<compile_context>
chip_gen: v7x
topology: tpu7x:2x2x1
jax: 0.10.0
libtpu: 0.0.40
codegen_flags: <defaults>
</compile_context>

<pallas_src>
import numpy as np
import jax
import jax.numpy as jnp
from jax.experimental import pallas as pl
from jax.experimental.pallas import tpu as pltpu

# ---- configuration (SMALL shapes consistent with MicroController.__init__) ----
NUM_ENC_SCALES = 4      # encoder input scales
OP_SIZE = 8             # number of operations
HIDDEN = 32             # LSTM hidden size
NUM_LSTM_LAYERS = 2
NUM_DEC_LAYERS = 3
NUM_CTX_LAYERS = 4
NEG_INF = -1e30


def build_head_schedule():
    """Head schedule in the exact order forward() visits the classifier heads.

    Returns a list of (head_kind, head_index, out_size).
    """
    sched = []
    # decoder connection heads: conn_fcs[2*l + i], out = num_enc_scales + l
    for l in range(NUM_DEC_LAYERS):
        for i in range(2):
            sched.append(("conn", 2 * l + i, NUM_ENC_SCALES + l))
    # ctx layer 0: one op head (linear_op)
    sched.append(("op", 0, OP_SIZE))
    # ctx layers 1..NUM_CTX_LAYERS-1: two position heads (ctx_fcs), two op heads
    for layer in range(1, NUM_CTX_LAYERS):
        pos_size = (layer + 1) * 3 - 4   # ctx_fcs built for l in 2..num_ctx_layers
        for i in range(2):
            sched.append(("ctx", 2 * (layer - 1) + i, pos_size))
        for i in range(2):
            sched.append(("op", 0, OP_SIZE))
    return sched


HEAD_SCHEDULE = build_head_schedule()
NUM_HEAD_STEPS = len(HEAD_SCHEDULE)                     # 19 for this config
MAX_OUT = max(s for _, _, s in HEAD_SCHEDULE)           # 8
TOTAL_LSTM_STEPS = NUM_ENC_SCALES + NUM_HEAD_STEPS      # 23


# ------------------------------- Pallas kernel -------------------------------
def controller_kernel(g_emb_ref, w_ref, b_ref, head_w_ref, head_b_ref,
                      head_onehot_ref, out_ref):
    H = HIDDEN

    # Hoist all parameters into values once (kernel is a single straight-line
    # unrolled block; this avoids re-emitting the same loads per step).
    w = [w_ref[l] for l in range(NUM_LSTM_LAYERS)]        # (2H, 4H), gate order i|f|o|g
    b = [b_ref[l] for l in range(NUM_LSTM_LAYERS)]        # (1, 4H), b_ih + b_hh pre-summed
    head_w_all = head_w_ref[...]                          # (H, S*MAX_OUT) lane-dense slab
    head_b_all = head_b_ref[...]                          # (S, MAX_OUT), -1e30 at pad lanes
    head_oh_all = head_onehot_ref[...]                    # (S, MAX_OUT) one-hot targets

    def lstm_step(x, state):
        """One time step through the stacked LSTM (PyTorch nn.LSTM semantics).

        Fused form: gates = [x, h] @ W_fused + b_fused, gate columns reordered
        on host to (i, f, o, g) so a single sigmoid covers the first 3H columns.
        """
        new_state = []
        inp = x
        for l in range(NUM_LSTM_LAYERS):
            h, c = state[l]
            xh = jnp.concatenate([inp, h], axis=1)                        # (1, 2H)
            gates = jnp.dot(xh, w[l], preferred_element_type=jnp.float32) + b[l]
            sig = jax.nn.sigmoid(gates[:, 0:3 * H])                       # i | f | o
            g_g = jnp.tanh(gates[:, 3 * H:4 * H])
            i_g = sig[:, 0:H]
            f_g = sig[:, H:2 * H]
            o_g = sig[:, 2 * H:3 * H]
            c = f_g * c + i_g * g_g
            h = o_g * jnp.tanh(c)
            new_state.append((h, c))
            inp = h
        return inp, new_state

    zeros = jnp.zeros((1, H), jnp.float32)
    state = [(zeros, zeros) for _ in range(NUM_LSTM_LAYERS)]
    x = g_emb_ref[...]                                                    # (1, H)

    ent_total = jnp.zeros((1, 1), jnp.float32)
    logp_total = jnp.zeros((1, 1), jnp.float32)

    # encoder warm-up steps (LSTM only, no heads)
    for _ in range(NUM_ENC_SCALES):
        x, state = lstm_step(x, state)

    # decoder / ctx steps, each followed by a classifier head
    for j in range(NUM_HEAD_STEPS):
        x, state = lstm_step(x, state)
        w_j = head_w_all[:, j * MAX_OUT:(j + 1) * MAX_OUT]                # (H, MAX_OUT)
        b_j = head_b_all[j:j + 1, :]                                      # (1, MAX_OUT)
        oh_j = head_oh_all[j:j + 1, :]                                    # (1, MAX_OUT)
        # Pad lanes: weight cols are 0 and bias is -1e30 -> logits = -1e30 exactly,
        # exp underflows to exact 0, so no mask / select is needed anywhere below.
        logits = jnp.dot(x, w_j, preferred_element_type=jnp.float32) + b_j
        m = jnp.max(logits, axis=-1, keepdims=True)
        e = jnp.exp(logits - m)
        s = jnp.sum(e, axis=-1, keepdims=True)
        p = e * pl.reciprocal(s, approx=True)
        logp = (logits - m) - jnp.log(s)
        ent_total = ent_total - jnp.sum(p * logp, axis=-1, keepdims=True)
        logp_total = logp_total + jnp.sum(oh_j * logp, axis=-1, keepdims=True)

    out_ref[...] = jnp.concatenate([ent_total, logp_total], axis=1)       # (1, 2)


# ------------------------------- host wrapper --------------------------------
def make_params(key):
    """Deterministic uniform(-0.1, 0.1) init mirroring reset_parameters().

    Returns canonical (PyTorch-layout, already transposed) parameters; the
    kernel-specific fused / lane-dense layout is produced by pack_params().
    """
    H = HIDDEN
    ks = list(jax.random.split(key, 16))
    u = lambda k, shape: jax.random.uniform(k, shape, jnp.float32, -0.1, 0.1)

    # LSTM weights (PyTorch layout: W_ih (4H, in), W_hh (4H, H)); pre-transposed.
    # Gate column order: i | f | g | o.
    w_ih_t = jnp.stack([u(ks[0], (H, 4 * H)), u(ks[1], (H, 4 * H))])      # (2, H, 4H)
    w_hh_t = jnp.stack([u(ks[2], (H, 4 * H)), u(ks[3], (H, 4 * H))])      # (2, H, 4H)
    b_ih = jnp.stack([u(ks[4], (1, 4 * H)), u(ks[5], (1, 4 * H))])        # (2, 1, 4H)
    b_hh = jnp.stack([u(ks[6], (1, 4 * H)), u(ks[7], (1, 4 * H))])        # (2, 1, 4H)
    g_emb = u(ks[8], (1, H))

    # Classifier heads: linear_op, conn_fcs, ctx_fcs -- generated deterministically.
    kop, kconn, kctx = jax.random.split(ks[9], 3)
    op_w = u(kop, (H, OP_SIZE))
    op_b = u(jax.random.fold_in(kop, 1), (1, OP_SIZE))

    conn_heads = []
    for idx in range(2 * NUM_DEC_LAYERS):
        size = NUM_ENC_SCALES + idx // 2
        kk = jax.random.fold_in(kconn, idx)
        conn_heads.append((u(kk, (H, size)), u(jax.random.fold_in(kk, 1), (1, size))))

    ctx_heads = []
    for idx in range(2 * (NUM_CTX_LAYERS - 1)):
        size = (idx // 2 + 2) * 3 - 4
        kk = jax.random.fold_in(kctx, idx)
        ctx_heads.append((u(kk, (H, size)), u(jax.random.fold_in(kk, 1), (1, size))))

    # Stack heads in step order, right-padded to MAX_OUT, plus validity masks.
    head_w_t, head_b, head_mask = [], [], []
    for kind, hidx, size in HEAD_SCHEDULE:
        if kind == "op":
            wh, bh = op_w, op_b
        elif kind == "conn":
            wh, bh = conn_heads[hidx]
        else:
            wh, bh = ctx_heads[hidx]
        head_w_t.append(jnp.pad(wh, ((0, 0), (0, MAX_OUT - size))))
        head_b.append(jnp.pad(bh, ((0, 0), (0, MAX_OUT - size))))
        head_mask.append(jnp.pad(jnp.ones((1, size), jnp.float32),
                                 ((0, 0), (0, MAX_OUT - size))))
    head_w_t = jnp.stack(head_w_t)       # (S, H, MAX_OUT)
    head_b = jnp.stack(head_b)           # (S, 1, MAX_OUT)
    head_mask = jnp.stack(head_mask)     # (S, 1, MAX_OUT)
    return dict(g_emb=g_emb, w_ih_t=w_ih_t, w_hh_t=w_hh_t, b_ih=b_ih, b_hh=b_hh,
                head_w_t=head_w_t, head_b=head_b, head_mask=head_mask)


def pack_params(params):
    """Host-side repack into the kernel's fused / lane-dense layout."""
    H = HIDDEN
    # Reorder gate columns i|f|g|o -> i|f|o|g so one sigmoid covers [:, :3H].
    perm = np.concatenate([np.arange(0, 2 * H),
                           np.arange(3 * H, 4 * H),
                           np.arange(2 * H, 3 * H)])
    w_ih = params["w_ih_t"][:, :, perm]                                   # (L, H, 4H)
    w_hh = params["w_hh_t"][:, :, perm]                                   # (L, H, 4H)
    w_fused = jnp.concatenate([w_ih, w_hh], axis=1)                       # (L, 2H, 4H)
    b_fused = (params["b_ih"] + params["b_hh"])[:, :, perm]               # (L, 1, 4H)

    # Heads: lane-dense weight slab (H, S*MAX_OUT); mask folded into the bias.
    head_w_slab = jnp.transpose(params["head_w_t"], (1, 0, 2)).reshape(
        H, NUM_HEAD_STEPS * MAX_OUT)                                      # (H, S*MAX_OUT)
    head_bias = jnp.where(params["head_mask"][:, 0, :] > 0,
                          params["head_b"][:, 0, :], NEG_INF)             # (S, MAX_OUT)
    return dict(g_emb=params["g_emb"], w_fused=w_fused, b_fused=b_fused,
                head_w_slab=head_w_slab, head_bias=head_bias)


def make_action_onehot():
    """Deterministic action (the 'config' passed to evaluate()), one-hot encoded."""
    onehots = np.zeros((NUM_HEAD_STEPS, MAX_OUT), np.float32)
    for j, (_, _, size) in enumerate(HEAD_SCHEDULE):
        onehots[j, j % size] = 1.0
    return jnp.asarray(onehots)          # (S, MAX_OUT)


@jax.jit
def micro_controller_evaluate(packed, head_onehot):
    vmem = pl.BlockSpec(memory_space=pltpu.MemorySpace.VMEM)
    out = pl.pallas_call(
        controller_kernel,
        out_shape=jax.ShapeDtypeStruct((1, 2), jnp.float32),
        in_specs=[vmem] * 6,
        out_specs=vmem,
    )(packed["g_emb"], packed["w_fused"], packed["b_fused"],
      packed["head_w_slab"], packed["head_bias"], head_onehot)
    return out[0, 0], out[0, 1]


# ------------------------- pure-JAX reference (checking) ---------------------
def reference_evaluate(params, head_onehot):
    """Independent reference using the canonical (un-fused, un-reordered) params."""
    H = HIDDEN
    w_ih_t, w_hh_t = params["w_ih_t"], params["w_hh_t"]
    b_ih, b_hh = params["b_ih"], params["b_hh"]

    def lstm_step(x, state):
        new_state, inp = [], x
        for l in range(NUM_LSTM_LAYERS):
            h, c = state[l]
            gates = inp @ w_ih_t[l] + h @ w_hh_t[l] + b_ih[l] + b_hh[l]
            i_g = jax.nn.sigmoid(gates[:, 0:H])
            f_g = jax.nn.sigmoid(gates[:, H:2 * H])
            g_g = jnp.tanh(gates[:, 2 * H:3 * H])
            o_g = jax.nn.sigmoid(gates[:, 3 * H:4 * H])
            c = f_g * c + i_g * g_g
            h = o_g * jnp.tanh(c)
            new_state.append((h, c))
            inp = h
        return inp, new_state

    zeros = jnp.zeros((1, H), jnp.float32)
    state = [(zeros, zeros) for _ in range(NUM_LSTM_LAYERS)]
    x = params["g_emb"]
    ent_total = logp_total = jnp.float32(0.0)
    for _ in range(NUM_ENC_SCALES):
        x, state = lstm_step(x, state)
    for j in range(NUM_HEAD_STEPS):
        x, state = lstm_step(x, state)
        logits = x @ params["head_w_t"][j] + params["head_b"][j]
        mask = params["head_mask"][j]
        logits = jnp.where(mask > 0, logits, NEG_INF)
        lsm = jax.nn.log_softmax(logits, axis=-1)
        p = jax.nn.softmax(logits, axis=-1)
        ent_total += -jnp.sum(jnp.where(mask > 0, p * lsm, 0.0))
        logp_total += jnp.sum(head_onehot[j] * lsm)
    return ent_total, logp_total


# ----------------------------------- main ------------------------------------
if __name__ == "__main__":
    # TODO(synk): the sampling path (forward(config=None), torch.multinomial) is
    # data-dependent discrete sampling and is not implemented in the kernel.
    key = jax.random.PRNGKey(0)
    params = make_params(key)
    packed = pack_params(params)
    head_onehot = make_action_onehot()

    ent, logp = micro_controller_evaluate(packed, head_onehot)
    ent, logp = jax.block_until_ready((ent, logp))

    ent_ref, logp_ref = reference_evaluate(params, head_onehot)
    np.testing.assert_allclose(np.asarray(ent), np.asarray(ent_ref), rtol=5e-3, atol=5e-3)
    np.testing.assert_allclose(np.asarray(logp), np.asarray(logp_ref), rtol=5e-3, atol=5e-3)

    print("KERNEL_OK")
</pallas_src>

<mosaic_0001>
module attributes {stable_mosaic.version = 11 : i64} {
  func.func @controller_kernel(%arg0: memref<1x32xf32, #tpu.memory_space<vmem>>, %arg1: memref<2x64x128xf32, #tpu.memory_space<vmem>>, %arg2: memref<2x1x128xf32, #tpu.memory_space<vmem>>, %arg3: memref<32x152xf32, #tpu.memory_space<vmem>>, %arg4: memref<19x8xf32, #tpu.memory_space<vmem>>, %arg5: memref<19x8xf32, #tpu.memory_space<vmem>>, %arg6: memref<1x2xf32, #tpu.memory_space<vmem>>) attributes {dimension_semantics = [], scalar_prefetch = 0 : i64, scratch_operands = 0 : i64, tpu.core_type = #tpu.core_type<tc>} {
    %c0 = arith.constant 0 : index
    %c0_0 = arith.constant 0 : index
    %c0_1 = arith.constant 0 : index
    %0 = vector.load %arg1[%c0, %c0_0, %c0_1] : memref<2x64x128xf32, #tpu.memory_space<vmem>>, vector<1x64x128xf32>
    %1 = vector.shape_cast %0 : vector<1x64x128xf32> to vector<64x128xf32>
    %c1 = arith.constant 1 : index
    %c0_2 = arith.constant 0 : index
    %c0_3 = arith.constant 0 : index
    %2 = vector.load %arg1[%c1, %c0_2, %c0_3] : memref<2x64x128xf32, #tpu.memory_space<vmem>>, vector<1x64x128xf32>
    %3 = vector.shape_cast %2 : vector<1x64x128xf32> to vector<64x128xf32>
    %c0_4 = arith.constant 0 : index
    %c0_5 = arith.constant 0 : index
    %c0_6 = arith.constant 0 : index
    %4 = vector.load %arg2[%c0_4, %c0_5, %c0_6] : memref<2x1x128xf32, #tpu.memory_space<vmem>>, vector<1x1x128xf32>
    %5 = vector.shape_cast %4 : vector<1x1x128xf32> to vector<1x128xf32>
    %c1_7 = arith.constant 1 : index
    %c0_8 = arith.constant 0 : index
    %c0_9 = arith.constant 0 : index
    %6 = vector.load %arg2[%c1_7, %c0_8, %c0_9] : memref<2x1x128xf32, #tpu.memory_space<vmem>>, vector<1x1x128xf32>
    %7 = vector.shape_cast %6 : vector<1x1x128xf32> to vector<1x128xf32>
    %c0_10 = arith.constant 0 : index
    %c0_11 = arith.constant 0 : index
    %8 = vector.load %arg3[%c0_10, %c0_11] : memref<32x152xf32, #tpu.memory_space<vmem>>, vector<32x152xf32>
    %c0_12 = arith.constant 0 : index
    %c0_13 = arith.constant 0 : index
    %9 = vector.load %arg4[%c0_12, %c0_13] : memref<19x8xf32, #tpu.memory_space<vmem>>, vector<19x8xf32>
    %c0_14 = arith.constant 0 : index
    %c0_15 = arith.constant 0 : index
    %10 = vector.load %arg5[%c0_14, %c0_15] : memref<19x8xf32, #tpu.memory_space<vmem>>, vector<19x8xf32>
    %cst = arith.constant 0.000000e+00 : f32
    %11 = vector.broadcast %cst : f32 to vector<1x32xf32>
    %c0_16 = arith.constant 0 : index
    %c0_17 = arith.constant 0 : index
    %12 = vector.load %arg0[%c0_16, %c0_17] : memref<1x32xf32, #tpu.memory_space<vmem>>, vector<1x32xf32>
    %cst_18 = arith.constant 0.000000e+00 : f32
    %13 = vector.broadcast %cst_18 : f32 to vector<1x1xf32>
    %cst_19 = arith.constant 0.000000e+00 : f32
    %14 = vector.broadcast %cst_19 : f32 to vector<1x1xf32>
    %15 = tpu.concatenate %12, %11 in 1 : vector<1x32xf32>, vector<1x32xf32> -> vector<1x64xf32>
    %cst_20 = arith.constant dense<0.000000e+00> : vector<1x128xf32>
    %16 = tpu.matmul %15, %1, %cst_20 {dimension_numbers = #tpu.dot_dimension_numbers<[1], [0], [0], [1], [0, 0, 1, 1], [], []>} : vector<1x64xf32>, vector<64x128xf32>, vector<1x128xf32> -> vector<1x128xf32>
    %17 = arith.addf %16, %5 : vector<1x128xf32>
    %18 = vector.extract_strided_slice %17 {offsets = [0, 0], sizes = [1, 96], strides = [1, 1]} : vector<1x128xf32> to vector<1x96xf32>
    %19 = arith.negf %18 : vector<1x96xf32>
    %20 = math.exp %19 : vector<1x96xf32>
    %cst_21 = arith.constant 1.000000e+00 : f32
    %21 = vector.broadcast %cst_21 : f32 to vector<1x96xf32>
    %22 = arith.addf %21, %20 : vector<1x96xf32>
    %23 = arith.divf %21, %22 : vector<1x96xf32>
    %24 = vector.extract_strided_slice %17 {offsets = [0, 96], sizes = [1, 32], strides = [1, 1]} : vector<1x128xf32> to vector<1x32xf32>
    %25 = math.tanh %24 : vector<1x32xf32>
    %26 = vector.extract_strided_slice %23 {offsets = [0, 0], sizes = [1, 32], strides = [1, 1]} : vector<1x96xf32> to vector<1x32xf32>
    %27 = vector.extract_strided_slice %23 {offsets = [0, 32], sizes = [1, 32], strides = [1, 1]} : vector<1x96xf32> to vector<1x32xf32>
    %28 = vector.extract_strided_slice %23 {offsets = [0, 64], sizes = [1, 32], strides = [1, 1]} : vector<1x96xf32> to vector<1x32xf32>
    %29 = arith.mulf %27, %11 : vector<1x32xf32>
    %30 = arith.mulf %26, %25 : vector<1x32xf32>
    %31 = arith.addf %29, %30 : vector<1x32xf32>
    %32 = math.tanh %31 : vector<1x32xf32>
    %33 = arith.mulf %28, %32 : vector<1x32xf32>
    %34 = tpu.concatenate %33, %11 in 1 : vector<1x32xf32>, vector<1x32xf32> -> vector<1x64xf32>
    %cst_22 = arith.constant dense<0.000000e+00> : vector<1x128xf32>
    %35 = tpu.matmul %34, %3, %cst_22 {dimension_numbers = #tpu.dot_dimension_numbers<[1], [0], [0], [1], [0, 0, 1, 1], [], []>} : vector<1x64xf32>, vector<64x128xf32>, vector<1x128xf32> -> vector<1x128xf32>
    %36 = arith.addf %35, %7 : vector<1x128xf32>
    %37 = vector.extract_strided_slice %36 {offsets = [0, 0], sizes = [1, 96], strides = [1, 1]} : vector<1x128xf32> to vector<1x96xf32>
    %38 = arith.negf %37 : vector<1x96xf32>
    %39 = math.exp %38 : vector<1x96xf32>
    %cst_23 = arith.constant 1.000000e+00 : f32
    %40 = vector.broadcast %cst_23 : f32 to vector<1x96xf32>
    %41 = arith.addf %40, %39 : vector<1x96xf32>
    %42 = arith.divf %40, %41 : vector<1x96xf32>
    %43 = vector.extract_strided_slice %36 {offsets = [0, 96], sizes = [1, 32], strides = [1, 1]} : vector<1x128xf32> to vector<1x32xf32>
    %44 = math.tanh %43 : vector<1x32xf32>
    %45 = vector.extract_strided_slice %42 {offsets = [0, 0], sizes = [1, 32], strides = [1, 1]} : vector<1x96xf32> to vector<1x32xf32>
    %46 = vector.extract_strided_slice %42 {offsets = [0, 32], sizes = [1, 32], strides = [1, 1]} : vector<1x96xf32> to vector<1x32xf32>
    %47 = vector.extract_strided_slice %42 {offsets = [0, 64], sizes = [1, 32], strides = [1, 1]} : vector<1x96xf32> to vector<1x32xf32>
    %48 = arith.mulf %46, %11 : vector<1x32xf32>
    %49 = arith.mulf %45, %44 : vector<1x32xf32>
    %50 = arith.addf %48, %49 : vector<1x32xf32>
    %51 = math.tanh %50 : vector<1x32xf32>
    %52 = arith.mulf %47, %51 : vector<1x32xf32>
    %53 = tpu.concatenate %52, %33 in 1 : vector<1x32xf32>, vector<1x32xf32> -> vector<1x64xf32>
    %cst_24 = arith.constant dense<0.000000e+00> : vector<1x128xf32>
    %54 = tpu.matmul %53, %1, %cst_24 {dimension_numbers = #tpu.dot_dimension_numbers<[1], [0], [0], [1], [0, 0, 1, 1], [], []>} : vector<1x64xf32>, vector<64x128xf32>, vector<1x128xf32> -> vector<1x128xf32>
    %55 = arith.addf %54, %5 : vector<1x128xf32>
    %56 = vector.extract_strided_slice %55 {offsets = [0, 0], sizes = [1, 96], strides = [1, 1]} : vector<1x128xf32> to vector<1x96xf32>
    %57 = arith.negf %56 : vector<1x96xf32>
    %58 = math.exp %57 : vector<1x96xf32>
    %cst_25 = arith.constant 1.000000e+00 : f32
    %59 = vector.broadcast %cst_25 : f32 to vector<1x96xf32>
    %60 = arith.addf %59, %58 : vector<1x96xf32>
    %61 = arith.divf %59, %60 : vector<1x96xf32>
    %62 = vector.extract_strided_slice %55 {offsets = [0, 96], sizes = [1, 32], strides = [1, 1]} : vector<1x128xf32> to vector<1x32xf32>
    %63 = math.tanh %62 : vector<1x32xf32>
    %64 = vector.extract_strided_slice %61 {offsets = [0, 0], sizes = [1, 32], strides = [1, 1]} : vector<1x96xf32> to vector<1x32xf32>
    %65 = vector.extract_strided_slice %61 {offsets = [0, 32], sizes = [1, 32], strides = [1, 1]} : vector<1x96xf32> to vector<1x32xf32>
    %66 = vector.extract_strided_slice %61 {offsets = [0, 64], sizes = [1, 32], strides = [1, 1]} : vector<1x96xf32> to vector<1x32xf32>
    %67 = arith.mulf %65, %31 : vector<1x32xf32>
    %68 = arith.mulf %64, %63 : vector<1x32xf32>
    %69 = arith.addf %67, %68 : vector<1x32xf32>
    %70 = math.tanh %69 : vector<1x32xf32>
    %71 = arith.mulf %66, %70 : vector<1x32xf32>
    %72 = tpu.concatenate %71, %52 in 1 : vector<1x32xf32>, vector<1x32xf32> -> vector<1x64xf32>
    %cst_26 = arith.constant dense<0.000000e+00> : vector<1x128xf32>
    %73 = tpu.matmul %72, %3, %cst_26 {dimension_numbers = #tpu.dot_dimension_numbers<[1], [0], [0], [1], [0, 0, 1, 1], [], []>} : vector<1x64xf32>, vector<64x128xf32>, vector<1x128xf32> -> vector<1x128xf32>
    %74 = arith.addf %73, %7 : vector<1x128xf32>
    %75 = vector.extract_strided_slice %74 {offsets = [0, 0], sizes = [1, 96], strides = [1, 1]} : vector<1x128xf32> to vector<1x96xf32>
    %76 = arith.negf %75 : vector<1x96xf32>
    %77 = math.exp %76 : vector<1x96xf32>
    %cst_27 = arith.constant 1.000000e+00 : f32
    %78 = vector.broadcast %cst_27 : f32 to vector<1x96xf32>
    %79 = arith.addf %78, %77 : vector<1x96xf32>
    %80 = arith.divf %78, %79 : vector<1x96xf32>
    %81 = vector.extract_strided_slice %74 {offsets = [0, 96], sizes = [1, 32], strides = [1, 1]} : vector<1x128xf32> to vector<1x32xf32>
    %82 = math.tanh %81 : vector<1x32xf32>
    %83 = vector.extract_strided_slice %80 {offsets = [0, 0], sizes = [1, 32], strides = [1, 1]} : vector<1x96xf32> to vector<1x32xf32>
    %84 = vector.extract_strided_slice %80 {offsets = [0, 32], sizes = [1, 32], strides = [1, 1]} : vector<1x96xf32> to vector<1x32xf32>
    %85 = vector.extract_strided_slice %80 {offsets = [0, 64], sizes = [1, 32], strides = [1, 1]} : vector<1x96xf32> to vector<1x32xf32>
    %86 = arith.mulf %84, %50 : vector<1x32xf32>
    %87 = arith.mulf %83, %82 : vector<1x32xf32>
    %88 = arith.addf %86, %87 : vector<1x32xf32>
    %89 = math.tanh %88 : vector<1x32xf32>
    %90 = arith.mulf %85, %89 : vector<1x32xf32>
    %91 = tpu.concatenate %90, %71 in 1 : vector<1x32xf32>, vector<1x32xf32> -> vector<1x64xf32>
    %cst_28 = arith.constant dense<0.000000e+00> : vector<1x128xf32>
    %92 = tpu.matmul %91, %1, %cst_28 {dimension_numbers = #tpu.dot_dimension_numbers<[1], [0], [0], [1], [0, 0, 1, 1], [], []>} : vector<1x64xf32>, vector<64x128xf32>, vector<1x128xf32> -> vector<1x128xf32>
    %93 = arith.addf %92, %5 : vector<1x128xf32>
    %94 = vector.extract_strided_slice %93 {offsets = [0, 0], sizes = [1, 96], strides = [1, 1]} : vector<1x128xf32> to vector<1x96xf32>
    %95 = arith.negf %94 : vector<1x96xf32>
    %96 = math.exp %95 : vector<1x96xf32>
    %cst_29 = arith.constant 1.000000e+00 : f32
    %97 = vector.broadcast %cst_29 : f32 to vector<1x96xf32>
    %98 = arith.addf %97, %96 : vector<1x96xf32>
    %99 = arith.divf %97, %98 : vector<1x96xf32>
    %100 = vector.extract_strided_slice %93 {offsets = [0, 96], sizes = [1, 32], strides = [1, 1]} : vector<1x128xf32> to vector<1x32xf32>
    %101 = math.tanh %100 : vector<1x32xf32>
    %102 = vector.extract_strided_slice %99 {offsets = [0, 0], sizes = [1, 32], strides = [1, 1]} : vector<1x96xf32> to vector<1x32xf32>
    %103 = vector.extract_strided_slice %99 {offsets = [0, 32], sizes = [1, 32], strides = [1, 1]} : vector<1x96xf32> to vector<1x32xf32>
    %104 = vector.extract_strided_slice %99 {offsets = [0, 64], sizes = [1, 32], strides = [1, 1]} : vector<1x96xf32> to vector<1x32xf32>
    %105 = arith.mulf %103, %69 : vector<1x32xf32>
    %106 = arith.mulf %102, %101 : vector<1x32xf32>
    %107 = arith.addf %105, %106 : vector<1x32xf32>
    %108 = math.tanh %107 : vector<1x32xf32>
    %109 = arith.mulf %104, %108 : vector<1x32xf32>
    %110 = tpu.concatenate %109, %90 in 1 : vector<1x32xf32>, vector<1x32xf32> -> vector<1x64xf32>
    %cst_30 = arith.constant dense<0.000000e+00> : vector<1x128xf32>
    %111 = tpu.matmul %110, %3, %cst_30 {dimension_numbers = #tpu.dot_dimension_numbers<[1], [0], [0], [1], [0, 0, 1, 1], [], []>} : vector<1x64xf32>, vector<64x128xf32>, vector<1x128xf32> -> vector<1x128xf32>
    %112 = arith.addf %111, %7 : vector<1x128xf32>
    %113 = vector.extract_strided_slice %112 {offsets = [0, 0], sizes = [1, 96], strides = [1, 1]} : vector<1x128xf32> to vector<1x96xf32>
    %114 = arith.negf %113 : vector<1x96xf32>
    %115 = math.exp %114 : vector<1x96xf32>
    %cst_31 = arith.constant 1.000000e+00 : f32
    %116 = vector.broadcast %cst_31 : f32 to vector<1x96xf32>
    %117 = arith.addf %116, %115 : vector<1x96xf32>
    %118 = arith.divf %116, %117 : vector<1x96xf32>
    %119 = vector.extract_strided_slice %112 {offsets = [0, 96], sizes = [1, 32], strides = [1, 1]} : vector<1x128xf32> to vector<1x32xf32>
    %120 = math.tanh %119 : vector<1x32xf32>
    %121 = vector.extract_strided_slice %118 {offsets = [0, 0], sizes = [1, 32], strides = [1, 1]} : vector<1x96xf32> to vector<1x32xf32>
    %122 = vector.extract_strided_slice %118 {offsets = [0, 32], sizes = [1, 32], strides = [1, 1]} : vector<1x96xf32> to vector<1x32xf32>
    %123 = vector.extract_strided_slice %118 {offsets = [0, 64], sizes = [1, 32], strides = [1, 1]} : vector<1x96xf32> to vector<1x32xf32>
    %124 = arith.mulf %122, %88 : vector<1x32xf32>
    %125 = arith.mulf %121, %120 : vector<1x32xf32>
    %126 = arith.addf %124, %125 : vector<1x32xf32>
    %127 = math.tanh %126 : vector<1x32xf32>
    %128 = arith.mulf %123, %127 : vector<1x32xf32>
    %129 = tpu.concatenate %128, %109 in 1 : vector<1x32xf32>, vector<1x32xf32> -> vector<1x64xf32>
    %cst_32 = arith.constant dense<0.000000e+00> : vector<1x128xf32>
    %130 = tpu.matmul %129, %1, %cst_32 {dimension_numbers = #tpu.dot_dimension_numbers<[1], [0], [0], [1], [0, 0, 1, 1], [], []>} : vector<1x64xf32>, vector<64x128xf32>, vector<1x128xf32> -> vector<1x128xf32>
    %131 = arith.addf %130, %5 : vector<1x128xf32>
    %132 = vector.extract_strided_slice %131 {offsets = [0, 0], sizes = [1, 96], strides = [1, 1]} : vector<1x128xf32> to vector<1x96xf32>
    %133 = arith.negf %132 : vector<1x96xf32>
    %134 = math.exp %133 : vector<1x96xf32>
    %cst_33 = arith.constant 1.000000e+00 : f32
    %135 = vector.broadcast %cst_33 : f32 to vector<1x96xf32>
    %136 = arith.addf %135, %134 : vector<1x96xf32>
    %137 = arith.divf %135, %136 : vector<1x96xf32>
    %138 = vector.extract_strided_slice %131 {offsets = [0, 96], sizes = [1, 32], strides = [1, 1]} : vector<1x128xf32> to vector<1x32xf32>
    %139 = math.tanh %138 : vector<1x32xf32>
    %140 = vector.extract_strided_slice %137 {offsets = [0, 0], sizes = [1, 32], strides = [1, 1]} : vector<1x96xf32> to vector<1x32xf32>
    %141 = vector.extract_strided_slice %137 {offsets = [0, 32], sizes = [1, 32], strides = [1, 1]} : vector<1x96xf32> to vector<1x32xf32>
    %142 = vector.extract_strided_slice %137 {offsets = [0, 64], sizes = [1, 32], strides = [1, 1]} : vector<1x96xf32> to vector<1x32xf32>
    %143 = arith.mulf %141, %107 : vector<1x32xf32>
    %144 = arith.mulf %140, %139 : vector<1x32xf32>
    %145 = arith.addf %143, %144 : vector<1x32xf32>
    %146 = math.tanh %145 : vector<1x32xf32>
    %147 = arith.mulf %142, %146 : vector<1x32xf32>
    %148 = tpu.concatenate %147, %128 in 1 : vector<1x32xf32>, vector<1x32xf32> -> vector<1x64xf32>
    %cst_34 = arith.constant dense<0.000000e+00> : vector<1x128xf32>
    %149 = tpu.matmul %148, %3, %cst_34 {dimension_numbers = #tpu.dot_dimension_numbers<[1], [0], [0], [1], [0, 0, 1, 1], [], []>} : vector<1x64xf32>, vector<64x128xf32>, vector<1x128xf32> -> vector<1x128xf32>
    %150 = arith.addf %149, %7 : vector<1x128xf32>
    %151 = vector.extract_strided_slice %150 {offsets = [0, 0], sizes = [1, 96], strides = [1, 1]} : vector<1x128xf32> to vector<1x96xf32>
    %152 = arith.negf %151 : vector<1x96xf32>
    %153 = math.exp %152 : vector<1x96xf32>
    %cst_35 = arith.constant 1.000000e+00 : f32
    %154 = vector.broadcast %cst_35 : f32 to vector<1x96xf32>
    %155 = arith.addf %154, %153 : vector<1x96xf32>
    %156 = arith.divf %154, %155 : vector<1x96xf32>
    %157 = vector.extract_strided_slice %150 {offsets = [0, 96], sizes = [1, 32], strides = [1, 1]} : vector<1x128xf32> to vector<1x32xf32>
    %158 = math.tanh %157 : vector<1x32xf32>
    %159 = vector.extract_strided_slice %156 {offsets = [0, 0], sizes = [1, 32], strides = [1, 1]} : vector<1x96xf32> to vector<1x32xf32>
    %160 = vector.extract_strided_slice %156 {offsets = [0, 32], sizes = [1, 32], strides = [1, 1]} : vector<1x96xf32> to vector<1x32xf32>
    %161 = vector.extract_strided_slice %156 {offsets = [0, 64], sizes = [1, 32], strides = [1, 1]} : vector<1x96xf32> to vector<1x32xf32>
    %162 = arith.mulf %160, %126 : vector<1x32xf32>
    %163 = arith.mulf %159, %158 : vector<1x32xf32>
    %164 = arith.addf %162, %163 : vector<1x32xf32>
    %165 = math.tanh %164 : vector<1x32xf32>
    %166 = arith.mulf %161, %165 : vector<1x32xf32>
    %167 = tpu.concatenate %166, %147 in 1 : vector<1x32xf32>, vector<1x32xf32> -> vector<1x64xf32>
    %cst_36 = arith.constant dense<0.000000e+00> : vector<1x128xf32>
    %168 = tpu.matmul %167, %1, %cst_36 {dimension_numbers = #tpu.dot_dimension_numbers<[1], [0], [0], [1], [0, 0, 1, 1], [], []>} : vector<1x64xf32>, vector<64x128xf32>, vector<1x128xf32> -> vector<1x128xf32>
    %169 = arith.addf %168, %5 : vector<1x128xf32>
    %170 = vector.extract_strided_slice %169 {offsets = [0, 0], sizes = [1, 96], strides = [1, 1]} : vector<1x128xf32> to vector<1x96xf32>
    %171 = arith.negf %170 : vector<1x96xf32>
    %172 = math.exp %171 : vector<1x96xf32>
    %cst_37 = arith.constant 1.000000e+00 : f32
    %173 = vector.broadcast %cst_37 : f32 to vector<1x96xf32>
    %174 = arith.addf %173, %172 : vector<1x96xf32>
    %175 = arith.divf %173, %174 : vector<1x96xf32>
    %176 = vector.extract_strided_slice %169 {offsets = [0, 96], sizes = [1, 32], strides = [1, 1]} : vector<1x128xf32> to vector<1x32xf32>
    %177 = math.tanh %176 : vector<1x32xf32>
    %178 = vector.extract_strided_slice %175 {offsets = [0, 0], sizes = [1, 32], strides = [1, 1]} : vector<1x96xf32> to vector<1x32xf32>
    %179 = vector.extract_strided_slice %175 {offsets = [0, 32], sizes = [1, 32], strides = [1, 1]} : vector<1x96xf32> to vector<1x32xf32>
    %180 = vector.extract_strided_slice %175 {offsets = [0, 64], sizes = [1, 32], strides = [1, 1]} : vector<1x96xf32> to vector<1x32xf32>
    %181 = arith.mulf %179, %145 : vector<1x32xf32>
    %182 = arith.mulf %178, %177 : vector<1x32xf32>
    %183 = arith.addf %181, %182 : vector<1x32xf32>
    %184 = math.tanh %183 : vector<1x32xf32>
    %185 = arith.mulf %180, %184 : vector<1x32xf32>
    %186 = tpu.concatenate %185, %166 in 1 : vector<1x32xf32>, vector<1x32xf32> -> vector<1x64xf32>
    %cst_38 = arith.constant dense<0.000000e+00> : vector<1x128xf32>
    %187 = tpu.matmul %186, %3, %cst_38 {dimension_numbers = #tpu.dot_dimension_numbers<[1], [0], [0], [1], [0, 0, 1, 1], [], []>} : vector<1x64xf32>, vector<64x128xf32>, vector<1x128xf32> -> vector<1x128xf32>
    %188 = arith.addf %187, %7 : vector<1x128xf32>
    %189 = vector.extract_strided_slice %188 {offsets = [0, 0], sizes = [1, 96], strides = [1, 1]} : vector<1x128xf32> to vector<1x96xf32>
    %190 = arith.negf %189 : vector<1x96xf32>
    %191 = math.exp %190 : vector<1x96xf32>
    %cst_39 = arith.constant 1.000000e+00 : f32
    %192 = vector.broadcast %cst_39 : f32 to vector<1x96xf32>
    %193 = arith.addf %192, %191 : vector<1x96xf32>
    %194 = arith.divf %192, %193 : vector<1x96xf32>
    %195 = vector.extract_strided_slice %188 {offsets = [0, 96], sizes = [1, 32], strides = [1, 1]} : vector<1x128xf32> to vector<1x32xf32>
    %196 = math.tanh %195 : vector<1x32xf32>
    %197 = vector.extract_strided_slice %194 {offsets = [0, 0], sizes = [1, 32], strides = [1, 1]} : vector<1x96xf32> to vector<1x32xf32>
    %198 = vector.extract_strided_slice %194 {offsets = [0, 32], sizes = [1, 32], strides = [1, 1]} : vector<1x96xf32> to vector<1x32xf32>
    %199 = vector.extract_strided_slice %194 {offsets = [0, 64], sizes = [1, 32], strides = [1, 1]} : vector<1x96xf32> to vector<1x32xf32>
    %200 = arith.mulf %198, %164 : vector<1x32xf32>
    %201 = arith.mulf %197, %196 : vector<1x32xf32>
    %202 = arith.addf %200, %201 : vector<1x32xf32>
    %203 = math.tanh %202 : vector<1x32xf32>
    %204 = arith.mulf %199, %203 : vector<1x32xf32>
    %205 = vector.extract_strided_slice %8 {offsets = [0, 0], sizes = [32, 8], strides = [1, 1]} : vector<32x152xf32> to vector<32x8xf32>
    %206 = vector.extract_strided_slice %9 {offsets = [0, 0], sizes = [1, 8], strides = [1, 1]} : vector<19x8xf32> to vector<1x8xf32>
    %207 = vector.extract_strided_slice %10 {offsets = [0, 0], sizes = [1, 8], strides = [1, 1]} : vector<19x8xf32> to vector<1x8xf32>
    %cst_40 = arith.constant dense<0.000000e+00> : vector<1x8xf32>
    %208 = tpu.matmul %204, %205, %cst_40 {dimension_numbers = #tpu.dot_dimension_numbers<[1], [0], [0], [1], [0, 0, 1, 1], [], []>} : vector<1x32xf32>, vector<32x8xf32>, vector<1x8xf32> -> vector<1x8xf32>
    %209 = arith.addf %208, %206 : vector<1x8xf32>
    %cst_41 = arith.constant dense<0xFF800000> : vector<1xf32>
    %210 = vector.multi_reduction <maximumf>, %209, %cst_41 [1] : vector<1x8xf32> to vector<1xf32>
    %211 = vector.shape_cast %210 : vector<1xf32> to vector<1x1xf32>
    %212 = vector.broadcast %211 : vector<1x1xf32> to vector<1x8xf32>
    %213 = arith.subf %209, %212 : vector<1x8xf32>
    %214 = math.exp %213 : vector<1x8xf32>
    %cst_42 = arith.constant dense<0.000000e+00> : vector<1xf32>
    %215 = vector.multi_reduction <add>, %214, %cst_42 [1] : vector<1x8xf32> to vector<1xf32>
    %216 = vector.shape_cast %215 : vector<1xf32> to vector<1x1xf32>
    %217 = tpu.reciprocal %216 {approx = true} : vector<1x1xf32> -> vector<1x1xf32>
    %218 = vector.broadcast %217 : vector<1x1xf32> to vector<1x8xf32>
    %219 = arith.mulf %214, %218 : vector<1x8xf32>
    %220 = vector.broadcast %211 : vector<1x1xf32> to vector<1x8xf32>
    %221 = arith.subf %209, %220 : vector<1x8xf32>
    %222 = math.log %216 : vector<1x1xf32>
    %223 = vector.broadcast %222 : vector<1x1xf32> to vector<1x8xf32>
    %224 = arith.subf %221, %223 : vector<1x8xf32>
    %225 = arith.mulf %219, %224 : vector<1x8xf32>
    %cst_43 = arith.constant dense<0.000000e+00> : vector<1xf32>
    %226 = vector.multi_reduction <add>, %225, %cst_43 [1] : vector<1x8xf32> to vector<1xf32>
    %227 = vector.shape_cast %226 : vector<1xf32> to vector<1x1xf32>
    %228 = arith.subf %13, %227 : vector<1x1xf32>
    %229 = arith.mulf %207, %224 : vector<1x8xf32>
    %cst_44 = arith.constant dense<0.000000e+00> : vector<1xf32>
    %230 = vector.multi_reduction <add>, %229, %cst_44 [1] : vector<1x8xf32> to vector<1xf32>
    %231 = vector.shape_cast %230 : vector<1xf32> to vector<1x1xf32>
    %232 = arith.addf %14, %231 : vector<1x1xf32>
    %233 = tpu.concatenate %204, %185 in 1 : vector<1x32xf32>, vector<1x32xf32> -> vector<1x64xf32>
    %cst_45 = arith.constant dense<0.000000e+00> : vector<1x128xf32>
    %234 = tpu.matmul %233, %1, %cst_45 {dimension_numbers = #tpu.dot_dimension_numbers<[1], [0], [0], [1], [0, 0, 1, 1], [], []>} : vector<1x64xf32>, vector<64x128xf32>, vector<1x128xf32> -> vector<1x128xf32>
    %235 = arith.addf %234, %5 : vector<1x128xf32>
    %236 = vector.extract_strided_slice %235 {offsets = [0, 0], sizes = [1, 96], strides = [1, 1]} : vector<1x128xf32> to vector<1x96xf32>
    %237 = arith.negf %236 : vector<1x96xf32>
    %238 = math.exp %237 : vector<1x96xf32>
    %cst_46 = arith.constant 1.000000e+00 : f32
    %239 = vector.broadcast %cst_46 : f32 to vector<1x96xf32>
    %240 = arith.addf %239, %238 : vector<1x96xf32>
    %241 = arith.divf %239, %240 : vector<1x96xf32>
    %242 = vector.extract_strided_slice %235 {offsets = [0, 96], sizes = [1, 32], strides = [1, 1]} : vector<1x128xf32> to vector<1x32xf32>
    %243 = math.tanh %242 : vector<1x32xf32>
    %244 = vector.extract_strided_slice %241 {offsets = [0, 0], sizes = [1, 32], strides = [1, 1]} : vector<1x96xf32> to vector<1x32xf32>
    %245 = vector.extract_strided_slice %241 {offsets = [0, 32], sizes = [1, 32], strides = [1, 1]} : vector<1x96xf32> to vector<1x32xf32>
    %246 = vector.extract_strided_slice %241 {offsets = [0, 64], sizes = [1, 32], strides = [1, 1]} : vector<1x96xf32> to vector<1x32xf32>
    %247 = arith.mulf %245, %183 : vector<1x32xf32>
    %248 = arith.mulf %244, %243 : vector<1x32xf32>
    %249 = arith.addf %247, %248 : vector<1x32xf32>
    %250 = math.tanh %249 : vector<1x32xf32>
    %251 = arith.mulf %246, %250 : vector<1x32xf32>
    %252 = tpu.concatenate %251, %204 in 1 : vector<1x32xf32>, vector<1x32xf32> -> vector<1x64xf32>
    %cst_47 = arith.constant dense<0.000000e+00> : vector<1x128xf32>
    %253 = tpu.matmul %252, %3, %cst_47 {dimension_numbers = #tpu.dot_dimension_numbers<[1], [0], [0], [1], [0, 0, 1, 1], [], []>} : vector<1x64xf32>, vector<64x128xf32>, vector<1x128xf32> -> vector<1x128xf32>
    %254 = arith.addf %253, %7 : vector<1x128xf32>
    %255 = vector.extract_strided_slice %254 {offsets = [0, 0], sizes = [1, 96], strides = [1, 1]} : vector<1x128xf32> to vector<1x96xf32>
    %256 = arith.negf %255 : vector<1x96xf32>
    %257 = math.exp %256 : vector<1x96xf32>
    %cst_48 = arith.constant 1.000000e+00 : f32
    %258 = vector.broadcast %cst_48 : f32 to vector<1x96xf32>
    %259 = arith.addf %258, %257 : vector<1x96xf32>
    %260 = arith.divf %258, %259 : vector<1x96xf32>
    %261 = vector.extract_strided_slice %254 {offsets = [0, 96], sizes = [1, 32], strides = [1, 1]} : vector<1x128xf32> to vector<1x32xf32>
    %262 = math.tanh %261 : vector<1x32xf32>
    %263 = vector.extract_strided_slice %260 {offsets = [0, 0], sizes = [1, 32], strides = [1, 1]} : vector<1x96xf32> to vector<1x32xf32>
    %264 = vector.extract_strided_slice %260 {offsets = [0, 32], sizes = [1, 32], strides = [1, 1]} : vector<1x96xf32> to vector<1x32xf32>
    %265 = vector.extract_strided_slice %260 {offsets = [0, 64], sizes = [1, 32], strides = [1, 1]} : vector<1x96xf32> to vector<1x32xf32>
    %266 = arith.mulf %264, %202 : vector<1x32xf32>
    %267 = arith.mulf %263, %262 : vector<1x32xf32>
    %268 = arith.addf %266, %267 : vector<1x32xf32>
    %269 = math.tanh %268 : vector<1x32xf32>
    %270 = arith.mulf %265, %269 : vector<1x32xf32>
    %271 = vector.extract_strided_slice %8 {offsets = [0, 8], sizes = [32, 8], strides = [1, 1]} : vector<32x152xf32> to vector<32x8xf32>
    %272 = vector.extract_strided_slice %9 {offsets = [1, 0], sizes = [1, 8], strides = [1, 1]} : vector<19x8xf32> to vector<1x8xf32>
    %273 = vector.extract_strided_slice %10 {offsets = [1, 0], sizes = [1, 8], strides = [1, 1]} : vector<19x8xf32> to vector<1x8xf32>
    %cst_49 = arith.constant dense<0.000000e+00> : vector<1x8xf32>
    %274 = tpu.matmul %270, %271, %cst_49 {dimension_numbers = #tpu.dot_dimension_numbers<[1], [0], [0], [1], [0, 0, 1, 1], [], []>} : vector<1x32xf32>, vector<32x8xf32>, vector<1x8xf32> -> vector<1x8xf32>
    %275 = arith.addf %274, %272 : vector<1x8xf32>
    %cst_50 = arith.constant dense<0xFF800000> : vector<1xf32>
    %276 = vector.multi_reduction <maximumf>, %275, %cst_50 [1] : vector<1x8xf32> to vector<1xf32>
    %277 = vector.shape_cast %276 : vector<1xf32> to vector<1x1xf32>
    %278 = vector.broadcast %277 : vector<1x1xf32> to vector<1x8xf32>
    %279 = arith.subf %275, %278 : vector<1x8xf32>
    %280 = math.exp %279 : vector<1x8xf32>
    %cst_51 = arith.constant dense<0.000000e+00> : vector<1xf32>
    %281 = vector.multi_reduction <add>, %280, %cst_51 [1] : vector<1x8xf32> to vector<1xf32>
    %282 = vector.shape_cast %281 : vector<1xf32> to vector<1x1xf32>
    %283 = tpu.reciprocal %282 {approx = true} : vector<1x1xf32> -> vector<1x1xf32>
    %284 = vector.broadcast %283 : vector<1x1xf32> to vector<1x8xf32>
    %285 = arith.mulf %280, %284 : vector<1x8xf32>
    %286 = vector.broadcast %277 : vector<1x1xf32> to vector<1x8xf32>
    %287 = arith.subf %275, %286 : vector<1x8xf32>
    %288 = math.log %282 : vector<1x1xf32>
    %289 = vector.broadcast %288 : vector<1x1xf32> to vector<1x8xf32>
    %290 = arith.subf %287, %289 : vector<1x8xf32>
    %291 = arith.mulf %285, %290 : vector<1x8xf32>
    %cst_52 = arith.constant dense<0.000000e+00> : vector<1xf32>
    %292 = vector.multi_reduction <add>, %291, %cst_52 [1] : vector<1x8xf32> to vector<1xf32>
    %293 = vector.shape_cast %292 : vector<1xf32> to vector<1x1xf32>
    %294 = arith.subf %228, %293 : vector<1x1xf32>
    %295 = arith.mulf %273, %290 : vector<1x8xf32>
    %cst_53 = arith.constant dense<0.000000e+00> : vector<1xf32>
    %296 = vector.multi_reduction <add>, %295, %cst_53 [1] : vector<1x8xf32> to vector<1xf32>
    %297 = vector.shape_cast %296 : vector<1xf32> to vector<1x1xf32>
    %298 = arith.addf %232, %297 : vector<1x1xf32>
    %299 = tpu.concatenate %270, %251 in 1 : vector<1x32xf32>, vector<1x32xf32> -> vector<1x64xf32>
    %cst_54 = arith.constant dense<0.000000e+00> : vector<1x128xf32>
    %300 = tpu.matmul %299, %1, %cst_54 {dimension_numbers = #tpu.dot_dimension_numbers<[1], [0], [0], [1], [0, 0, 1, 1], [], []>} : vector<1x64xf32>, vector<64x128xf32>, vector<1x128xf32> -> vector<1x128xf32>
    %301 = arith.addf %300, %5 : vector<1x128xf32>
    %302 = vector.extract_strided_slice %301 {offsets = [0, 0], sizes = [1, 96], strides = [1, 1]} : vector<1x128xf32> to vector<1x96xf32>
    %303 = arith.negf %302 : vector<1x96xf32>
    %304 = math.exp %303 : vector<1x96xf32>
    %cst_55 = arith.constant 1.000000e+00 : f32
    %305 = vector.broadcast %cst_55 : f32 to vector<1x96xf32>
    %306 = arith.addf %305, %304 : vector<1x96xf32>
    %307 = arith.divf %305, %306 : vector<1x96xf32>
    %308 = vector.extract_strided_slice %301 {offsets = [0, 96], sizes = [1, 32], strides = [1, 1]} : vector<1x128xf32> to vector<1x32xf32>
    %309 = math.tanh %308 : vector<1x32xf32>
    %310 = vector.extract_strided_slice %307 {offsets = [0, 0], sizes = [1, 32], strides = [1, 1]} : vector<1x96xf32> to vector<1x32xf32>
    %311 = vector.extract_strided_slice %307 {offsets = [0, 32], sizes = [1, 32], strides = [1, 1]} : vector<1x96xf32> to vector<1x32xf32>
    %312 = vector.extract_strided_slice %307 {offsets = [0, 64], sizes = [1, 32], strides = [1, 1]} : vector<1x96xf32> to vector<1x32xf32>
    %313 = arith.mulf %311, %249 : vector<1x32xf32>
    %314 = arith.mulf %310, %309 : vector<1x32xf32>
    %315 = arith.addf %313, %314 : vector<1x32xf32>
    %316 = math.tanh %315 : vector<1x32xf32>
    %317 = arith.mulf %312, %316 : vector<1x32xf32>
    %318 = tpu.concatenate %317, %270 in 1 : vector<1x32xf32>, vector<1x32xf32> -> vector<1x64xf32>
    %cst_56 = arith.constant dense<0.000000e+00> : vector<1x128xf32>
    %319 = tpu.matmul %318, %3, %cst_56 {dimension_numbers = #tpu.dot_dimension_numbers<[1], [0], [0], [1], [0, 0, 1, 1], [], []>} : vector<1x64xf32>, vector<64x128xf32>, vector<1x128xf32> -> vector<1x128xf32>
    %320 = arith.addf %319, %7 : vector<1x128xf32>
    %321 = vector.extract_strided_slice %320 {offsets = [0, 0], sizes = [1, 96], strides = [1, 1]} : vector<1x128xf32> to vector<1x96xf32>
    %322 = arith.negf %321 : vector<1x96xf32>
    %323 = math.exp %322 : vector<1x96xf32>
    %cst_57 = arith.constant 1.000000e+00 : f32
    %324 = vector.broadcast %cst_57 : f32 to vector<1x96xf32>
    %325 = arith.addf %324, %323 : vector<1x96xf32>
    %326 = arith.divf %324, %325 : vector<1x96xf32>
    %327 = vector.extract_strided_slice %320 {offsets = [0, 96], sizes = [1, 32], strides = [1, 1]} : vector<1x128xf32> to vector<1x32xf32>
    %328 = math.tanh %327 : vector<1x32xf32>
    %329 = vector.extract_strided_slice %326 {offsets = [0, 0], sizes = [1, 32], strides = [1, 1]} : vector<1x96xf32> to vector<1x32xf32>
    %330 = vector.extract_strided_slice %326 {offsets = [0, 32], sizes = [1, 32], strides = [1, 1]} : vector<1x96xf32> to vector<1x32xf32>
    %331 = vector.extract_strided_slice %326 {offsets = [0, 64], sizes = [1, 32], strides = [1, 1]} : vector<1x96xf32> to vector<1x32xf32>
    %332 = arith.mulf %330, %268 : vector<1x32xf32>
    %333 = arith.mulf %329, %328 : vector<1x32xf32>
    %334 = arith.addf %332, %333 : vector<1x32xf32>
    %335 = math.tanh %334 : vector<1x32xf32>
    %336 = arith.mulf %331, %335 : vector<1x32xf32>
    %337 = vector.extract_strided_slice %8 {offsets = [0, 16], sizes = [32, 8], strides = [1, 1]} : vector<32x152xf32> to vector<32x8xf32>
    %338 = vector.extract_strided_slice %9 {offsets = [2, 0], sizes = [1, 8], strides = [1, 1]} : vector<19x8xf32> to vector<1x8xf32>
    %339 = vector.extract_strided_slice %10 {offsets = [2, 0], sizes = [1, 8], strides = [1, 1]} : vector<19x8xf32> to vector<1x8xf32>
    %cst_58 = arith.constant dense<0.000000e+00> : vector<1x8xf32>
    %340 = tpu.matmul %336, %337, %cst_58 {dimension_numbers = #tpu.dot_dimension_numbers<[1], [0], [0], [1], [0, 0, 1, 1], [], []>} : vector<1x32xf32>, vector<32x8xf32>, vector<1x8xf32> -> vector<1x8xf32>
    %341 = arith.addf %340, %338 : vector<1x8xf32>
    %cst_59 = arith.constant dense<0xFF800000> : vector<1xf32>
    %342 = vector.multi_reduction <maximumf>, %341, %cst_59 [1] : vector<1x8xf32> to vector<1xf32>
    %343 = vector.shape_cast %342 : vector<1xf32> to vector<1x1xf32>
    %344 = vector.broadcast %343 : vector<1x1xf32> to vector<1x8xf32>
    %345 = arith.subf %341, %344 : vector<1x8xf32>
    %346 = math.exp %345 : vector<1x8xf32>
    %cst_60 = arith.constant dense<0.000000e+00> : vector<1xf32>
    %347 = vector.multi_reduction <add>, %346, %cst_60 [1] : vector<1x8xf32> to vector<1xf32>
    %348 = vector.shape_cast %347 : vector<1xf32> to vector<1x1xf32>
    %349 = tpu.reciprocal %348 {approx = true} : vector<1x1xf32> -> vector<1x1xf32>
    %350 = vector.broadcast %349 : vector<1x1xf32> to vector<1x8xf32>
    %351 = arith.mulf %346, %350 : vector<1x8xf32>
    %352 = vector.broadcast %343 : vector<1x1xf32> to vector<1x8xf32>
    %353 = arith.subf %341, %352 : vector<1x8xf32>
    %354 = math.log %348 : vector<1x1xf32>
    %355 = vector.broadcast %354 : vector<1x1xf32> to vector<1x8xf32>
    %356 = arith.subf %353, %355 : vector<1x8xf32>
    %357 = arith.mulf %351, %356 : vector<1x8xf32>
    %cst_61 = arith.constant dense<0.000000e+00> : vector<1xf32>
    %358 = vector.multi_reduction <add>, %357, %cst_61 [1] : vector<1x8xf32> to vector<1xf32>
    %359 = vector.shape_cast %358 : vector<1xf32> to vector<1x1xf32>
    %360 = arith.subf %294, %359 : vector<1x1xf32>
    %361 = arith.mulf %339, %356 : vector<1x8xf32>
    %cst_62 = arith.constant dense<0.000000e+00> : vector<1xf32>
    %362 = vector.multi_reduction <add>, %361, %cst_62 [1] : vector<1x8xf32> to vector<1xf32>
    %363 = vector.shape_cast %362 : vector<1xf32> to vector<1x1xf32>
    %364 = arith.addf %298, %363 : vector<1x1xf32>
    %365 = tpu.concatenate %336, %317 in 1 : vector<1x32xf32>, vector<1x32xf32> -> vector<1x64xf32>
    %cst_63 = arith.constant dense<0.000000e+00> : vector<1x128xf32>
    %366 = tpu.matmul %365, %1, %cst_63 {dimension_numbers = #tpu.dot_dimension_numbers<[1], [0], [0], [1], [0, 0, 1, 1], [], []>} : vector<1x64xf32>, vector<64x128xf32>, vector<1x128xf32> -> vector<1x128xf32>
    %367 = arith.addf %366, %5 : vector<1x128xf32>
    %368 = vector.extract_strided_slice %367 {offsets = [0, 0], sizes = [1, 96], strides = [1, 1]} : vector<1x128xf32> to vector<1x96xf32>
    %369 = arith.negf %368 : vector<1x96xf32>
    %370 = math.exp %369 : vector<1x96xf32>
    %cst_64 = arith.constant 1.000000e+00 : f32
    %371 = vector.broadcast %cst_64 : f32 to vector<1x96xf32>
    %372 = arith.addf %371, %370 : vector<1x96xf32>
    %373 = arith.divf %371, %372 : vector<1x96xf32>
    %374 = vector.extract_strided_slice %367 {offsets = [0, 96], sizes = [1, 32], strides = [1, 1]} : vector<1x128xf32> to vector<1x32xf32>
    %375 = math.tanh %374 : vector<1x32xf32>
    %376 = vector.extract_strided_slice %373 {offsets = [0, 0], sizes = [1, 32], strides = [1, 1]} : vector<1x96xf32> to vector<1x32xf32>
    %377 = vector.extract_strided_slice %373 {offsets = [0, 32], sizes = [1, 32], strides = [1, 1]} : vector<1x96xf32> to vector<1x32xf32>
    %378 = vector.extract_strided_slice %373 {offsets = [0, 64], sizes = [1, 32], strides = [1, 1]} : vector<1x96xf32> to vector<1x32xf32>
    %379 = arith.mulf %377, %315 : vector<1x32xf32>
    %380 = arith.mulf %376, %375 : vector<1x32xf32>
    %381 = arith.addf %379, %380 : vector<1x32xf32>
    %382 = math.tanh %381 : vector<1x32xf32>
    %383 = arith.mulf %378, %382 : vector<1x32xf32>
    %384 = tpu.concatenate %383, %336 in 1 : vector<1x32xf32>, vector<1x32xf32> -> vector<1x64xf32>
    %cst_65 = arith.constant dense<0.000000e+00> : vector<1x128xf32>
    %385 = tpu.matmul %384, %3, %cst_65 {dimension_numbers = #tpu.dot_dimension_numbers<[1], [0], [0], [1], [0, 0, 1, 1], [], []>} : vector<1x64xf32>, vector<64x128xf32>, vector<1x128xf32> -> vector<1x128xf32>
    %386 = arith.addf %385, %7 : vector<1x128xf32>
    %387 = vector.extract_strided_slice %386 {offsets = [0, 0], sizes = [1, 96], strides = [1, 1]} : vector<1x128xf32> to vector<1x96xf32>
    %388 = arith.negf %387 : vector<1x96xf32>
    %389 = math.exp %388 : vector<1x96xf32>
    %cst_66 = arith.constant 1.000000e+00 : f32
    %390 = vector.broadcast %cst_66 : f32 to vector<1x96xf32>
    %391 = arith.addf %390, %389 : vector<1x96xf32>
    %392 = arith.divf %390, %391 : vector<1x96xf32>
    %393 = vector.extract_strided_slice %386 {offsets = [0, 96], sizes = [1, 32], strides = [1, 1]} : vector<1x128xf32> to vector<1x32xf32>
    %394 = math.tanh %393 : vector<1x32xf32>
    %395 = vector.extract_strided_slice %392 {offsets = [0, 0], sizes = [1, 32], strides = [1, 1]} : vector<1x96xf32> to vector<1x32xf32>
    %396 = vector.extract_strided_slice %392 {offsets = [0, 32], sizes = [1, 32], strides = [1, 1]} : vector<1x96xf32> to vector<1x32xf32>
    %397 = vector.extract_strided_slice %392 {offsets = [0, 64], sizes = [1, 32], strides = [1, 1]} : vector<1x96xf32> to vector<1x32xf32>
    %398 = arith.mulf %396, %334 : vector<1x32xf32>
    %399 = arith.mulf %395, %394 : vector<1x32xf32>
    %400 = arith.addf %398, %399 : vector<1x32xf32>
    %401 = math.tanh %400 : vector<1x32xf32>
    %402 = arith.mulf %397, %401 : vector<1x32xf32>
    %403 = vector.extract_strided_slice %8 {offsets = [0, 24], sizes = [32, 8], strides = [1, 1]} : vector<32x152xf32> to vector<32x8xf32>
    %404 = vector.extract_strided_slice %9 {offsets = [3, 0], sizes = [1, 8], strides = [1, 1]} : vector<19x8xf32> to vector<1x8xf32>
    %405 = vector.extract_strided_slice %10 {offsets = [3, 0], sizes = [1, 8], strides = [1, 1]} : vector<19x8xf32> to vector<1x8xf32>
    %cst_67 = arith.constant dense<0.000000e+00> : vector<1x8xf32>
    %406 = tpu.matmul %402, %403, %cst_67 {dimension_numbers = #tpu.dot_dimension_numbers<[1], [0], [0], [1], [0, 0, 1, 1], [], []>} : vector<1x32xf32>, vector<32x8xf32>, vector<1x8xf32> -> vector<1x8xf32>
    %407 = arith.addf %406, %404 : vector<1x8xf32>
    %cst_68 = arith.constant dense<0xFF800000> : vector<1xf32>
    %408 = vector.multi_reduction <maximumf>, %407, %cst_68 [1] : vector<1x8xf32> to vector<1xf32>
    %409 = vector.shape_cast %408 : vector<1xf32> to vector<1x1xf32>
    %410 = vector.broadcast %409 : vector<1x1xf32> to vector<1x8xf32>
    %411 = arith.subf %407, %410 : vector<1x8xf32>
    %412 = math.exp %411 : vector<1x8xf32>
    %cst_69 = arith.constant dense<0.000000e+00> : vector<1xf32>
    %413 = vector.multi_reduction <add>, %412, %cst_69 [1] : vector<1x8xf32> to vector<1xf32>
    %414 = vector.shape_cast %413 : vector<1xf32> to vector<1x1xf32>
    %415 = tpu.reciprocal %414 {approx = true} : vector<1x1xf32> -> vector<1x1xf32>
    %416 = vector.broadcast %415 : vector<1x1xf32> to vector<1x8xf32>
    %417 = arith.mulf %412, %416 : vector<1x8xf32>
    %418 = vector.broadcast %409 : vector<1x1xf32> to vector<1x8xf32>
    %419 = arith.subf %407, %418 : vector<1x8xf32>
    %420 = math.log %414 : vector<1x1xf32>
    %421 = vector.broadcast %420 : vector<1x1xf32> to vector<1x8xf32>
    %422 = arith.subf %419, %421 : vector<1x8xf32>
    %423 = arith.mulf %417, %422 : vector<1x8xf32>
    %cst_70 = arith.constant dense<0.000000e+00> : vector<1xf32>
    %424 = vector.multi_reduction <add>, %423, %cst_70 [1] : vector<1x8xf32> to vector<1xf32>
    %425 = vector.shape_cast %424 : vector<1xf32> to vector<1x1xf32>
    %426 = arith.subf %360, %425 : vector<1x1xf32>
    %427 = arith.mulf %405, %422 : vector<1x8xf32>
    %cst_71 = arith.constant dense<0.000000e+00> : vector<1xf32>
    %428 = vector.multi_reduction <add>, %427, %cst_71 [1] : vector<1x8xf32> to vector<1xf32>
    %429 = vector.shape_cast %428 : vector<1xf32> to vector<1x1xf32>
    %430 = arith.addf %364, %429 : vector<1x1xf32>
    %431 = tpu.concatenate %402, %383 in 1 : vector<1x32xf32>, vector<1x32xf32> -> vector<1x64xf32>
    %cst_72 = arith.constant dense<0.000000e+00> : vector<1x128xf32>
    %432 = tpu.matmul %431, %1, %cst_72 {dimension_numbers = #tpu.dot_dimension_numbers<[1], [0], [0], [1], [0, 0, 1, 1], [], []>} : vector<1x64xf32>, vector<64x128xf32>, vector<1x128xf32> -> vector<1x128xf32>
    %433 = arith.addf %432, %5 : vector<1x128xf32>
    %434 = vector.extract_strided_slice %433 {offsets = [0, 0], sizes = [1, 96], strides = [1, 1]} : vector<1x128xf32> to vector<1x96xf32>
    %435 = arith.negf %434 : vector<1x96xf32>
    %436 = math.exp %435 : vector<1x96xf32>
    %cst_73 = arith.constant 1.000000e+00 : f32
    %437 = vector.broadcast %cst_73 : f32 to vector<1x96xf32>
    %438 = arith.addf %437, %436 : vector<1x96xf32>
    %439 = arith.divf %437, %438 : vector<1x96xf32>
    %440 = vector.extract_strided_slice %433 {offsets = [0, 96], sizes = [1, 32], strides = [1, 1]} : vector<1x128xf32> to vector<1x32xf32>
    %441 = math.tanh %440 : vector<1x32xf32>
    %442 = vector.extract_strided_slice %439 {offsets = [0, 0], sizes = [1, 32], strides = [1, 1]} : vector<1x96xf32> to vector<1x32xf32>
    %443 = vector.extract_strided_slice %439 {offsets = [0, 32], sizes = [1, 32], strides = [1, 1]} : vector<1x96xf32> to vector<1x32xf32>
    %444 = vector.extract_strided_slice %439 {offsets = [0, 64], sizes = [1, 32], strides = [1, 1]} : vector<1x96xf32> to vector<1x32xf32>
    %445 = arith.mulf %443, %381 : vector<1x32xf32>
    %446 = arith.mulf %442, %441 : vector<1x32xf32>
    %447 = arith.addf %445, %446 : vector<1x32xf32>
    %448 = math.tanh %447 : vector<1x32xf32>
    %449 = arith.mulf %444, %448 : vector<1x32xf32>
    %450 = tpu.concatenate %449, %402 in 1 : vector<1x32xf32>, vector<1x32xf32> -> vector<1x64xf32>
    %cst_74 = arith.constant dense<0.000000e+00> : vector<1x128xf32>
    %451 = tpu.matmul %450, %3, %cst_74 {dimension_numbers = #tpu.dot_dimension_numbers<[1], [0], [0], [1], [0, 0, 1, 1], [], []>} : vector<1x64xf32>, vector<64x128xf32>, vector<1x128xf32> -> vector<1x128xf32>
    %452 = arith.addf %451, %7 : vector<1x128xf32>
    %453 = vector.extract_strided_slice %452 {offsets = [0, 0], sizes = [1, 96], strides = [1, 1]} : vector<1x128xf32> to vector<1x96xf32>
    %454 = arith.negf %453 : vector<1x96xf32>
    %455 = math.exp %454 : vector<1x96xf32>
    %cst_75 = arith.constant 1.000000e+00 : f32
    %456 = vector.broadcast %cst_75 : f32 to vector<1x96xf32>
    %457 = arith.addf %456, %455 : vector<1x96xf32>
    %458 = arith.divf %456, %457 : vector<1x96xf32>
    %459 = vector.extract_strided_slice %452 {offsets = [0, 96], sizes = [1, 32], strides = [1, 1]} : vector<1x128xf32> to vector<1x32xf32>
    %460 = math.tanh %459 : vector<1x32xf32>
    %461 = vector.extract_strided_slice %458 {offsets = [0, 0], sizes = [1, 32], strides = [1, 1]} : vector<1x96xf32> to vector<1x32xf32>
    %462 = vector.extract_strided_slice %458 {offsets = [0, 32], sizes = [1, 32], strides = [1, 1]} : vector<1x96xf32> to vector<1x32xf32>
    %463 = vector.extract_strided_slice %458 {offsets = [0, 64], sizes = [1, 32], strides = [1, 1]} : vector<1x96xf32> to vector<1x32xf32>
    %464 = arith.mulf %462, %400 : vector<1x32xf32>
    %465 = arith.mulf %461, %460 : vector<1x32xf32>
    %466 = arith.addf %464, %465 : vector<1x32xf32>
    %467 = math.tanh %466 : vector<1x32xf32>
    %468 = arith.mulf %463, %467 : vector<1x32xf32>
    %469 = vector.extract_strided_slice %8 {offsets = [0, 32], sizes = [32, 8], strides = [1, 1]} : vector<32x152xf32> to vector<32x8xf32>
    %470 = vector.extract_strided_slice %9 {offsets = [4, 0], sizes = [1, 8], strides = [1, 1]} : vector<19x8xf32> to vector<1x8xf32>
    %471 = vector.extract_strided_slice %10 {offsets = [4, 0], sizes = [1, 8], strides = [1, 1]} : vector<19x8xf32> to vector<1x8xf32>
    %cst_76 = arith.constant dense<0.000000e+00> : vector<1x8xf32>
    %472 = tpu.matmul %468, %469, %cst_76 {dimension_numbers = #tpu.dot_dimension_numbers<[1], [0], [0], [1], [0, 0, 1, 1], [], []>} : vector<1x32xf32>, vector<32x8xf32>, vector<1x8xf32> -> vector<1x8xf32>
    %473 = arith.addf %472, %470 : vector<1x8xf32>
    %cst_77 = arith.constant dense<0xFF800000> : vector<1xf32>
    %474 = vector.multi_reduction <maximumf>, %473, %cst_77 [1] : vector<1x8xf32> to vector<1xf32>
    %475 = vector.shape_cast %474 : vector<1xf32> to vector<1x1xf32>
    %476 = vector.broadcast %475 : vector<1x1xf32> to vector<1x8xf32>
    %477 = arith.subf %473, %476 : vector<1x8xf32>
    %478 = math.exp %477 : vector<1x8xf32>
    %cst_78 = arith.constant dense<0.000000e+00> : vector<1xf32>
    %479 = vector.multi_reduction <add>, %478, %cst_78 [1] : vector<1x8xf32> to vector<1xf32>
    %480 = vector.shape_cast %479 : vector<1xf32> to vector<1x1xf32>
    %481 = tpu.reciprocal %480 {approx = true} : vector<1x1xf32> -> vector<1x1xf32>
    %482 = vector.broadcast %481 : vector<1x1xf32> to vector<1x8xf32>
    %483 = arith.mulf %478, %482 : vector<1x8xf32>
    %484 = vector.broadcast %475 : vector<1x1xf32> to vector<1x8xf32>
    %485 = arith.subf %473, %484 : vector<1x8xf32>
    %486 = math.log %480 : vector<1x1xf32>
    %487 = vector.broadcast %486 : vector<1x1xf32> to vector<1x8xf32>
    %488 = arith.subf %485, %487 : vector<1x8xf32>
    %489 = arith.mulf %483, %488 : vector<1x8xf32>
    %cst_79 = arith.constant dense<0.000000e+00> : vector<1xf32>
    %490 = vector.multi_reduction <add>, %489, %cst_79 [1] : vector<1x8xf32> to vector<1xf32>
    %491 = vector.shape_cast %490 : vector<1xf32> to vector<1x1xf32>
    %492 = arith.subf %426, %491 : vector<1x1xf32>
    %493 = arith.mulf %471, %488 : vector<1x8xf32>
    %cst_80 = arith.constant dense<0.000000e+00> : vector<1xf32>
    %494 = vector.multi_reduction <add>, %493, %cst_80 [1] : vector<1x8xf32> to vector<1xf32>
    %495 = vector.shape_cast %494 : vector<1xf32> to vector<1x1xf32>
    %496 = arith.addf %430, %495 : vector<1x1xf32>
    %497 = tpu.concatenate %468, %449 in 1 : vector<1x32xf32>, vector<1x32xf32> -> vector<1x64xf32>
    %cst_81 = arith.constant dense<0.000000e+00> : vector<1x128xf32>
    %498 = tpu.matmul %497, %1, %cst_81 {dimension_numbers = #tpu.dot_dimension_numbers<[1], [0], [0], [1], [0, 0, 1, 1], [], []>} : vector<1x64xf32>, vector<64x128xf32>, vector<1x128xf32> -> vector<1x128xf32>
    %499 = arith.addf %498, %5 : vector<1x128xf32>
    %500 = vector.extract_strided_slice %499 {offsets = [0, 0], sizes = [1, 96], strides = [1, 1]} : vector<1x128xf32> to vector<1x96xf32>
    %501 = arith.negf %500 : vector<1x96xf32>
    %502 = math.exp %501 : vector<1x96xf32>
    %cst_82 = arith.constant 1.000000e+00 : f32
    %503 = vector.broadcast %cst_82 : f32 to vector<1x96xf32>
    %504 = arith.addf %503, %502 : vector<1x96xf32>
    %505 = arith.divf %503, %504 : vector<1x96xf32>
    %506 = vector.extract_strided_slice %499 {offsets = [0, 96], sizes = [1, 32], strides = [1, 1]} : vector<1x128xf32> to vector<1x32xf32>
    %507 = math.tanh %506 : vector<1x32xf32>
    %508 = vector.extract_strided_slice %505 {offsets = [0, 0], sizes = [1, 32], strides = [1, 1]} : vector<1x96xf32> to vector<1x32xf32>
    %509 = vector.extract_strided_slice %505 {offsets = [0, 32], sizes = [1, 32], strides = [1, 1]} : vector<1x96xf32> to vector<1x32xf32>
    %510 = vector.extract_strided_slice %505 {offsets = [0, 64], sizes = [1, 32], strides = [1, 1]} : vector<1x96xf32> to vector<1x32xf32>
    %511 = arith.mulf %509, %447 : vector<1x32xf32>
    %512 = arith.mulf %508, %507 : vector<1x32xf32>
    %513 = arith.addf %511, %512 : vector<1x32xf32>
    %514 = math.tanh %513 : vector<1x32xf32>
    %515 = arith.mulf %510, %514 : vector<1x32xf32>
    %516 = tpu.concatenate %515, %468 in 1 : vector<1x32xf32>, vector<1x32xf32> -> vector<1x64xf32>
    %cst_83 = arith.constant dense<0.000000e+00> : vector<1x128xf32>
    %517 = tpu.matmul %516, %3, %cst_83 {dimension_numbers = #tpu.dot_dimension_numbers<[1], [0], [0], [1], [0, 0, 1, 1], [], []>} : vector<1x64xf32>, vector<64x128xf32>, vector<1x128xf32> -> vector<1x128xf32>
    %518 = arith.addf %517, %7 : vector<1x128xf32>
    %519 = vector.extract_strided_slice %518 {offsets = [0, 0], sizes = [1, 96], strides = [1, 1]} : vector<1x128xf32> to vector<1x96xf32>
    %520 = arith.negf %519 : vector<1x96xf32>
    %521 = math.exp %520 : vector<1x96xf32>
    %cst_84 = arith.constant 1.000000e+00 : f32
    %522 = vector.broadcast %cst_84 : f32 to vector<1x96xf32>
    %523 = arith.addf %522, %521 : vector<1x96xf32>
    %524 = arith.divf %522, %523 : vector<1x96xf32>
    %525 = vector.extract_strided_slice %518 {offsets = [0, 96], sizes = [1, 32], strides = [1, 1]} : vector<1x128xf32> to vector<1x32xf32>
    %526 = math.tanh %525 : vector<1x32xf32>
    %527 = vector.extract_strided_slice %524 {offsets = [0, 0], sizes = [1, 32], strides = [1, 1]} : vector<1x96xf32> to vector<1x32xf32>
    %528 = vector.extract_strided_slice %524 {offsets = [0, 32], sizes = [1, 32], strides = [1, 1]} : vector<1x96xf32> to vector<1x32xf32>
    %529 = vector.extract_strided_slice %524 {offsets = [0, 64], sizes = [1, 32], strides = [1, 1]} : vector<1x96xf32> to vector<1x32xf32>
    %530 = arith.mulf %528, %466 : vector<1x32xf32>
    %531 = arith.mulf %527, %526 : vector<1x32xf32>
    %532 = arith.addf %530, %531 : vector<1x32xf32>
    %533 = math.tanh %532 : vector<1x32xf32>
    %534 = arith.mulf %529, %533 : vector<1x32xf32>
    %535 = vector.extract_strided_slice %8 {offsets = [0, 40], sizes = [32, 8], strides = [1, 1]} : vector<32x152xf32> to vector<32x8xf32>
    %536 = vector.extract_strided_slice %9 {offsets = [5, 0], sizes = [1, 8], strides = [1, 1]} : vector<19x8xf32> to vector<1x8xf32>
    %537 = vector.extract_strided_slice %10 {offsets = [5, 0], sizes = [1, 8], strides = [1, 1]} : vector<19x8xf32> to vector<1x8xf32>
    %cst_85 = arith.constant dense<0.000000e+00> : vector<1x8xf32>
    %538 = tpu.matmul %534, %535, %cst_85 {dimension_numbers = #tpu.dot_dimension_numbers<[1], [0], [0], [1], [0, 0, 1, 1], [], []>} : vector<1x32xf32>, vector<32x8xf32>, vector<1x8xf32> -> vector<1x8xf32>
    %539 = arith.addf %538, %536 : vector<1x8xf32>
    %cst_86 = arith.constant dense<0xFF800000> : vector<1xf32>
    %540 = vector.multi_reduction <maximumf>, %539, %cst_86 [1] : vector<1x8xf32> to vector<1xf32>
    %541 = vector.shape_cast %540 : vector<1xf32> to vector<1x1xf32>
    %542 = vector.broadcast %541 : vector<1x1xf32> to vector<1x8xf32>
    %543 = arith.subf %539, %542 : vector<1x8xf32>
    %544 = math.exp %543 : vector<1x8xf32>
    %cst_87 = arith.constant dense<0.000000e+00> : vector<1xf32>
    %545 = vector.multi_reduction <add>, %544, %cst_87 [1] : vector<1x8xf32> to vector<1xf32>
    %546 = vector.shape_cast %545 : vector<1xf32> to vector<1x1xf32>
    %547 = tpu.reciprocal %546 {approx = true} : vector<1x1xf32> -> vector<1x1xf32>
    %548 = vector.broadcast %547 : vector<1x1xf32> to vector<1x8xf32>
    %549 = arith.mulf %544, %548 : vector<1x8xf32>
    %550 = vector.broadcast %541 : vector<1x1xf32> to vector<1x8xf32>
    %551 = arith.subf %539, %550 : vector<1x8xf32>
    %552 = math.log %546 : vector<1x1xf32>
    %553 = vector.broadcast %552 : vector<1x1xf32> to vector<1x8xf32>
    %554 = arith.subf %551, %553 : vector<1x8xf32>
    %555 = arith.mulf %549, %554 : vector<1x8xf32>
    %cst_88 = arith.constant dense<0.000000e+00> : vector<1xf32>
    %556 = vector.multi_reduction <add>, %555, %cst_88 [1] : vector<1x8xf32> to vector<1xf32>
    %557 = vector.shape_cast %556 : vector<1xf32> to vector<1x1xf32>
    %558 = arith.subf %492, %557 : vector<1x1xf32>
    %559 = arith.mulf %537, %554 : vector<1x8xf32>
    %cst_89 = arith.constant dense<0.000000e+00> : vector<1xf32>
    %560 = vector.multi_reduction <add>, %559, %cst_89 [1] : vector<1x8xf32> to vector<1xf32>
    %561 = vector.shape_cast %560 : vector<1xf32> to vector<1x1xf32>
    %562 = arith.addf %496, %561 : vector<1x1xf32>
    %563 = tpu.concatenate %534, %515 in 1 : vector<1x32xf32>, vector<1x32xf32> -> vector<1x64xf32>
    %cst_90 = arith.constant dense<0.000000e+00> : vector<1x128xf32>
    %564 = tpu.matmul %563, %1, %cst_90 {dimension_numbers = #tpu.dot_dimension_numbers<[1], [0], [0], [1], [0, 0, 1, 1], [], []>} : vector<1x64xf32>, vector<64x128xf32>, vector<1x128xf32> -> vector<1x128xf32>
    %565 = arith.addf %564, %5 : vector<1x128xf32>
    %566 = vector.extract_strided_slice %565 {offsets = [0, 0], sizes = [1, 96], strides = [1, 1]} : vector<1x128xf32> to vector<1x96xf32>
    %567 = arith.negf %566 : vector<1x96xf32>
    %568 = math.exp %567 : vector<1x96xf32>
    %cst_91 = arith.constant 1.000000e+00 : f32
    %569 = vector.broadcast %cst_91 : f32 to vector<1x96xf32>
    %570 = arith.addf %569, %568 : vector<1x96xf32>
    %571 = arith.divf %569, %570 : vector<1x96xf32>
    %572 = vector.extract_strided_slice %565 {offsets = [0, 96], sizes = [1, 32], strides = [1, 1]} : vector<1x128xf32> to vector<1x32xf32>
    %573 = math.tanh %572 : vector<1x32xf32>
    %574 = vector.extract_strided_slice %571 {offsets = [0, 0], sizes = [1, 32], strides = [1, 1]} : vector<1x96xf32> to vector<1x32xf32>
    %575 = vector.extract_strided_slice %571 {offsets = [0, 32], sizes = [1, 32], strides = [1, 1]} : vector<1x96xf32> to vector<1x32xf32>
    %576 = vector.extract_strided_slice %571 {offsets = [0, 64], sizes = [1, 32], strides = [1, 1]} : vector<1x96xf32> to vector<1x32xf32>
    %577 = arith.mulf %575, %513 : vector<1x32xf32>
    %578 = arith.mulf %574, %573 : vector<1x32xf32>
    %579 = arith.addf %577, %578 : vector<1x32xf32>
    %580 = math.tanh %579 : vector<1x32xf32>
    %581 = arith.mulf %576, %580 : vector<1x32xf32>
    %582 = tpu.concatenate %581, %534 in 1 : vector<1x32xf32>, vector<1x32xf32> -> vector<1x64xf32>
    %cst_92 = arith.constant dense<0.000000e+00> : vector<1x128xf32>
    %583 = tpu.matmul %582, %3, %cst_92 {dimension_numbers = #tpu.dot_dimension_numbers<[1], [0], [0], [1], [0, 0, 1, 1], [], []>} : vector<1x64xf32>, vector<64x128xf32>, vector<1x128xf32> -> vector<1x128xf32>
    %584 = arith.addf %583, %7 : vector<1x128xf32>
    %585 = vector.extract_strided_slice %584 {offsets = [0, 0], sizes = [1, 96], strides = [1, 1]} : vector<1x128xf32> to vector<1x96xf32>
    %586 = arith.negf %585 : vector<1x96xf32>
    %587 = math.exp %586 : vector<1x96xf32>
    %cst_93 = arith.constant 1.000000e+00 : f32
    %588 = vector.broadcast %cst_93 : f32 to vector<1x96xf32>
    %589 = arith.addf %588, %587 : vector<1x96xf32>
    %590 = arith.divf %588, %589 : vector<1x96xf32>
    %591 = vector.extract_strided_slice %584 {offsets = [0, 96], sizes = [1, 32], strides = [1, 1]} : vector<1x128xf32> to vector<1x32xf32>
    %592 = math.tanh %591 : vector<1x32xf32>
    %593 = vector.extract_strided_slice %590 {offsets = [0, 0], sizes = [1, 32], strides = [1, 1]} : vector<1x96xf32> to vector<1x32xf32>
    %594 = vector.extract_strided_slice %590 {offsets = [0, 32], sizes = [1, 32], strides = [1, 1]} : vector<1x96xf32> to vector<1x32xf32>
    %595 = vector.extract_strided_slice %590 {offsets = [0, 64], sizes = [1, 32], strides = [1, 1]} : vector<1x96xf32> to vector<1x32xf32>
    %596 = arith.mulf %594, %532 : vector<1x32xf32>
    %597 = arith.mulf %593, %592 : vector<1x32xf32>
    %598 = arith.addf %596, %597 : vector<1x32xf32>
    %599 = math.tanh %598 : vector<1x32xf32>
    %600 = arith.mulf %595, %599 : vector<1x32xf32>
    %601 = vector.extract_strided_slice %8 {offsets = [0, 48], sizes = [32, 8], strides = [1, 1]} : vector<32x152xf32> to vector<32x8xf32>
    %602 = vector.extract_strided_slice %9 {offsets = [6, 0], sizes = [1, 8], strides = [1, 1]} : vector<19x8xf32> to vector<1x8xf32>
    %603 = vector.extract_strided_slice %10 {offsets = [6, 0], sizes = [1, 8], strides = [1, 1]} : vector<19x8xf32> to vector<1x8xf32>
    %cst_94 = arith.constant dense<0.000000e+00> : vector<1x8xf32>
    %604 = tpu.matmul %600, %601, %cst_94 {dimension_numbers = #tpu.dot_dimension_numbers<[1], [0], [0], [1], [0, 0, 1, 1], [], []>} : vector<1x32xf32>, vector<32x8xf32>, vector<1x8xf32> -> vector<1x8xf32>
    %605 = arith.addf %604, %602 : vector<1x8xf32>
    %cst_95 = arith.constant dense<0xFF800000> : vector<1xf32>
    %606 = vector.multi_reduction <maximumf>, %605, %cst_95 [1] : vector<1x8xf32> to vector<1xf32>
    %607 = vector.shape_cast %606 : vector<1xf32> to vector<1x1xf32>
    %608 = vector.broadcast %607 : vector<1x1xf32> to vector<1x8xf32>
    %609 = arith.subf %605, %608 : vector<1x8xf32>
    %610 = math.exp %609 : vector<1x8xf32>
    %cst_96 = arith.constant dense<0.000000e+00> : vector<1xf32>
    %611 = vector.multi_reduction <add>, %610, %cst_96 [1] : vector<1x8xf32> to vector<1xf32>
    %612 = vector.shape_cast %611 : vector<1xf32> to vector<1x1xf32>
    %613 = tpu.reciprocal %612 {approx = true} : vector<1x1xf32> -> vector<1x1xf32>
    %614 = vector.broadcast %613 : vector<1x1xf32> to vector<1x8xf32>
    %615 = arith.mulf %610, %614 : vector<1x8xf32>
    %616 = vector.broadcast %607 : vector<1x1xf32> to vector<1x8xf32>
    %617 = arith.subf %605, %616 : vector<1x8xf32>
    %618 = math.log %612 : vector<1x1xf32>
    %619 = vector.broadcast %618 : vector<1x1xf32> to vector<1x8xf32>
    %620 = arith.subf %617, %619 : vector<1x8xf32>
    %621 = arith.mulf %615, %620 : vector<1x8xf32>
    %cst_97 = arith.constant dense<0.000000e+00> : vector<1xf32>
    %622 = vector.multi_reduction <add>, %621, %cst_97 [1] : vector<1x8xf32> to vector<1xf32>
    %623 = vector.shape_cast %622 : vector<1xf32> to vector<1x1xf32>
    %624 = arith.subf %558, %623 : vector<1x1xf32>
    %625 = arith.mulf %603, %620 : vector<1x8xf32>
    %cst_98 = arith.constant dense<0.000000e+00> : vector<1xf32>
    %626 = vector.multi_reduction <add>, %625, %cst_98 [1] : vector<1x8xf32> to vector<1xf32>
    %627 = vector.shape_cast %626 : vector<1xf32> to vector<1x1xf32>
    %628 = arith.addf %562, %627 : vector<1x1xf32>
    %629 = tpu.concatenate %600, %581 in 1 : vector<1x32xf32>, vector<1x32xf32> -> vector<1x64xf32>
    %cst_99 = arith.constant dense<0.000000e+00> : vector<1x128xf32>
    %630 = tpu.matmul %629, %1, %cst_99 {dimension_numbers = #tpu.dot_dimension_numbers<[1], [0], [0], [1], [0, 0, 1, 1], [], []>} : vector<1x64xf32>, vector<64x128xf32>, vector<1x128xf32> -> vector<1x128xf32>
    %631 = arith.addf %630, %5 : vector<1x128xf32>
    %632 = vector.extract_strided_slice %631 {offsets = [0, 0], sizes = [1, 96], strides = [1, 1]} : vector<1x128xf32> to vector<1x96xf32>
    %633 = arith.negf %632 : vector<1x96xf32>
    %634 = math.exp %633 : vector<1x96xf32>
    %cst_100 = arith.constant 1.000000e+00 : f32
    %635 = vector.broadcast %cst_100 : f32 to vector<1x96xf32>
    %636 = arith.addf %635, %634 : vector<1x96xf32>
    %637 = arith.divf %635, %636 : vector<1x96xf32>
    %638 = vector.extract_strided_slice %631 {offsets = [0, 96], sizes = [1, 32], strides = [1, 1]} : vector<1x128xf32> to vector<1x32xf32>
    %639 = math.tanh %638 : vector<1x32xf32>
    %640 = vector.extract_strided_slice %637 {offsets = [0, 0], sizes = [1, 32], strides = [1, 1]} : vector<1x96xf32> to vector<1x32xf32>
    %641 = vector.extract_strided_slice %637 {offsets = [0, 32], sizes = [1, 32], strides = [1, 1]} : vector<1x96xf32> to vector<1x32xf32>
    %642 = vector.extract_strided_slice %637 {offsets = [0, 64], sizes = [1, 32], strides = [1, 1]} : vector<1x96xf32> to vector<1x32xf32>
    %643 = arith.mulf %641, %579 : vector<1x32xf32>
    %644 = arith.mulf %640, %639 : vector<1x32xf32>
    %645 = arith.addf %643, %644 : vector<1x32xf32>
    %646 = math.tanh %645 : vector<1x32xf32>
    %647 = arith.mulf %642, %646 : vector<1x32xf32>
    %648 = tpu.concatenate %647, %600 in 1 : vector<1x32xf32>, vector<1x32xf32> -> vector<1x64xf32>
    %cst_101 = arith.constant dense<0.000000e+00> : vector<1x128xf32>
    %649 = tpu.matmul %648, %3, %cst_101 {dimension_numbers = #tpu.dot_dimension_numbers<[1], [0], [0], [1], [0, 0, 1, 1], [], []>} : vector<1x64xf32>, vector<64x128xf32>, vector<1x128xf32> -> vector<1x128xf32>
    %650 = arith.addf %649, %7 : vector<1x128xf32>
    %651 = vector.extract_strided_slice %650 {offsets = [0, 0], sizes = [1, 96], strides = [1, 1]} : vector<1x128xf32> to vector<1x96xf32>
    %652 = arith.negf %651 : vector<1x96xf32>
    %653 = math.exp %652 : vector<1x96xf32>
    %cst_102 = arith.constant 1.000000e+00 : f32
    %654 = vector.broadcast %cst_102 : f32 to vector<1x96xf32>
    %655 = arith.addf %654, %653 : vector<1x96xf32>
    %656 = arith.divf %654, %655 : vector<1x96xf32>
    %657 = vector.extract_strided_slice %650 {offsets = [0, 96], sizes = [1, 32], strides = [1, 1]} : vector<1x128xf32> to vector<1x32xf32>
    %658 = math.tanh %657 : vector<1x32xf32>
    %659 = vector.extract_strided_slice %656 {offsets = [0, 0], sizes = [1, 32], strides = [1, 1]} : vector<1x96xf32> to vector<1x32xf32>
    %660 = vector.extract_strided_slice %656 {offsets = [0, 32], sizes = [1, 32], strides = [1, 1]} : vector<1x96xf32> to vector<1x32xf32>
    %661 = vector.extract_strided_slice %656 {offsets = [0, 64], sizes = [1, 32], strides = [1, 1]} : vector<1x96xf32> to vector<1x32xf32>
    %662 = arith.mulf %660, %598 : vector<1x32xf32>
    %663 = arith.mulf %659, %658 : vector<1x32xf32>
    %664 = arith.addf %662, %663 : vector<1x32xf32>
    %665 = math.tanh %664 : vector<1x32xf32>
    %666 = arith.mulf %661, %665 : vector<1x32xf32>
    %667 = vector.extract_strided_slice %8 {offsets = [0, 56], sizes = [32, 8], strides = [1, 1]} : vector<32x152xf32> to vector<32x8xf32>
    %668 = vector.extract_strided_slice %9 {offsets = [7, 0], sizes = [1, 8], strides = [1, 1]} : vector<19x8xf32> to vector<1x8xf32>
    %669 = vector.extract_strided_slice %10 {offsets = [7, 0], sizes = [1, 8], strides = [1, 1]} : vector<19x8xf32> to vector<1x8xf32>
    %cst_103 = arith.constant dense<0.000000e+00> : vector<1x8xf32>
    %670 = tpu.matmul %666, %667, %cst_103 {dimension_numbers = #tpu.dot_dimension_numbers<[1], [0], [0], [1], [0, 0, 1, 1], [], []>} : vector<1x32xf32>, vector<32x8xf32>, vector<1x8xf32> -> vector<1x8xf32>
    %671 = arith.addf %670, %668 : vector<1x8xf32>
    %cst_104 = arith.constant dense<0xFF800000> : vector<1xf32>
    %672 = vector.multi_reduction <maximumf>, %671, %cst_104 [1] : vector<1x8xf32> to vector<1xf32>
    %673 = vector.shape_cast %672 : vector<1xf32> to vector<1x1xf32>
    %674 = vector.broadcast %673 : vector<1x1xf32> to vector<1x8xf32>
    %675 = arith.subf %671, %674 : vector<1x8xf32>
    %676 = math.exp %675 : vector<1x8xf32>
    %cst_105 = arith.constant dense<0.000000e+00> : vector<1xf32>
    %677 = vector.multi_reduction <add>, %676, %cst_105 [1] : vector<1x8xf32> to vector<1xf32>
    %678 = vector.shape_cast %677 : vector<1xf32> to vector<1x1xf32>
    %679 = tpu.reciprocal %678 {approx = true} : vector<1x1xf32> -> vector<1x1xf32>
    %680 = vector.broadcast %679 : vector<1x1xf32> to vector<1x8xf32>
    %681 = arith.mulf %676, %680 : vector<1x8xf32>
    %682 = vector.broadcast %673 : vector<1x1xf32> to vector<1x8xf32>
    %683 = arith.subf %671, %682 : vector<1x8xf32>
    %684 = math.log %678 : vector<1x1xf32>
    %685 = vector.broadcast %684 : vector<1x1xf32> to vector<1x8xf32>
    %686 = arith.subf %683, %685 : vector<1x8xf32>
    %687 = arith.mulf %681, %686 : vector<1x8xf32>
    %cst_106 = arith.constant dense<0.000000e+00> : vector<1xf32>
    %688 = vector.multi_reduction <add>, %687, %cst_106 [1] : vector<1x8xf32> to vector<1xf32>
    %689 = vector.shape_cast %688 : vector<1xf32> to vector<1x1xf32>
    %690 = arith.subf %624, %689 : vector<1x1xf32>
    %691 = arith.mulf %669, %686 : vector<1x8xf32>
    %cst_107 = arith.constant dense<0.000000e+00> : vector<1xf32>
    %692 = vector.multi_reduction <add>, %691, %cst_107 [1] : vector<1x8xf32> to vector<1xf32>
    %693 = vector.shape_cast %692 : vector<1xf32> to vector<1x1xf32>
    %694 = arith.addf %628, %693 : vector<1x1xf32>
    %695 = tpu.concatenate %666, %647 in 1 : vector<1x32xf32>, vector<1x32xf32> -> vector<1x64xf32>
    %cst_108 = arith.constant dense<0.000000e+00> : vector<1x128xf32>
    %696 = tpu.matmul %695, %1, %cst_108 {dimension_numbers = #tpu.dot_dimension_numbers<[1], [0], [0], [1], [0, 0, 1, 1], [], []>} : vector<1x64xf32>, vector<64x128xf32>, vector<1x128xf32> -> vector<1x128xf32>
    %697 = arith.addf %696, %5 : vector<1x128xf32>
    %698 = vector.extract_strided_slice %697 {offsets = [0, 0], sizes = [1, 96], strides = [1, 1]} : vector<1x128xf32> to vector<1x96xf32>
    %699 = arith.negf %698 : vector<1x96xf32>
    %700 = math.exp %699 : vector<1x96xf32>
    %cst_109 = arith.constant 1.000000e+00 : f32
    %701 = vector.broadcast %cst_109 : f32 to vector<1x96xf32>
    %702 = arith.addf %701, %700 : vector<1x96xf32>
    %703 = arith.divf %701, %702 : vector<1x96xf32>
    %704 = vector.extract_strided_slice %697 {offsets = [0, 96], sizes = [1, 32], strides = [1, 1]} : vector<1x128xf32> to vector<1x32xf32>
    %705 = math.tanh %704 : vector<1x32xf32>
    %706 = vector.extract_strided_slice %703 {offsets = [0, 0], sizes = [1, 32], strides = [1, 1]} : vector<1x96xf32> to vector<1x32xf32>
    %707 = vector.extract_strided_slice %703 {offsets = [0, 32], sizes = [1, 32], strides = [1, 1]} : vector<1x96xf32> to vector<1x32xf32>
    %708 = vector.extract_strided_slice %703 {offsets = [0, 64], sizes = [1, 32], strides = [1, 1]} : vector<1x96xf32> to vector<1x32xf32>
    %709 = arith.mulf %707, %645 : vector<1x32xf32>
    %710 = arith.mulf %706, %705 : vector<1x32xf32>
    %711 = arith.addf %709, %710 : vector<1x32xf32>
    %712 = math.tanh %711 : vector<1x32xf32>
    %713 = arith.mulf %708, %712 : vector<1x32xf32>
    %714 = tpu.concatenate %713, %666 in 1 : vector<1x32xf32>, vector<1x32xf32> -> vector<1x64xf32>
    %cst_110 = arith.constant dense<0.000000e+00> : vector<1x128xf32>
    %715 = tpu.matmul %714, %3, %cst_110 {dimension_numbers = #tpu.dot_dimension_numbers<[1], [0], [0], [1], [0, 0, 1, 1], [], []>} : vector<1x64xf32>, vector<64x128xf32>, vector<1x128xf32> -> vector<1x128xf32>
    %716 = arith.addf %715, %7 : vector<1x128xf32>
    %717 = vector.extract_strided_slice %716 {offsets = [0, 0], sizes = [1, 96], strides = [1, 1]} : vector<1x128xf32> to vector<1x96xf32>
    %718 = arith.negf %717 : vector<1x96xf32>
    %719 = math.exp %718 : vector<1x96xf32>
    %cst_111 = arith.constant 1.000000e+00 : f32
    %720 = vector.broadcast %cst_111 : f32 to vector<1x96xf32>
    %721 = arith.addf %720, %719 : vector<1x96xf32>
    %722 = arith.divf %720, %721 : vector<1x96xf32>
    %723 = vector.extract_strided_slice %716 {offsets = [0, 96], sizes = [1, 32], strides = [1, 1]} : vector<1x128xf32> to vector<1x32xf32>
    %724 = math.tanh %723 : vector<1x32xf32>
    %725 = vector.extract_strided_slice %722 {offsets = [0, 0], sizes = [1, 32], strides = [1, 1]} : vector<1x96xf32> to vector<1x32xf32>
    %726 = vector.extract_strided_slice %722 {offsets = [0, 32], sizes = [1, 32], strides = [1, 1]} : vector<1x96xf32> to vector<1x32xf32>
    %727 = vector.extract_strided_slice %722 {offsets = [0, 64], sizes = [1, 32], strides = [1, 1]} : vector<1x96xf32> to vector<1x32xf32>
    %728 = arith.mulf %726, %664 : vector<1x32xf32>
    %729 = arith.mulf %725, %724 : vector<1x32xf32>
    %730 = arith.addf %728, %729 : vector<1x32xf32>
    %731 = math.tanh %730 : vector<1x32xf32>
    %732 = arith.mulf %727, %731 : vector<1x32xf32>
    %733 = vector.extract_strided_slice %8 {offsets = [0, 64], sizes = [32, 8], strides = [1, 1]} : vector<32x152xf32> to vector<32x8xf32>
    %734 = vector.extract_strided_slice %9 {offsets = [8, 0], sizes = [1, 8], strides = [1, 1]} : vector<19x8xf32> to vector<1x8xf32>
    %735 = vector.extract_strided_slice %10 {offsets = [8, 0], sizes = [1, 8], strides = [1, 1]} : vector<19x8xf32> to vector<1x8xf32>
    %cst_112 = arith.constant dense<0.000000e+00> : vector<1x8xf32>
    %736 = tpu.matmul %732, %733, %cst_112 {dimension_numbers = #tpu.dot_dimension_numbers<[1], [0], [0], [1], [0, 0, 1, 1], [], []>} : vector<1x32xf32>, vector<32x8xf32>, vector<1x8xf32> -> vector<1x8xf32>
    %737 = arith.addf %736, %734 : vector<1x8xf32>
    %cst_113 = arith.constant dense<0xFF800000> : vector<1xf32>
    %738 = vector.multi_reduction <maximumf>, %737, %cst_113 [1] : vector<1x8xf32> to vector<1xf32>
    %739 = vector.shape_cast %738 : vector<1xf32> to vector<1x1xf32>
    %740 = vector.broadcast %739 : vector<1x1xf32> to vector<1x8xf32>
    %741 = arith.subf %737, %740 : vector<1x8xf32>
    %742 = math.exp %741 : vector<1x8xf32>
    %cst_114 = arith.constant dense<0.000000e+00> : vector<1xf32>
    %743 = vector.multi_reduction <add>, %742, %cst_114 [1] : vector<1x8xf32> to vector<1xf32>
    %744 = vector.shape_cast %743 : vector<1xf32> to vector<1x1xf32>
    %745 = tpu.reciprocal %744 {approx = true} : vector<1x1xf32> -> vector<1x1xf32>
    %746 = vector.broadcast %745 : vector<1x1xf32> to vector<1x8xf32>
    %747 = arith.mulf %742, %746 : vector<1x8xf32>
    %748 = vector.broadcast %739 : vector<1x1xf32> to vector<1x8xf32>
    %749 = arith.subf %737, %748 : vector<1x8xf32>
    %750 = math.log %744 : vector<1x1xf32>
    %751 = vector.broadcast %750 : vector<1x1xf32> to vector<1x8xf32>
    %752 = arith.subf %749, %751 : vector<1x8xf32>
    %753 = arith.mulf %747, %752 : vector<1x8xf32>
    %cst_115 = arith.constant dense<0.000000e+00> : vector<1xf32>
    %754 = vector.multi_reduction <add>, %753, %cst_115 [1] : vector<1x8xf32> to vector<1xf32>
    %755 = vector.shape_cast %754 : vector<1xf32> to vector<1x1xf32>
    %756 = arith.subf %690, %755 : vector<1x1xf32>
    %757 = arith.mulf %735, %752 : vector<1x8xf32>
    %cst_116 = arith.constant dense<0.000000e+00> : vector<1xf32>
    %758 = vector.multi_reduction <add>, %757, %cst_116 [1] : vector<1x8xf32> to vector<1xf32>
    %759 = vector.shape_cast %758 : vector<1xf32> to vector<1x1xf32>
    %760 = arith.addf %694, %759 : vector<1x1xf32>
    %761 = tpu.concatenate %732, %713 in 1 : vector<1x32xf32>, vector<1x32xf32> -> vector<1x64xf32>
    %cst_117 = arith.constant dense<0.000000e+00> : vector<1x128xf32>
    %762 = tpu.matmul %761, %1, %cst_117 {dimension_numbers = #tpu.dot_dimension_numbers<[1], [0], [0], [1], [0, 0, 1, 1], [], []>} : vector<1x64xf32>, vector<64x128xf32>, vector<1x128xf32> -> vector<1x128xf32>
    %763 = arith.addf %762, %5 : vector<1x128xf32>
    %764 = vector.extract_strided_slice %763 {offsets = [0, 0], sizes = [1, 96], strides = [1, 1]} : vector<1x128xf32> to vector<1x96xf32>
    %765 = arith.negf %764 : vector<1x96xf32>
    %766 = math.exp %765 : vector<1x96xf32>
    %cst_118 = arith.constant 1.000000e+00 : f32
    %767 = vector.broadcast %cst_118 : f32 to vector<1x96xf32>
    %768 = arith.addf %767, %766 : vector<1x96xf32>
    %769 = arith.divf %767, %768 : vector<1x96xf32>
    %770 = vector.extract_strided_slice %763 {offsets = [0, 96], sizes = [1, 32], strides = [1, 1]} : vector<1x128xf32> to vector<1x32xf32>
    %771 = math.tanh %770 : vector<1x32xf32>
    %772 = vector.extract_strided_slice %769 {offsets = [0, 0], sizes = [1, 32], strides = [1, 1]} : vector<1x96xf32> to vector<1x32xf32>
    %773 = vector.extract_strided_slice %769 {offsets = [0, 32], sizes = [1, 32], strides = [1, 1]} : vector<1x96xf32> to vector<1x32xf32>
    %774 = vector.extract_strided_slice %769 {offsets = [0, 64], sizes = [1, 32], strides = [1, 1]} : vector<1x96xf32> to vector<1x32xf32>
    %775 = arith.mulf %773, %711 : vector<1x32xf32>
    %776 = arith.mulf %772, %771 : vector<1x32xf32>
    %777 = arith.addf %775, %776 : vector<1x32xf32>
    %778 = math.tanh %777 : vector<1x32xf32>
    %779 = arith.mulf %774, %778 : vector<1x32xf32>
    %780 = tpu.concatenate %779, %732 in 1 : vector<1x32xf32>, vector<1x32xf32> -> vector<1x64xf32>
    %cst_119 = arith.constant dense<0.000000e+00> : vector<1x128xf32>
    %781 = tpu.matmul %780, %3, %cst_119 {dimension_numbers = #tpu.dot_dimension_numbers<[1], [0], [0], [1], [0, 0, 1, 1], [], []>} : vector<1x64xf32>, vector<64x128xf32>, vector<1x128xf32> -> vector<1x128xf32>
    %782 = arith.addf %781, %7 : vector<1x128xf32>
    %783 = vector.extract_strided_slice %782 {offsets = [0, 0], sizes = [1, 96], strides = [1, 1]} : vector<1x128xf32> to vector<1x96xf32>
    %784 = arith.negf %783 : vector<1x96xf32>
    %785 = math.exp %784 : vector<1x96xf32>
    %cst_120 = arith.constant 1.000000e+00 : f32
    %786 = vector.broadcast %cst_120 : f32 to vector<1x96xf32>
    %787 = arith.addf %786, %785 : vector<1x96xf32>
    %788 = arith.divf %786, %787 : vector<1x96xf32>
    %789 = vector.extract_strided_slice %782 {offsets = [0, 96], sizes = [1, 32], strides = [1, 1]} : vector<1x128xf32> to vector<1x32xf32>
    %790 = math.tanh %789 : vector<1x32xf32>
    %791 = vector.extract_strided_slice %788 {offsets = [0, 0], sizes = [1, 32], strides = [1, 1]} : vector<1x96xf32> to vector<1x32xf32>
    %792 = vector.extract_strided_slice %788 {offsets = [0, 32], sizes = [1, 32], strides = [1, 1]} : vector<1x96xf32> to vector<1x32xf32>
    %793 = vector.extract_strided_slice %788 {offsets = [0, 64], sizes = [1, 32], strides = [1, 1]} : vector<1x96xf32> to vector<1x32xf32>
    %794 = arith.mulf %792, %730 : vector<1x32xf32>
    %795 = arith.mulf %791, %790 : vector<1x32xf32>
    %796 = arith.addf %794, %795 : vector<1x32xf32>
    %797 = math.tanh %796 : vector<1x32xf32>
    %798 = arith.mulf %793, %797 : vector<1x32xf32>
    %799 = vector.extract_strided_slice %8 {offsets = [0, 72], sizes = [32, 8], strides = [1, 1]} : vector<32x152xf32> to vector<32x8xf32>
    %800 = vector.extract_strided_slice %9 {offsets = [9, 0], sizes = [1, 8], strides = [1, 1]} : vector<19x8xf32> to vector<1x8xf32>
    %801 = vector.extract_strided_slice %10 {offsets = [9, 0], sizes = [1, 8], strides = [1, 1]} : vector<19x8xf32> to vector<1x8xf32>
    %cst_121 = arith.constant dense<0.000000e+00> : vector<1x8xf32>
    %802 = tpu.matmul %798, %799, %cst_121 {dimension_numbers = #tpu.dot_dimension_numbers<[1], [0], [0], [1], [0, 0, 1, 1], [], []>} : vector<1x32xf32>, vector<32x8xf32>, vector<1x8xf32> -> vector<1x8xf32>
    %803 = arith.addf %802, %800 : vector<1x8xf32>
    %cst_122 = arith.constant dense<0xFF800000> : vector<1xf32>
    %804 = vector.multi_reduction <maximumf>, %803, %cst_122 [1] : vector<1x8xf32> to vector<1xf32>
    %805 = vector.shape_cast %804 : vector<1xf32> to vector<1x1xf32>
    %806 = vector.broadcast %805 : vector<1x1xf32> to vector<1x8xf32>
    %807 = arith.subf %803, %806 : vector<1x8xf32>
    %808 = math.exp %807 : vector<1x8xf32>
    %cst_123 = arith.constant dense<0.000000e+00> : vector<1xf32>
    %809 = vector.multi_reduction <add>, %808, %cst_123 [1] : vector<1x8xf32> to vector<1xf32>
    %810 = vector.shape_cast %809 : vector<1xf32> to vector<1x1xf32>
    %811 = tpu.reciprocal %810 {approx = true} : vector<1x1xf32> -> vector<1x1xf32>
    %812 = vector.broadcast %811 : vector<1x1xf32> to vector<1x8xf32>
    %813 = arith.mulf %808, %812 : vector<1x8xf32>
    %814 = vector.broadcast %805 : vector<1x1xf32> to vector<1x8xf32>
    %815 = arith.subf %803, %814 : vector<1x8xf32>
    %816 = math.log %810 : vector<1x1xf32>
    %817 = vector.broadcast %816 : vector<1x1xf32> to vector<1x8xf32>
    %818 = arith.subf %815, %817 : vector<1x8xf32>
    %819 = arith.mulf %813, %818 : vector<1x8xf32>
    %cst_124 = arith.constant dense<0.000000e+00> : vector<1xf32>
    %820 = vector.multi_reduction <add>, %819, %cst_124 [1] : vector<1x8xf32> to vector<1xf32>
    %821 = vector.shape_cast %820 : vector<1xf32> to vector<1x1xf32>
    %822 = arith.subf %756, %821 : vector<1x1xf32>
    %823 = arith.mulf %801, %818 : vector<1x8xf32>
    %cst_125 = arith.constant dense<0.000000e+00> : vector<1xf32>
    %824 = vector.multi_reduction <add>, %823, %cst_125 [1] : vector<1x8xf32> to vector<1xf32>
    %825 = vector.shape_cast %824 : vector<1xf32> to vector<1x1xf32>
    %826 = arith.addf %760, %825 : vector<1x1xf32>
    %827 = tpu.concatenate %798, %779 in 1 : vector<1x32xf32>, vector<1x32xf32> -> vector<1x64xf32>
    %cst_126 = arith.constant dense<0.000000e+00> : vector<1x128xf32>
    %828 = tpu.matmul %827, %1, %cst_126 {dimension_numbers = #tpu.dot_dimension_numbers<[1], [0], [0], [1], [0, 0, 1, 1], [], []>} : vector<1x64xf32>, vector<64x128xf32>, vector<1x128xf32> -> vector<1x128xf32>
    %829 = arith.addf %828, %5 : vector<1x128xf32>
    %830 = vector.extract_strided_slice %829 {offsets = [0, 0], sizes = [1, 96], strides = [1, 1]} : vector<1x128xf32> to vector<1x96xf32>
    %831 = arith.negf %830 : vector<1x96xf32>
    %832 = math.exp %831 : vector<1x96xf32>
    %cst_127 = arith.constant 1.000000e+00 : f32
    %833 = vector.broadcast %cst_127 : f32 to vector<1x96xf32>
    %834 = arith.addf %833, %832 : vector<1x96xf32>
    %835 = arith.divf %833, %834 : vector<1x96xf32>
    %836 = vector.extract_strided_slice %829 {offsets = [0, 96], sizes = [1, 32], strides = [1, 1]} : vector<1x128xf32> to vector<1x32xf32>
    %837 = math.tanh %836 : vector<1x32xf32>
    %838 = vector.extract_strided_slice %835 {offsets = [0, 0], sizes = [1, 32], strides = [1, 1]} : vector<1x96xf32> to vector<1x32xf32>
    %839 = vector.extract_strided_slice %835 {offsets = [0, 32], sizes = [1, 32], strides = [1, 1]} : vector<1x96xf32> to vector<1x32xf32>
    %840 = vector.extract_strided_slice %835 {offsets = [0, 64], sizes = [1, 32], strides = [1, 1]} : vector<1x96xf32> to vector<1x32xf32>
    %841 = arith.mulf %839, %777 : vector<1x32xf32>
    %842 = arith.mulf %838, %837 : vector<1x32xf32>
    %843 = arith.addf %841, %842 : vector<1x32xf32>
    %844 = math.tanh %843 : vector<1x32xf32>
    %845 = arith.mulf %840, %844 : vector<1x32xf32>
    %846 = tpu.concatenate %845, %798 in 1 : vector<1x32xf32>, vector<1x32xf32> -> vector<1x64xf32>
    %cst_128 = arith.constant dense<0.000000e+00> : vector<1x128xf32>
    %847 = tpu.matmul %846, %3, %cst_128 {dimension_numbers = #tpu.dot_dimension_numbers<[1], [0], [0], [1], [0, 0, 1, 1], [], []>} : vector<1x64xf32>, vector<64x128xf32>, vector<1x128xf32> -> vector<1x128xf32>
    %848 = arith.addf %847, %7 : vector<1x128xf32>
    %849 = vector.extract_strided_slice %848 {offsets = [0, 0], sizes = [1, 96], strides = [1, 1]} : vector<1x128xf32> to vector<1x96xf32>
    %850 = arith.negf %849 : vector<1x96xf32>
    %851 = math.exp %850 : vector<1x96xf32>
    %cst_129 = arith.constant 1.000000e+00 : f32
    %852 = vector.broadcast %cst_129 : f32 to vector<1x96xf32>
    %853 = arith.addf %852, %851 : vector<1x96xf32>
    %854 = arith.divf %852, %853 : vector<1x96xf32>
    %855 = vector.extract_strided_slice %848 {offsets = [0, 96], sizes = [1, 32], strides = [1, 1]} : vector<1x128xf32> to vector<1x32xf32>
    %856 = math.tanh %855 : vector<1x32xf32>
    %857 = vector.extract_strided_slice %854 {offsets = [0, 0], sizes = [1, 32], strides = [1, 1]} : vector<1x96xf32> to vector<1x32xf32>
    %858 = vector.extract_strided_slice %854 {offsets = [0, 32], sizes = [1, 32], strides = [1, 1]} : vector<1x96xf32> to vector<1x32xf32>
    %859 = vector.extract_strided_slice %854 {offsets = [0, 64], sizes = [1, 32], strides = [1, 1]} : vector<1x96xf32> to vector<1x32xf32>
    %860 = arith.mulf %858, %796 : vector<1x32xf32>
    %861 = arith.mulf %857, %856 : vector<1x32xf32>
    %862 = arith.addf %860, %861 : vector<1x32xf32>
    %863 = math.tanh %862 : vector<1x32xf32>
    %864 = arith.mulf %859, %863 : vector<1x32xf32>
    %865 = vector.extract_strided_slice %8 {offsets = [0, 80], sizes = [32, 8], strides = [1, 1]} : vector<32x152xf32> to vector<32x8xf32>
    %866 = vector.extract_strided_slice %9 {offsets = [10, 0], sizes = [1, 8], strides = [1, 1]} : vector<19x8xf32> to vector<1x8xf32>
    %867 = vector.extract_strided_slice %10 {offsets = [10, 0], sizes = [1, 8], strides = [1, 1]} : vector<19x8xf32> to vector<1x8xf32>
    %cst_130 = arith.constant dense<0.000000e+00> : vector<1x8xf32>
    %868 = tpu.matmul %864, %865, %cst_130 {dimension_numbers = #tpu.dot_dimension_numbers<[1], [0], [0], [1], [0, 0, 1, 1], [], []>} : vector<1x32xf32>, vector<32x8xf32>, vector<1x8xf32> -> vector<1x8xf32>
    %869 = arith.addf %868, %866 : vector<1x8xf32>
    %cst_131 = arith.constant dense<0xFF800000> : vector<1xf32>
    %870 = vector.multi_reduction <maximumf>, %869, %cst_131 [1] : vector<1x8xf32> to vector<1xf32>
    %871 = vector.shape_cast %870 : vector<1xf32> to vector<1x1xf32>
    %872 = vector.broadcast %871 : vector<1x1xf32> to vector<1x8xf32>
    %873 = arith.subf %869, %872 : vector<1x8xf32>
    %874 = math.exp %873 : vector<1x8xf32>
    %cst_132 = arith.constant dense<0.000000e+00> : vector<1xf32>
    %875 = vector.multi_reduction <add>, %874, %cst_132 [1] : vector<1x8xf32> to vector<1xf32>
    %876 = vector.shape_cast %875 : vector<1xf32> to vector<1x1xf32>
    %877 = tpu.reciprocal %876 {approx = true} : vector<1x1xf32> -> vector<1x1xf32>
    %878 = vector.broadcast %877 : vector<1x1xf32> to vector<1x8xf32>
    %879 = arith.mulf %874, %878 : vector<1x8xf32>
    %880 = vector.broadcast %871 : vector<1x1xf32> to vector<1x8xf32>
    %881 = arith.subf %869, %880 : vector<1x8xf32>
    %882 = math.log %876 : vector<1x1xf32>
    %883 = vector.broadcast %882 : vector<1x1xf32> to vector<1x8xf32>
    %884 = arith.subf %881, %883 : vector<1x8xf32>
    %885 = arith.mulf %879, %884 : vector<1x8xf32>
    %cst_133 = arith.constant dense<0.000000e+00> : vector<1xf32>
    %886 = vector.multi_reduction <add>, %885, %cst_133 [1] : vector<1x8xf32> to vector<1xf32>
    %887 = vector.shape_cast %886 : vector<1xf32> to vector<1x1xf32>
    %888 = arith.subf %822, %887 : vector<1x1xf32>
    %889 = arith.mulf %867, %884 : vector<1x8xf32>
    %cst_134 = arith.constant dense<0.000000e+00> : vector<1xf32>
    %890 = vector.multi_reduction <add>, %889, %cst_134 [1] : vector<1x8xf32> to vector<1xf32>
    %891 = vector.shape_cast %890 : vector<1xf32> to vector<1x1xf32>
    %892 = arith.addf %826, %891 : vector<1x1xf32>
    %893 = tpu.concatenate %864, %845 in 1 : vector<1x32xf32>, vector<1x32xf32> -> vector<1x64xf32>
    %cst_135 = arith.constant dense<0.000000e+00> : vector<1x128xf32>
    %894 = tpu.matmul %893, %1, %cst_135 {dimension_numbers = #tpu.dot_dimension_numbers<[1], [0], [0], [1], [0, 0, 1, 1], [], []>} : vector<1x64xf32>, vector<64x128xf32>, vector<1x128xf32> -> vector<1x128xf32>
    %895 = arith.addf %894, %5 : vector<1x128xf32>
    %896 = vector.extract_strided_slice %895 {offsets = [0, 0], sizes = [1, 96], strides = [1, 1]} : vector<1x128xf32> to vector<1x96xf32>
    %897 = arith.negf %896 : vector<1x96xf32>
    %898 = math.exp %897 : vector<1x96xf32>
    %cst_136 = arith.constant 1.000000e+00 : f32
    %899 = vector.broadcast %cst_136 : f32 to vector<1x96xf32>
    %900 = arith.addf %899, %898 : vector<1x96xf32>
    %901 = arith.divf %899, %900 : vector<1x96xf32>
    %902 = vector.extract_strided_slice %895 {offsets = [0, 96], sizes = [1, 32], strides = [1, 1]} : vector<1x128xf32> to vector<1x32xf32>
    %903 = math.tanh %902 : vector<1x32xf32>
    %904 = vector.extract_strided_slice %901 {offsets = [0, 0], sizes = [1, 32], strides = [1, 1]} : vector<1x96xf32> to vector<1x32xf32>
    %905 = vector.extract_strided_slice %901 {offsets = [0, 32], sizes = [1, 32], strides = [1, 1]} : vector<1x96xf32> to vector<1x32xf32>
    %906 = vector.extract_strided_slice %901 {offsets = [0, 64], sizes = [1, 32], strides = [1, 1]} : vector<1x96xf32> to vector<1x32xf32>
    %907 = arith.mulf %905, %843 : vector<1x32xf32>
    %908 = arith.mulf %904, %903 : vector<1x32xf32>
    %909 = arith.addf %907, %908 : vector<1x32xf32>
    %910 = math.tanh %909 : vector<1x32xf32>
    %911 = arith.mulf %906, %910 : vector<1x32xf32>
    %912 = tpu.concatenate %911, %864 in 1 : vector<1x32xf32>, vector<1x32xf32> -> vector<1x64xf32>
    %cst_137 = arith.constant dense<0.000000e+00> : vector<1x128xf32>
    %913 = tpu.matmul %912, %3, %cst_137 {dimension_numbers = #tpu.dot_dimension_numbers<[1], [0], [0], [1], [0, 0, 1, 1], [], []>} : vector<1x64xf32>, vector<64x128xf32>, vector<1x128xf32> -> vector<1x128xf32>
    %914 = arith.addf %913, %7 : vector<1x128xf32>
    %915 = vector.extract_strided_slice %914 {offsets = [0, 0], sizes = [1, 96], strides = [1, 1]} : vector<1x128xf32> to vector<1x96xf32>
    %916 = arith.negf %915 : vector<1x96xf32>
    %917 = math.exp %916 : vector<1x96xf32>
    %cst_138 = arith.constant 1.000000e+00 : f32
    %918 = vector.broadcast %cst_138 : f32 to vector<1x96xf32>
    %919 = arith.addf %918, %917 : vector<1x96xf32>
    %920 = arith.divf %918, %919 : vector<1x96xf32>
    %921 = vector.extract_strided_slice %914 {offsets = [0, 96], sizes = [1, 32], strides = [1, 1]} : vector<1x128xf32> to vector<1x32xf32>
    %922 = math.tanh %921 : vector<1x32xf32>
    %923 = vector.extract_strided_slice %920 {offsets = [0, 0], sizes = [1, 32], strides = [1, 1]} : vector<1x96xf32> to vector<1x32xf32>
    %924 = vector.extract_strided_slice %920 {offsets = [0, 32], sizes = [1, 32], strides = [1, 1]} : vector<1x96xf32> to vector<1x32xf32>
    %925 = vector.extract_strided_slice %920 {offsets = [0, 64], sizes = [1, 32], strides = [1, 1]} : vector<1x96xf32> to vector<1x32xf32>
    %926 = arith.mulf %924, %862 : vector<1x32xf32>
    %927 = arith.mulf %923, %922 : vector<1x32xf32>
    %928 = arith.addf %926, %927 : vector<1x32xf32>
    %929 = math.tanh %928 : vector<1x32xf32>
    %930 = arith.mulf %925, %929 : vector<1x32xf32>
    %931 = vector.extract_strided_slice %8 {offsets = [0, 88], sizes = [32, 8], strides = [1, 1]} : vector<32x152xf32> to vector<32x8xf32>
    %932 = vector.extract_strided_slice %9 {offsets = [11, 0], sizes = [1, 8], strides = [1, 1]} : vector<19x8xf32> to vector<1x8xf32>
    %933 = vector.extract_strided_slice %10 {offsets = [11, 0], sizes = [1, 8], strides = [1, 1]} : vector<19x8xf32> to vector<1x8xf32>
    %cst_139 = arith.constant dense<0.000000e+00> : vector<1x8xf32>
    %934 = tpu.matmul %930, %931, %cst_139 {dimension_numbers = #tpu.dot_dimension_numbers<[1], [0], [0], [1], [0, 0, 1, 1], [], []>} : vector<1x32xf32>, vector<32x8xf32>, vector<1x8xf32> -> vector<1x8xf32>
    %935 = arith.addf %934, %932 : vector<1x8xf32>
    %cst_140 = arith.constant dense<0xFF800000> : vector<1xf32>
    %936 = vector.multi_reduction <maximumf>, %935, %cst_140 [1] : vector<1x8xf32> to vector<1xf32>
    %937 = vector.shape_cast %936 : vector<1xf32> to vector<1x1xf32>
    %938 = vector.broadcast %937 : vector<1x1xf32> to vector<1x8xf32>
    %939 = arith.subf %935, %938 : vector<1x8xf32>
    %940 = math.exp %939 : vector<1x8xf32>
    %cst_141 = arith.constant dense<0.000000e+00> : vector<1xf32>
    %941 = vector.multi_reduction <add>, %940, %cst_141 [1] : vector<1x8xf32> to vector<1xf32>
    %942 = vector.shape_cast %941 : vector<1xf32> to vector<1x1xf32>
    %943 = tpu.reciprocal %942 {approx = true} : vector<1x1xf32> -> vector<1x1xf32>
    %944 = vector.broadcast %943 : vector<1x1xf32> to vector<1x8xf32>
    %945 = arith.mulf %940, %944 : vector<1x8xf32>
    %946 = vector.broadcast %937 : vector<1x1xf32> to vector<1x8xf32>
    %947 = arith.subf %935, %946 : vector<1x8xf32>
    %948 = math.log %942 : vector<1x1xf32>
    %949 = vector.broadcast %948 : vector<1x1xf32> to vector<1x8xf32>
    %950 = arith.subf %947, %949 : vector<1x8xf32>
    %951 = arith.mulf %945, %950 : vector<1x8xf32>
    %cst_142 = arith.constant dense<0.000000e+00> : vector<1xf32>
    %952 = vector.multi_reduction <add>, %951, %cst_142 [1] : vector<1x8xf32> to vector<1xf32>
    %953 = vector.shape_cast %952 : vector<1xf32> to vector<1x1xf32>
    %954 = arith.subf %888, %953 : vector<1x1xf32>
    %955 = arith.mulf %933, %950 : vector<1x8xf32>
    %cst_143 = arith.constant dense<0.000000e+00> : vector<1xf32>
    %956 = vector.multi_reduction <add>, %955, %cst_143 [1] : vector<1x8xf32> to vector<1xf32>
    %957 = vector.shape_cast %956 : vector<1xf32> to vector<1x1xf32>
    %958 = arith.addf %892, %957 : vector<1x1xf32>
    %959 = tpu.concatenate %930, %911 in 1 : vector<1x32xf32>, vector<1x32xf32> -> vector<1x64xf32>
    %cst_144 = arith.constant dense<0.000000e+00> : vector<1x128xf32>
    %960 = tpu.matmul %959, %1, %cst_144 {dimension_numbers = #tpu.dot_dimension_numbers<[1], [0], [0], [1], [0, 0, 1, 1], [], []>} : vector<1x64xf32>, vector<64x128xf32>, vector<1x128xf32> -> vector<1x128xf32>
    %961 = arith.addf %960, %5 : vector<1x128xf32>
    %962 = vector.extract_strided_slice %961 {offsets = [0, 0], sizes = [1, 96], strides = [1, 1]} : vector<1x128xf32> to vector<1x96xf32>
    %963 = arith.negf %962 : vector<1x96xf32>
    %964 = math.exp %963 : vector<1x96xf32>
    %cst_145 = arith.constant 1.000000e+00 : f32
    %965 = vector.broadcast %cst_145 : f32 to vector<1x96xf32>
    %966 = arith.addf %965, %964 : vector<1x96xf32>
    %967 = arith.divf %965, %966 : vector<1x96xf32>
    %968 = vector.extract_strided_slice %961 {offsets = [0, 96], sizes = [1, 32], strides = [1, 1]} : vector<1x128xf32> to vector<1x32xf32>
    %969 = math.tanh %968 : vector<1x32xf32>
    %970 = vector.extract_strided_slice %967 {offsets = [0, 0], sizes = [1, 32], strides = [1, 1]} : vector<1x96xf32> to vector<1x32xf32>
    %971 = vector.extract_strided_slice %967 {offsets = [0, 32], sizes = [1, 32], strides = [1, 1]} : vector<1x96xf32> to vector<1x32xf32>
    %972 = vector.extract_strided_slice %967 {offsets = [0, 64], sizes = [1, 32], strides = [1, 1]} : vector<1x96xf32> to vector<1x32xf32>
    %973 = arith.mulf %971, %909 : vector<1x32xf32>
    %974 = arith.mulf %970, %969 : vector<1x32xf32>
    %975 = arith.addf %973, %974 : vector<1x32xf32>
    %976 = math.tanh %975 : vector<1x32xf32>
    %977 = arith.mulf %972, %976 : vector<1x32xf32>
    %978 = tpu.concatenate %977, %930 in 1 : vector<1x32xf32>, vector<1x32xf32> -> vector<1x64xf32>
    %cst_146 = arith.constant dense<0.000000e+00> : vector<1x128xf32>
    %979 = tpu.matmul %978, %3, %cst_146 {dimension_numbers = #tpu.dot_dimension_numbers<[1], [0], [0], [1], [0, 0, 1, 1], [], []>} : vector<1x64xf32>, vector<64x128xf32>, vector<1x128xf32> -> vector<1x128xf32>
    %980 = arith.addf %979, %7 : vector<1x128xf32>
    %981 = vector.extract_strided_slice %980 {offsets = [0, 0], sizes = [1, 96], strides = [1, 1]} : vector<1x128xf32> to vector<1x96xf32>
    %982 = arith.negf %981 : vector<1x96xf32>
    %983 = math.exp %982 : vector<1x96xf32>
    %cst_147 = arith.constant 1.000000e+00 : f32
    %984 = vector.broadcast %cst_147 : f32 to vector<1x96xf32>
    %985 = arith.addf %984, %983 : vector<1x96xf32>
    %986 = arith.divf %984, %985 : vector<1x96xf32>
    %987 = vector.extract_strided_slice %980 {offsets = [0, 96], sizes = [1, 32], strides = [1, 1]} : vector<1x128xf32> to vector<1x32xf32>
    %988 = math.tanh %987 : vector<1x32xf32>
    %989 = vector.extract_strided_slice %986 {offsets = [0, 0], sizes = [1, 32], strides = [1, 1]} : vector<1x96xf32> to vector<1x32xf32>
    %990 = vector.extract_strided_slice %986 {offsets = [0, 32], sizes = [1, 32], strides = [1, 1]} : vector<1x96xf32> to vector<1x32xf32>
    %991 = vector.extract_strided_slice %986 {offsets = [0, 64], sizes = [1, 32], strides = [1, 1]} : vector<1x96xf32> to vector<1x32xf32>
    %992 = arith.mulf %990, %928 : vector<1x32xf32>
    %993 = arith.mulf %989, %988 : vector<1x32xf32>
    %994 = arith.addf %992, %993 : vector<1x32xf32>
    %995 = math.tanh %994 : vector<1x32xf32>
    %996 = arith.mulf %991, %995 : vector<1x32xf32>
    %997 = vector.extract_strided_slice %8 {offsets = [0, 96], sizes = [32, 8], strides = [1, 1]} : vector<32x152xf32> to vector<32x8xf32>
    %998 = vector.extract_strided_slice %9 {offsets = [12, 0], sizes = [1, 8], strides = [1, 1]} : vector<19x8xf32> to vector<1x8xf32>
    %999 = vector.extract_strided_slice %10 {offsets = [12, 0], sizes = [1, 8], strides = [1, 1]} : vector<19x8xf32> to vector<1x8xf32>
    %cst_148 = arith.constant dense<0.000000e+00> : vector<1x8xf32>
    %1000 = tpu.matmul %996, %997, %cst_148 {dimension_numbers = #tpu.dot_dimension_numbers<[1], [0], [0], [1], [0, 0, 1, 1], [], []>} : vector<1x32xf32>, vector<32x8xf32>, vector<1x8xf32> -> vector<1x8xf32>
    %1001 = arith.addf %1000, %998 : vector<1x8xf32>
    %cst_149 = arith.constant dense<0xFF800000> : vector<1xf32>
    %1002 = vector.multi_reduction <maximumf>, %1001, %cst_149 [1] : vector<1x8xf32> to vector<1xf32>
    %1003 = vector.shape_cast %1002 : vector<1xf32> to vector<1x1xf32>
    %1004 = vector.broadcast %1003 : vector<1x1xf32> to vector<1x8xf32>
    %1005 = arith.subf %1001, %1004 : vector<1x8xf32>
    %1006 = math.exp %1005 : vector<1x8xf32>
    %cst_150 = arith.constant dense<0.000000e+00> : vector<1xf32>
    %1007 = vector.multi_reduction <add>, %1006, %cst_150 [1] : vector<1x8xf32> to vector<1xf32>
    %1008 = vector.shape_cast %1007 : vector<1xf32> to vector<1x1xf32>
    %1009 = tpu.reciprocal %1008 {approx = true} : vector<1x1xf32> -> vector<1x1xf32>
    %1010 = vector.broadcast %1009 : vector<1x1xf32> to vector<1x8xf32>
    %1011 = arith.mulf %1006, %1010 : vector<1x8xf32>
    %1012 = vector.broadcast %1003 : vector<1x1xf32> to vector<1x8xf32>
    %1013 = arith.subf %1001, %1012 : vector<1x8xf32>
    %1014 = math.log %1008 : vector<1x1xf32>
    %1015 = vector.broadcast %1014 : vector<1x1xf32> to vector<1x8xf32>
    %1016 = arith.subf %1013, %1015 : vector<1x8xf32>
    %1017 = arith.mulf %1011, %1016 : vector<1x8xf32>
    %cst_151 = arith.constant dense<0.000000e+00> : vector<1xf32>
    %1018 = vector.multi_reduction <add>, %1017, %cst_151 [1] : vector<1x8xf32> to vector<1xf32>
    %1019 = vector.shape_cast %1018 : vector<1xf32> to vector<1x1xf32>
    %1020 = arith.subf %954, %1019 : vector<1x1xf32>
    %1021 = arith.mulf %999, %1016 : vector<1x8xf32>
    %cst_152 = arith.constant dense<0.000000e+00> : vector<1xf32>
    %1022 = vector.multi_reduction <add>, %1021, %cst_152 [1] : vector<1x8xf32> to vector<1xf32>
    %1023 = vector.shape_cast %1022 : vector<1xf32> to vector<1x1xf32>
    %1024 = arith.addf %958, %1023 : vector<1x1xf32>
    %1025 = tpu.concatenate %996, %977 in 1 : vector<1x32xf32>, vector<1x32xf32> -> vector<1x64xf32>
    %cst_153 = arith.constant dense<0.000000e+00> : vector<1x128xf32>
    %1026 = tpu.matmul %1025, %1, %cst_153 {dimension_numbers = #tpu.dot_dimension_numbers<[1], [0], [0], [1], [0, 0, 1, 1], [], []>} : vector<1x64xf32>, vector<64x128xf32>, vector<1x128xf32> -> vector<1x128xf32>
    %1027 = arith.addf %1026, %5 : vector<1x128xf32>
    %1028 = vector.extract_strided_slice %1027 {offsets = [0, 0], sizes = [1, 96], strides = [1, 1]} : vector<1x128xf32> to vector<1x96xf32>
    %1029 = arith.negf %1028 : vector<1x96xf32>
    %1030 = math.exp %1029 : vector<1x96xf32>
    %cst_154 = arith.constant 1.000000e+00 : f32
    %1031 = vector.broadcast %cst_154 : f32 to vector<1x96xf32>
    %1032 = arith.addf %1031, %1030 : vector<1x96xf32>
    %1033 = arith.divf %1031, %1032 : vector<1x96xf32>
    %1034 = vector.extract_strided_slice %1027 {offsets = [0, 96], sizes = [1, 32], strides = [1, 1]} : vector<1x128xf32> to vector<1x32xf32>
    %1035 = math.tanh %1034 : vector<1x32xf32>
    %1036 = vector.extract_strided_slice %1033 {offsets = [0, 0], sizes = [1, 32], strides = [1, 1]} : vector<1x96xf32> to vector<1x32xf32>
    %1037 = vector.extract_strided_slice %1033 {offsets = [0, 32], sizes = [1, 32], strides = [1, 1]} : vector<1x96xf32> to vector<1x32xf32>
    %1038 = vector.extract_strided_slice %1033 {offsets = [0, 64], sizes = [1, 32], strides = [1, 1]} : vector<1x96xf32> to vector<1x32xf32>
    %1039 = arith.mulf %1037, %975 : vector<1x32xf32>
    %1040 = arith.mulf %1036, %1035 : vector<1x32xf32>
    %1041 = arith.addf %1039, %1040 : vector<1x32xf32>
    %1042 = math.tanh %1041 : vector<1x32xf32>
    %1043 = arith.mulf %1038, %1042 : vector<1x32xf32>
    %1044 = tpu.concatenate %1043, %996 in 1 : vector<1x32xf32>, vector<1x32xf32> -> vector<1x64xf32>
    %cst_155 = arith.constant dense<0.000000e+00> : vector<1x128xf32>
    %1045 = tpu.matmul %1044, %3, %cst_155 {dimension_numbers = #tpu.dot_dimension_numbers<[1], [0], [0], [1], [0, 0, 1, 1], [], []>} : vector<1x64xf32>, vector<64x128xf32>, vector<1x128xf32> -> vector<1x128xf32>
    %1046 = arith.addf %1045, %7 : vector<1x128xf32>
    %1047 = vector.extract_strided_slice %1046 {offsets = [0, 0], sizes = [1, 96], strides = [1, 1]} : vector<1x128xf32> to vector<1x96xf32>
    %1048 = arith.negf %1047 : vector<1x96xf32>
    %1049 = math.exp %1048 : vector<1x96xf32>
    %cst_156 = arith.constant 1.000000e+00 : f32
    %1050 = vector.broadcast %cst_156 : f32 to vector<1x96xf32>
    %1051 = arith.addf %1050, %1049 : vector<1x96xf32>
    %1052 = arith.divf %1050, %1051 : vector<1x96xf32>
    %1053 = vector.extract_strided_slice %1046 {offsets = [0, 96], sizes = [1, 32], strides = [1, 1]} : vector<1x128xf32> to vector<1x32xf32>
    %1054 = math.tanh %1053 : vector<1x32xf32>
    %1055 = vector.extract_strided_slice %1052 {offsets = [0, 0], sizes = [1, 32], strides = [1, 1]} : vector<1x96xf32> to vector<1x32xf32>
    %1056 = vector.extract_strided_slice %1052 {offsets = [0, 32], sizes = [1, 32], strides = [1, 1]} : vector<1x96xf32> to vector<1x32xf32>
    %1057 = vector.extract_strided_slice %1052 {offsets = [0, 64], sizes = [1, 32], strides = [1, 1]} : vector<1x96xf32> to vector<1x32xf32>
    %1058 = arith.mulf %1056, %994 : vector<1x32xf32>
    %1059 = arith.mulf %1055, %1054 : vector<1x32xf32>
    %1060 = arith.addf %1058, %1059 : vector<1x32xf32>
    %1061 = math.tanh %1060 : vector<1x32xf32>
    %1062 = arith.mulf %1057, %1061 : vector<1x32xf32>
    %1063 = vector.extract_strided_slice %8 {offsets = [0, 104], sizes = [32, 8], strides = [1, 1]} : vector<32x152xf32> to vector<32x8xf32>
    %1064 = vector.extract_strided_slice %9 {offsets = [13, 0], sizes = [1, 8], strides = [1, 1]} : vector<19x8xf32> to vector<1x8xf32>
    %1065 = vector.extract_strided_slice %10 {offsets = [13, 0], sizes = [1, 8], strides = [1, 1]} : vector<19x8xf32> to vector<1x8xf32>
    %cst_157 = arith.constant dense<0.000000e+00> : vector<1x8xf32>
    %1066 = tpu.matmul %1062, %1063, %cst_157 {dimension_numbers = #tpu.dot_dimension_numbers<[1], [0], [0], [1], [0, 0, 1, 1], [], []>} : vector<1x32xf32>, vector<32x8xf32>, vector<1x8xf32> -> vector<1x8xf32>
    %1067 = arith.addf %1066, %1064 : vector<1x8xf32>
    %cst_158 = arith.constant dense<0xFF800000> : vector<1xf32>
    %1068 = vector.multi_reduction <maximumf>, %1067, %cst_158 [1] : vector<1x8xf32> to vector<1xf32>
    %1069 = vector.shape_cast %1068 : vector<1xf32> to vector<1x1xf32>
    %1070 = vector.broadcast %1069 : vector<1x1xf32> to vector<1x8xf32>
    %1071 = arith.subf %1067, %1070 : vector<1x8xf32>
    %1072 = math.exp %1071 : vector<1x8xf32>
    %cst_159 = arith.constant dense<0.000000e+00> : vector<1xf32>
    %1073 = vector.multi_reduction <add>, %1072, %cst_159 [1] : vector<1x8xf32> to vector<1xf32>
    %1074 = vector.shape_cast %1073 : vector<1xf32> to vector<1x1xf32>
    %1075 = tpu.reciprocal %1074 {approx = true} : vector<1x1xf32> -> vector<1x1xf32>
    %1076 = vector.broadcast %1075 : vector<1x1xf32> to vector<1x8xf32>
    %1077 = arith.mulf %1072, %1076 : vector<1x8xf32>
    %1078 = vector.broadcast %1069 : vector<1x1xf32> to vector<1x8xf32>
    %1079 = arith.subf %1067, %1078 : vector<1x8xf32>
    %1080 = math.log %1074 : vector<1x1xf32>
    %1081 = vector.broadcast %1080 : vector<1x1xf32> to vector<1x8xf32>
    %1082 = arith.subf %1079, %1081 : vector<1x8xf32>
    %1083 = arith.mulf %1077, %1082 : vector<1x8xf32>
    %cst_160 = arith.constant dense<0.000000e+00> : vector<1xf32>
    %1084 = vector.multi_reduction <add>, %1083, %cst_160 [1] : vector<1x8xf32> to vector<1xf32>
    %1085 = vector.shape_cast %1084 : vector<1xf32> to vector<1x1xf32>
    %1086 = arith.subf %1020, %1085 : vector<1x1xf32>
    %1087 = arith.mulf %1065, %1082 : vector<1x8xf32>
    %cst_161 = arith.constant dense<0.000000e+00> : vector<1xf32>
    %1088 = vector.multi_reduction <add>, %1087, %cst_161 [1] : vector<1x8xf32> to vector<1xf32>
    %1089 = vector.shape_cast %1088 : vector<1xf32> to vector<1x1xf32>
    %1090 = arith.addf %1024, %1089 : vector<1x1xf32>
    %1091 = tpu.concatenate %1062, %1043 in 1 : vector<1x32xf32>, vector<1x32xf32> -> vector<1x64xf32>
    %cst_162 = arith.constant dense<0.000000e+00> : vector<1x128xf32>
    %1092 = tpu.matmul %1091, %1, %cst_162 {dimension_numbers = #tpu.dot_dimension_numbers<[1], [0], [0], [1], [0, 0, 1, 1], [], []>} : vector<1x64xf32>, vector<64x128xf32>, vector<1x128xf32> -> vector<1x128xf32>
    %1093 = arith.addf %1092, %5 : vector<1x128xf32>
    %1094 = vector.extract_strided_slice %1093 {offsets = [0, 0], sizes = [1, 96], strides = [1, 1]} : vector<1x128xf32> to vector<1x96xf32>
    %1095 = arith.negf %1094 : vector<1x96xf32>
    %1096 = math.exp %1095 : vector<1x96xf32>
    %cst_163 = arith.constant 1.000000e+00 : f32
    %1097 = vector.broadcast %cst_163 : f32 to vector<1x96xf32>
    %1098 = arith.addf %1097, %1096 : vector<1x96xf32>
    %1099 = arith.divf %1097, %1098 : vector<1x96xf32>
    %1100 = vector.extract_strided_slice %1093 {offsets = [0, 96], sizes = [1, 32], strides = [1, 1]} : vector<1x128xf32> to vector<1x32xf32>
    %1101 = math.tanh %1100 : vector<1x32xf32>
    %1102 = vector.extract_strided_slice %1099 {offsets = [0, 0], sizes = [1, 32], strides = [1, 1]} : vector<1x96xf32> to vector<1x32xf32>
    %1103 = vector.extract_strided_slice %1099 {offsets = [0, 32], sizes = [1, 32], strides = [1, 1]} : vector<1x96xf32> to vector<1x32xf32>
    %1104 = vector.extract_strided_slice %1099 {offsets = [0, 64], sizes = [1, 32], strides = [1, 1]} : vector<1x96xf32> to vector<1x32xf32>
    %1105 = arith.mulf %1103, %1041 : vector<1x32xf32>
    %1106 = arith.mulf %1102, %1101 : vector<1x32xf32>
    %1107 = arith.addf %1105, %1106 : vector<1x32xf32>
    %1108 = math.tanh %1107 : vector<1x32xf32>
    %1109 = arith.mulf %1104, %1108 : vector<1x32xf32>
    %1110 = tpu.concatenate %1109, %1062 in 1 : vector<1x32xf32>, vector<1x32xf32> -> vector<1x64xf32>
    %cst_164 = arith.constant dense<0.000000e+00> : vector<1x128xf32>
    %1111 = tpu.matmul %1110, %3, %cst_164 {dimension_numbers = #tpu.dot_dimension_numbers<[1], [0], [0], [1], [0, 0, 1, 1], [], []>} : vector<1x64xf32>, vector<64x128xf32>, vector<1x128xf32> -> vector<1x128xf32>
    %1112 = arith.addf %1111, %7 : vector<1x128xf32>
    %1113 = vector.extract_strided_slice %1112 {offsets = [0, 0], sizes = [1, 96], strides = [1, 1]} : vector<1x128xf32> to vector<1x96xf32>
    %1114 = arith.negf %1113 : vector<1x96xf32>
    %1115 = math.exp %1114 : vector<1x96xf32>
    %cst_165 = arith.constant 1.000000e+00 : f32
    %1116 = vector.broadcast %cst_165 : f32 to vector<1x96xf32>
    %1117 = arith.addf %1116, %1115 : vector<1x96xf32>
    %1118 = arith.divf %1116, %1117 : vector<1x96xf32>
    %1119 = vector.extract_strided_slice %1112 {offsets = [0, 96], sizes = [1, 32], strides = [1, 1]} : vector<1x128xf32> to vector<1x32xf32>
    %1120 = math.tanh %1119 : vector<1x32xf32>
    %1121 = vector.extract_strided_slice %1118 {offsets = [0, 0], sizes = [1, 32], strides = [1, 1]} : vector<1x96xf32> to vector<1x32xf32>
    %1122 = vector.extract_strided_slice %1118 {offsets = [0, 32], sizes = [1, 32], strides = [1, 1]} : vector<1x96xf32> to vector<1x32xf32>
    %1123 = vector.extract_strided_slice %1118 {offsets = [0, 64], sizes = [1, 32], strides = [1, 1]} : vector<1x96xf32> to vector<1x32xf32>
    %1124 = arith.mulf %1122, %1060 : vector<1x32xf32>
    %1125 = arith.mulf %1121, %1120 : vector<1x32xf32>
    %1126 = arith.addf %1124, %1125 : vector<1x32xf32>
    %1127 = math.tanh %1126 : vector<1x32xf32>
    %1128 = arith.mulf %1123, %1127 : vector<1x32xf32>
    %1129 = vector.extract_strided_slice %8 {offsets = [0, 112], sizes = [32, 8], strides = [1, 1]} : vector<32x152xf32> to vector<32x8xf32>
    %1130 = vector.extract_strided_slice %9 {offsets = [14, 0], sizes = [1, 8], strides = [1, 1]} : vector<19x8xf32> to vector<1x8xf32>
    %1131 = vector.extract_strided_slice %10 {offsets = [14, 0], sizes = [1, 8], strides = [1, 1]} : vector<19x8xf32> to vector<1x8xf32>
    %cst_166 = arith.constant dense<0.000000e+00> : vector<1x8xf32>
    %1132 = tpu.matmul %1128, %1129, %cst_166 {dimension_numbers = #tpu.dot_dimension_numbers<[1], [0], [0], [1], [0, 0, 1, 1], [], []>} : vector<1x32xf32>, vector<32x8xf32>, vector<1x8xf32> -> vector<1x8xf32>
    %1133 = arith.addf %1132, %1130 : vector<1x8xf32>
    %cst_167 = arith.constant dense<0xFF800000> : vector<1xf32>
    %1134 = vector.multi_reduction <maximumf>, %1133, %cst_167 [1] : vector<1x8xf32> to vector<1xf32>
    %1135 = vector.shape_cast %1134 : vector<1xf32> to vector<1x1xf32>
    %1136 = vector.broadcast %1135 : vector<1x1xf32> to vector<1x8xf32>
    %1137 = arith.subf %1133, %1136 : vector<1x8xf32>
    %1138 = math.exp %1137 : vector<1x8xf32>
    %cst_168 = arith.constant dense<0.000000e+00> : vector<1xf32>
    %1139 = vector.multi_reduction <add>, %1138, %cst_168 [1] : vector<1x8xf32> to vector<1xf32>
    %1140 = vector.shape_cast %1139 : vector<1xf32> to vector<1x1xf32>
    %1141 = tpu.reciprocal %1140 {approx = true} : vector<1x1xf32> -> vector<1x1xf32>
    %1142 = vector.broadcast %1141 : vector<1x1xf32> to vector<1x8xf32>
    %1143 = arith.mulf %1138, %1142 : vector<1x8xf32>
    %1144 = vector.broadcast %1135 : vector<1x1xf32> to vector<1x8xf32>
    %1145 = arith.subf %1133, %1144 : vector<1x8xf32>
    %1146 = math.log %1140 : vector<1x1xf32>
    %1147 = vector.broadcast %1146 : vector<1x1xf32> to vector<1x8xf32>
    %1148 = arith.subf %1145, %1147 : vector<1x8xf32>
    %1149 = arith.mulf %1143, %1148 : vector<1x8xf32>
    %cst_169 = arith.constant dense<0.000000e+00> : vector<1xf32>
    %1150 = vector.multi_reduction <add>, %1149, %cst_169 [1] : vector<1x8xf32> to vector<1xf32>
    %1151 = vector.shape_cast %1150 : vector<1xf32> to vector<1x1xf32>
    %1152 = arith.subf %1086, %1151 : vector<1x1xf32>
    %1153 = arith.mulf %1131, %1148 : vector<1x8xf32>
    %cst_170 = arith.constant dense<0.000000e+00> : vector<1xf32>
    %1154 = vector.multi_reduction <add>, %1153, %cst_170 [1] : vector<1x8xf32> to vector<1xf32>
    %1155 = vector.shape_cast %1154 : vector<1xf32> to vector<1x1xf32>
    %1156 = arith.addf %1090, %1155 : vector<1x1xf32>
    %1157 = tpu.concatenate %1128, %1109 in 1 : vector<1x32xf32>, vector<1x32xf32> -> vector<1x64xf32>
    %cst_171 = arith.constant dense<0.000000e+00> : vector<1x128xf32>
    %1158 = tpu.matmul %1157, %1, %cst_171 {dimension_numbers = #tpu.dot_dimension_numbers<[1], [0], [0], [1], [0, 0, 1, 1], [], []>} : vector<1x64xf32>, vector<64x128xf32>, vector<1x128xf32> -> vector<1x128xf32>
    %1159 = arith.addf %1158, %5 : vector<1x128xf32>
    %1160 = vector.extract_strided_slice %1159 {offsets = [0, 0], sizes = [1, 96], strides = [1, 1]} : vector<1x128xf32> to vector<1x96xf32>
    %1161 = arith.negf %1160 : vector<1x96xf32>
    %1162 = math.exp %1161 : vector<1x96xf32>
    %cst_172 = arith.constant 1.000000e+00 : f32
    %1163 = vector.broadcast %cst_172 : f32 to vector<1x96xf32>
    %1164 = arith.addf %1163, %1162 : vector<1x96xf32>
    %1165 = arith.divf %1163, %1164 : vector<1x96xf32>
    %1166 = vector.extract_strided_slice %1159 {offsets = [0, 96], sizes = [1, 32], strides = [1, 1]} : vector<1x128xf32> to vector<1x32xf32>
    %1167 = math.tanh %1166 : vector<1x32xf32>
    %1168 = vector.extract_strided_slice %1165 {offsets = [0, 0], sizes = [1, 32], strides = [1, 1]} : vector<1x96xf32> to vector<1x32xf32>
    %1169 = vector.extract_strided_slice %1165 {offsets = [0, 32], sizes = [1, 32], strides = [1, 1]} : vector<1x96xf32> to vector<1x32xf32>
    %1170 = vector.extract_strided_slice %1165 {offsets = [0, 64], sizes = [1, 32], strides = [1, 1]} : vector<1x96xf32> to vector<1x32xf32>
    %1171 = arith.mulf %1169, %1107 : vector<1x32xf32>
    %1172 = arith.mulf %1168, %1167 : vector<1x32xf32>
    %1173 = arith.addf %1171, %1172 : vector<1x32xf32>
    %1174 = math.tanh %1173 : vector<1x32xf32>
    %1175 = arith.mulf %1170, %1174 : vector<1x32xf32>
    %1176 = tpu.concatenate %1175, %1128 in 1 : vector<1x32xf32>, vector<1x32xf32> -> vector<1x64xf32>
    %cst_173 = arith.constant dense<0.000000e+00> : vector<1x128xf32>
    %1177 = tpu.matmul %1176, %3, %cst_173 {dimension_numbers = #tpu.dot_dimension_numbers<[1], [0], [0], [1], [0, 0, 1, 1], [], []>} : vector<1x64xf32>, vector<64x128xf32>, vector<1x128xf32> -> vector<1x128xf32>
    %1178 = arith.addf %1177, %7 : vector<1x128xf32>
    %1179 = vector.extract_strided_slice %1178 {offsets = [0, 0], sizes = [1, 96], strides = [1, 1]} : vector<1x128xf32> to vector<1x96xf32>
    %1180 = arith.negf %1179 : vector<1x96xf32>
    %1181 = math.exp %1180 : vector<1x96xf32>
    %cst_174 = arith.constant 1.000000e+00 : f32
    %1182 = vector.broadcast %cst_174 : f32 to vector<1x96xf32>
    %1183 = arith.addf %1182, %1181 : vector<1x96xf32>
    %1184 = arith.divf %1182, %1183 : vector<1x96xf32>
    %1185 = vector.extract_strided_slice %1178 {offsets = [0, 96], sizes = [1, 32], strides = [1, 1]} : vector<1x128xf32> to vector<1x32xf32>
    %1186 = math.tanh %1185 : vector<1x32xf32>
    %1187 = vector.extract_strided_slice %1184 {offsets = [0, 0], sizes = [1, 32], strides = [1, 1]} : vector<1x96xf32> to vector<1x32xf32>
    %1188 = vector.extract_strided_slice %1184 {offsets = [0, 32], sizes = [1, 32], strides = [1, 1]} : vector<1x96xf32> to vector<1x32xf32>
    %1189 = vector.extract_strided_slice %1184 {offsets = [0, 64], sizes = [1, 32], strides = [1, 1]} : vector<1x96xf32> to vector<1x32xf32>
    %1190 = arith.mulf %1188, %1126 : vector<1x32xf32>
    %1191 = arith.mulf %1187, %1186 : vector<1x32xf32>
    %1192 = arith.addf %1190, %1191 : vector<1x32xf32>
    %1193 = math.tanh %1192 : vector<1x32xf32>
    %1194 = arith.mulf %1189, %1193 : vector<1x32xf32>
    %1195 = vector.extract_strided_slice %8 {offsets = [0, 120], sizes = [32, 8], strides = [1, 1]} : vector<32x152xf32> to vector<32x8xf32>
    %1196 = vector.extract_strided_slice %9 {offsets = [15, 0], sizes = [1, 8], strides = [1, 1]} : vector<19x8xf32> to vector<1x8xf32>
    %1197 = vector.extract_strided_slice %10 {offsets = [15, 0], sizes = [1, 8], strides = [1, 1]} : vector<19x8xf32> to vector<1x8xf32>
    %cst_175 = arith.constant dense<0.000000e+00> : vector<1x8xf32>
    %1198 = tpu.matmul %1194, %1195, %cst_175 {dimension_numbers = #tpu.dot_dimension_numbers<[1], [0], [0], [1], [0, 0, 1, 1], [], []>} : vector<1x32xf32>, vector<32x8xf32>, vector<1x8xf32> -> vector<1x8xf32>
    %1199 = arith.addf %1198, %1196 : vector<1x8xf32>
    %cst_176 = arith.constant dense<0xFF800000> : vector<1xf32>
    %1200 = vector.multi_reduction <maximumf>, %1199, %cst_176 [1] : vector<1x8xf32> to vector<1xf32>
    %1201 = vector.shape_cast %1200 : vector<1xf32> to vector<1x1xf32>
    %1202 = vector.broadcast %1201 : vector<1x1xf32> to vector<1x8xf32>
    %1203 = arith.subf %1199, %1202 : vector<1x8xf32>
    %1204 = math.exp %1203 : vector<1x8xf32>
    %cst_177 = arith.constant dense<0.000000e+00> : vector<1xf32>
    %1205 = vector.multi_reduction <add>, %1204, %cst_177 [1] : vector<1x8xf32> to vector<1xf32>
    %1206 = vector.shape_cast %1205 : vector<1xf32> to vector<1x1xf32>
    %1207 = tpu.reciprocal %1206 {approx = true} : vector<1x1xf32> -> vector<1x1xf32>
    %1208 = vector.broadcast %1207 : vector<1x1xf32> to vector<1x8xf32>
    %1209 = arith.mulf %1204, %1208 : vector<1x8xf32>
    %1210 = vector.broadcast %1201 : vector<1x1xf32> to vector<1x8xf32>
    %1211 = arith.subf %1199, %1210 : vector<1x8xf32>
    %1212 = math.log %1206 : vector<1x1xf32>
    %1213 = vector.broadcast %1212 : vector<1x1xf32> to vector<1x8xf32>
    %1214 = arith.subf %1211, %1213 : vector<1x8xf32>
    %1215 = arith.mulf %1209, %1214 : vector<1x8xf32>
    %cst_178 = arith.constant dense<0.000000e+00> : vector<1xf32>
    %1216 = vector.multi_reduction <add>, %1215, %cst_178 [1] : vector<1x8xf32> to vector<1xf32>
    %1217 = vector.shape_cast %1216 : vector<1xf32> to vector<1x1xf32>
    %1218 = arith.subf %1152, %1217 : vector<1x1xf32>
    %1219 = arith.mulf %1197, %1214 : vector<1x8xf32>
    %cst_179 = arith.constant dense<0.000000e+00> : vector<1xf32>
    %1220 = vector.multi_reduction <add>, %1219, %cst_179 [1] : vector<1x8xf32> to vector<1xf32>
    %1221 = vector.shape_cast %1220 : vector<1xf32> to vector<1x1xf32>
    %1222 = arith.addf %1156, %1221 : vector<1x1xf32>
    %1223 = tpu.concatenate %1194, %1175 in 1 : vector<1x32xf32>, vector<1x32xf32> -> vector<1x64xf32>
    %cst_180 = arith.constant dense<0.000000e+00> : vector<1x128xf32>
    %1224 = tpu.matmul %1223, %1, %cst_180 {dimension_numbers = #tpu.dot_dimension_numbers<[1], [0], [0], [1], [0, 0, 1, 1], [], []>} : vector<1x64xf32>, vector<64x128xf32>, vector<1x128xf32> -> vector<1x128xf32>
    %1225 = arith.addf %1224, %5 : vector<1x128xf32>
    %1226 = vector.extract_strided_slice %1225 {offsets = [0, 0], sizes = [1, 96], strides = [1, 1]} : vector<1x128xf32> to vector<1x96xf32>
    %1227 = arith.negf %1226 : vector<1x96xf32>
    %1228 = math.exp %1227 : vector<1x96xf32>
    %cst_181 = arith.constant 1.000000e+00 : f32
    %1229 = vector.broadcast %cst_181 : f32 to vector<1x96xf32>
    %1230 = arith.addf %1229, %1228 : vector<1x96xf32>
    %1231 = arith.divf %1229, %1230 : vector<1x96xf32>
    %1232 = vector.extract_strided_slice %1225 {offsets = [0, 96], sizes = [1, 32], strides = [1, 1]} : vector<1x128xf32> to vector<1x32xf32>
    %1233 = math.tanh %1232 : vector<1x32xf32>
    %1234 = vector.extract_strided_slice %1231 {offsets = [0, 0], sizes = [1, 32], strides = [1, 1]} : vector<1x96xf32> to vector<1x32xf32>
    %1235 = vector.extract_strided_slice %1231 {offsets = [0, 32], sizes = [1, 32], strides = [1, 1]} : vector<1x96xf32> to vector<1x32xf32>
    %1236 = vector.extract_strided_slice %1231 {offsets = [0, 64], sizes = [1, 32], strides = [1, 1]} : vector<1x96xf32> to vector<1x32xf32>
    %1237 = arith.mulf %1235, %1173 : vector<1x32xf32>
    %1238 = arith.mulf %1234, %1233 : vector<1x32xf32>
    %1239 = arith.addf %1237, %1238 : vector<1x32xf32>
    %1240 = math.tanh %1239 : vector<1x32xf32>
    %1241 = arith.mulf %1236, %1240 : vector<1x32xf32>
    %1242 = tpu.concatenate %1241, %1194 in 1 : vector<1x32xf32>, vector<1x32xf32> -> vector<1x64xf32>
    %cst_182 = arith.constant dense<0.000000e+00> : vector<1x128xf32>
    %1243 = tpu.matmul %1242, %3, %cst_182 {dimension_numbers = #tpu.dot_dimension_numbers<[1], [0], [0], [1], [0, 0, 1, 1], [], []>} : vector<1x64xf32>, vector<64x128xf32>, vector<1x128xf32> -> vector<1x128xf32>
    %1244 = arith.addf %1243, %7 : vector<1x128xf32>
    %1245 = vector.extract_strided_slice %1244 {offsets = [0, 0], sizes = [1, 96], strides = [1, 1]} : vector<1x128xf32> to vector<1x96xf32>
    %1246 = arith.negf %1245 : vector<1x96xf32>
    %1247 = math.exp %1246 : vector<1x96xf32>
    %cst_183 = arith.constant 1.000000e+00 : f32
    %1248 = vector.broadcast %cst_183 : f32 to vector<1x96xf32>
    %1249 = arith.addf %1248, %1247 : vector<1x96xf32>
    %1250 = arith.divf %1248, %1249 : vector<1x96xf32>
    %1251 = vector.extract_strided_slice %1244 {offsets = [0, 96], sizes = [1, 32], strides = [1, 1]} : vector<1x128xf32> to vector<1x32xf32>
    %1252 = math.tanh %1251 : vector<1x32xf32>
    %1253 = vector.extract_strided_slice %1250 {offsets = [0, 0], sizes = [1, 32], strides = [1, 1]} : vector<1x96xf32> to vector<1x32xf32>
    %1254 = vector.extract_strided_slice %1250 {offsets = [0, 32], sizes = [1, 32], strides = [1, 1]} : vector<1x96xf32> to vector<1x32xf32>
    %1255 = vector.extract_strided_slice %1250 {offsets = [0, 64], sizes = [1, 32], strides = [1, 1]} : vector<1x96xf32> to vector<1x32xf32>
    %1256 = arith.mulf %1254, %1192 : vector<1x32xf32>
    %1257 = arith.mulf %1253, %1252 : vector<1x32xf32>
    %1258 = arith.addf %1256, %1257 : vector<1x32xf32>
    %1259 = math.tanh %1258 : vector<1x32xf32>
    %1260 = arith.mulf %1255, %1259 : vector<1x32xf32>
    %1261 = vector.extract_strided_slice %8 {offsets = [0, 128], sizes = [32, 8], strides = [1, 1]} : vector<32x152xf32> to vector<32x8xf32>
    %1262 = vector.extract_strided_slice %9 {offsets = [16, 0], sizes = [1, 8], strides = [1, 1]} : vector<19x8xf32> to vector<1x8xf32>
    %1263 = vector.extract_strided_slice %10 {offsets = [16, 0], sizes = [1, 8], strides = [1, 1]} : vector<19x8xf32> to vector<1x8xf32>
    %cst_184 = arith.constant dense<0.000000e+00> : vector<1x8xf32>
    %1264 = tpu.matmul %1260, %1261, %cst_184 {dimension_numbers = #tpu.dot_dimension_numbers<[1], [0], [0], [1], [0, 0, 1, 1], [], []>} : vector<1x32xf32>, vector<32x8xf32>, vector<1x8xf32> -> vector<1x8xf32>
    %1265 = arith.addf %1264, %1262 : vector<1x8xf32>
    %cst_185 = arith.constant dense<0xFF800000> : vector<1xf32>
    %1266 = vector.multi_reduction <maximumf>, %1265, %cst_185 [1] : vector<1x8xf32> to vector<1xf32>
    %1267 = vector.shape_cast %1266 : vector<1xf32> to vector<1x1xf32>
    %1268 = vector.broadcast %1267 : vector<1x1xf32> to vector<1x8xf32>
    %1269 = arith.subf %1265, %1268 : vector<1x8xf32>
    %1270 = math.exp %1269 : vector<1x8xf32>
    %cst_186 = arith.constant dense<0.000000e+00> : vector<1xf32>
    %1271 = vector.multi_reduction <add>, %1270, %cst_186 [1] : vector<1x8xf32> to vector<1xf32>
    %1272 = vector.shape_cast %1271 : vector<1xf32> to vector<1x1xf32>
    %1273 = tpu.reciprocal %1272 {approx = true} : vector<1x1xf32> -> vector<1x1xf32>
    %1274 = vector.broadcast %1273 : vector<1x1xf32> to vector<1x8xf32>
    %1275 = arith.mulf %1270, %1274 : vector<1x8xf32>
    %1276 = vector.broadcast %1267 : vector<1x1xf32> to vector<1x8xf32>
    %1277 = arith.subf %1265, %1276 : vector<1x8xf32>
    %1278 = math.log %1272 : vector<1x1xf32>
    %1279 = vector.broadcast %1278 : vector<1x1xf32> to vector<1x8xf32>
    %1280 = arith.subf %1277, %1279 : vector<1x8xf32>
    %1281 = arith.mulf %1275, %1280 : vector<1x8xf32>
    %cst_187 = arith.constant dense<0.000000e+00> : vector<1xf32>
    %1282 = vector.multi_reduction <add>, %1281, %cst_187 [1] : vector<1x8xf32> to vector<1xf32>
    %1283 = vector.shape_cast %1282 : vector<1xf32> to vector<1x1xf32>
    %1284 = arith.subf %1218, %1283 : vector<1x1xf32>
    %1285 = arith.mulf %1263, %1280 : vector<1x8xf32>
    %cst_188 = arith.constant dense<0.000000e+00> : vector<1xf32>
    %1286 = vector.multi_reduction <add>, %1285, %cst_188 [1] : vector<1x8xf32> to vector<1xf32>
    %1287 = vector.shape_cast %1286 : vector<1xf32> to vector<1x1xf32>
    %1288 = arith.addf %1222, %1287 : vector<1x1xf32>
    %1289 = tpu.concatenate %1260, %1241 in 1 : vector<1x32xf32>, vector<1x32xf32> -> vector<1x64xf32>
    %cst_189 = arith.constant dense<0.000000e+00> : vector<1x128xf32>
    %1290 = tpu.matmul %1289, %1, %cst_189 {dimension_numbers = #tpu.dot_dimension_numbers<[1], [0], [0], [1], [0, 0, 1, 1], [], []>} : vector<1x64xf32>, vector<64x128xf32>, vector<1x128xf32> -> vector<1x128xf32>
    %1291 = arith.addf %1290, %5 : vector<1x128xf32>
    %1292 = vector.extract_strided_slice %1291 {offsets = [0, 0], sizes = [1, 96], strides = [1, 1]} : vector<1x128xf32> to vector<1x96xf32>
    %1293 = arith.negf %1292 : vector<1x96xf32>
    %1294 = math.exp %1293 : vector<1x96xf32>
    %cst_190 = arith.constant 1.000000e+00 : f32
    %1295 = vector.broadcast %cst_190 : f32 to vector<1x96xf32>
    %1296 = arith.addf %1295, %1294 : vector<1x96xf32>
    %1297 = arith.divf %1295, %1296 : vector<1x96xf32>
    %1298 = vector.extract_strided_slice %1291 {offsets = [0, 96], sizes = [1, 32], strides = [1, 1]} : vector<1x128xf32> to vector<1x32xf32>
    %1299 = math.tanh %1298 : vector<1x32xf32>
    %1300 = vector.extract_strided_slice %1297 {offsets = [0, 0], sizes = [1, 32], strides = [1, 1]} : vector<1x96xf32> to vector<1x32xf32>
    %1301 = vector.extract_strided_slice %1297 {offsets = [0, 32], sizes = [1, 32], strides = [1, 1]} : vector<1x96xf32> to vector<1x32xf32>
    %1302 = vector.extract_strided_slice %1297 {offsets = [0, 64], sizes = [1, 32], strides = [1, 1]} : vector<1x96xf32> to vector<1x32xf32>
    %1303 = arith.mulf %1301, %1239 : vector<1x32xf32>
    %1304 = arith.mulf %1300, %1299 : vector<1x32xf32>
    %1305 = arith.addf %1303, %1304 : vector<1x32xf32>
    %1306 = math.tanh %1305 : vector<1x32xf32>
    %1307 = arith.mulf %1302, %1306 : vector<1x32xf32>
    %1308 = tpu.concatenate %1307, %1260 in 1 : vector<1x32xf32>, vector<1x32xf32> -> vector<1x64xf32>
    %cst_191 = arith.constant dense<0.000000e+00> : vector<1x128xf32>
    %1309 = tpu.matmul %1308, %3, %cst_191 {dimension_numbers = #tpu.dot_dimension_numbers<[1], [0], [0], [1], [0, 0, 1, 1], [], []>} : vector<1x64xf32>, vector<64x128xf32>, vector<1x128xf32> -> vector<1x128xf32>
    %1310 = arith.addf %1309, %7 : vector<1x128xf32>
    %1311 = vector.extract_strided_slice %1310 {offsets = [0, 0], sizes = [1, 96], strides = [1, 1]} : vector<1x128xf32> to vector<1x96xf32>
    %1312 = arith.negf %1311 : vector<1x96xf32>
    %1313 = math.exp %1312 : vector<1x96xf32>
    %cst_192 = arith.constant 1.000000e+00 : f32
    %1314 = vector.broadcast %cst_192 : f32 to vector<1x96xf32>
    %1315 = arith.addf %1314, %1313 : vector<1x96xf32>
    %1316 = arith.divf %1314, %1315 : vector<1x96xf32>
    %1317 = vector.extract_strided_slice %1310 {offsets = [0, 96], sizes = [1, 32], strides = [1, 1]} : vector<1x128xf32> to vector<1x32xf32>
    %1318 = math.tanh %1317 : vector<1x32xf32>
    %1319 = vector.extract_strided_slice %1316 {offsets = [0, 0], sizes = [1, 32], strides = [1, 1]} : vector<1x96xf32> to vector<1x32xf32>
    %1320 = vector.extract_strided_slice %1316 {offsets = [0, 32], sizes = [1, 32], strides = [1, 1]} : vector<1x96xf32> to vector<1x32xf32>
    %1321 = vector.extract_strided_slice %1316 {offsets = [0, 64], sizes = [1, 32], strides = [1, 1]} : vector<1x96xf32> to vector<1x32xf32>
    %1322 = arith.mulf %1320, %1258 : vector<1x32xf32>
    %1323 = arith.mulf %1319, %1318 : vector<1x32xf32>
    %1324 = arith.addf %1322, %1323 : vector<1x32xf32>
    %1325 = math.tanh %1324 : vector<1x32xf32>
    %1326 = arith.mulf %1321, %1325 : vector<1x32xf32>
    %1327 = vector.extract_strided_slice %8 {offsets = [0, 136], sizes = [32, 8], strides = [1, 1]} : vector<32x152xf32> to vector<32x8xf32>
    %1328 = vector.extract_strided_slice %9 {offsets = [17, 0], sizes = [1, 8], strides = [1, 1]} : vector<19x8xf32> to vector<1x8xf32>
    %1329 = vector.extract_strided_slice %10 {offsets = [17, 0], sizes = [1, 8], strides = [1, 1]} : vector<19x8xf32> to vector<1x8xf32>
    %cst_193 = arith.constant dense<0.000000e+00> : vector<1x8xf32>
    %1330 = tpu.matmul %1326, %1327, %cst_193 {dimension_numbers = #tpu.dot_dimension_numbers<[1], [0], [0], [1], [0, 0, 1, 1], [], []>} : vector<1x32xf32>, vector<32x8xf32>, vector<1x8xf32> -> vector<1x8xf32>
    %1331 = arith.addf %1330, %1328 : vector<1x8xf32>
    %cst_194 = arith.constant dense<0xFF800000> : vector<1xf32>
    %1332 = vector.multi_reduction <maximumf>, %1331, %cst_194 [1] : vector<1x8xf32> to vector<1xf32>
    %1333 = vector.shape_cast %1332 : vector<1xf32> to vector<1x1xf32>
    %1334 = vector.broadcast %1333 : vector<1x1xf32> to vector<1x8xf32>
    %1335 = arith.subf %1331, %1334 : vector<1x8xf32>
    %1336 = math.exp %1335 : vector<1x8xf32>
    %cst_195 = arith.constant dense<0.000000e+00> : vector<1xf32>
    %1337 = vector.multi_reduction <add>, %1336, %cst_195 [1] : vector<1x8xf32> to vector<1xf32>
    %1338 = vector.shape_cast %1337 : vector<1xf32> to vector<1x1xf32>
    %1339 = tpu.reciprocal %1338 {approx = true} : vector<1x1xf32> -> vector<1x1xf32>
    %1340 = vector.broadcast %1339 : vector<1x1xf32> to vector<1x8xf32>
    %1341 = arith.mulf %1336, %1340 : vector<1x8xf32>
    %1342 = vector.broadcast %1333 : vector<1x1xf32> to vector<1x8xf32>
    %1343 = arith.subf %1331, %1342 : vector<1x8xf32>
    %1344 = math.log %1338 : vector<1x1xf32>
    %1345 = vector.broadcast %1344 : vector<1x1xf32> to vector<1x8xf32>
    %1346 = arith.subf %1343, %1345 : vector<1x8xf32>
    %1347 = arith.mulf %1341, %1346 : vector<1x8xf32>
    %cst_196 = arith.constant dense<0.000000e+00> : vector<1xf32>
    %1348 = vector.multi_reduction <add>, %1347, %cst_196 [1] : vector<1x8xf32> to vector<1xf32>
    %1349 = vector.shape_cast %1348 : vector<1xf32> to vector<1x1xf32>
    %1350 = arith.subf %1284, %1349 : vector<1x1xf32>
    %1351 = arith.mulf %1329, %1346 : vector<1x8xf32>
    %cst_197 = arith.constant dense<0.000000e+00> : vector<1xf32>
    %1352 = vector.multi_reduction <add>, %1351, %cst_197 [1] : vector<1x8xf32> to vector<1xf32>
    %1353 = vector.shape_cast %1352 : vector<1xf32> to vector<1x1xf32>
    %1354 = arith.addf %1288, %1353 : vector<1x1xf32>
    %1355 = tpu.concatenate %1326, %1307 in 1 : vector<1x32xf32>, vector<1x32xf32> -> vector<1x64xf32>
    %cst_198 = arith.constant dense<0.000000e+00> : vector<1x128xf32>
    %1356 = tpu.matmul %1355, %1, %cst_198 {dimension_numbers = #tpu.dot_dimension_numbers<[1], [0], [0], [1], [0, 0, 1, 1], [], []>} : vector<1x64xf32>, vector<64x128xf32>, vector<1x128xf32> -> vector<1x128xf32>
    %1357 = arith.addf %1356, %5 : vector<1x128xf32>
    %1358 = vector.extract_strided_slice %1357 {offsets = [0, 0], sizes = [1, 96], strides = [1, 1]} : vector<1x128xf32> to vector<1x96xf32>
    %1359 = arith.negf %1358 : vector<1x96xf32>
    %1360 = math.exp %1359 : vector<1x96xf32>
    %cst_199 = arith.constant 1.000000e+00 : f32
    %1361 = vector.broadcast %cst_199 : f32 to vector<1x96xf32>
    %1362 = arith.addf %1361, %1360 : vector<1x96xf32>
    %1363 = arith.divf %1361, %1362 : vector<1x96xf32>
    %1364 = vector.extract_strided_slice %1357 {offsets = [0, 96], sizes = [1, 32], strides = [1, 1]} : vector<1x128xf32> to vector<1x32xf32>
    %1365 = math.tanh %1364 : vector<1x32xf32>
    %1366 = vector.extract_strided_slice %1363 {offsets = [0, 0], sizes = [1, 32], strides = [1, 1]} : vector<1x96xf32> to vector<1x32xf32>
    %1367 = vector.extract_strided_slice %1363 {offsets = [0, 32], sizes = [1, 32], strides = [1, 1]} : vector<1x96xf32> to vector<1x32xf32>
    %1368 = vector.extract_strided_slice %1363 {offsets = [0, 64], sizes = [1, 32], strides = [1, 1]} : vector<1x96xf32> to vector<1x32xf32>
    %1369 = arith.mulf %1367, %1305 : vector<1x32xf32>
    %1370 = arith.mulf %1366, %1365 : vector<1x32xf32>
    %1371 = arith.addf %1369, %1370 : vector<1x32xf32>
    %1372 = math.tanh %1371 : vector<1x32xf32>
    %1373 = arith.mulf %1368, %1372 : vector<1x32xf32>
    %1374 = tpu.concatenate %1373, %1326 in 1 : vector<1x32xf32>, vector<1x32xf32> -> vector<1x64xf32>
    %cst_200 = arith.constant dense<0.000000e+00> : vector<1x128xf32>
    %1375 = tpu.matmul %1374, %3, %cst_200 {dimension_numbers = #tpu.dot_dimension_numbers<[1], [0], [0], [1], [0, 0, 1, 1], [], []>} : vector<1x64xf32>, vector<64x128xf32>, vector<1x128xf32> -> vector<1x128xf32>
    %1376 = arith.addf %1375, %7 : vector<1x128xf32>
    %1377 = vector.extract_strided_slice %1376 {offsets = [0, 0], sizes = [1, 96], strides = [1, 1]} : vector<1x128xf32> to vector<1x96xf32>
    %1378 = arith.negf %1377 : vector<1x96xf32>
    %1379 = math.exp %1378 : vector<1x96xf32>
    %cst_201 = arith.constant 1.000000e+00 : f32
    %1380 = vector.broadcast %cst_201 : f32 to vector<1x96xf32>
    %1381 = arith.addf %1380, %1379 : vector<1x96xf32>
    %1382 = arith.divf %1380, %1381 : vector<1x96xf32>
    %1383 = vector.extract_strided_slice %1376 {offsets = [0, 96], sizes = [1, 32], strides = [1, 1]} : vector<1x128xf32> to vector<1x32xf32>
    %1384 = math.tanh %1383 : vector<1x32xf32>
    %1385 = vector.extract_strided_slice %1382 {offsets = [0, 0], sizes = [1, 32], strides = [1, 1]} : vector<1x96xf32> to vector<1x32xf32>
    %1386 = vector.extract_strided_slice %1382 {offsets = [0, 32], sizes = [1, 32], strides = [1, 1]} : vector<1x96xf32> to vector<1x32xf32>
    %1387 = vector.extract_strided_slice %1382 {offsets = [0, 64], sizes = [1, 32], strides = [1, 1]} : vector<1x96xf32> to vector<1x32xf32>
    %1388 = arith.mulf %1386, %1324 : vector<1x32xf32>
    %1389 = arith.mulf %1385, %1384 : vector<1x32xf32>
    %1390 = arith.addf %1388, %1389 : vector<1x32xf32>
    %1391 = math.tanh %1390 : vector<1x32xf32>
    %1392 = arith.mulf %1387, %1391 : vector<1x32xf32>
    %1393 = vector.extract_strided_slice %8 {offsets = [0, 144], sizes = [32, 8], strides = [1, 1]} : vector<32x152xf32> to vector<32x8xf32>
    %1394 = vector.extract_strided_slice %9 {offsets = [18, 0], sizes = [1, 8], strides = [1, 1]} : vector<19x8xf32> to vector<1x8xf32>
    %1395 = vector.extract_strided_slice %10 {offsets = [18, 0], sizes = [1, 8], strides = [1, 1]} : vector<19x8xf32> to vector<1x8xf32>
    %cst_202 = arith.constant dense<0.000000e+00> : vector<1x8xf32>
    %1396 = tpu.matmul %1392, %1393, %cst_202 {dimension_numbers = #tpu.dot_dimension_numbers<[1], [0], [0], [1], [0, 0, 1, 1], [], []>} : vector<1x32xf32>, vector<32x8xf32>, vector<1x8xf32> -> vector<1x8xf32>
    %1397 = arith.addf %1396, %1394 : vector<1x8xf32>
    %cst_203 = arith.constant dense<0xFF800000> : vector<1xf32>
    %1398 = vector.multi_reduction <maximumf>, %1397, %cst_203 [1] : vector<1x8xf32> to vector<1xf32>
    %1399 = vector.shape_cast %1398 : vector<1xf32> to vector<1x1xf32>
    %1400 = vector.broadcast %1399 : vector<1x1xf32> to vector<1x8xf32>
    %1401 = arith.subf %1397, %1400 : vector<1x8xf32>
    %1402 = math.exp %1401 : vector<1x8xf32>
    %cst_204 = arith.constant dense<0.000000e+00> : vector<1xf32>
    %1403 = vector.multi_reduction <add>, %1402, %cst_204 [1] : vector<1x8xf32> to vector<1xf32>
    %1404 = vector.shape_cast %1403 : vector<1xf32> to vector<1x1xf32>
    %1405 = tpu.reciprocal %1404 {approx = true} : vector<1x1xf32> -> vector<1x1xf32>
    %1406 = vector.broadcast %1405 : vector<1x1xf32> to vector<1x8xf32>
    %1407 = arith.mulf %1402, %1406 : vector<1x8xf32>
    %1408 = vector.broadcast %1399 : vector<1x1xf32> to vector<1x8xf32>
    %1409 = arith.subf %1397, %1408 : vector<1x8xf32>
    %1410 = math.log %1404 : vector<1x1xf32>
    %1411 = vector.broadcast %1410 : vector<1x1xf32> to vector<1x8xf32>
    %1412 = arith.subf %1409, %1411 : vector<1x8xf32>
    %1413 = arith.mulf %1407, %1412 : vector<1x8xf32>
    %cst_205 = arith.constant dense<0.000000e+00> : vector<1xf32>
    %1414 = vector.multi_reduction <add>, %1413, %cst_205 [1] : vector<1x8xf32> to vector<1xf32>
    %1415 = vector.shape_cast %1414 : vector<1xf32> to vector<1x1xf32>
    %1416 = arith.subf %1350, %1415 : vector<1x1xf32>
    %1417 = arith.mulf %1395, %1412 : vector<1x8xf32>
    %cst_206 = arith.constant dense<0.000000e+00> : vector<1xf32>
    %1418 = vector.multi_reduction <add>, %1417, %cst_206 [1] : vector<1x8xf32> to vector<1xf32>
    %1419 = vector.shape_cast %1418 : vector<1xf32> to vector<1x1xf32>
    %1420 = arith.addf %1354, %1419 : vector<1x1xf32>
    %1421 = tpu.concatenate %1416, %1420 in 1 : vector<1x1xf32>, vector<1x1xf32> -> vector<1x2xf32>
    %c0_207 = arith.constant 0 : index
    %c0_208 = arith.constant 0 : index
    %1422 = vector.load %arg6[%c0_207, %c0_208] : memref<1x2xf32, #tpu.memory_space<vmem>>, vector<1x2xf32>
    tpu.vector_store %arg6[%c0_207, %c0_208], %1421 {strides = array<i32>} : memref<1x2xf32, #tpu.memory_space<vmem>>, vector<1x2xf32>,
    return
  }
}

</mosaic_0001>

<llo_original>
// kernel: micro_controller_evaluate.1
$region0: #{micro_controller_evaluate.1}
  #allocation0 [shape = 'u32[]', space=smem, size = 0x4, offset = 0x4, fixed_abs, tag = 'smem constant byte address 0x4 - core index']
  #allocation1 [shape = 'u32[144,128]{1,0:T(1,128)}', space=vmem, size = 0x12000, scoped, tag = 'internal scratch']
  %s0 = inlined_call_operand.vmem [shape: f32[1,32], index: 0, kind: input, shape index: {}]
  %s1 = inlined_call_operand.hbm [shape: f32[2,64,128], index: 1, kind: input, shape index: {}]
  %s2 = inlined_call_operand.vmem [shape: f32[2,1,128], index: 2, kind: input, shape index: {}]
  %s3 = inlined_call_operand.vmem [shape: f32[32,152], index: 3, kind: input, shape index: {}]
  %s4 = inlined_call_operand.vmem [shape: f32[19,8], index: 4, kind: input, shape index: {}]
  %s5 = inlined_call_operand.vmem [shape: f32[19,8], index: 5, kind: input, shape index: {}]
  %s6 = inlined_call_operand.vmem [shape: f32[1,2], index: 6, kind: output, shape index: {}]
  %s7 = sld [smem:[#allocation0]]
  $region38: #{micro_controller_evaluate.1} parent=0
    _
  %s9 = ssub.s32 1, %s7
  %s10 = scalar_select 0, %s9, %s7
  $region1: #{micro_controller_evaluate.1} parent=0
    #allocation2 [shape = 'u8[65536]{0}', space=vmem, size = 0x10000, scoped, tag = 'input window, operand 1, single buffered']
    #allocation3 [shape = 's32[1]{0}', space=sflag, size = 0x4, scoped, tag = 'scoped memory for micro_controller_evaluate.1']
    %11 = vsyncpa [#allocation3], 0
    // Predicated region
    $region2: #{micro_controller_evaluate.1} parent=1 // pred_check
      _
    $region3: #{micro_controller_evaluate.1} parent=1 // pred_check_branch
      %13 = sbr.rel (0) target = $region5
    $region4: #{micro_controller_evaluate.1} parent=1 // pred_region
      _
    $region5: #{micro_controller_evaluate.1} parent=1 // pred_fallthru
      _
    // Predicated region
    $region6: #{micro_controller_evaluate.1} parent=1 // pred_check
      _
    $region7: #{micro_controller_evaluate.1} parent=1 // pred_check_branch
      %15 = sbr.rel (0) target = $region9
    $region8: #{micro_controller_evaluate.1} parent=1 // pred_region
      %s17 = ssub.s32 2048, 2048
      %18 = vsyncadd [#allocation3], %s17
      %s19 = sshll.u32 [#allocation2], 4
      %s20 = int_to_ptr.vmem [resolvable:$true] %s19
      %25 = dma.hbm_to_vmem [thread:$0]  %s1, 2048, %s20, [#allocation3], 128, 128, 8
    $region9: #{micro_controller_evaluate.1} parent=1 // pred_fallthru
      _
    // Predicated region
    $region10: #{micro_controller_evaluate.1} parent=1 // pred_check
      _
    $region11: #{micro_controller_evaluate.1} parent=1 // pred_check_branch
      %27 = sbr.rel (0) target = $region13
    $region12: #{micro_controller_evaluate.1} parent=1 // pred_region
      _
    $region13: #{micro_controller_evaluate.1} parent=1 // pred_fallthru
      _
    // Predicated region
    $region14: #{micro_controller_evaluate.1} parent=1 // pred_check
      _
    $region15: #{micro_controller_evaluate.1} parent=1 // pred_check_branch
      %29 = sbr.rel (0) target = $region17
    $region16: #{micro_controller_evaluate.1} parent=1 // pred_region
      _
    $region17: #{micro_controller_evaluate.1} parent=1 // pred_fallthru
      _
    // Predicated region
    $region18: #{micro_controller_evaluate.1} parent=1 // pred_check
      _
    $region19: #{micro_controller_evaluate.1} parent=1 // pred_check_branch
      %31 = sbr.rel (0) target = $region21
    $region20: #{micro_controller_evaluate.1} parent=1 // pred_region
      _
    $region21: #{micro_controller_evaluate.1} parent=1 // pred_fallthru
      _
    // Predicated region
    $region22: #{micro_controller_evaluate.1} parent=1 // pred_check
      _
    $region23: #{micro_controller_evaluate.1} parent=1 // pred_check_branch
      %33 = sbr.rel (0) target = $region25
    $region24: #{micro_controller_evaluate.1} parent=1 // pred_region
      _
    $region25: #{micro_controller_evaluate.1} parent=1 // pred_fallthru
      _
    // Predicated region
    $region26: #{micro_controller_evaluate.1} parent=1 // pred_check
      _
    $region27: #{micro_controller_evaluate.1} parent=1 // pred_check_branch
      %35 = sbr.rel (0) target = $region29
    $region28: #{micro_controller_evaluate.1} parent=1 // pred_region
      %36 = dma.done [#allocation3], 2048
    $region29: #{micro_controller_evaluate.1} parent=1 // pred_fallthru
      _
    %v37 = vld [vmem:[#allocation2] sm:$0xff]
    %v38 = vld [vmem:[#allocation2 + $0x8] sm:$0xff]
    %v39 = vld [vmem:[#allocation2 + $0x10] sm:$0xff]
    %v40 = vld [vmem:[#allocation2 + $0x18] sm:$0xff]
    %v41 = vld [vmem:[#allocation2 + $0x20] sm:$0xff]
    %v42 = vld [vmem:[#allocation2 + $0x28] sm:$0xff]
    %v43 = vld [vmem:[#allocation2 + $0x30] sm:$0xff]
    %v44 = vld [vmem:[#allocation2 + $0x38] sm:$0xff]
    %s45 = scalar_lea.vmem [#allocation2], 64
    %v46 = vld [vmem:[%s45] sm:$0xff]
    %v47 = vld [vmem:[%s45 + $0x8] sm:$0xff]
    %v48 = vld [vmem:[%s45 + $0x10] sm:$0xff]
    %v49 = vld [vmem:[%s45 + $0x18] sm:$0xff]
    %v50 = vld [vmem:[%s45 + $0x20] sm:$0xff]
    %v51 = vld [vmem:[%s45 + $0x28] sm:$0xff]
    %v52 = vld [vmem:[%s45 + $0x30] sm:$0xff]
    %v53 = vld [vmem:[%s45 + $0x38] sm:$0xff]
    %v54 = vld [vmem:[%s2] sm:$0x1]
    %s55 = scalar_lea.vmem %s2, 1
    %v56 = vld [vmem:[%s55] sm:$0x1]
    %v57 = vld [vmem:[%s3] sm:$0xff]
    %v58 = vld [vmem:[%s3 + $0x8] sm:$0xff]
    %v59 = vld [vmem:[%s3 + $0x10] sm:$0xff]
    %v60 = vld [vmem:[%s3 + $0x18] sm:$0xff]
    %v61 = vld [vmem:[%s3 + $0x20] sm:$0xff]
    %v62 = vld [vmem:[%s3 + $0x28] sm:$0xff]
    %v63 = vld [vmem:[%s3 + $0x30] sm:$0xff]
    %v64 = vld [vmem:[%s3 + $0x38] sm:$0xff]
    %v65 = vld [vmem:[%s4] sm:$0xff]
    %v66 = vld [vmem:[%s4 + $0x8] sm:$0xff]
    %v67 = vld [vmem:[%s4 + $0x10] sm:$0x7]
    %v68 = vld [vmem:[%s5] sm:$0xff]
    %v69 = vld [vmem:[%s5 + $0x8] sm:$0xff]
    %v70 = vld [vmem:[%s5 + $0x10] sm:$0x7]
    %v71 = vld [vmem:[%s0] sm:$0x1]
    %vm72 = vcmask 261120
    %v73 = vsel %vm72, %v71, 0.0
    %vm74 = vcmask 523264
    %v76 = vsel %vm74, %v73, 0
    %78 = vmatprep.subr.mxu0 0.0
    %79 = vmatpush1.msra.mxu0 %v37
    %80 = vmatprep.subr.mxu0 0.0
    %81 = vmatpush1.msra.mxu0 %v38
    %82 = vmatprep.subr.mxu0 0.0
    %83 = vmatpush1.msra.mxu0 %v39
    %84 = vmatprep.subr.mxu0 0.0
    %85 = vmatpush1.msra.mxu0 %v40
    %86 = vmatprep.subr.mxu0 0.0
    %87 = vmatpush1.msra.mxu0 %v41
    %88 = vmatprep.subr.mxu0 0.0
    %89 = vmatpush1.msra.mxu0 %v42
    %90 = vmatprep.subr.mxu0 0.0
    %91 = vmatpush1.msra.mxu0 %v43
    %92 = vmatprep.subr.mxu0 0.0
    %93 = vmatpush1.msra.mxu0 %v44
    %94 = vmatprep.subr.mxu0 0.0
    %95 = vmatpush1.msra.mxu0 0.0
    %96 = vmatprep.subr.mxu0 0.0
    %97 = vmatpush1.msra.mxu0 0.0
    %98 = vmatprep.subr.mxu0 0.0
    %99 = vmatpush1.msra.mxu0 0.0
    %100 = vmatprep.subr.mxu0 0.0
    %101 = vmatpush1.msra.mxu0 0.0
    %102 = vmatprep.subr.mxu0 0.0
    %103 = vmatpush1.msra.mxu0 0.0
    %104 = vmatprep.subr.mxu0 0.0
    %105 = vmatpush1.msra.mxu0 0.0
    %106 = vmatprep.subr.mxu0 0.0
    %107 = vmatpush1.msra.mxu0 0.0
    %108 = vmatprep.subr.mxu0 0.0
    %109 = vmatpush1.msra.mxu0 0.0
    %110 = vmatprep.subr.mxu0 0.0
    %111 = vmatpush1.msra.mxu0 0.0
    %112 = vmatprep.subr.mxu0 0.0
    %113 = vmatpush1.msra.mxu0 0.0
    %114 = vmatprep.subr.mxu0 0.0
    %115 = vmatpush1.msra.mxu0 0.0
    %116 = vmatprep.subr.mxu0 0.0
    %117 = vmatpush1.msra.mxu0 0.0
    %118 = vmatprep.subr.mxu0 0.0
    %119 = vmatpush1.msra.mxu0 0.0
    %120 = vmatprep.subr.mxu0 0.0
    %121 = vmatpush1.msra.mxu0 0.0
    %122 = vmatprep.subr.mxu0 0.0
    %123 = vmatpush1.msra.mxu0 0.0
    %124 = vmatprep.subr.mxu0 0.0
    %125 = vmatpush1.msra.mxu0 0.0
    %126 = vmatprep.subr.mxu0 0.0
    %127 = vmatpush1.msra.mxu0 0.0
    %128 = vmatprep.subr.mxu0 0.0
    %129 = vmatpush1.msra.mxu0 0.0
    %130 = vmatprep.subr.mxu0 0.0
    %131 = vmatpush1.msra.mxu0 0.0
    %132 = vmatprep.subr.mxu0 0.0
    %133 = vmatpush1.msra.mxu0 0.0
    %134 = vmatprep.subr.mxu0 0.0
    %135 = vmatpush1.msra.mxu0 0.0
    %136 = vmatprep.subr.mxu0 0.0
    %137 = vmatpush1.msra.mxu0 0.0
    %138 = vmatprep.subr.mxu0 0.0
    %139 = vmatpush1.msra.mxu0 0.0
    %140 = vmatprep.subr.mxu0 0.0
    %141 = vmatpush1.msra.mxu0 0.0
    %142 = vmatprep.mubr.f32.mxu0 0.0
    %143 = vmatmul.mubr.f32.gmra.mrb[0].mxu0 %v76
    %v144 = vpop.f32.mrb[0].mxu0
    %v145 = vadd.f32 %v54, %v144
    %v146 = vpop.f32.mrb[0].mxu0
    %147 = vdwg.mxu0
    %v148 = vxor.u32 %v145, 2147483648
    %v149 = vmul.f32 %v148, 1.442695
    %v150 = vpow.pop %v149
    %v151 = vadd.f32 %v150, 1.0
    %v152 = vrcp.pop %v151
    %v153 = vmul.f32 1.0, %v152
    %v154 = vtanh.pop %v145
    %v155 = vmul.f32 %v153, 0.0
    %157 = vrot.lane.b32.xlu0 %v154, 32
    %v158 = vpop.permute.xlu0 %157
    %v160 = vmul.f32 %v153, %v158
    %162 = vrot.lane.b32.xlu0 %v160, 32
    %v163 = vpop.permute.xlu0 %162
    %v165 = vadd.f32 %v155, %v163
    %v166 = vtanh.pop %v165
    %168 = vrot.lane.b32.xlu0 %v166, 32
    %v169 = vpop.permute.xlu0 %168
    %v171 = vmul.f32 %v153, %v169
    %173 = vrot.lane.b32.xlu0 %v171, 64
    %v174 = vpop.permute.xlu0 %173
    %v176 = vsel %vm72, %v174, 0.0
    %v178 = vsel %vm74, %v176, 0
    %180 = vmatprep.subr.mxu0 0.0
    %181 = vmatpush1.msra.mxu0 %v46
    %182 = vmatprep.subr.mxu0 0.0
    %183 = vmatpush1.msra.mxu0 %v47
    %184 = vmatprep.subr.mxu0 0.0
    %185 = vmatpush1.msra.mxu0 %v48
    %186 = vmatprep.subr.mxu0 0.0
    %187 = vmatpush1.msra.mxu0 %v49
    %188 = vmatprep.subr.mxu0 0.0
    %189 = vmatpush1.msra.mxu0 %v50
    %190 = vmatprep.subr.mxu0 0.0
    %191 = vmatpush1.msra.mxu0 %v51
    %192 = vmatprep.subr.mxu0 0.0
    %193 = vmatpush1.msra.mxu0 %v52
    %194 = vmatprep.subr.mxu0 0.0
    %195 = vmatpush1.msra.mxu0 %v53
    %196 = vmatprep.subr.mxu0 0.0
    %197 = vmatpush1.msra.mxu0 0.0
    %198 = vmatprep.subr.mxu0 0.0
    %199 = vmatpush1.msra.mxu0 0.0
    %200 = vmatprep.subr.mxu0 0.0
    %201 = vmatpush1.msra.mxu0 0.0
    %202 = vmatprep.subr.mxu0 0.0
    %203 = vmatpush1.msra.mxu0 0.0
    %204 = vmatprep.subr.mxu0 0.0
    %205 = vmatpush1.msra.mxu0 0.0
    %206 = vmatprep.subr.mxu0 0.0
    %207 = vmatpush1.msra.mxu0 0.0
    %208 = vmatprep.subr.mxu0 0.0
    %209 = vmatpush1.msra.mxu0 0.0
    %210 = vmatprep.subr.mxu0 0.0
    %211 = vmatpush1.msra.mxu0 0.0
    %212 = vmatprep.subr.mxu0 0.0
    %213 = vmatpush1.msra.mxu0 0.0
    %214 = vmatprep.subr.mxu0 0.0
    %215 = vmatpush1.msra.mxu0 0.0
    %216 = vmatprep.subr.mxu0 0.0
    %217 = vmatpush1.msra.mxu0 0.0
    %218 = vmatprep.subr.mxu0 0.0
    %219 = vmatpush1.msra.mxu0 0.0
    %220 = vmatprep.subr.mxu0 0.0
    %221 = vmatpush1.msra.mxu0 0.0
    %222 = vmatprep.subr.mxu0 0.0
    %223 = vmatpush1.msra.mxu0 0.0
    %224 = vmatprep.subr.mxu0 0.0
    %225 = vmatpush1.msra.mxu0 0.0
    %226 = vmatprep.subr.mxu0 0.0
    %227 = vmatpush1.msra.mxu0 0.0
    %228 = vmatprep.subr.mxu0 0.0
    %229 = vmatpush1.msra.mxu0 0.0
    %230 = vmatprep.subr.mxu0 0.0
    %231 = vmatpush1.msra.mxu0 0.0
    %232 = vmatprep.subr.mxu0 0.0
    %233 = vmatpush1.msra.mxu0 0.0
    %234 = vmatprep.subr.mxu0 0.0
    %235 = vmatpush1.msra.mxu0 0.0
    %236 = vmatprep.subr.mxu0 0.0
    %237 = vmatpush1.msra.mxu0 0.0
    %238 = vmatprep.subr.mxu0 0.0
    %239 = vmatpush1.msra.mxu0 0.0
    %240 = vmatprep.subr.mxu0 0.0
    %241 = vmatpush1.msra.mxu0 0.0
    %242 = vmatprep.subr.mxu0 0.0
    %243 = vmatpush1.msra.mxu0 0.0
    %244 = vmatprep.mubr.f32.mxu0 0.0
    %245 = vmatmul.mubr.f32.gmra.mrb[0].mxu0 %v178
    %v246 = vpop.f32.mrb[0].mxu0
    %v247 = vadd.f32 %v56, %v246
    %v248 = vpop.f32.mrb[0].mxu0
    %249 = vdwg.mxu0
    %v250 = vxor.u32 %v247, 2147483648
    %v251 = vmul.f32 %v250, 1.442695
    %v252 = vpow.pop %v251
    %v253 = vadd.f32 %v252, 1.0
    %v254 = vrcp.pop %v253
    %v255 = vmul.f32 1.0, %v254
    %v256 = vtanh.pop %v247
    %v257 = vmul.f32 %v255, 0.0
    %259 = vrot.lane.b32.xlu0 %v256, 32
    %v260 = vpop.permute.xlu0 %259
    %v262 = vmul.f32 %v255, %v260
    %264 = vrot.lane.b32.xlu0 %v262, 32
    %v265 = vpop.permute.xlu0 %264
    %v267 = vadd.f32 %v257, %v265
    %v268 = vtanh.pop %v267
    %270 = vrot.lane.b32.xlu0 %v268, 32
    %v271 = vpop.permute.xlu0 %270
    %v273 = vmul.f32 %v255, %v271
    %275 = vrot.lane.b32.xlu0 %v273, 64
    %v276 = vpop.permute.xlu0 %275
    %278 = vrot.lane.b32.xlu0 %v171, 96
    %v279 = vpop.permute.xlu0 %278
    %v281 = vsel %vm72, %v276, %v279
    %v283 = vsel %vm74, %v281, 0
    %285 = vmatprep.subr.mxu0 0.0
    %286 = vmatpush1.msra.mxu0 %v37
    %287 = vmatprep.subr.mxu0 0.0
    %288 = vmatpush1.msra.mxu0 %v38
    %289 = vmatprep.subr.mxu0 0.0
    %290 = vmatpush1.msra.mxu0 %v39
    %291 = vmatprep.subr.mxu0 0.0
    %292 = vmatpush1.msra.mxu0 %v40
    %293 = vmatprep.subr.mxu0 0.0
    %294 = vmatpush1.msra.mxu0 %v41
    %295 = vmatprep.subr.mxu0 0.0
    %296 = vmatpush1.msra.mxu0 %v42
    %297 = vmatprep.subr.mxu0 0.0
    %298 = vmatpush1.msra.mxu0 %v43
    %299 = vmatprep.subr.mxu0 0.0
    %300 = vmatpush1.msra.mxu0 %v44
    %301 = vmatprep.subr.mxu0 0.0
    %302 = vmatpush1.msra.mxu0 0.0
    %303 = vmatprep.subr.mxu0 0.0
    %304 = vmatpush1.msra.mxu0 0.0
    %305 = vmatprep.subr.mxu0 0.0
    %306 = vmatpush1.msra.mxu0 0.0
    %307 = vmatprep.subr.mxu0 0.0
    %308 = vmatpush1.msra.mxu0 0.0
    %309 = vmatprep.subr.mxu0 0.0
    %310 = vmatpush1.msra.mxu0 0.0
    %311 = vmatprep.subr.mxu0 0.0
    %312 = vmatpush1.msra.mxu0 0.0
    %313 = vmatprep.subr.mxu0 0.0
    %314 = vmatpush1.msra.mxu0 0.0
    %315 = vmatprep.subr.mxu0 0.0
    %316 = vmatpush1.msra.mxu0 0.0
    %317 = vmatprep.subr.mxu0 0.0
    %318 = vmatpush1.msra.mxu0 0.0
    %319 = vmatprep.subr.mxu0 0.0
    %320 = vmatpush1.msra.mxu0 0.0
    %321 = vmatprep.subr.mxu0 0.0
    %322 = vmatpush1.msra.mxu0 0.0
    %323 = vmatprep.subr.mxu0 0.0
    %324 = vmatpush1.msra.mxu0 0.0
    %325 = vmatprep.subr.mxu0 0.0
    %326 = vmatpush1.msra.mxu0 0.0
    %327 = vmatprep.subr.mxu0 0.0
    %328 = vmatpush1.msra.mxu0 0.0
    %329 = vmatprep.subr.mxu0 0.0
    %330 = vmatpush1.msra.mxu0 0.0
    %331 = vmatprep.subr.mxu0 0.0
    %332 = vmatpush1.msra.mxu0 0.0
    %333 = vmatprep.subr.mxu0 0.0
    %334 = vmatpush1.msra.mxu0 0.0
    %335 = vmatprep.subr.mxu0 0.0
    %336 = vmatpush1.msra.mxu0 0.0
    %337 = vmatprep.subr.mxu0 0.0
    %338 = vmatpush1.msra.mxu0 0.0
    %339 = vmatprep.subr.mxu0 0.0
    %340 = vmatpush1.msra.mxu0 0.0
    %341 = vmatprep.subr.mxu0 0.0
    %342 = vmatpush1.msra.mxu0 0.0
    %343 = vmatprep.subr.mxu0 0.0
    %344 = vmatpush1.msra.mxu0 0.0
    %345 = vmatprep.subr.mxu0 0.0
    %346 = vmatpush1.msra.mxu0 0.0
    %347 = vmatprep.subr.mxu0 0.0
    %348 = vmatpush1.msra.mxu0 0.0
    %349 = vmatprep.mubr.f32.mxu0 0.0
    %350 = vmatmul.mubr.f32.gmra.mrb[0].mxu0 %v283
    %v351 = vpop.f32.mrb[0].mxu0
    %v352 = vadd.f32 %v54, %v351
    %v353 = vpop.f32.mrb[0].mxu0
    %354 = vdwg.mxu0
    %v355 = vxor.u32 %v352, 2147483648
    %v356 = vmul.f32 %v355, 1.442695
    %v357 = vpow.pop %v356
    %v358 = vadd.f32 %v357, 1.0
    %v359 = vrcp.pop %v358
    %v360 = vmul.f32 1.0, %v359
    %v361 = vtanh.pop %v352
    %v362 = vmul.f32 %v360, %v165
    %364 = vrot.lane.b32.xlu0 %v361, 32
    %v365 = vpop.permute.xlu0 %364
    %v367 = vmul.f32 %v360, %v365
    %369 = vrot.lane.b32.xlu0 %v367, 32
    %v370 = vpop.permute.xlu0 %369
    %v372 = vadd.f32 %v362, %v370
    %v373 = vtanh.pop %v372
    %375 = vrot.lane.b32.xlu0 %v373, 32
    %v376 = vpop.permute.xlu0 %375
    %v378 = vmul.f32 %v360, %v376
    %380 = vrot.lane.b32.xlu0 %v378, 64
    %v381 = vpop.permute.xlu0 %380
    %383 = vrot.lane.b32.xlu0 %v273, 96
    %v384 = vpop.permute.xlu0 %383
    %v386 = vsel %vm72, %v381, %v384
    %v388 = vsel %vm74, %v386, 0
    %390 = vmatprep.subr.mxu0 0.0
    %391 = vmatpush1.msra.mxu0 %v46
    %392 = vmatprep.subr.mxu0 0.0
    %393 = vmatpush1.msra.mxu0 %v47
    %394 = vmatprep.subr.mxu0 0.0
    %395 = vmatpush1.msra.mxu0 %v48
    %396 = vmatprep.subr.mxu0 0.0
    %397 = vmatpush1.msra.mxu0 %v49
    %398 = vmatprep.subr.mxu0 0.0
    %399 = vmatpush1.msra.mxu0 %v50
    %400 = vmatprep.subr.mxu0 0.0
    %401 = vmatpush1.msra.mxu0 %v51
    %402 = vmatprep.subr.mxu0 0.0
    %403 = vmatpush1.msra.mxu0 %v52
    %404 = vmatprep.subr.mxu0 0.0
    %405 = vmatpush1.msra.mxu0 %v53
    %406 = vmatprep.subr.mxu0 0.0
    %407 = vmatpush1.msra.mxu0 0.0
    %408 = vmatprep.subr.mxu0 0.0
    %409 = vmatpush1.msra.mxu0 0.0
    %410 = vmatprep.subr.mxu0 0.0
    %411 = vmatpush1.msra.mxu0 0.0
    %412 = vmatprep.subr.mxu0 0.0
    %413 = vmatpush1.msra.mxu0 0.0
    %414 = vmatprep.subr.mxu0 0.0
    %415 = vmatpush1.msra.mxu0 0.0
    %416 = vmatprep.subr.mxu0 0.0
    %417 = vmatpush1.msra.mxu0 0.0
    %418 = vmatprep.subr.mxu0 0.0
    %419 = vmatpush1.msra.mxu0 0.0
    %420 = vmatprep.subr.mxu0 0.0
    %421 = vmatpush1.msra.mxu0 0.0
    %422 = vmatprep.subr.mxu0 0.0
    %423 = vmatpush1.msra.mxu0 0.0
    %424 = vmatprep.subr.mxu0 0.0
    %425 = vmatpush1.msra.mxu0 0.0
    %426 = vmatprep.subr.mxu0 0.0
    %427 = vmatpush1.msra.mxu0 0.0
    %428 = vmatprep.subr.mxu0 0.0
    %429 = vmatpush1.msra.mxu0 0.0
    %430 = vmatprep.subr.mxu0 0.0
    %431 = vmatpush1.msra.mxu0 0.0
    %432 = vmatprep.subr.mxu0 0.0
    %433 = vmatpush1.msra.mxu0 0.0
    %434 = vmatprep.subr.mxu0 0.0
    %435 = vmatpush1.msra.mxu0 0.0
    %436 = vmatprep.subr.mxu0 0.0
    %437 = vmatpush1.msra.mxu0 0.0
    %438 = vmatprep.subr.mxu0 0.0
    %439 = vmatpush1.msra.mxu0 0.0
    %440 = vmatprep.subr.mxu0 0.0
    %441 = vmatpush1.msra.mxu0 0.0
    %442 = vmatprep.subr.mxu0 0.0
    %443 = vmatpush1.msra.mxu0 0.0
    %444 = vmatprep.subr.mxu0 0.0
    %445 = vmatpush1.msra.mxu0 0.0
    %446 = vmatprep.subr.mxu0 0.0
    %447 = vmatpush1.msra.mxu0 0.0
    %448 = vmatprep.subr.mxu0 0.0
    %449 = vmatpush1.msra.mxu0 0.0
    %450 = vmatprep.subr.mxu0 0.0
    %451 = vmatpush1.msra.mxu0 0.0
    %452 = vmatprep.subr.mxu0 0.0
    %453 = vmatpush1.msra.mxu0 0.0
    %454 = vmatprep.mubr.f32.mxu0 0.0
    %455 = vmatmul.mubr.f32.gmra.mrb[0].mxu0 %v388
    %v456 = vpop.f32.mrb[0].mxu0
    %v457 = vadd.f32 %v56, %v456
    %v458 = vpop.f32.mrb[0].mxu0
    %459 = vdwg.mxu0
    %v460 = vxor.u32 %v457, 2147483648
    %v461 = vmul.f32 %v460, 1.442695
    %v462 = vpow.pop %v461
    %v463 = vadd.f32 %v462, 1.0
    %v464 = vrcp.pop %v463
    %v465 = vmul.f32 1.0, %v464
    %v466 = vtanh.pop %v457
    %v467 = vmul.f32 %v465, %v267
    %469 = vrot.lane.b32.xlu0 %v466, 32
    %v470 = vpop.permute.xlu0 %469
    %v472 = vmul.f32 %v465, %v470
    %474 = vrot.lane.b32.xlu0 %v472, 32
    %v475 = vpop.permute.xlu0 %474
    %v477 = vadd.f32 %v467, %v475
    %v478 = vtanh.pop %v477
    %480 = vrot.lane.b32.xlu0 %v478, 32
    %v481 = vpop.permute.xlu0 %480
    %v483 = vmul.f32 %v465, %v481
    %485 = vrot.lane.b32.xlu0 %v483, 64
    %v486 = vpop.permute.xlu0 %485
    %488 = vrot.lane.b32.xlu0 %v378, 96
    %v489 = vpop.permute.xlu0 %488
    %v491 = vsel %vm72, %v486, %v489
    %v493 = vsel %vm74, %v491, 0
    %495 = vmatprep.subr.mxu0 0.0
    %496 = vmatpush1.msra.mxu0 %v37
    %497 = vmatprep.subr.mxu0 0.0
    %498 = vmatpush1.msra.mxu0 %v38
    %499 = vmatprep.subr.mxu0 0.0
    %500 = vmatpush1.msra.mxu0 %v39
    %501 = vmatprep.subr.mxu0 0.0
    %502 = vmatpush1.msra.mxu0 %v40
    %503 = vmatprep.subr.mxu0 0.0
    %504 = vmatpush1.msra.mxu0 %v41
    %505 = vmatprep.subr.mxu0 0.0
    %506 = vmatpush1.msra.mxu0 %v42
    %507 = vmatprep.subr.mxu0 0.0
    %508 = vmatpush1.msra.mxu0 %v43
    %509 = vmatprep.subr.mxu0 0.0
    %510 = vmatpush1.msra.mxu0 %v44
    %511 = vmatprep.subr.mxu0 0.0
    %512 = vmatpush1.msra.mxu0 0.0
    %513 = vmatprep.subr.mxu0 0.0
    %514 = vmatpush1.msra.mxu0 0.0
    %515 = vmatprep.subr.mxu0 0.0
    %516 = vmatpush1.msra.mxu0 0.0
    %517 = vmatprep.subr.mxu0 0.0
    %518 = vmatpush1.msra.mxu0 0.0
    %519 = vmatprep.subr.mxu0 0.0
    %520 = vmatpush1.msra.mxu0 0.0
    %521 = vmatprep.subr.mxu0 0.0
    %522 = vmatpush1.msra.mxu0 0.0
    %523 = vmatprep.subr.mxu0 0.0
    %524 = vmatpush1.msra.mxu0 0.0
    %525 = vmatprep.subr.mxu0 0.0
    %526 = vmatpush1.msra.mxu0 0.0
    %527 = vmatprep.subr.mxu0 0.0
    %528 = vmatpush1.msra.mxu0 0.0
    %529 = vmatprep.subr.mxu0 0.0
    %530 = vmatpush1.msra.mxu0 0.0
    %531 = vmatprep.subr.mxu0 0.0
    %532 = vmatpush1.msra.mxu0 0.0
    %533 = vmatprep.subr.mxu0 0.0
    %534 = vmatpush1.msra.mxu0 0.0
    %535 = vmatprep.subr.mxu0 0.0
    %536 = vmatpush1.msra.mxu0 0.0
    %537 = vmatprep.subr.mxu0 0.0
    %538 = vmatpush1.msra.mxu0 0.0
    %539 = vmatprep.subr.mxu0 0.0
    %540 = vmatpush1.msra.mxu0 0.0
    %541 = vmatprep.subr.mxu0 0.0
    %542 = vmatpush1.msra.mxu0 0.0
    %543 = vmatprep.subr.mxu0 0.0
    %544 = vmatpush1.msra.mxu0 0.0
    %545 = vmatprep.subr.mxu0 0.0
    %546 = vmatpush1.msra.mxu0 0.0
    %547 = vmatprep.subr.mxu0 0.0
    %548 = vmatpush1.msra.mxu0 0.0
    %549 = vmatprep.subr.mxu0 0.0
    %550 = vmatpush1.msra.mxu0 0.0
    %551 = vmatprep.subr.mxu0 0.0
    %552 = vmatpush1.msra.mxu0 0.0
    %553 = vmatprep.subr.mxu0 0.0
    %554 = vmatpush1.msra.mxu0 0.0
    %555 = vmatprep.subr.mxu0 0.0
    %556 = vmatpush1.msra.mxu0 0.0
    %557 = vmatprep.subr.mxu0 0.0
    %558 = vmatpush1.msra.mxu0 0.0
    %559 = vmatprep.mubr.f32.mxu0 0.0
    %560 = vmatmul.mubr.f32.gmra.mrb[0].mxu0 %v493
    %v561 = vpop.f32.mrb[0].mxu0
    %v562 = vadd.f32 %v54, %v561
    %v563 = vpop.f32.mrb[0].mxu0
    %564 = vdwg.mxu0
    %v565 = vxor.u32 %v562, 2147483648
    %v566 = vmul.f32 %v565, 1.442695
    %v567 = vpow.pop %v566
    %v568 = vadd.f32 %v567, 1.0
    %v569 = vrcp.pop %v568
    %v570 = vmul.f32 1.0, %v569
    %v571 = vtanh.pop %v562
    %v572 = vmul.f32 %v570, %v372
    %574 = vrot.lane.b32.xlu0 %v571, 32
    %v575 = vpop.permute.xlu0 %574
    %v577 = vmul.f32 %v570, %v575
    %579 = vrot.lane.b32.xlu0 %v577, 32
    %v580 = vpop.permute.xlu0 %579
    %v582 = vadd.f32 %v572, %v580
    %v583 = vtanh.pop %v582
    %585 = vrot.lane.b32.xlu0 %v583, 32
    %v586 = vpop.permute.xlu0 %585
    %v588 = vmul.f32 %v570, %v586
    %590 = vrot.lane.b32.xlu0 %v588, 64
    %v591 = vpop.permute.xlu0 %590
    %593 = vrot.lane.b32.xlu0 %v483, 96
    %v594 = vpop.permute.xlu0 %593
    %v596 = vsel %vm72, %v591, %v594
    %v598 = vsel %vm74, %v596, 0
    %600 = vmatprep.subr.mxu0 0.0
    %601 = vmatpush1.msra.mxu0 %v46
    %602 = vmatprep.subr.mxu0 0.0
    %603 = vmatpush1.msra.mxu0 %v47
    %604 = vmatprep.subr.mxu0 0.0
    %605 = vmatpush1.msra.mxu0 %v48
    %606 = vmatprep.subr.mxu0 0.0
    %607 = vmatpush1.msra.mxu0 %v49
    %608 = vmatprep.subr.mxu0 0.0
    %609 = vmatpush1.msra.mxu0 %v50
    %610 = vmatprep.subr.mxu0 0.0
    %611 = vmatpush1.msra.mxu0 %v51
    %612 = vmatprep.subr.mxu0 0.0
    %613 = vmatpush1.msra.mxu0 %v52
    %614 = vmatprep.subr.mxu0 0.0
    %615 = vmatpush1.msra.mxu0 %v53
    %616 = vmatprep.subr.mxu0 0.0
    %617 = vmatpush1.msra.mxu0 0.0
    %618 = vmatprep.subr.mxu0 0.0
    %619 = vmatpush1.msra.mxu0 0.0
    %620 = vmatprep.subr.mxu0 0.0
    %621 = vmatpush1.msra.mxu0 0.0
    %622 = vmatprep.subr.mxu0 0.0
    %623 = vmatpush1.msra.mxu0 0.0
    %624 = vmatprep.subr.mxu0 0.0
    %625 = vmatpush1.msra.mxu0 0.0
    %626 = vmatprep.subr.mxu0 0.0
    %627 = vmatpush1.msra.mxu0 0.0
    %628 = vmatprep.subr.mxu0 0.0
    %629 = vmatpush1.msra.mxu0 0.0
    %630 = vmatprep.subr.mxu0 0.0
    %631 = vmatpush1.msra.mxu0 0.0
    %632 = vmatprep.subr.mxu0 0.0
    %633 = vmatpush1.msra.mxu0 0.0
    %634 = vmatprep.subr.mxu0 0.0
    %635 = vmatpush1.msra.mxu0 0.0
    %636 = vmatprep.subr.mxu0 0.0
    %637 = vmatpush1.msra.mxu0 0.0
    %638 = vmatprep.subr.mxu0 0.0
    %639 = vmatpush1.msra.mxu0 0.0
    %640 = vmatprep.subr.mxu0 0.0
    %641 = vmatpush1.msra.mxu0 0.0
    %642 = vmatprep.subr.mxu0 0.0
    %643 = vmatpush1.msra.mxu0 0.0
    %644 = vmatprep.subr.mxu0 0.0
    %645 = vmatpush1.msra.mxu0 0.0
    %646 = vmatprep.subr.mxu0 0.0
    %647 = vmatpush1.msra.mxu0 0.0
    %648 = vmatprep.subr.mxu0 0.0
    %649 = vmatpush1.msra.mxu0 0.0
    %650 = vmatprep.subr.mxu0 0.0
    %651 = vmatpush1.msra.mxu0 0.0
    %652 = vmatprep.subr.mxu0 0.0
    %653 = vmatpush1.msra.mxu0 0.0
    %654 = vmatprep.subr.mxu0 0.0
    %655 = vmatpush1.msra.mxu0 0.0
    %656 = vmatprep.subr.mxu0 0.0
    %657 = vmatpush1.msra.mxu0 0.0
    %658 = vmatprep.subr.mxu0 0.0
    %659 = vmatpush1.msra.mxu0 0.0
    %660 = vmatprep.subr.mxu0 0.0
    %661 = vmatpush1.msra.mxu0 0.0
    %662 = vmatprep.subr.mxu0 0.0
    %663 = vmatpush1.msra.mxu0 0.0
    %664 = vmatprep.mubr.f32.mxu0 0.0
    %665 = vmatmul.mubr.f32.gmra.mrb[0].mxu0 %v598
    %v666 = vpop.f32.mrb[0].mxu0
    %v667 = vadd.f32 %v56, %v666
    %v668 = vpop.f32.mrb[0].mxu0
    %669 = vdwg.mxu0
    %v670 = vxor.u32 %v667, 2147483648
    %v671 = vmul.f32 %v670, 1.442695
    %v672 = vpow.pop %v671
    %v673 = vadd.f32 %v672, 1.0
    %v674 = vrcp.pop %v673
    %v675 = vmul.f32 1.0, %v674
    %v676 = vtanh.pop %v667
    %v677 = vmul.f32 %v675, %v477
    %679 = vrot.lane.b32.xlu0 %v676, 32
    %v680 = vpop.permute.xlu0 %679
    %v682 = vmul.f32 %v675, %v680
    %684 = vrot.lane.b32.xlu0 %v682, 32
    %v685 = vpop.permute.xlu0 %684
    %v687 = vadd.f32 %v677, %v685
    %v688 = vtanh.pop %v687
    %690 = vrot.lane.b32.xlu0 %v688, 32
    %v691 = vpop.permute.xlu0 %690
    %v693 = vmul.f32 %v675, %v691
    %695 = vrot.lane.b32.xlu0 %v693, 64
    %v696 = vpop.permute.xlu0 %695
    %698 = vrot.lane.b32.xlu0 %v588, 96
    %v699 = vpop.permute.xlu0 %698
    %v701 = vsel %vm72, %v696, %v699
    %v703 = vsel %vm74, %v701, 0
    %705 = vmatprep.subr.mxu0 0.0
    %706 = vmatpush1.msra.mxu0 %v37
    %707 = vmatprep.subr.mxu0 0.0
    %708 = vmatpush1.msra.mxu0 %v38
    %709 = vmatprep.subr.mxu0 0.0
    %710 = vmatpush1.msra.mxu0 %v39
    %711 = vmatprep.subr.mxu0 0.0
    %712 = vmatpush1.msra.mxu0 %v40
    %713 = vmatprep.subr.mxu0 0.0
    %714 = vmatpush1.msra.mxu0 %v41
    %715 = vmatprep.subr.mxu0 0.0
    %716 = vmatpush1.msra.mxu0 %v42
    %717 = vmatprep.subr.mxu0 0.0
    %718 = vmatpush1.msra.mxu0 %v43
    %719 = vmatprep.subr.mxu0 0.0
    %720 = vmatpush1.msra.mxu0 %v44
    %721 = vmatprep.subr.mxu0 0.0
    %722 = vmatpush1.msra.mxu0 0.0
    %723 = vmatprep.subr.mxu0 0.0
    %724 = vmatpush1.msra.mxu0 0.0
    %725 = vmatprep.subr.mxu0 0.0
    %726 = vmatpush1.msra.mxu0 0.0
    %727 = vmatprep.subr.mxu0 0.0
    %728 = vmatpush1.msra.mxu0 0.0
    %729 = vmatprep.subr.mxu0 0.0
    %730 = vmatpush1.msra.mxu0 0.0
    %731 = vmatprep.subr.mxu0 0.0
    %732 = vmatpush1.msra.mxu0 0.0
    %733 = vmatprep.subr.mxu0 0.0
    %734 = vmatpush1.msra.mxu0 0.0
    %735 = vmatprep.subr.mxu0 0.0
    %736 = vmatpush1.msra.mxu0 0.0
    %737 = vmatprep.subr.mxu0 0.0
    %738 = vmatpush1.msra.mxu0 0.0
    %739 = vmatprep.subr.mxu0 0.0
    %740 = vmatpush1.msra.mxu0 0.0
    %741 = vmatprep.subr.mxu0 0.0
    %742 = vmatpush1.msra.mxu0 0.0
    %743 = vmatprep.subr.mxu0 0.0
    %744 = vmatpush1.msra.mxu0 0.0
    %745 = vmatprep.subr.mxu0 0.0
    %746 = vmatpush1.msra.mxu0 0.0
    %747 = vmatprep.subr.mxu0 0.0
    %748 = vmatpush1.msra.mxu0 0.0
    %749 = vmatprep.subr.mxu0 0.0
    %750 = vmatpush1.msra.mxu0 0.0
    %751 = vmatprep.subr.mxu0 0.0
    %752 = vmatpush1.msra.mxu0 0.0
    %753 = vmatprep.subr.mxu0 0.0
    %754 = vmatpush1.msra.mxu0 0.0
    %755 = vmatprep.subr.mxu0 0.0
    %756 = vmatpush1.msra.mxu0 0.0
    %757 = vmatprep.subr.mxu0 0.0
    %758 = vmatpush1.msra.mxu0 0.0
    %759 = vmatprep.subr.mxu0 0.0
    %760 = vmatpush1.msra.mxu0 0.0
    %761 = vmatprep.subr.mxu0 0.0
    %762 = vmatpush1.msra.mxu0 0.0
    %763 = vmatprep.subr.mxu0 0.0
    %764 = vmatpush1.msra.mxu0 0.0
    %765 = vmatprep.subr.mxu0 0.0
    %766 = vmatpush1.msra.mxu0 0.0
    %767 = vmatprep.subr.mxu0 0.0
    %768 = vmatpush1.msra.mxu0 0.0
    %769 = vmatprep.mubr.f32.mxu0 0.0
    %770 = vmatmul.mubr.f32.gmra.mrb[0].mxu0 %v703
    %v771 = vpop.f32.mrb[0].mxu0
    %v772 = vadd.f32 %v54, %v771
    %v773 = vpop.f32.mrb[0].mxu0
    %774 = vdwg.mxu0
    %v775 = vxor.u32 %v772, 2147483648
    %v776 = vmul.f32 %v775, 1.442695
    %v777 = vpow.pop %v776
    %v778 = vadd.f32 %v777, 1.0
    %v779 = vrcp.pop %v778
    %v780 = vmul.f32 1.0, %v779
    %v781 = vtanh.pop %v772
    %v782 = vmul.f32 %v780, %v582
    %784 = vrot.lane.b32.xlu0 %v781, 32
    %v785 = vpop.permute.xlu0 %784
    %v787 = vmul.f32 %v780, %v785
    %789 = vrot.lane.b32.xlu0 %v787, 32
    %v790 = vpop.permute.xlu0 %789
    %v792 = vadd.f32 %v782, %v790
    %v793 = vtanh.pop %v792
    %795 = vrot.lane.b32.xlu0 %v793, 32
    %v796 = vpop.permute.xlu0 %795
    %v798 = vmul.f32 %v780, %v796
    %800 = vrot.lane.b32.xlu0 %v798, 64
    %v801 = vpop.permute.xlu0 %800
    %803 = vrot.lane.b32.xlu0 %v693, 96
    %v804 = vpop.permute.xlu0 %803
    %v806 = vsel %vm72, %v801, %v804
    %v808 = vsel %vm74, %v806, 0
    %810 = vmatprep.subr.mxu0 0.0
    %811 = vmatpush1.msra.mxu0 %v46
    %812 = vmatprep.subr.mxu0 0.0
    %813 = vmatpush1.msra.mxu0 %v47
    %814 = vmatprep.subr.mxu0 0.0
    %815 = vmatpush1.msra.mxu0 %v48
    %816 = vmatprep.subr.mxu0 0.0
    %817 = vmatpush1.msra.mxu0 %v49
    %818 = vmatprep.subr.mxu0 0.0
    %819 = vmatpush1.msra.mxu0 %v50
    %820 = vmatprep.subr.mxu0 0.0
    %821 = vmatpush1.msra.mxu0 %v51
    %822 = vmatprep.subr.mxu0 0.0
    %823 = vmatpush1.msra.mxu0 %v52
    %824 = vmatprep.subr.mxu0 0.0
    %825 = vmatpush1.msra.mxu0 %v53
    %826 = vmatprep.subr.mxu0 0.0
    %827 = vmatpush1.msra.mxu0 0.0
    %828 = vmatprep.subr.mxu0 0.0
    %829 = vmatpush1.msra.mxu0 0.0
    %830 = vmatprep.subr.mxu0 0.0
    %831 = vmatpush1.msra.mxu0 0.0
    %832 = vmatprep.subr.mxu0 0.0
    %833 = vmatpush1.msra.mxu0 0.0
    %834 = vmatprep.subr.mxu0 0.0
    %835 = vmatpush1.msra.mxu0 0.0
    %836 = vmatprep.subr.mxu0 0.0
    %837 = vmatpush1.msra.mxu0 0.0
    %838 = vmatprep.subr.mxu0 0.0
    %839 = vmatpush1.msra.mxu0 0.0
    %840 = vmatprep.subr.mxu0 0.0
    %841 = vmatpush1.msra.mxu0 0.0
    %842 = vmatprep.subr.mxu0 0.0
    %843 = vmatpush1.msra.mxu0 0.0
    %844 = vmatprep.subr.mxu0 0.0
    %845 = vmatpush1.msra.mxu0 0.0
    %846 = vmatprep.subr.mxu0 0.0
    %847 = vmatpush1.msra.mxu0 0.0
    %848 = vmatprep.subr.mxu0 0.0
    %849 = vmatpush1.msra.mxu0 0.0
    %850 = vmatprep.subr.mxu0 0.0
    %851 = vmatpush1.msra.mxu0 0.0
    %852 = vmatprep.subr.mxu0 0.0
    %853 = vmatpush1.msra.mxu0 0.0
    %854 = vmatprep.subr.mxu0 0.0
    %855 = vmatpush1.msra.mxu0 0.0
    %856 = vmatprep.subr.mxu0 0.0
    %857 = vmatpush1.msra.mxu0 0.0
    %858 = vmatprep.subr.mxu0 0.0
    %859 = vmatpush1.msra.mxu0 0.0
    %860 = vmatprep.subr.mxu0 0.0
    %861 = vmatpush1.msra.mxu0 0.0
    %862 = vmatprep.subr.mxu0 0.0
    %863 = vmatpush1.msra.mxu0 0.0
    %864 = vmatprep.subr.mxu0 0.0
    %865 = vmatpush1.msra.mxu0 0.0
    %866 = vmatprep.subr.mxu0 0.0
    %867 = vmatpush1.msra.mxu0 0.0
    %868 = vmatprep.subr.mxu0 0.0
    %869 = vmatpush1.msra.mxu0 0.0
    %870 = vmatprep.subr.mxu0 0.0
    %871 = vmatpush1.msra.mxu0 0.0
    %872 = vmatprep.subr.mxu0 0.0
    %873 = vmatpush1.msra.mxu0 0.0
    %874 = vmatprep.mubr.f32.mxu0 0.0
    %875 = vmatmul.mubr.f32.gmra.mrb[0].mxu0 %v808
    %v876 = vpop.f32.mrb[0].mxu0
    %v877 = vadd.f32 %v56, %v876
    %v878 = vpop.f32.mrb[0].mxu0
    %879 = vdwg.mxu0
    %v880 = vxor.u32 %v877, 2147483648
    %v881 = vmul.f32 %v880, 1.442695
    %v882 = vpow.pop %v881
    %v883 = vadd.f32 %v882, 1.0
    %v884 = vrcp.pop %v883
    %v885 = vmul.f32 1.0, %v884
    %v886 = vtanh.pop %v877
    %v887 = vmul.f32 %v885, %v687
    %889 = vrot.lane.b32.xlu0 %v886, 32
    %v890 = vpop.permute.xlu0 %889
    %v892 = vmul.f32 %v885, %v890
    %894 = vrot.lane.b32.xlu0 %v892, 32
    %v895 = vpop.permute.xlu0 %894
    %v897 = vadd.f32 %v887, %v895
    %v898 = vtanh.pop %v897
    %900 = vrot.lane.b32.xlu0 %v898, 32
    %v901 = vpop.permute.xlu0 %900
    %v903 = vmul.f32 %v885, %v901
    %905 = vrot.lane.b32.xlu0 %v903, 64
    %v906 = vpop.permute.xlu0 %905
    %908 = vrot.lane.b32.xlu0 %v798, 96
    %v909 = vpop.permute.xlu0 %908
    %v911 = vsel %vm72, %v906, %v909
    %v913 = vsel %vm74, %v911, 0
    %915 = vmatprep.subr.mxu0 0.0
    %916 = vmatpush1.msra.mxu0 %v37
    %917 = vmatprep.subr.mxu0 0.0
    %918 = vmatpush1.msra.mxu0 %v38
    %919 = vmatprep.subr.mxu0 0.0
    %920 = vmatpush1.msra.mxu0 %v39
    %921 = vmatprep.subr.mxu0 0.0
    %922 = vmatpush1.msra.mxu0 %v40
    %923 = vmatprep.subr.mxu0 0.0
    %924 = vmatpush1.msra.mxu0 %v41
    %925 = vmatprep.subr.mxu0 0.0
    %926 = vmatpush1.msra.mxu0 %v42
    %927 = vmatprep.subr.mxu0 0.0
    %928 = vmatpush1.msra.mxu0 %v43
    %929 = vmatprep.subr.mxu0 0.0
    %930 = vmatpush1.msra.mxu0 %v44
    %931 = vmatprep.subr.mxu0 0.0
    %932 = vmatpush1.msra.mxu0 0.0
    %933 = vmatprep.subr.mxu0 0.0
    %934 = vmatpush1.msra.mxu0 0.0
    %935 = vmatprep.subr.mxu0 0.0
    %936 = vmatpush1.msra.mxu0 0.0
    %937 = vmatprep.subr.mxu0 0.0
    %938 = vmatpush1.msra.mxu0 0.0
    %939 = vmatprep.subr.mxu0 0.0
    %940 = vmatpush1.msra.mxu0 0.0
    %941 = vmatprep.subr.mxu0 0.0
    %942 = vmatpush1.msra.mxu0 0.0
    %943 = vmatprep.subr.mxu0 0.0
    %944 = vmatpush1.msra.mxu0 0.0
    %945 = vmatprep.subr.mxu0 0.0
    %946 = vmatpush1.msra.mxu0 0.0
    %947 = vmatprep.subr.mxu0 0.0
    %948 = vmatpush1.msra.mxu0 0.0
    %949 = vmatprep.subr.mxu0 0.0
    %950 = vmatpush1.msra.mxu0 0.0
    %951 = vmatprep.subr.mxu0 0.0
    %952 = vmatpush1.msra.mxu0 0.0
    %953 = vmatprep.subr.mxu0 0.0
    %954 = vmatpush1.msra.mxu0 0.0
    %955 = vmatprep.subr.mxu0 0.0
    %956 = vmatpush1.msra.mxu0 0.0
    %957 = vmatprep.subr.mxu0 0.0
    %958 = vmatpush1.msra.mxu0 0.0
    %959 = vmatprep.subr.mxu0 0.0
    %960 = vmatpush1.msra.mxu0 0.0
    %961 = vmatprep.subr.mxu0 0.0
    %962 = vmatpush1.msra.mxu0 0.0
    %963 = vmatprep.subr.mxu0 0.0
    %964 = vmatpush1.msra.mxu0 0.0
    %965 = vmatprep.subr.mxu0 0.0
    %966 = vmatpush1.msra.mxu0 0.0
    %967 = vmatprep.subr.mxu0 0.0
    %968 = vmatpush1.msra.mxu0 0.0
    %969 = vmatprep.subr.mxu0 0.0
    %970 = vmatpush1.msra.mxu0 0.0
    %971 = vmatprep.subr.mxu0 0.0
    %972 = vmatpush1.msra.mxu0 0.0
    %973 = vmatprep.subr.mxu0 0.0
    %974 = vmatpush1.msra.mxu0 0.0
    %975 = vmatprep.subr.mxu0 0.0
    %976 = vmatpush1.msra.mxu0 0.0
    %977 = vmatprep.subr.mxu0 0.0
    %978 = vmatpush1.msra.mxu0 0.0
    %979 = vmatprep.mubr.f32.mxu0 0.0
    %980 = vmatmul.mubr.f32.gmra.mrb[0].mxu0 %v913
    %v981 = vpop.f32.mrb[0].mxu0
    %v982 = vadd.f32 %v54, %v981
    %v983 = vpop.f32.mrb[0].mxu0
    %984 = vdwg.mxu0
    %v985 = vxor.u32 %v982, 2147483648
    %v986 = vmul.f32 %v985, 1.442695
    %v987 = vpow.pop %v986
    %v988 = vadd.f32 %v987, 1.0
    %v989 = vrcp.pop %v988
    %v990 = vmul.f32 1.0, %v989
    %v991 = vtanh.pop %v982
    %v992 = vmul.f32 %v990, %v792
    %994 = vrot.lane.b32.xlu0 %v991, 32
    %v995 = vpop.permute.xlu0 %994
    %v997 = vmul.f32 %v990, %v995
    %999 = vrot.lane.b32.xlu0 %v997, 32
    %v1000 = vpop.permute.xlu0 %999
    %v1002 = vadd.f32 %v992, %v1000
    %v1003 = vtanh.pop %v1002
    %1005 = vrot.lane.b32.xlu0 %v1003, 32
    %v1006 = vpop.permute.xlu0 %1005
    %v1008 = vmul.f32 %v990, %v1006
    %1010 = vrot.lane.b32.xlu0 %v1008, 64
    %v1011 = vpop.permute.xlu0 %1010
    %1013 = vrot.lane.b32.xlu0 %v903, 96
    %v1014 = vpop.permute.xlu0 %1013
    %v1016 = vsel %vm72, %v1011, %v1014
    %v1018 = vsel %vm74, %v1016, 0
    %1020 = vmatprep.subr.mxu0 0.0
    %1021 = vmatpush1.msra.mxu0 %v46
    %1022 = vmatprep.subr.mxu0 0.0
    %1023 = vmatpush1.msra.mxu0 %v47
    %1024 = vmatprep.subr.mxu0 0.0
    %1025 = vmatpush1.msra.mxu0 %v48
    %1026 = vmatprep.subr.mxu0 0.0
    %1027 = vmatpush1.msra.mxu0 %v49
    %1028 = vmatprep.subr.mxu0 0.0
    %1029 = vmatpush1.msra.mxu0 %v50
    %1030 = vmatprep.subr.mxu0 0.0
    %1031 = vmatpush1.msra.mxu0 %v51
    %1032 = vmatprep.subr.mxu0 0.0
    %1033 = vmatpush1.msra.mxu0 %v52
    %1034 = vmatprep.subr.mxu0 0.0
    %1035 = vmatpush1.msra.mxu0 %v53
    %1036 = vmatprep.subr.mxu0 0.0
    %1037 = vmatpush1.msra.mxu0 0.0
    %1038 = vmatprep.subr.mxu0 0.0
    %1039 = vmatpush1.msra.mxu0 0.0
    %1040 = vmatprep.subr.mxu0 0.0
    %1041 = vmatpush1.msra.mxu0 0.0
    %1042 = vmatprep.subr.mxu0 0.0
    %1043 = vmatpush1.msra.mxu0 0.0
    %1044 = vmatprep.subr.mxu0 0.0
    %1045 = vmatpush1.msra.mxu0 0.0
    %1046 = vmatprep.subr.mxu0 0.0
    %1047 = vmatpush1.msra.mxu0 0.0
    %1048 = vmatprep.subr.mxu0 0.0
    %1049 = vmatpush1.msra.mxu0 0.0
    %1050 = vmatprep.subr.mxu0 0.0
    %1051 = vmatpush1.msra.mxu0 0.0
    %1052 = vmatprep.subr.mxu0 0.0
    %1053 = vmatpush1.msra.mxu0 0.0
    %1054 = vmatprep.subr.mxu0 0.0
    %1055 = vmatpush1.msra.mxu0 0.0
    %1056 = vmatprep.subr.mxu0 0.0
    %1057 = vmatpush1.msra.mxu0 0.0
    %1058 = vmatprep.subr.mxu0 0.0
    %1059 = vmatpush1.msra.mxu0 0.0
    %1060 = vmatprep.subr.mxu0 0.0
    %1061 = vmatpush1.msra.mxu0 0.0
    %1062 = vmatprep.subr.mxu0 0.0
    %1063 = vmatpush1.msra.mxu0 0.0
    %1064 = vmatprep.subr.mxu0 0.0
    %1065 = vmatpush1.msra.mxu0 0.0
    %1066 = vmatprep.subr.mxu0 0.0
    %1067 = vmatpush1.msra.mxu0 0.0
    %1068 = vmatprep.subr.mxu0 0.0
    %1069 = vmatpush1.msra.mxu0 0.0
    %1070 = vmatprep.subr.mxu0 0.0
    %1071 = vmatpush1.msra.mxu0 0.0
    %1072 = vmatprep.subr.mxu0 0.0
    %1073 = vmatpush1.msra.mxu0 0.0
    %1074 = vmatprep.subr.mxu0 0.0
    %1075 = vmatpush1.msra.mxu0 0.0
    %1076 = vmatprep.subr.mxu0 0.0
    %1077 = vmatpush1.msra.mxu0 0.0
    %1078 = vmatprep.subr.mxu0 0.0
    %1079 = vmatpush1.msra.mxu0 0.0
    %1080 = vmatprep.subr.mxu0 0.0
    %1081 = vmatpush1.msra.mxu0 0.0
    %1082 = vmatprep.subr.mxu0 0.0
    %1083 = vmatpush1.msra.mxu0 0.0
    %1084 = vmatprep.mubr.f32.mxu0 0.0
    %1085 = vmatmul.mubr.f32.gmra.mrb[0].mxu0 %v1018
    %v1086 = vpop.f32.mrb[0].mxu0
    %v1087 = vadd.f32 %v56, %v1086
    %v1088 = vpop.f32.mrb[0].mxu0
    %1089 = vdwg.mxu0
    %v1090 = vxor.u32 %v1087, 2147483648
    %v1091 = vmul.f32 %v1090, 1.442695
    %v1092 = vpow.pop %v1091
    %v1093 = vadd.f32 %v1092, 1.0
    %v1094 = vrcp.pop %v1093
    %v1095 = vmul.f32 1.0, %v1094
    %v1096 = vtanh.pop %v1087
    %v1097 = vmul.f32 %v1095, %v897
    %1099 = vrot.lane.b32.xlu0 %v1096, 32
    %v1100 = vpop.permute.xlu0 %1099
    %v1102 = vmul.f32 %v1095, %v1100
    %1104 = vrot.lane.b32.xlu0 %v1102, 32
    %v1105 = vpop.permute.xlu0 %1104
    %v1107 = vadd.f32 %v1097, %v1105
    %v1108 = vtanh.pop %v1107
    %1110 = vrot.lane.b32.xlu0 %v1108, 32
    %v1111 = vpop.permute.xlu0 %1110
    %v1113 = vmul.f32 %v1095, %v1111
    %1115 = vrot.lane.b32.xlu0 %v1113, 64
    %v1116 = vpop.permute.xlu0 %1115
    %v1117 = vsel %vm72, %v1116, 0
    %1119 = vmatprep.subr.mxu0 0.0
    %1120 = vmatpush1.msra.mxu0 %v57
    %1121 = vmatprep.subr.mxu0 0.0
    %1122 = vmatpush1.msra.mxu0 %v59
    %1123 = vmatprep.subr.mxu0 0.0
    %1124 = vmatpush1.msra.mxu0 %v61
    %1125 = vmatprep.subr.mxu0 0.0
    %1126 = vmatpush1.msra.mxu0 %v63
    %1127 = vmatprep.subr.mxu0 0.0
    %1128 = vmatpush1.msra.mxu0 0.0
    %1129 = vmatprep.subr.mxu0 0.0
    %1130 = vmatpush1.msra.mxu0 0.0
    %1131 = vmatprep.subr.mxu0 0.0
    %1132 = vmatpush1.msra.mxu0 0.0
    %1133 = vmatprep.subr.mxu0 0.0
    %1134 = vmatpush1.msra.mxu0 0.0
    %1135 = vmatprep.subr.mxu0 0.0
    %1136 = vmatpush1.msra.mxu0 0.0
    %1137 = vmatprep.subr.mxu0 0.0
    %1138 = vmatpush1.msra.mxu0 0.0
    %1139 = vmatprep.subr.mxu0 0.0
    %1140 = vmatpush1.msra.mxu0 0.0
    %1141 = vmatprep.subr.mxu0 0.0
    %1142 = vmatpush1.msra.mxu0 0.0
    %1143 = vmatprep.subr.mxu0 0.0
    %1144 = vmatpush1.msra.mxu0 0.0
    %1145 = vmatprep.subr.mxu0 0.0
    %1146 = vmatpush1.msra.mxu0 0.0
    %1147 = vmatprep.subr.mxu0 0.0
    %1148 = vmatpush1.msra.mxu0 0.0
    %1149 = vmatprep.subr.mxu0 0.0
    %1150 = vmatpush1.msra.mxu0 0.0
    %1151 = vmatprep.subr.mxu0 0.0
    %1152 = vmatpush1.msra.mxu0 0.0
    %1153 = vmatprep.subr.mxu0 0.0
    %1154 = vmatpush1.msra.mxu0 0.0
    %1155 = vmatprep.subr.mxu0 0.0
    %1156 = vmatpush1.msra.mxu0 0.0
    %1157 = vmatprep.subr.mxu0 0.0
    %1158 = vmatpush1.msra.mxu0 0.0
    %1159 = vmatprep.subr.mxu0 0.0
    %1160 = vmatpush1.msra.mxu0 0.0
    %1161 = vmatprep.subr.mxu0 0.0
    %1162 = vmatpush1.msra.mxu0 0.0
    %1163 = vmatprep.subr.mxu0 0.0
    %1164 = vmatpush1.msra.mxu0 0.0
    %1165 = vmatprep.subr.mxu0 0.0
    %1166 = vmatpush1.msra.mxu0 0.0
    %1167 = vmatprep.subr.mxu0 0.0
    %1168 = vmatpush1.msra.mxu0 0.0
    %1169 = vmatprep.subr.mxu0 0.0
    %1170 = vmatpush1.msra.mxu0 0.0
    %1171 = vmatprep.subr.mxu0 0.0
    %1172 = vmatpush1.msra.mxu0 0.0
    %1173 = vmatprep.subr.mxu0 0.0
    %1174 = vmatpush1.msra.mxu0 0.0
    %1175 = vmatprep.subr.mxu0 0.0
    %1176 = vmatpush1.msra.mxu0 0.0
    %1177 = vmatprep.subr.mxu0 0.0
    %1178 = vmatpush1.msra.mxu0 0.0
    %1179 = vmatprep.subr.mxu0 0.0
    %1180 = vmatpush1.msra.mxu0 0.0
    %1181 = vmatprep.subr.mxu0 0.0
    %1182 = vmatpush1.msra.mxu0 0.0
    %1183 = vmatprep.mubr.f32.mxu0 0.0
    %1184 = vmatmul.mubr.f32.gmra.mrb[0].mxu0 %v1117
    %v1185 = vpop.f32.mrb[0].mxu0
    %v1186 = vadd.f32 %v65, %v1185
    %v1187 = vpop.f32.mrb[0].mxu0
    %1188 = vdwg.mxu0
    %vm1189 = vcmask 57344
    %v1190 = vsel %vm1189, %v1186, -inf
    %1191 = vmax.xlane.f32.xlu0 %v1190
    %v1192 = vpop.xlane.xlu0 %1191
    %v1193 = vsub.f32 %v1186, %v1192
    %v1194 = vmul.f32 %v1193, 1.442695
    %v1195 = vpow.pop %v1194
    %v1196 = vsel %vm1189, %v1195, 0.0
    %1197 = vadd.xlane.f32.xlu0 %v1196
    %v1198 = vpop.xlane.xlu0 %1197
    %v1199 = vrcp.pop %v1198
    %v1200 = vmul.f32 %v1195, %v1199
    %v1201 = vlog2.pop %v1198
    %v1202 = vmul.f32 %v1201, 0.6931472
    %v1203 = vsub.f32 %v1193, %v1202
    %v1204 = vmul.f32 %v1200, %v1203
    %v1205 = vsel %vm1189, %v1204, 0.0
    %1206 = vadd.xlane.f32.xlu0 %v1205
    %v1207 = vpop.xlane.xlu0 %1206
    %v1208 = vsub.f32 0.0, %v1207
    %v1209 = vmul.f32 %v68, %v1203
    %v1210 = vsel %vm1189, %v1209, 0.0
    %1211 = vadd.xlane.f32.xlu0 %v1210
    %v1212 = vpop.xlane.xlu0 %1211
    %v1213 = vadd.f32 %v1212, 0.0
    %1215 = vrot.lane.b32.xlu0 %v1008, 96
    %v1216 = vpop.permute.xlu0 %1215
    %v1218 = vsel %vm72, %v1116, %v1216
    %v1220 = vsel %vm74, %v1218, 0
    %1222 = vmatprep.subr.mxu0 0.0
    %1223 = vmatpush1.msra.mxu0 %v37
    %1224 = vmatprep.subr.mxu0 0.0
    %1225 = vmatpush1.msra.mxu0 %v38
    %1226 = vmatprep.subr.mxu0 0.0
    %1227 = vmatpush1.msra.mxu0 %v39
    %1228 = vmatprep.subr.mxu0 0.0
    %1229 = vmatpush1.msra.mxu0 %v40
    %1230 = vmatprep.subr.mxu0 0.0
    %1231 = vmatpush1.msra.mxu0 %v41
    %1232 = vmatprep.subr.mxu0 0.0
    %1233 = vmatpush1.msra.mxu0 %v42
    %1234 = vmatprep.subr.mxu0 0.0
    %1235 = vmatpush1.msra.mxu0 %v43
    %1236 = vmatprep.subr.mxu0 0.0
    %1237 = vmatpush1.msra.mxu0 %v44
    %1238 = vmatprep.subr.mxu0 0.0
    %1239 = vmatpush1.msra.mxu0 0.0
    %1240 = vmatprep.subr.mxu0 0.0
    %1241 = vmatpush1.msra.mxu0 0.0
    %1242 = vmatprep.subr.mxu0 0.0
    %1243 = vmatpush1.msra.mxu0 0.0
    %1244 = vmatprep.subr.mxu0 0.0
    %1245 = vmatpush1.msra.mxu0 0.0
    %1246 = vmatprep.subr.mxu0 0.0
    %1247 = vmatpush1.msra.mxu0 0.0
    %1248 = vmatprep.subr.mxu0 0.0
    %1249 = vmatpush1.msra.mxu0 0.0
    %1250 = vmatprep.subr.mxu0 0.0
    %1251 = vmatpush1.msra.mxu0 0.0
    %1252 = vmatprep.subr.mxu0 0.0
    %1253 = vmatpush1.msra.mxu0 0.0
    %1254 = vmatprep.subr.mxu0 0.0
    %1255 = vmatpush1.msra.mxu0 0.0
    %1256 = vmatprep.subr.mxu0 0.0
    %1257 = vmatpush1.msra.mxu0 0.0
    %1258 = vmatprep.subr.mxu0 0.0
    %1259 = vmatpush1.msra.mxu0 0.0
    %1260 = vmatprep.subr.mxu0 0.0
    %1261 = vmatpush1.msra.mxu0 0.0
    %1262 = vmatprep.subr.mxu0 0.0
    %1263 = vmatpush1.msra.mxu0 0.0
    %1264 = vmatprep.subr.mxu0 0.0
    %1265 = vmatpush1.msra.mxu0 0.0
    %1266 = vmatprep.subr.mxu0 0.0
    %1267 = vmatpush1.msra.mxu0 0.0
    %1268 = vmatprep.subr.mxu0 0.0
    %1269 = vmatpush1.msra.mxu0 0.0
    %1270 = vmatprep.subr.mxu0 0.0
    %1271 = vmatpush1.msra.mxu0 0.0
    %1272 = vmatprep.subr.mxu0 0.0
    %1273 = vmatpush1.msra.mxu0 0.0
    %1274 = vmatprep.subr.mxu0 0.0
    %1275 = vmatpush1.msra.mxu0 0.0
    %1276 = vmatprep.subr.mxu0 0.0
    %1277 = vmatpush1.msra.mxu0 0.0
    %1278 = vmatprep.subr.mxu0 0.0
    %1279 = vmatpush1.msra.mxu0 0.0
    %1280 = vmatprep.subr.mxu0 0.0
    %1281 = vmatpush1.msra.mxu0 0.0
    %1282 = vmatprep.subr.mxu0 0.0
    %1283 = vmatpush1.msra.mxu0 0.0
    %1284 = vmatprep.subr.mxu0 0.0
    %1285 = vmatpush1.msra.mxu0 0.0
    %1286 = vmatprep.mubr.f32.mxu0 0.0
    %1287 = vmatmul.mubr.f32.gmra.mrb[0].mxu0 %v1220
    %v1288 = vpop.f32.mrb[0].mxu0
    %v1289 = vadd.f32 %v54, %v1288
    %v1290 = vpop.f32.mrb[0].mxu0
    %1291 = vdwg.mxu0
    %v1292 = vxor.u32 %v1289, 2147483648
    %v1293 = vmul.f32 %v1292, 1.442695
    %v1294 = vpow.pop %v1293
    %v1295 = vadd.f32 %v1294, 1.0
    %v1296 = vrcp.pop %v1295
    %v1297 = vmul.f32 1.0, %v1296
    %v1298 = vtanh.pop %v1289
    %v1299 = vmul.f32 %v1297, %v1002
    %1301 = vrot.lane.b32.xlu0 %v1298, 32
    %v1302 = vpop.permute.xlu0 %1301
    %v1304 = vmul.f32 %v1297, %v1302
    %1306 = vrot.lane.b32.xlu0 %v1304, 32
    %v1307 = vpop.permute.xlu0 %1306
    %v1309 = vadd.f32 %v1299, %v1307
    %v1310 = vtanh.pop %v1309
    %1312 = vrot.lane.b32.xlu0 %v1310, 32
    %v1313 = vpop.permute.xlu0 %1312
    %v1315 = vmul.f32 %v1297, %v1313
    %1317 = vrot.lane.b32.xlu0 %v1315, 64
    %v1318 = vpop.permute.xlu0 %1317
    %1320 = vrot.lane.b32.xlu0 %v1113, 96
    %v1321 = vpop.permute.xlu0 %1320
    %v1323 = vsel %vm72, %v1318, %v1321
    %v1325 = vsel %vm74, %v1323, 0
    %1327 = vmatprep.subr.mxu0 0.0
    %1328 = vmatpush1.msra.mxu0 %v46
    %1329 = vmatprep.subr.mxu0 0.0
    %1330 = vmatpush1.msra.mxu0 %v47
    %1331 = vmatprep.subr.mxu0 0.0
    %1332 = vmatpush1.msra.mxu0 %v48
    %1333 = vmatprep.subr.mxu0 0.0
    %1334 = vmatpush1.msra.mxu0 %v49
    %1335 = vmatprep.subr.mxu0 0.0
    %1336 = vmatpush1.msra.mxu0 %v50
    %1337 = vmatprep.subr.mxu0 0.0
    %1338 = vmatpush1.msra.mxu0 %v51
    %1339 = vmatprep.subr.mxu0 0.0
    %1340 = vmatpush1.msra.mxu0 %v52
    %1341 = vmatprep.subr.mxu0 0.0
    %1342 = vmatpush1.msra.mxu0 %v53
    %1343 = vmatprep.subr.mxu0 0.0
    %1344 = vmatpush1.msra.mxu0 0.0
    %1345 = vmatprep.subr.mxu0 0.0
    %1346 = vmatpush1.msra.mxu0 0.0
    %1347 = vmatprep.subr.mxu0 0.0
    %1348 = vmatpush1.msra.mxu0 0.0
    %1349 = vmatprep.subr.mxu0 0.0
    %1350 = vmatpush1.msra.mxu0 0.0
    %1351 = vmatprep.subr.mxu0 0.0
    %1352 = vmatpush1.msra.mxu0 0.0
    %1353 = vmatprep.subr.mxu0 0.0
    %1354 = vmatpush1.msra.mxu0 0.0
    %1355 = vmatprep.subr.mxu0 0.0
    %1356 = vmatpush1.msra.mxu0 0.0
    %1357 = vmatprep.subr.mxu0 0.0
    %1358 = vmatpush1.msra.mxu0 0.0
    %1359 = vmatprep.subr.mxu0 0.0
    %1360 = vmatpush1.msra.mxu0 0.0
    %1361 = vmatprep.subr.mxu0 0.0
    %1362 = vmatpush1.msra.mxu0 0.0
    %1363 = vmatprep.subr.mxu0 0.0
    %1364 = vmatpush1.msra.mxu0 0.0
    %1365 = vmatprep.subr.mxu0 0.0
    %1366 = vmatpush1.msra.mxu0 0.0
    %1367 = vmatprep.subr.mxu0 0.0
    %1368 = vmatpush1.msra.mxu0 0.0
    %1369 = vmatprep.subr.mxu0 0.0
    %1370 = vmatpush1.msra.mxu0 0.0
    %1371 = vmatprep.subr.mxu0 0.0
    %1372 = vmatpush1.msra.mxu0 0.0
    %1373 = vmatprep.subr.mxu0 0.0
    %1374 = vmatpush1.msra.mxu0 0.0
    %1375 = vmatprep.subr.mxu0 0.0
    %1376 = vmatpush1.msra.mxu0 0.0
    %1377 = vmatprep.subr.mxu0 0.0
    %1378 = vmatpush1.msra.mxu0 0.0
    %1379 = vmatprep.subr.mxu0 0.0
    %1380 = vmatpush1.msra.mxu0 0.0
    %1381 = vmatprep.subr.mxu0 0.0
    %1382 = vmatpush1.msra.mxu0 0.0
    %1383 = vmatprep.subr.mxu0 0.0
    %1384 = vmatpush1.msra.mxu0 0.0
    %1385 = vmatprep.subr.mxu0 0.0
    %1386 = vmatpush1.msra.mxu0 0.0
    %1387 = vmatprep.subr.mxu0 0.0
    %1388 = vmatpush1.msra.mxu0 0.0
    %1389 = vmatprep.subr.mxu0 0.0
    %1390 = vmatpush1.msra.mxu0 0.0
    %1391 = vmatprep.mubr.f32.mxu0 0.0
    %1392 = vmatmul.mubr.f32.gmra.mrb[0].mxu0 %v1325
    %v1393 = vpop.f32.mrb[0].mxu0
    %v1394 = vadd.f32 %v56, %v1393
    %v1395 = vpop.f32.mrb[0].mxu0
    %1396 = vdwg.mxu0
    %v1397 = vxor.u32 %v1394, 2147483648
    %v1398 = vmul.f32 %v1397, 1.442695
    %v1399 = vpow.pop %v1398
    %v1400 = vadd.f32 %v1399, 1.0
    %v1401 = vrcp.pop %v1400
    %v1402 = vmul.f32 1.0, %v1401
    %v1403 = vtanh.pop %v1394
    %v1404 = vmul.f32 %v1402, %v1107
    %1406 = vrot.lane.b32.xlu0 %v1403, 32
    %v1407 = vpop.permute.xlu0 %1406
    %v1409 = vmul.f32 %v1402, %v1407
    %1411 = vrot.lane.b32.xlu0 %v1409, 32
    %v1412 = vpop.permute.xlu0 %1411
    %v1414 = vadd.f32 %v1404, %v1412
    %v1415 = vtanh.pop %v1414
    %1417 = vrot.lane.b32.xlu0 %v1415, 32
    %v1418 = vpop.permute.xlu0 %1417
    %v1420 = vmul.f32 %v1402, %v1418
    %1422 = vrot.lane.b32.xlu0 %v1420, 64
    %v1423 = vpop.permute.xlu0 %1422
    %1428 = vrot.lane.b32.xlu0 %v57, 120
    %v1429 = vpop.permute.xlu0 %1428
    %1430 = vrot.lane.b32.xlu0 %v59, 120
    %v1431 = vpop.permute.xlu0 %1430
    %1432 = vrot.lane.b32.xlu0 %v61, 120
    %v1433 = vpop.permute.xlu0 %1432
    %1434 = vrot.lane.b32.xlu0 %v63, 120
    %v1435 = vpop.permute.xlu0 %1434
    %v1441 = vrot.slane %v65, 1
    %v1443 = vsel %vm72, %v1423, 0
    %1445 = vmatprep.subr.mxu0 0.0
    %1446 = vmatpush1.msra.mxu0 %v1429
    %1447 = vmatprep.subr.mxu0 0.0
    %1448 = vmatpush1.msra.mxu0 %v1431
    %1449 = vmatprep.subr.mxu0 0.0
    %1450 = vmatpush1.msra.mxu0 %v1433
    %1451 = vmatprep.subr.mxu0 0.0
    %1452 = vmatpush1.msra.mxu0 %v1435
    %1453 = vmatprep.subr.mxu0 0.0
    %1454 = vmatpush1.msra.mxu0 0.0
    %1455 = vmatprep.subr.mxu0 0.0
    %1456 = vmatpush1.msra.mxu0 0.0
    %1457 = vmatprep.subr.mxu0 0.0
    %1458 = vmatpush1.msra.mxu0 0.0
    %1459 = vmatprep.subr.mxu0 0.0
    %1460 = vmatpush1.msra.mxu0 0.0
    %1461 = vmatprep.subr.mxu0 0.0
    %1462 = vmatpush1.msra.mxu0 0.0
    %1463 = vmatprep.subr.mxu0 0.0
    %1464 = vmatpush1.msra.mxu0 0.0
    %1465 = vmatprep.subr.mxu0 0.0
    %1466 = vmatpush1.msra.mxu0 0.0
    %1467 = vmatprep.subr.mxu0 0.0
    %1468 = vmatpush1.msra.mxu0 0.0
    %1469 = vmatprep.subr.mxu0 0.0
    %1470 = vmatpush1.msra.mxu0 0.0
    %1471 = vmatprep.subr.mxu0 0.0
    %1472 = vmatpush1.msra.mxu0 0.0
    %1473 = vmatprep.subr.mxu0 0.0
    %1474 = vmatpush1.msra.mxu0 0.0
    %1475 = vmatprep.subr.mxu0 0.0
    %1476 = vmatpush1.msra.mxu0 0.0
    %1477 = vmatprep.subr.mxu0 0.0
    %1478 = vmatpush1.msra.mxu0 0.0
    %1479 = vmatprep.subr.mxu0 0.0
    %1480 = vmatpush1.msra.mxu0 0.0
    %1481 = vmatprep.subr.mxu0 0.0
    %1482 = vmatpush1.msra.mxu0 0.0
    %1483 = vmatprep.subr.mxu0 0.0
    %1484 = vmatpush1.msra.mxu0 0.0
    %1485 = vmatprep.subr.mxu0 0.0
    %1486 = vmatpush1.msra.mxu0 0.0
    %1487 = vmatprep.subr.mxu0 0.0
    %1488 = vmatpush1.msra.mxu0 0.0
    %1489 = vmatprep.subr.mxu0 0.0
    %1490 = vmatpush1.msra.mxu0 0.0
    %1491 = vmatprep.subr.mxu0 0.0
    %1492 = vmatpush1.msra.mxu0 0.0
    %1493 = vmatprep.subr.mxu0 0.0
    %1494 = vmatpush1.msra.mxu0 0.0
    %1495 = vmatprep.subr.mxu0 0.0
    %1496 = vmatpush1.msra.mxu0 0.0
    %1497 = vmatprep.subr.mxu0 0.0
    %1498 = vmatpush1.msra.mxu0 0.0
    %1499 = vmatprep.subr.mxu0 0.0
    %1500 = vmatpush1.msra.mxu0 0.0
    %1501 = vmatprep.subr.mxu0 0.0
    %1502 = vmatpush1.msra.mxu0 0.0
    %1503 = vmatprep.subr.mxu0 0.0
    %1504 = vmatpush1.msra.mxu0 0.0
    %1505 = vmatprep.subr.mxu0 0.0
    %1506 = vmatpush1.msra.mxu0 0.0
    %1507 = vmatprep.subr.mxu0 0.0
    %1508 = vmatpush1.msra.mxu0 0.0
    %1509 = vmatprep.mubr.f32.mxu0 0.0
    %1510 = vmatmul.mubr.f32.gmra.mrb[0].mxu0 %v1443
    %v1511 = vpop.f32.mrb[0].mxu0
    %v1512 = vadd.f32 %v1441, %v1511
    %v1513 = vpop.f32.mrb[0].mxu0
    %1514 = vdwg.mxu0
    %v1515 = vsel %vm1189, %v1512, -inf
    %1516 = vmax.xlane.f32.xlu0 %v1515
    %v1517 = vpop.xlane.xlu0 %1516
    %v1518 = vsub.f32 %v1512, %v1517
    %v1519 = vmul.f32 %v1518, 1.442695
    %v1520 = vpow.pop %v1519
    %v1521 = vsel %vm1189, %v1520, 0.0
    %1522 = vadd.xlane.f32.xlu0 %v1521
    %v1523 = vpop.xlane.xlu0 %1522
    %v1524 = vrcp.pop %v1523
    %v1525 = vmul.f32 %v1520, %v1524
    %v1526 = vlog2.pop %v1523
    %v1527 = vmul.f32 %v1526, 0.6931472
    %v1528 = vsub.f32 %v1518, %v1527
    %v1529 = vmul.f32 %v1525, %v1528
    %v1530 = vsel %vm1189, %v1529, 0.0
    %1531 = vadd.xlane.f32.xlu0 %v1530
    %v1532 = vpop.xlane.xlu0 %1531
    %v1533 = vsub.f32 %v1208, %v1532
    %v1535 = vrot.slane %v1528, 7
    %v1537 = vmul.f32 %v68, %v1535
    %vm1538 = vcmask 58369
    %v1539 = vsel %vm1538, %v1537, 0.0
    %1540 = vadd.xlane.f32.xlu0 %v1539
    %v1541 = vpop.xlane.xlu0 %1540
    %v1543 = vrot.slane %v1541, 1
    %v1545 = vadd.f32 %v1213, %v1543
    %1547 = vrot.lane.b32.xlu0 %v1315, 96
    %v1548 = vpop.permute.xlu0 %1547
    %v1550 = vsel %vm72, %v1423, %v1548
    %v1552 = vsel %vm74, %v1550, 0
    %1554 = vmatprep.subr.mxu0 0.0
    %1555 = vmatpush1.msra.mxu0 %v37
    %1556 = vmatprep.subr.mxu0 0.0
    %1557 = vmatpush1.msra.mxu0 %v38
    %1558 = vmatprep.subr.mxu0 0.0
    %1559 = vmatpush1.msra.mxu0 %v39
    %1560 = vmatprep.subr.mxu0 0.0
    %1561 = vmatpush1.msra.mxu0 %v40
    %1562 = vmatprep.subr.mxu0 0.0
    %1563 = vmatpush1.msra.mxu0 %v41
    %1564 = vmatprep.subr.mxu0 0.0
    %1565 = vmatpush1.msra.mxu0 %v42
    %1566 = vmatprep.subr.mxu0 0.0
    %1567 = vmatpush1.msra.mxu0 %v43
    %1568 = vmatprep.subr.mxu0 0.0
    %1569 = vmatpush1.msra.mxu0 %v44
    %1570 = vmatprep.subr.mxu0 0.0
    %1571 = vmatpush1.msra.mxu0 0.0
    %1572 = vmatprep.subr.mxu0 0.0
    %1573 = vmatpush1.msra.mxu0 0.0
    %1574 = vmatprep.subr.mxu0 0.0
    %1575 = vmatpush1.msra.mxu0 0.0
    %1576 = vmatprep.subr.mxu0 0.0
    %1577 = vmatpush1.msra.mxu0 0.0
    %1578 = vmatprep.subr.mxu0 0.0
    %1579 = vmatpush1.msra.mxu0 0.0
    %1580 = vmatprep.subr.mxu0 0.0
    %1581 = vmatpush1.msra.mxu0 0.0
    %1582 = vmatprep.subr.mxu0 0.0
    %1583 = vmatpush1.msra.mxu0 0.0
    %1584 = vmatprep.subr.mxu0 0.0
    %1585 = vmatpush1.msra.mxu0 0.0
    %1586 = vmatprep.subr.mxu0 0.0
    %1587 = vmatpush1.msra.mxu0 0.0
    %1588 = vmatprep.subr.mxu0 0.0
    %1589 = vmatpush1.msra.mxu0 0.0
    %1590 = vmatprep.subr.mxu0 0.0
    %1591 = vmatpush1.msra.mxu0 0.0
    %1592 = vmatprep.subr.mxu0 0.0
    %1593 = vmatpush1.msra.mxu0 0.0
    %1594 = vmatprep.subr.mxu0 0.0
    %1595 = vmatpush1.msra.mxu0 0.0
    %1596 = vmatprep.subr.mxu0 0.0
    %1597 = vmatpush1.msra.mxu0 0.0
    %1598 = vmatprep.subr.mxu0 0.0
    %1599 = vmatpush1.msra.mxu0 0.0
    %1600 = vmatprep.subr.mxu0 0.0
    %1601 = vmatpush1.msra.mxu0 0.0
    %1602 = vmatprep.subr.mxu0 0.0
    %1603 = vmatpush1.msra.mxu0 0.0
    %1604 = vmatprep.subr.mxu0 0.0
    %1605 = vmatpush1.msra.mxu0 0.0
    %1606 = vmatprep.subr.mxu0 0.0
    %1607 = vmatpush1.msra.mxu0 0.0
    %1608 = vmatprep.subr.mxu0 0.0
    %1609 = vmatpush1.msra.mxu0 0.0
    %1610 = vmatprep.subr.mxu0 0.0
    %1611 = vmatpush1.msra.mxu0 0.0
    %1612 = vmatprep.subr.mxu0 0.0
    %1613 = vmatpush1.msra.mxu0 0.0
    %1614 = vmatprep.subr.mxu0 0.0
    %1615 = vmatpush1.msra.mxu0 0.0
    %1616 = vmatprep.subr.mxu0 0.0
    %1617 = vmatpush1.msra.mxu0 0.0
    %1618 = vmatprep.mubr.f32.mxu0 0.0
    %1619 = vmatmul.mubr.f32.gmra.mrb[0].mxu0 %v1552
    %v1620 = vpop.f32.mrb[0].mxu0
    %v1621 = vadd.f32 %v54, %v1620
    %v1622 = vpop.f32.mrb[0].mxu0
    %1623 = vdwg.mxu0
    %v1624 = vxor.u32 %v1621, 2147483648
    %v1625 = vmul.f32 %v1624, 1.442695
    %v1626 = vpow.pop %v1625
    %v1627 = vadd.f32 %v1626, 1.0
    %v1628 = vrcp.pop %v1627
    %v1629 = vmul.f32 1.0, %v1628
    %v1630 = vtanh.pop %v1621
    %v1631 = vmul.f32 %v1629, %v1309
    %1633 = vrot.lane.b32.xlu0 %v1630, 32
    %v1634 = vpop.permute.xlu0 %1633
    %v1636 = vmul.f32 %v1629, %v1634
    %1638 = vrot.lane.b32.xlu0 %v1636, 32
    %v1639 = vpop.permute.xlu0 %1638
    %v1641 = vadd.f32 %v1631, %v1639
    %v1642 = vtanh.pop %v1641
    %1644 = vrot.lane.b32.xlu0 %v1642, 32
    %v1645 = vpop.permute.xlu0 %1644
    %v1647 = vmul.f32 %v1629, %v1645
    %1649 = vrot.lane.b32.xlu0 %v1647, 64
    %v1650 = vpop.permute.xlu0 %1649
    %1652 = vrot.lane.b32.xlu0 %v1420, 96
    %v1653 = vpop.permute.xlu0 %1652
    %v1655 = vsel %vm72, %v1650, %v1653
    %v1657 = vsel %vm74, %v1655, 0
    %1659 = vmatprep.subr.mxu0 0.0
    %1660 = vmatpush1.msra.mxu0 %v46
    %1661 = vmatprep.subr.mxu0 0.0
    %1662 = vmatpush1.msra.mxu0 %v47
    %1663 = vmatprep.subr.mxu0 0.0
    %1664 = vmatpush1.msra.mxu0 %v48
    %1665 = vmatprep.subr.mxu0 0.0
    %1666 = vmatpush1.msra.mxu0 %v49
    %1667 = vmatprep.subr.mxu0 0.0
    %1668 = vmatpush1.msra.mxu0 %v50
    %1669 = vmatprep.subr.mxu0 0.0
    %1670 = vmatpush1.msra.mxu0 %v51
    %1671 = vmatprep.subr.mxu0 0.0
    %1672 = vmatpush1.msra.mxu0 %v52
    %1673 = vmatprep.subr.mxu0 0.0
    %1674 = vmatpush1.msra.mxu0 %v53
    %1675 = vmatprep.subr.mxu0 0.0
    %1676 = vmatpush1.msra.mxu0 0.0
    %1677 = vmatprep.subr.mxu0 0.0
    %1678 = vmatpush1.msra.mxu0 0.0
    %1679 = vmatprep.subr.mxu0 0.0
    %1680 = vmatpush1.msra.mxu0 0.0
    %1681 = vmatprep.subr.mxu0 0.0
    %1682 = vmatpush1.msra.mxu0 0.0
    %1683 = vmatprep.subr.mxu0 0.0
    %1684 = vmatpush1.msra.mxu0 0.0
    %1685 = vmatprep.subr.mxu0 0.0
    %1686 = vmatpush1.msra.mxu0 0.0
    %1687 = vmatprep.subr.mxu0 0.0
    %1688 = vmatpush1.msra.mxu0 0.0
    %1689 = vmatprep.subr.mxu0 0.0
    %1690 = vmatpush1.msra.mxu0 0.0
    %1691 = vmatprep.subr.mxu0 0.0
    %1692 = vmatpush1.msra.mxu0 0.0
    %1693 = vmatprep.subr.mxu0 0.0
    %1694 = vmatpush1.msra.mxu0 0.0
    %1695 = vmatprep.subr.mxu0 0.0
    %1696 = vmatpush1.msra.mxu0 0.0
    %1697 = vmatprep.subr.mxu0 0.0
    %1698 = vmatpush1.msra.mxu0 0.0
    %1699 = vmatprep.subr.mxu0 0.0
    %1700 = vmatpush1.msra.mxu0 0.0
    %1701 = vmatprep.subr.mxu0 0.0
    %1702 = vmatpush1.msra.mxu0 0.0
    %1703 = vmatprep.subr.mxu0 0.0
    %1704 = vmatpush1.msra.mxu0 0.0
    %1705 = vmatprep.subr.mxu0 0.0
    %1706 = vmatpush1.msra.mxu0 0.0
    %1707 = vmatprep.subr.mxu0 0.0
    %1708 = vmatpush1.msra.mxu0 0.0
    %1709 = vmatprep.subr.mxu0 0.0
    %1710 = vmatpush1.msra.mxu0 0.0
    %1711 = vmatprep.subr.mxu0 0.0
    %1712 = vmatpush1.msra.mxu0 0.0
    %1713 = vmatprep.subr.mxu0 0.0
    %1714 = vmatpush1.msra.mxu0 0.0
    %1715 = vmatprep.subr.mxu0 0.0
    %1716 = vmatpush1.msra.mxu0 0.0
    %1717 = vmatprep.subr.mxu0 0.0
    %1718 = vmatpush1.msra.mxu0 0.0
    %1719 = vmatprep.subr.mxu0 0.0
    %1720 = vmatpush1.msra.mxu0 0.0
    %1721 = vmatprep.subr.mxu0 0.0
    %1722 = vmatpush1.msra.mxu0 0.0
    %1723 = vmatprep.mubr.f32.mxu0 0.0
    %1724 = vmatmul.mubr.f32.gmra.mrb[0].mxu0 %v1657
    %v1725 = vpop.f32.mrb[0].mxu0
    %v1726 = vadd.f32 %v56, %v1725
    %v1727 = vpop.f32.mrb[0].mxu0
    %1728 = vdwg.mxu0
    %v1729 = vxor.u32 %v1726, 2147483648
    %v1730 = vmul.f32 %v1729, 1.442695
    %v1731 = vpow.pop %v1730
    %v1732 = vadd.f32 %v1731, 1.0
    %v1733 = vrcp.pop %v1732
    %v1734 = vmul.f32 1.0, %v1733
    %v1735 = vtanh.pop %v1726
    %v1736 = vmul.f32 %v1734, %v1414
    %1738 = vrot.lane.b32.xlu0 %v1735, 32
    %v1739 = vpop.permute.xlu0 %1738
    %v1741 = vmul.f32 %v1734, %v1739
    %1743 = vrot.lane.b32.xlu0 %v1741, 32
    %v1744 = vpop.permute.xlu0 %1743
    %v1746 = vadd.f32 %v1736, %v1744
    %v1747 = vtanh.pop %v1746
    %1749 = vrot.lane.b32.xlu0 %v1747, 32
    %v1750 = vpop.permute.xlu0 %1749
    %v1752 = vmul.f32 %v1734, %v1750
    %1754 = vrot.lane.b32.xlu0 %v1752, 64
    %v1755 = vpop.permute.xlu0 %1754
    %1756 = vrot.lane.b32.xlu0 %v57, 112
    %v1757 = vpop.permute.xlu0 %1756
    %1758 = vrot.lane.b32.xlu0 %v59, 112
    %v1759 = vpop.permute.xlu0 %1758
    %1760 = vrot.lane.b32.xlu0 %v61, 112
    %v1761 = vpop.permute.xlu0 %1760
    %1762 = vrot.lane.b32.xlu0 %v63, 112
    %v1763 = vpop.permute.xlu0 %1762
    %v1768 = vrot.slane %v65, 2
    %v1770 = vsel %vm72, %v1755, 0
    %1772 = vmatprep.subr.mxu0 0.0
    %1773 = vmatpush1.msra.mxu0 %v1757
    %1774 = vmatprep.subr.mxu0 0.0
    %1775 = vmatpush1.msra.mxu0 %v1759
    %1776 = vmatprep.subr.mxu0 0.0
    %1777 = vmatpush1.msra.mxu0 %v1761
    %1778 = vmatprep.subr.mxu0 0.0
    %1779 = vmatpush1.msra.mxu0 %v1763
    %1780 = vmatprep.subr.mxu0 0.0
    %1781 = vmatpush1.msra.mxu0 0.0
    %1782 = vmatprep.subr.mxu0 0.0
    %1783 = vmatpush1.msra.mxu0 0.0
    %1784 = vmatprep.subr.mxu0 0.0
    %1785 = vmatpush1.msra.mxu0 0.0
    %1786 = vmatprep.subr.mxu0 0.0
    %1787 = vmatpush1.msra.mxu0 0.0
    %1788 = vmatprep.subr.mxu0 0.0
    %1789 = vmatpush1.msra.mxu0 0.0
    %1790 = vmatprep.subr.mxu0 0.0
    %1791 = vmatpush1.msra.mxu0 0.0
    %1792 = vmatprep.subr.mxu0 0.0
    %1793 = vmatpush1.msra.mxu0 0.0
    %1794 = vmatprep.subr.mxu0 0.0
    %1795 = vmatpush1.msra.mxu0 0.0
    %1796 = vmatprep.subr.mxu0 0.0
    %1797 = vmatpush1.msra.mxu0 0.0
    %1798 = vmatprep.subr.mxu0 0.0
    %1799 = vmatpush1.msra.mxu0 0.0
    %1800 = vmatprep.subr.mxu0 0.0
    %1801 = vmatpush1.msra.mxu0 0.0
    %1802 = vmatprep.subr.mxu0 0.0
    %1803 = vmatpush1.msra.mxu0 0.0
    %1804 = vmatprep.subr.mxu0 0.0
    %1805 = vmatpush1.msra.mxu0 0.0
    %1806 = vmatprep.subr.mxu0 0.0
    %1807 = vmatpush1.msra.mxu0 0.0
    %1808 = vmatprep.subr.mxu0 0.0
    %1809 = vmatpush1.msra.mxu0 0.0
    %1810 = vmatprep.subr.mxu0 0.0
    %1811 = vmatpush1.msra.mxu0 0.0
    %1812 = vmatprep.subr.mxu0 0.0
    %1813 = vmatpush1.msra.mxu0 0.0
    %1814 = vmatprep.subr.mxu0 0.0
    %1815 = vmatpush1.msra.mxu0 0.0
    %1816 = vmatprep.subr.mxu0 0.0
    %1817 = vmatpush1.msra.mxu0 0.0
    %1818 = vmatprep.subr.mxu0 0.0
    %1819 = vmatpush1.msra.mxu0 0.0
    %1820 = vmatprep.subr.mxu0 0.0
    %1821 = vmatpush1.msra.mxu0 0.0
    %1822 = vmatprep.subr.mxu0 0.0
    %1823 = vmatpush1.msra.mxu0 0.0
    %1824 = vmatprep.subr.mxu0 0.0
    %1825 = vmatpush1.msra.mxu0 0.0
    %1826 = vmatprep.subr.mxu0 0.0
    %1827 = vmatpush1.msra.mxu0 0.0
    %1828 = vmatprep.subr.mxu0 0.0
    %1829 = vmatpush1.msra.mxu0 0.0
    %1830 = vmatprep.subr.mxu0 0.0
    %1831 = vmatpush1.msra.mxu0 0.0
    %1832 = vmatprep.subr.mxu0 0.0
    %1833 = vmatpush1.msra.mxu0 0.0
    %1834 = vmatprep.subr.mxu0 0.0
    %1835 = vmatpush1.msra.mxu0 0.0
    %1836 = vmatprep.mubr.f32.mxu0 0.0
    %1837 = vmatmul.mubr.f32.gmra.mrb[0].mxu0 %v1770
    %v1838 = vpop.f32.mrb[0].mxu0
    %v1839 = vadd.f32 %v1768, %v1838
    %v1840 = vpop.f32.mrb[0].mxu0
    %1841 = vdwg.mxu0
    %v1842 = vsel %vm1189, %v1839, -inf
    %1843 = vmax.xlane.f32.xlu0 %v1842
    %v1844 = vpop.xlane.xlu0 %1843
    %v1845 = vsub.f32 %v1839, %v1844
    %v1846 = vmul.f32 %v1845, 1.442695
    %v1847 = vpow.pop %v1846
    %v1848 = vsel %vm1189, %v1847, 0.0
    %1849 = vadd.xlane.f32.xlu0 %v1848
    %v1850 = vpop.xlane.xlu0 %1849
    %v1851 = vrcp.pop %v1850
    %v1852 = vmul.f32 %v1847, %v1851
    %v1853 = vlog2.pop %v1850
    %v1854 = vmul.f32 %v1853, 0.6931472
    %v1855 = vsub.f32 %v1845, %v1854
    %v1856 = vmul.f32 %v1852, %v1855
    %v1857 = vsel %vm1189, %v1856, 0.0
    %1858 = vadd.xlane.f32.xlu0 %v1857
    %v1859 = vpop.xlane.xlu0 %1858
    %v1860 = vsub.f32 %v1533, %v1859
    %v1862 = vrot.slane %v1855, 6
    %v1864 = vmul.f32 %v68, %v1862
    %vm1865 = vcmask 59394
    %v1866 = vsel %vm1865, %v1864, 0.0
    %1867 = vadd.xlane.f32.xlu0 %v1866
    %v1868 = vpop.xlane.xlu0 %1867
    %v1870 = vrot.slane %v1868, 2
    %v1872 = vadd.f32 %v1545, %v1870
    %1874 = vrot.lane.b32.xlu0 %v1647, 96
    %v1875 = vpop.permute.xlu0 %1874
    %v1877 = vsel %vm72, %v1755, %v1875
    %v1879 = vsel %vm74, %v1877, 0
    %1881 = vmatprep.subr.mxu0 0.0
    %1882 = vmatpush1.msra.mxu0 %v37
    %1883 = vmatprep.subr.mxu0 0.0
    %1884 = vmatpush1.msra.mxu0 %v38
    %1885 = vmatprep.subr.mxu0 0.0
    %1886 = vmatpush1.msra.mxu0 %v39
    %1887 = vmatprep.subr.mxu0 0.0
    %1888 = vmatpush1.msra.mxu0 %v40
    %1889 = vmatprep.subr.mxu0 0.0
    %1890 = vmatpush1.msra.mxu0 %v41
    %1891 = vmatprep.subr.mxu0 0.0
    %1892 = vmatpush1.msra.mxu0 %v42
    %1893 = vmatprep.subr.mxu0 0.0
    %1894 = vmatpush1.msra.mxu0 %v43
    %1895 = vmatprep.subr.mxu0 0.0
    %1896 = vmatpush1.msra.mxu0 %v44
    %1897 = vmatprep.subr.mxu0 0.0
    %1898 = vmatpush1.msra.mxu0 0.0
    %1899 = vmatprep.subr.mxu0 0.0
    %1900 = vmatpush1.msra.mxu0 0.0
    %1901 = vmatprep.subr.mxu0 0.0
    %1902 = vmatpush1.msra.mxu0 0.0
    %1903 = vmatprep.subr.mxu0 0.0
    %1904 = vmatpush1.msra.mxu0 0.0
    %1905 = vmatprep.subr.mxu0 0.0
    %1906 = vmatpush1.msra.mxu0 0.0
    %1907 = vmatprep.subr.mxu0 0.0
    %1908 = vmatpush1.msra.mxu0 0.0
    %1909 = vmatprep.subr.mxu0 0.0
    %1910 = vmatpush1.msra.mxu0 0.0
    %1911 = vmatprep.subr.mxu0 0.0
    %1912 = vmatpush1.msra.mxu0 0.0
    %1913 = vmatprep.subr.mxu0 0.0
    %1914 = vmatpush1.msra.mxu0 0.0
    %1915 = vmatprep.subr.mxu0 0.0
    %1916 = vmatpush1.msra.mxu0 0.0
    %1917 = vmatprep.subr.mxu0 0.0
    %1918 = vmatpush1.msra.mxu0 0.0
    %1919 = vmatprep.subr.mxu0 0.0
    %1920 = vmatpush1.msra.mxu0 0.0
    %1921 = vmatprep.subr.mxu0 0.0
    %1922 = vmatpush1.msra.mxu0 0.0
    %1923 = vmatprep.subr.mxu0 0.0
    %1924 = vmatpush1.msra.mxu0 0.0
    %1925 = vmatprep.subr.mxu0 0.0
    %1926 = vmatpush1.msra.mxu0 0.0
    %1927 = vmatprep.subr.mxu0 0.0
    %1928 = vmatpush1.msra.mxu0 0.0
    %1929 = vmatprep.subr.mxu0 0.0
    %1930 = vmatpush1.msra.mxu0 0.0
    %1931 = vmatprep.subr.mxu0 0.0
    %1932 = vmatpush1.msra.mxu0 0.0
    %1933 = vmatprep.subr.mxu0 0.0
    %1934 = vmatpush1.msra.mxu0 0.0
    %1935 = vmatprep.subr.mxu0 0.0
    %1936 = vmatpush1.msra.mxu0 0.0
    %1937 = vmatprep.subr.mxu0 0.0
    %1938 = vmatpush1.msra.mxu0 0.0
    %1939 = vmatprep.subr.mxu0 0.0
    %1940 = vmatpush1.msra.mxu0 0.0
    %1941 = vmatprep.subr.mxu0 0.0
    %1942 = vmatpush1.msra.mxu0 0.0
    %1943 = vmatprep.subr.mxu0 0.0
    %1944 = vmatpush1.msra.mxu0 0.0
    %1945 = vmatprep.mubr.f32.mxu0 0.0
    %1946 = vmatmul.mubr.f32.gmra.mrb[0].mxu0 %v1879
    %v1947 = vpop.f32.mrb[0].mxu0
    %v1948 = vadd.f32 %v54, %v1947
    %v1949 = vpop.f32.mrb[0].mxu0
    %1950 = vdwg.mxu0
    %v1951 = vxor.u32 %v1948, 2147483648
    %v1952 = vmul.f32 %v1951, 1.442695
    %v1953 = vpow.pop %v1952
    %v1954 = vadd.f32 %v1953, 1.0
    %v1955 = vrcp.pop %v1954
    %v1956 = vmul.f32 1.0, %v1955
    %v1957 = vtanh.pop %v1948
    %v1958 = vmul.f32 %v1956, %v1641
    %1960 = vrot.lane.b32.xlu0 %v1957, 32
    %v1961 = vpop.permute.xlu0 %1960
    %v1963 = vmul.f32 %v1956, %v1961
    %1965 = vrot.lane.b32.xlu0 %v1963, 32
    %v1966 = vpop.permute.xlu0 %1965
    %v1968 = vadd.f32 %v1958, %v1966
    %v1969 = vtanh.pop %v1968
    %1971 = vrot.lane.b32.xlu0 %v1969, 32
    %v1972 = vpop.permute.xlu0 %1971
    %v1974 = vmul.f32 %v1956, %v1972
    %1976 = vrot.lane.b32.xlu0 %v1974, 64
    %v1977 = vpop.permute.xlu0 %1976
    %1979 = vrot.lane.b32.xlu0 %v1752, 96
    %v1980 = vpop.permute.xlu0 %1979
    %v1982 = vsel %vm72, %v1977, %v1980
    %v1984 = vsel %vm74, %v1982, 0
    %1986 = vmatprep.subr.mxu0 0.0
    %1987 = vmatpush1.msra.mxu0 %v46
    %1988 = vmatprep.subr.mxu0 0.0
    %1989 = vmatpush1.msra.mxu0 %v47
    %1990 = vmatprep.subr.mxu0 0.0
    %1991 = vmatpush1.msra.mxu0 %v48
    %1992 = vmatprep.subr.mxu0 0.0
    %1993 = vmatpush1.msra.mxu0 %v49
    %1994 = vmatprep.subr.mxu0 0.0
    %1995 = vmatpush1.msra.mxu0 %v50
    %1996 = vmatprep.subr.mxu0 0.0
    %1997 = vmatpush1.msra.mxu0 %v51
    %1998 = vmatprep.subr.mxu0 0.0
    %1999 = vmatpush1.msra.mxu0 %v52
    %2000 = vmatprep.subr.mxu0 0.0
    %2001 = vmatpush1.msra.mxu0 %v53
    %2002 = vmatprep.subr.mxu0 0.0
    %2003 = vmatpush1.msra.mxu0 0.0
    %2004 = vmatprep.subr.mxu0 0.0
    %2005 = vmatpush1.msra.mxu0 0.0
    %2006 = vmatprep.subr.mxu0 0.0
    %2007 = vmatpush1.msra.mxu0 0.0
    %2008 = vmatprep.subr.mxu0 0.0
    %2009 = vmatpush1.msra.mxu0 0.0
    %2010 = vmatprep.subr.mxu0 0.0
    %2011 = vmatpush1.msra.mxu0 0.0
    %2012 = vmatprep.subr.mxu0 0.0
    %2013 = vmatpush1.msra.mxu0 0.0
    %2014 = vmatprep.subr.mxu0 0.0
    %2015 = vmatpush1.msra.mxu0 0.0
    %2016 = vmatprep.subr.mxu0 0.0
    %2017 = vmatpush1.msra.mxu0 0.0
    %2018 = vmatprep.subr.mxu0 0.0
    %2019 = vmatpush1.msra.mxu0 0.0
    %2020 = vmatprep.subr.mxu0 0.0
    %2021 = vmatpush1.msra.mxu0 0.0
    %2022 = vmatprep.subr.mxu0 0.0
    %2023 = vmatpush1.msra.mxu0 0.0
    %2024 = vmatprep.subr.mxu0 0.0
    %2025 = vmatpush1.msra.mxu0 0.0
    %2026 = vmatprep.subr.mxu0 0.0
    %2027 = vmatpush1.msra.mxu0 0.0
    %2028 = vmatprep.subr.mxu0 0.0
    %2029 = vmatpush1.msra.mxu0 0.0
    %2030 = vmatprep.subr.mxu0 0.0
    %2031 = vmatpush1.msra.mxu0 0.0
    %2032 = vmatprep.subr.mxu0 0.0
    %2033 = vmatpush1.msra.mxu0 0.0
    %2034 = vmatprep.subr.mxu0 0.0
    %2035 = vmatpush1.msra.mxu0 0.0
    %2036 = vmatprep.subr.mxu0 0.0
    %2037 = vmatpush1.msra.mxu0 0.0
    %2038 = vmatprep.subr.mxu0 0.0
    %2039 = vmatpush1.msra.mxu0 0.0
    %2040 = vmatprep.subr.mxu0 0.0
    %2041 = vmatpush1.msra.mxu0 0.0
    %2042 = vmatprep.subr.mxu0 0.0
    %2043 = vmatpush1.msra.mxu0 0.0
    %2044 = vmatprep.subr.mxu0 0.0
    %2045 = vmatpush1.msra.mxu0 0.0
    %2046 = vmatprep.subr.mxu0 0.0
    %2047 = vmatpush1.msra.mxu0 0.0
    %2048 = vmatprep.subr.mxu0 0.0
    %2049 = vmatpush1.msra.mxu0 0.0
    %2050 = vmatprep.mubr.f32.mxu0 0.0
    %2051 = vmatmul.mubr.f32.gmra.mrb[0].mxu0 %v1984
    %v2052 = vpop.f32.mrb[0].mxu0
    %v2053 = vadd.f32 %v56, %v2052
    %v2054 = vpop.f32.mrb[0].mxu0
    %2055 = vdwg.mxu0
    %v2056 = vxor.u32 %v2053, 2147483648
    %v2057 = vmul.f32 %v2056, 1.442695
    %v2058 = vpow.pop %v2057
    %v2059 = vadd.f32 %v2058, 1.0
    %v2060 = vrcp.pop %v2059
    %v2061 = vmul.f32 1.0, %v2060
    %v2062 = vtanh.pop %v2053
    %v2063 = vmul.f32 %v2061, %v1746
    %2065 = vrot.lane.b32.xlu0 %v2062, 32
    %v2066 = vpop.permute.xlu0 %2065
    %v2068 = vmul.f32 %v2061, %v2066
    %2070 = vrot.lane.b32.xlu0 %v2068, 32
    %v2071 = vpop.permute.xlu0 %2070
    %v2073 = vadd.f32 %v2063, %v2071
    %v2074 = vtanh.pop %v2073
    %2076 = vrot.lane.b32.xlu0 %v2074, 32
    %v2077 = vpop.permute.xlu0 %2076
    %v2079 = vmul.f32 %v2061, %v2077
    %2081 = vrot.lane.b32.xlu0 %v2079, 64
    %v2082 = vpop.permute.xlu0 %2081
    %2083 = vrot.lane.b32.xlu0 %v57, 104
    %v2084 = vpop.permute.xlu0 %2083
    %2085 = vrot.lane.b32.xlu0 %v59, 104
    %v2086 = vpop.permute.xlu0 %2085
    %2087 = vrot.lane.b32.xlu0 %v61, 104
    %v2088 = vpop.permute.xlu0 %2087
    %2089 = vrot.lane.b32.xlu0 %v63, 104
    %v2090 = vpop.permute.xlu0 %2089
    %v2095 = vrot.slane %v65, 3
    %v2097 = vsel %vm72, %v2082, 0
    %2099 = vmatprep.subr.mxu0 0.0
    %2100 = vmatpush1.msra.mxu0 %v2084
    %2101 = vmatprep.subr.mxu0 0.0
    %2102 = vmatpush1.msra.mxu0 %v2086
    %2103 = vmatprep.subr.mxu0 0.0
    %2104 = vmatpush1.msra.mxu0 %v2088
    %2105 = vmatprep.subr.mxu0 0.0
    %2106 = vmatpush1.msra.mxu0 %v2090
    %2107 = vmatprep.subr.mxu0 0.0
    %2108 = vmatpush1.msra.mxu0 0.0
    %2109 = vmatprep.subr.mxu0 0.0
    %2110 = vmatpush1.msra.mxu0 0.0
    %2111 = vmatprep.subr.mxu0 0.0
    %2112 = vmatpush1.msra.mxu0 0.0
    %2113 = vmatprep.subr.mxu0 0.0
    %2114 = vmatpush1.msra.mxu0 0.0
    %2115 = vmatprep.subr.mxu0 0.0
    %2116 = vmatpush1.msra.mxu0 0.0
    %2117 = vmatprep.subr.mxu0 0.0
    %2118 = vmatpush1.msra.mxu0 0.0
    %2119 = vmatprep.subr.mxu0 0.0
    %2120 = vmatpush1.msra.mxu0 0.0
    %2121 = vmatprep.subr.mxu0 0.0
    %2122 = vmatpush1.msra.mxu0 0.0
    %2123 = vmatprep.subr.mxu0 0.0
    %2124 = vmatpush1.msra.mxu0 0.0
    %2125 = vmatprep.subr.mxu0 0.0
    %2126 = vmatpush1.msra.mxu0 0.0
    %2127 = vmatprep.subr.mxu0 0.0
    %2128 = vmatpush1.msra.mxu0 0.0
    %2129 = vmatprep.subr.mxu0 0.0
    %2130 = vmatpush1.msra.mxu0 0.0
    %2131 = vmatprep.subr.mxu0 0.0
    %2132 = vmatpush1.msra.mxu0 0.0
    %2133 = vmatprep.subr.mxu0 0.0
    %2134 = vmatpush1.msra.mxu0 0.0
    %2135 = vmatprep.subr.mxu0 0.0
    %2136 = vmatpush1.msra.mxu0 0.0
    %2137 = vmatprep.subr.mxu0 0.0
    %2138 = vmatpush1.msra.mxu0 0.0
    %2139 = vmatprep.subr.mxu0 0.0
    %2140 = vmatpush1.msra.mxu0 0.0
    %2141 = vmatprep.subr.mxu0 0.0
    %2142 = vmatpush1.msra.mxu0 0.0
    %2143 = vmatprep.subr.mxu0 0.0
    %2144 = vmatpush1.msra.mxu0 0.0
    %2145 = vmatprep.subr.mxu0 0.0
    %2146 = vmatpush1.msra.mxu0 0.0
    %2147 = vmatprep.subr.mxu0 0.0
    %2148 = vmatpush1.msra.mxu0 0.0
    %2149 = vmatprep.subr.mxu0 0.0
    %2150 = vmatpush1.msra.mxu0 0.0
    %2151 = vmatprep.subr.mxu0 0.0
    %2152 = vmatpush1.msra.mxu0 0.0
    %2153 = vmatprep.subr.mxu0 0.0
    %2154 = vmatpush1.msra.mxu0 0.0
    %2155 = vmatprep.subr.mxu0 0.0
    %2156 = vmatpush1.msra.mxu0 0.0
    %2157 = vmatprep.subr.mxu0 0.0
    %2158 = vmatpush1.msra.mxu0 0.0
    %2159 = vmatprep.subr.mxu0 0.0
    %2160 = vmatpush1.msra.mxu0 0.0
    %2161 = vmatprep.subr.mxu0 0.0
    %2162 = vmatpush1.msra.mxu0 0.0
    %2163 = vmatprep.mubr.f32.mxu0 0.0
    %2164 = vmatmul.mubr.f32.gmra.mrb[0].mxu0 %v2097
    %v2165 = vpop.f32.mrb[0].mxu0
    %v2166 = vadd.f32 %v2095, %v2165
    %v2167 = vpop.f32.mrb[0].mxu0
    %2168 = vdwg.mxu0
    %v2169 = vsel %vm1189, %v2166, -inf
    %2170 = vmax.xlane.f32.xlu0 %v2169
    %v2171 = vpop.xlane.xlu0 %2170
    %v2172 = vsub.f32 %v2166, %v2171
    %v2173 = vmul.f32 %v2172, 1.442695
    %v2174 = vpow.pop %v2173
    %v2175 = vsel %vm1189, %v2174, 0.0
    %2176 = vadd.xlane.f32.xlu0 %v2175
    %v2177 = vpop.xlane.xlu0 %2176
    %v2178 = vrcp.pop %v2177
    %v2179 = vmul.f32 %v2174, %v2178
    %v2180 = vlog2.pop %v2177
    %v2181 = vmul.f32 %v2180, 0.6931472
    %v2182 = vsub.f32 %v2172, %v2181
    %v2183 = vmul.f32 %v2179, %v2182
    %v2184 = vsel %vm1189, %v2183, 0.0
    %2185 = vadd.xlane.f32.xlu0 %v2184
    %v2186 = vpop.xlane.xlu0 %2185
    %v2187 = vsub.f32 %v1860, %v2186
    %v2189 = vrot.slane %v2182, 5
    %v2191 = vmul.f32 %v68, %v2189
    %vm2192 = vcmask 60419
    %v2193 = vsel %vm2192, %v2191, 0.0
    %2194 = vadd.xlane.f32.xlu0 %v2193
    %v2195 = vpop.xlane.xlu0 %2194
    %v2197 = vrot.slane %v2195, 3
    %v2199 = vadd.f32 %v1872, %v2197
    %2201 = vrot.lane.b32.xlu0 %v1974, 96
    %v2202 = vpop.permute.xlu0 %2201
    %v2204 = vsel %vm72, %v2082, %v2202
    %v2206 = vsel %vm74, %v2204, 0
    %2208 = vmatprep.subr.mxu0 0.0
    %2209 = vmatpush1.msra.mxu0 %v37
    %2210 = vmatprep.subr.mxu0 0.0
    %2211 = vmatpush1.msra.mxu0 %v38
    %2212 = vmatprep.subr.mxu0 0.0
    %2213 = vmatpush1.msra.mxu0 %v39
    %2214 = vmatprep.subr.mxu0 0.0
    %2215 = vmatpush1.msra.mxu0 %v40
    %2216 = vmatprep.subr.mxu0 0.0
    %2217 = vmatpush1.msra.mxu0 %v41
    %2218 = vmatprep.subr.mxu0 0.0
    %2219 = vmatpush1.msra.mxu0 %v42
    %2220 = vmatprep.subr.mxu0 0.0
    %2221 = vmatpush1.msra.mxu0 %v43
    %2222 = vmatprep.subr.mxu0 0.0
    %2223 = vmatpush1.msra.mxu0 %v44
    %2224 = vmatprep.subr.mxu0 0.0
    %2225 = vmatpush1.msra.mxu0 0.0
    %2226 = vmatprep.subr.mxu0 0.0
    %2227 = vmatpush1.msra.mxu0 0.0
    %2228 = vmatprep.subr.mxu0 0.0
    %2229 = vmatpush1.msra.mxu0 0.0
    %2230 = vmatprep.subr.mxu0 0.0
    %2231 = vmatpush1.msra.mxu0 0.0
    %2232 = vmatprep.subr.mxu0 0.0
    %2233 = vmatpush1.msra.mxu0 0.0
    %2234 = vmatprep.subr.mxu0 0.0
    %2235 = vmatpush1.msra.mxu0 0.0
    %2236 = vmatprep.subr.mxu0 0.0
    %2237 = vmatpush1.msra.mxu0 0.0
    %2238 = vmatprep.subr.mxu0 0.0
    %2239 = vmatpush1.msra.mxu0 0.0
    %2240 = vmatprep.subr.mxu0 0.0
    %2241 = vmatpush1.msra.mxu0 0.0
    %2242 = vmatprep.subr.mxu0 0.0
    %2243 = vmatpush1.msra.mxu0 0.0
    %2244 = vmatprep.subr.mxu0 0.0
    %2245 = vmatpush1.msra.mxu0 0.0
    %2246 = vmatprep.subr.mxu0 0.0
    %2247 = vmatpush1.msra.mxu0 0.0
    %2248 = vmatprep.subr.mxu0 0.0
    %2249 = vmatpush1.msra.mxu0 0.0
    %2250 = vmatprep.subr.mxu0 0.0
    %2251 = vmatpush1.msra.mxu0 0.0
    %2252 = vmatprep.subr.mxu0 0.0
    %2253 = vmatpush1.msra.mxu0 0.0
    %2254 = vmatprep.subr.mxu0 0.0
    %2255 = vmatpush1.msra.mxu0 0.0
    %2256 = vmatprep.subr.mxu0 0.0
    %2257 = vmatpush1.msra.mxu0 0.0
    %2258 = vmatprep.subr.mxu0 0.0
    %2259 = vmatpush1.msra.mxu0 0.0
    %2260 = vmatprep.subr.mxu0 0.0
    %2261 = vmatpush1.msra.mxu0 0.0
    %2262 = vmatprep.subr.mxu0 0.0
    %2263 = vmatpush1.msra.mxu0 0.0
    %2264 = vmatprep.subr.mxu0 0.0
    %2265 = vmatpush1.msra.mxu0 0.0
    %2266 = vmatprep.subr.mxu0 0.0
    %2267 = vmatpush1.msra.mxu0 0.0
    %2268 = vmatprep.subr.mxu0 0.0
    %2269 = vmatpush1.msra.mxu0 0.0
    %2270 = vmatprep.subr.mxu0 0.0
    %2271 = vmatpush1.msra.mxu0 0.0
    %2272 = vmatprep.mubr.f32.mxu0 0.0
    %2273 = vmatmul.mubr.f32.gmra.mrb[0].mxu0 %v2206
    %v2274 = vpop.f32.mrb[0].mxu0
    %v2275 = vadd.f32 %v54, %v2274
    %v2276 = vpop.f32.mrb[0].mxu0
    %2277 = vdwg.mxu0
    %v2278 = vxor.u32 %v2275, 2147483648
    %v2279 = vmul.f32 %v2278, 1.442695
    %v2280 = vpow.pop %v2279
    %v2281 = vadd.f32 %v2280, 1.0
    %v2282 = vrcp.pop %v2281
    %v2283 = vmul.f32 1.0, %v2282
    %v2284 = vtanh.pop %v2275
    %v2285 = vmul.f32 %v2283, %v1968
    %2287 = vrot.lane.b32.xlu0 %v2284, 32
    %v2288 = vpop.permute.xlu0 %2287
    %v2290 = vmul.f32 %v2283, %v2288
    %2292 = vrot.lane.b32.xlu0 %v2290, 32
    %v2293 = vpop.permute.xlu0 %2292
    %v2295 = vadd.f32 %v2285, %v2293
    %v2296 = vtanh.pop %v2295
    %2298 = vrot.lane.b32.xlu0 %v2296, 32
    %v2299 = vpop.permute.xlu0 %2298
    %v2301 = vmul.f32 %v2283, %v2299
    %2303 = vrot.lane.b32.xlu0 %v2301, 64
    %v2304 = vpop.permute.xlu0 %2303
    %2306 = vrot.lane.b32.xlu0 %v2079, 96
    %v2307 = vpop.permute.xlu0 %2306
    %v2309 = vsel %vm72, %v2304, %v2307
    %v2311 = vsel %vm74, %v2309, 0
    %2313 = vmatprep.subr.mxu0 0.0
    %2314 = vmatpush1.msra.mxu0 %v46
    %2315 = vmatprep.subr.mxu0 0.0
    %2316 = vmatpush1.msra.mxu0 %v47
    %2317 = vmatprep.subr.mxu0 0.0
    %2318 = vmatpush1.msra.mxu0 %v48
    %2319 = vmatprep.subr.mxu0 0.0
    %2320 = vmatpush1.msra.mxu0 %v49
    %2321 = vmatprep.subr.mxu0 0.0
    %2322 = vmatpush1.msra.mxu0 %v50
    %2323 = vmatprep.subr.mxu0 0.0
    %2324 = vmatpush1.msra.mxu0 %v51
    %2325 = vmatprep.subr.mxu0 0.0
    %2326 = vmatpush1.msra.mxu0 %v52
    %2327 = vmatprep.subr.mxu0 0.0
    %2328 = vmatpush1.msra.mxu0 %v53
    %2329 = vmatprep.subr.mxu0 0.0
    %2330 = vmatpush1.msra.mxu0 0.0
    %2331 = vmatprep.subr.mxu0 0.0
    %2332 = vmatpush1.msra.mxu0 0.0
    %2333 = vmatprep.subr.mxu0 0.0
    %2334 = vmatpush1.msra.mxu0 0.0
    %2335 = vmatprep.subr.mxu0 0.0
    %2336 = vmatpush1.msra.mxu0 0.0
    %2337 = vmatprep.subr.mxu0 0.0
    %2338 = vmatpush1.msra.mxu0 0.0
    %2339 = vmatprep.subr.mxu0 0.0
    %2340 = vmatpush1.msra.mxu0 0.0
    %2341 = vmatprep.subr.mxu0 0.0
    %2342 = vmatpush1.msra.mxu0 0.0
    %2343 = vmatprep.subr.mxu0 0.0
    %2344 = vmatpush1.msra.mxu0 0.0
    %2345 = vmatprep.subr.mxu0 0.0
    %2346 = vmatpush1.msra.mxu0 0.0
    %2347 = vmatprep.subr.mxu0 0.0
    %2348 = vmatpush1.msra.mxu0 0.0
    %2349 = vmatprep.subr.mxu0 0.0
    %2350 = vmatpush1.msra.mxu0 0.0
    %2351 = vmatprep.subr.mxu0 0.0
    %2352 = vmatpush1.msra.mxu0 0.0
    %2353 = vmatprep.subr.mxu0 0.0
    %2354 = vmatpush1.msra.mxu0 0.0
    %2355 = vmatprep.subr.mxu0 0.0
    %2356 = vmatpush1.msra.mxu0 0.0
    %2357 = vmatprep.subr.mxu0 0.0
    %2358 = vmatpush1.msra.mxu0 0.0
    %2359 = vmatprep.subr.mxu0 0.0
    %2360 = vmatpush1.msra.mxu0 0.0
    %2361 = vmatprep.subr.mxu0 0.0
    %2362 = vmatpush1.msra.mxu0 0.0
    %2363 = vmatprep.subr.mxu0 0.0
    %2364 = vmatpush1.msra.mxu0 0.0
    %2365 = vmatprep.subr.mxu0 0.0
    %2366 = vmatpush1.msra.mxu0 0.0
    %2367 = vmatprep.subr.mxu0 0.0
    %2368 = vmatpush1.msra.mxu0 0.0
    %2369 = vmatprep.subr.mxu0 0.0
    %2370 = vmatpush1.msra.mxu0 0.0
    %2371 = vmatprep.subr.mxu0 0.0
    %2372 = vmatpush1.msra.mxu0 0.0
    %2373 = vmatprep.subr.mxu0 0.0
    %2374 = vmatpush1.msra.mxu0 0.0
    %2375 = vmatprep.subr.mxu0 0.0
    %2376 = vmatpush1.msra.mxu0 0.0
    %2377 = vmatprep.mubr.f32.mxu0 0.0
    %2378 = vmatmul.mubr.f32.gmra.mrb[0].mxu0 %v2311
    %v2379 = vpop.f32.mrb[0].mxu0
    %v2380 = vadd.f32 %v56, %v2379
    %v2381 = vpop.f32.mrb[0].mxu0
    %2382 = vdwg.mxu0
    %v2383 = vxor.u32 %v2380, 2147483648
    %v2384 = vmul.f32 %v2383, 1.442695
    %v2385 = vpow.pop %v2384
    %v2386 = vadd.f32 %v2385, 1.0
    %v2387 = vrcp.pop %v2386
    %v2388 = vmul.f32 1.0, %v2387
    %v2389 = vtanh.pop %v2380
    %v2390 = vmul.f32 %v2388, %v2073
    %2392 = vrot.lane.b32.xlu0 %v2389, 32
    %v2393 = vpop.permute.xlu0 %2392
    %v2395 = vmul.f32 %v2388, %v2393
    %2397 = vrot.lane.b32.xlu0 %v2395, 32
    %v2398 = vpop.permute.xlu0 %2397
    %v2400 = vadd.f32 %v2390, %v2398
    %v2401 = vtanh.pop %v2400
    %2403 = vrot.lane.b32.xlu0 %v2401, 32
    %v2404 = vpop.permute.xlu0 %2403
    %v2406 = vmul.f32 %v2388, %v2404
    %2408 = vrot.lane.b32.xlu0 %v2406, 64
    %v2409 = vpop.permute.xlu0 %2408
    %2410 = vrot.lane.b32.xlu0 %v57, 96
    %v2411 = vpop.permute.xlu0 %2410
    %2412 = vrot.lane.b32.xlu0 %v59, 96
    %v2413 = vpop.permute.xlu0 %2412
    %2414 = vrot.lane.b32.xlu0 %v61, 96
    %v2415 = vpop.permute.xlu0 %2414
    %2416 = vrot.lane.b32.xlu0 %v63, 96
    %v2417 = vpop.permute.xlu0 %2416
    %v2422 = vrot.slane %v65, 4
    %v2424 = vsel %vm72, %v2409, 0
    %2426 = vmatprep.subr.mxu0 0.0
    %2427 = vmatpush1.msra.mxu0 %v2411
    %2428 = vmatprep.subr.mxu0 0.0
    %2429 = vmatpush1.msra.mxu0 %v2413
    %2430 = vmatprep.subr.mxu0 0.0
    %2431 = vmatpush1.msra.mxu0 %v2415
    %2432 = vmatprep.subr.mxu0 0.0
    %2433 = vmatpush1.msra.mxu0 %v2417
    %2434 = vmatprep.subr.mxu0 0.0
    %2435 = vmatpush1.msra.mxu0 0.0
    %2436 = vmatprep.subr.mxu0 0.0
    %2437 = vmatpush1.msra.mxu0 0.0
    %2438 = vmatprep.subr.mxu0 0.0
    %2439 = vmatpush1.msra.mxu0 0.0
    %2440 = vmatprep.subr.mxu0 0.0
    %2441 = vmatpush1.msra.mxu0 0.0
    %2442 = vmatprep.subr.mxu0 0.0
    %2443 = vmatpush1.msra.mxu0 0.0
    %2444 = vmatprep.subr.mxu0 0.0
    %2445 = vmatpush1.msra.mxu0 0.0
    %2446 = vmatprep.subr.mxu0 0.0
    %2447 = vmatpush1.msra.mxu0 0.0
    %2448 = vmatprep.subr.mxu0 0.0
    %2449 = vmatpush1.msra.mxu0 0.0
    %2450 = vmatprep.subr.mxu0 0.0
    %2451 = vmatpush1.msra.mxu0 0.0
    %2452 = vmatprep.subr.mxu0 0.0
    %2453 = vmatpush1.msra.mxu0 0.0
    %2454 = vmatprep.subr.mxu0 0.0
    %2455 = vmatpush1.msra.mxu0 0.0
    %2456 = vmatprep.subr.mxu0 0.0
    %2457 = vmatpush1.msra.mxu0 0.0
    %2458 = vmatprep.subr.mxu0 0.0
    %2459 = vmatpush1.msra.mxu0 0.0
    %2460 = vmatprep.subr.mxu0 0.0
    %2461 = vmatpush1.msra.mxu0 0.0
    %2462 = vmatprep.subr.mxu0 0.0
    %2463 = vmatpush1.msra.mxu0 0.0
    %2464 = vmatprep.subr.mxu0 0.0
    %2465 = vmatpush1.msra.mxu0 0.0
    %2466 = vmatprep.subr.mxu0 0.0
    %2467 = vmatpush1.msra.mxu0 0.0
    %2468 = vmatprep.subr.mxu0 0.0
    %2469 = vmatpush1.msra.mxu0 0.0
    %2470 = vmatprep.subr.mxu0 0.0
    %2471 = vmatpush1.msra.mxu0 0.0
    %2472 = vmatprep.subr.mxu0 0.0
    %2473 = vmatpush1.msra.mxu0 0.0
    %2474 = vmatprep.subr.mxu0 0.0
    %2475 = vmatpush1.msra.mxu0 0.0
    %2476 = vmatprep.subr.mxu0 0.0
    %2477 = vmatpush1.msra.mxu0 0.0
    %2478 = vmatprep.subr.mxu0 0.0
    %2479 = vmatpush1.msra.mxu0 0.0
    %2480 = vmatprep.subr.mxu0 0.0
    %2481 = vmatpush1.msra.mxu0 0.0
    %2482 = vmatprep.subr.mxu0 0.0
    %2483 = vmatpush1.msra.mxu0 0.0
    %2484 = vmatprep.subr.mxu0 0.0
    %2485 = vmatpush1.msra.mxu0 0.0
    %2486 = vmatprep.subr.mxu0 0.0
    %2487 = vmatpush1.msra.mxu0 0.0
    %2488 = vmatprep.subr.mxu0 0.0
    %2489 = vmatpush1.msra.mxu0 0.0
    %2490 = vmatprep.mubr.f32.mxu0 0.0
    %2491 = vmatmul.mubr.f32.gmra.mrb[0].mxu0 %v2424
    %v2492 = vpop.f32.mrb[0].mxu0
    %v2493 = vadd.f32 %v2422, %v2492
    %v2494 = vpop.f32.mrb[0].mxu0
    %2495 = vdwg.mxu0
    %v2496 = vsel %vm1189, %v2493, -inf
    %2497 = vmax.xlane.f32.xlu0 %v2496
    %v2498 = vpop.xlane.xlu0 %2497
    %v2499 = vsub.f32 %v2493, %v2498
    %v2500 = vmul.f32 %v2499, 1.442695
    %v2501 = vpow.pop %v2500
    %v2502 = vsel %vm1189, %v2501, 0.0
    %2503 = vadd.xlane.f32.xlu0 %v2502
    %v2504 = vpop.xlane.xlu0 %2503
    %v2505 = vrcp.pop %v2504
    %v2506 = vmul.f32 %v2501, %v2505
    %v2507 = vlog2.pop %v2504
    %v2508 = vmul.f32 %v2507, 0.6931472
    %v2509 = vsub.f32 %v2499, %v2508
    %v2510 = vmul.f32 %v2506, %v2509
    %v2511 = vsel %vm1189, %v2510, 0.0
    %2512 = vadd.xlane.f32.xlu0 %v2511
    %v2513 = vpop.xlane.xlu0 %2512
    %v2514 = vsub.f32 %v2187, %v2513
    %v2516 = vrot.slane %v2509, 4
    %v2518 = vmul.f32 %v68, %v2516
    %vm2519 = vcmask 61444
    %v2520 = vsel %vm2519, %v2518, 0.0
    %2521 = vadd.xlane.f32.xlu0 %v2520
    %v2522 = vpop.xlane.xlu0 %2521
    %v2524 = vrot.slane %v2522, 4
    %v2526 = vadd.f32 %v2199, %v2524
    %2528 = vrot.lane.b32.xlu0 %v2301, 96
    %v2529 = vpop.permute.xlu0 %2528
    %v2531 = vsel %vm72, %v2409, %v2529
    %v2533 = vsel %vm74, %v2531, 0
    %2535 = vmatprep.subr.mxu0 0.0
    %2536 = vmatpush1.msra.mxu0 %v37
    %2537 = vmatprep.subr.mxu0 0.0
    %2538 = vmatpush1.msra.mxu0 %v38
    %2539 = vmatprep.subr.mxu0 0.0
    %2540 = vmatpush1.msra.mxu0 %v39
    %2541 = vmatprep.subr.mxu0 0.0
    %2542 = vmatpush1.msra.mxu0 %v40
    %2543 = vmatprep.subr.mxu0 0.0
    %2544 = vmatpush1.msra.mxu0 %v41
    %2545 = vmatprep.subr.mxu0 0.0
    %2546 = vmatpush1.msra.mxu0 %v42
    %2547 = vmatprep.subr.mxu0 0.0
    %2548 = vmatpush1.msra.mxu0 %v43
    %2549 = vmatprep.subr.mxu0 0.0
    %2550 = vmatpush1.msra.mxu0 %v44
    %2551 = vmatprep.subr.mxu0 0.0
    %2552 = vmatpush1.msra.mxu0 0.0
    %2553 = vmatprep.subr.mxu0 0.0
    %2554 = vmatpush1.msra.mxu0 0.0
    %2555 = vmatprep.subr.mxu0 0.0
    %2556 = vmatpush1.msra.mxu0 0.0
    %2557 = vmatprep.subr.mxu0 0.0
    %2558 = vmatpush1.msra.mxu0 0.0
    %2559 = vmatprep.subr.mxu0 0.0
    %2560 = vmatpush1.msra.mxu0 0.0
    %2561 = vmatprep.subr.mxu0 0.0
    %2562 = vmatpush1.msra.mxu0 0.0
    %2563 = vmatprep.subr.mxu0 0.0
    %2564 = vmatpush1.msra.mxu0 0.0
    %2565 = vmatprep.subr.mxu0 0.0
    %2566 = vmatpush1.msra.mxu0 0.0
    %2567 = vmatprep.subr.mxu0 0.0
    %2568 = vmatpush1.msra.mxu0 0.0
    %2569 = vmatprep.subr.mxu0 0.0
    %2570 = vmatpush1.msra.mxu0 0.0
    %2571 = vmatprep.subr.mxu0 0.0
    %2572 = vmatpush1.msra.mxu0 0.0
    %2573 = vmatprep.subr.mxu0 0.0
    %2574 = vmatpush1.msra.mxu0 0.0
    %2575 = vmatprep.subr.mxu0 0.0
    %2576 = vmatpush1.msra.mxu0 0.0
    %2577 = vmatprep.subr.mxu0 0.0
    %2578 = vmatpush1.msra.mxu0 0.0
    %2579 = vmatprep.subr.mxu0 0.0
    %2580 = vmatpush1.msra.mxu0 0.0
    %2581 = vmatprep.subr.mxu0 0.0
    %2582 = vmatpush1.msra.mxu0 0.0
    %2583 = vmatprep.subr.mxu0 0.0
    %2584 = vmatpush1.msra.mxu0 0.0
    %2585 = vmatprep.subr.mxu0 0.0
    %2586 = vmatpush1.msra.mxu0 0.0
    %2587 = vmatprep.subr.mxu0 0.0
    %2588 = vmatpush1.msra.mxu0 0.0
    %2589 = vmatprep.subr.mxu0 0.0
    %2590 = vmatpush1.msra.mxu0 0.0
    %2591 = vmatprep.subr.mxu0 0.0
    %2592 = vmatpush1.msra.mxu0 0.0
    %2593 = vmatprep.subr.mxu0 0.0
    %2594 = vmatpush1.msra.mxu0 0.0
    %2595 = vmatprep.subr.mxu0 0.0
    %2596 = vmatpush1.msra.mxu0 0.0
    %2597 = vmatprep.subr.mxu0 0.0
    %2598 = vmatpush1.msra.mxu0 0.0
    %2599 = vmatprep.mubr.f32.mxu0 0.0
    %2600 = vmatmul.mubr.f32.gmra.mrb[0].mxu0 %v2533
    %v2601 = vpop.f32.mrb[0].mxu0
    %v2602 = vadd.f32 %v54, %v2601
    %v2603 = vpop.f32.mrb[0].mxu0
    %2604 = vdwg.mxu0
    %v2605 = vxor.u32 %v2602, 2147483648
    %v2606 = vmul.f32 %v2605, 1.442695
    %v2607 = vpow.pop %v2606
    %v2608 = vadd.f32 %v2607, 1.0
    %v2609 = vrcp.pop %v2608
    %v2610 = vmul.f32 1.0, %v2609
    %v2611 = vtanh.pop %v2602
    %v2612 = vmul.f32 %v2610, %v2295
    %2614 = vrot.lane.b32.xlu0 %v2611, 32
    %v2615 = vpop.permute.xlu0 %2614
    %v2617 = vmul.f32 %v2610, %v2615
    %2619 = vrot.lane.b32.xlu0 %v2617, 32
    %v2620 = vpop.permute.xlu0 %2619
    %v2622 = vadd.f32 %v2612, %v2620
    %v2623 = vtanh.pop %v2622
    %2625 = vrot.lane.b32.xlu0 %v2623, 32
    %v2626 = vpop.permute.xlu0 %2625
    %v2628 = vmul.f32 %v2610, %v2626
    %2630 = vrot.lane.b32.xlu0 %v2628, 64
    %v2631 = vpop.permute.xlu0 %2630
    %2633 = vrot.lane.b32.xlu0 %v2406, 96
    %v2634 = vpop.permute.xlu0 %2633
    %v2636 = vsel %vm72, %v2631, %v2634
    %v2638 = vsel %vm74, %v2636, 0
    %2640 = vmatprep.subr.mxu0 0.0
    %2641 = vmatpush1.msra.mxu0 %v46
    %2642 = vmatprep.subr.mxu0 0.0
    %2643 = vmatpush1.msra.mxu0 %v47
    %2644 = vmatprep.subr.mxu0 0.0
    %2645 = vmatpush1.msra.mxu0 %v48
    %2646 = vmatprep.subr.mxu0 0.0
    %2647 = vmatpush1.msra.mxu0 %v49
    %2648 = vmatprep.subr.mxu0 0.0
    %2649 = vmatpush1.msra.mxu0 %v50
    %2650 = vmatprep.subr.mxu0 0.0
    %2651 = vmatpush1.msra.mxu0 %v51
    %2652 = vmatprep.subr.mxu0 0.0
    %2653 = vmatpush1.msra.mxu0 %v52
    %2654 = vmatprep.subr.mxu0 0.0
    %2655 = vmatpush1.msra.mxu0 %v53
    %2656 = vmatprep.subr.mxu0 0.0
    %2657 = vmatpush1.msra.mxu0 0.0
    %2658 = vmatprep.subr.mxu0 0.0
    %2659 = vmatpush1.msra.mxu0 0.0
    %2660 = vmatprep.subr.mxu0 0.0
    %2661 = vmatpush1.msra.mxu0 0.0
    %2662 = vmatprep.subr.mxu0 0.0
    %2663 = vmatpush1.msra.mxu0 0.0
    %2664 = vmatprep.subr.mxu0 0.0
    %2665 = vmatpush1.msra.mxu0 0.0
    %2666 = vmatprep.subr.mxu0 0.0
    %2667 = vmatpush1.msra.mxu0 0.0
    %2668 = vmatprep.subr.mxu0 0.0
    %2669 = vmatpush1.msra.mxu0 0.0
    %2670 = vmatprep.subr.mxu0 0.0
    %2671 = vmatpush1.msra.mxu0 0.0
    %2672 = vmatprep.subr.mxu0 0.0
    %2673 = vmatpush1.msra.mxu0 0.0
    %2674 = vmatprep.subr.mxu0 0.0
    %2675 = vmatpush1.msra.mxu0 0.0
    %2676 = vmatprep.subr.mxu0 0.0
    %2677 = vmatpush1.msra.mxu0 0.0
    %2678 = vmatprep.subr.mxu0 0.0
    %2679 = vmatpush1.msra.mxu0 0.0
    %2680 = vmatprep.subr.mxu0 0.0
    %2681 = vmatpush1.msra.mxu0 0.0
    %2682 = vmatprep.subr.mxu0 0.0
    %2683 = vmatpush1.msra.mxu0 0.0
    %2684 = vmatprep.subr.mxu0 0.0
    %2685 = vmatpush1.msra.mxu0 0.0
    %2686 = vmatprep.subr.mxu0 0.0
    %2687 = vmatpush1.msra.mxu0 0.0
    %2688 = vmatprep.subr.mxu0 0.0
    %2689 = vmatpush1.msra.mxu0 0.0
    %2690 = vmatprep.subr.mxu0 0.0
    %2691 = vmatpush1.msra.mxu0 0.0
    %2692 = vmatprep.subr.mxu0 0.0
    %2693 = vmatpush1.msra.mxu0 0.0
    %2694 = vmatprep.subr.mxu0 0.0
    %2695 = vmatpush1.msra.mxu0 0.0
    %2696 = vmatprep.subr.mxu0 0.0
    %2697 = vmatpush1.msra.mxu0 0.0
    %2698 = vmatprep.subr.mxu0 0.0
    %2699 = vmatpush1.msra.mxu0 0.0
    %2700 = vmatprep.subr.mxu0 0.0
    %2701 = vmatpush1.msra.mxu0 0.0
    %2702 = vmatprep.subr.mxu0 0.0
    %2703 = vmatpush1.msra.mxu0 0.0
    %2704 = vmatprep.mubr.f32.mxu0 0.0
    %2705 = vmatmul.mubr.f32.gmra.mrb[0].mxu0 %v2638
    %v2706 = vpop.f32.mrb[0].mxu0
    %v2707 = vadd.f32 %v56, %v2706
    %v2708 = vpop.f32.mrb[0].mxu0
    %2709 = vdwg.mxu0
    %v2710 = vxor.u32 %v2707, 2147483648
    %v2711 = vmul.f32 %v2710, 1.442695
    %v2712 = vpow.pop %v2711
    %v2713 = vadd.f32 %v2712, 1.0
    %v2714 = vrcp.pop %v2713
    %v2715 = vmul.f32 1.0, %v2714
    %v2716 = vtanh.pop %v2707
    %v2717 = vmul.f32 %v2715, %v2400
    %2719 = vrot.lane.b32.xlu0 %v2716, 32
    %v2720 = vpop.permute.xlu0 %2719
    %v2722 = vmul.f32 %v2715, %v2720
    %2724 = vrot.lane.b32.xlu0 %v2722, 32
    %v2725 = vpop.permute.xlu0 %2724
    %v2727 = vadd.f32 %v2717, %v2725
    %v2728 = vtanh.pop %v2727
    %2730 = vrot.lane.b32.xlu0 %v2728, 32
    %v2731 = vpop.permute.xlu0 %2730
    %v2733 = vmul.f32 %v2715, %v2731
    %2735 = vrot.lane.b32.xlu0 %v2733, 64
    %v2736 = vpop.permute.xlu0 %2735
    %2737 = vrot.lane.b32.xlu0 %v57, 88
    %v2738 = vpop.permute.xlu0 %2737
    %2739 = vrot.lane.b32.xlu0 %v59, 88
    %v2740 = vpop.permute.xlu0 %2739
    %2741 = vrot.lane.b32.xlu0 %v61, 88
    %v2742 = vpop.permute.xlu0 %2741
    %2743 = vrot.lane.b32.xlu0 %v63, 88
    %v2744 = vpop.permute.xlu0 %2743
    %v2749 = vrot.slane %v65, 5
    %v2751 = vsel %vm72, %v2736, 0
    %2753 = vmatprep.subr.mxu0 0.0
    %2754 = vmatpush1.msra.mxu0 %v2738
    %2755 = vmatprep.subr.mxu0 0.0
    %2756 = vmatpush1.msra.mxu0 %v2740
    %2757 = vmatprep.subr.mxu0 0.0
    %2758 = vmatpush1.msra.mxu0 %v2742
    %2759 = vmatprep.subr.mxu0 0.0
    %2760 = vmatpush1.msra.mxu0 %v2744
    %2761 = vmatprep.subr.mxu0 0.0
    %2762 = vmatpush1.msra.mxu0 0.0
    %2763 = vmatprep.subr.mxu0 0.0
    %2764 = vmatpush1.msra.mxu0 0.0
    %2765 = vmatprep.subr.mxu0 0.0
    %2766 = vmatpush1.msra.mxu0 0.0
    %2767 = vmatprep.subr.mxu0 0.0
    %2768 = vmatpush1.msra.mxu0 0.0
    %2769 = vmatprep.subr.mxu0 0.0
    %2770 = vmatpush1.msra.mxu0 0.0
    %2771 = vmatprep.subr.mxu0 0.0
    %2772 = vmatpush1.msra.mxu0 0.0
    %2773 = vmatprep.subr.mxu0 0.0
    %2774 = vmatpush1.msra.mxu0 0.0
    %2775 = vmatprep.subr.mxu0 0.0
    %2776 = vmatpush1.msra.mxu0 0.0
    %2777 = vmatprep.subr.mxu0 0.0
    %2778 = vmatpush1.msra.mxu0 0.0
    %2779 = vmatprep.subr.mxu0 0.0
    %2780 = vmatpush1.msra.mxu0 0.0
    %2781 = vmatprep.subr.mxu0 0.0
    %2782 = vmatpush1.msra.mxu0 0.0
    %2783 = vmatprep.subr.mxu0 0.0
    %2784 = vmatpush1.msra.mxu0 0.0
    %2785 = vmatprep.subr.mxu0 0.0
    %2786 = vmatpush1.msra.mxu0 0.0
    %2787 = vmatprep.subr.mxu0 0.0
    %2788 = vmatpush1.msra.mxu0 0.0
    %2789 = vmatprep.subr.mxu0 0.0
    %2790 = vmatpush1.msra.mxu0 0.0
    %2791 = vmatprep.subr.mxu0 0.0
    %2792 = vmatpush1.msra.mxu0 0.0
    %2793 = vmatprep.subr.mxu0 0.0
    %2794 = vmatpush1.msra.mxu0 0.0
    %2795 = vmatprep.subr.mxu0 0.0
    %2796 = vmatpush1.msra.mxu0 0.0
    %2797 = vmatprep.subr.mxu0 0.0
    %2798 = vmatpush1.msra.mxu0 0.0
    %2799 = vmatprep.subr.mxu0 0.0
    %2800 = vmatpush1.msra.mxu0 0.0
    %2801 = vmatprep.subr.mxu0 0.0
    %2802 = vmatpush1.msra.mxu0 0.0
    %2803 = vmatprep.subr.mxu0 0.0
    %2804 = vmatpush1.msra.mxu0 0.0
    %2805 = vmatprep.subr.mxu0 0.0
    %2806 = vmatpush1.msra.mxu0 0.0
    %2807 = vmatprep.subr.mxu0 0.0
    %2808 = vmatpush1.msra.mxu0 0.0
    %2809 = vmatprep.subr.mxu0 0.0
    %2810 = vmatpush1.msra.mxu0 0.0
    %2811 = vmatprep.subr.mxu0 0.0
    %2812 = vmatpush1.msra.mxu0 0.0
    %2813 = vmatprep.subr.mxu0 0.0
    %2814 = vmatpush1.msra.mxu0 0.0
    %2815 = vmatprep.subr.mxu0 0.0
    %2816 = vmatpush1.msra.mxu0 0.0
    %2817 = vmatprep.mubr.f32.mxu0 0.0
    %2818 = vmatmul.mubr.f32.gmra.mrb[0].mxu0 %v2751
    %v2819 = vpop.f32.mrb[0].mxu0
    %v2820 = vadd.f32 %v2749, %v2819
    %v2821 = vpop.f32.mrb[0].mxu0
    %2822 = vdwg.mxu0
    %v2823 = vsel %vm1189, %v2820, -inf
    %2824 = vmax.xlane.f32.xlu0 %v2823
    %v2825 = vpop.xlane.xlu0 %2824
    %v2826 = vsub.f32 %v2820, %v2825
    %v2827 = vmul.f32 %v2826, 1.442695
    %v2828 = vpow.pop %v2827
    %v2829 = vsel %vm1189, %v2828, 0.0
    %2830 = vadd.xlane.f32.xlu0 %v2829
    %v2831 = vpop.xlane.xlu0 %2830
    %v2832 = vrcp.pop %v2831
    %v2833 = vmul.f32 %v2828, %v2832
    %v2834 = vlog2.pop %v2831
    %v2835 = vmul.f32 %v2834, 0.6931472
    %v2836 = vsub.f32 %v2826, %v2835
    %v2837 = vmul.f32 %v2833, %v2836
    %v2838 = vsel %vm1189, %v2837, 0.0
    %2839 = vadd.xlane.f32.xlu0 %v2838
    %v2840 = vpop.xlane.xlu0 %2839
    %v2841 = vsub.f32 %v2514, %v2840
    %v2843 = vrot.slane %v2836, 3
    %v2845 = vmul.f32 %v68, %v2843
    %vm2846 = vcmask 62469
    %v2847 = vsel %vm2846, %v2845, 0.0
    %2848 = vadd.xlane.f32.xlu0 %v2847
    %v2849 = vpop.xlane.xlu0 %2848
    %v2851 = vrot.slane %v2849, 5
    %v2853 = vadd.f32 %v2526, %v2851
    %2855 = vrot.lane.b32.xlu0 %v2628, 96
    %v2856 = vpop.permute.xlu0 %2855
    %v2858 = vsel %vm72, %v2736, %v2856
    %v2860 = vsel %vm74, %v2858, 0
    %2862 = vmatprep.subr.mxu0 0.0
    %2863 = vmatpush1.msra.mxu0 %v37
    %2864 = vmatprep.subr.mxu0 0.0
    %2865 = vmatpush1.msra.mxu0 %v38
    %2866 = vmatprep.subr.mxu0 0.0
    %2867 = vmatpush1.msra.mxu0 %v39
    %2868 = vmatprep.subr.mxu0 0.0
    %2869 = vmatpush1.msra.mxu0 %v40
    %2870 = vmatprep.subr.mxu0 0.0
    %2871 = vmatpush1.msra.mxu0 %v41
    %2872 = vmatprep.subr.mxu0 0.0
    %2873 = vmatpush1.msra.mxu0 %v42
    %2874 = vmatprep.subr.mxu0 0.0
    %2875 = vmatpush1.msra.mxu0 %v43
    %2876 = vmatprep.subr.mxu0 0.0
    %2877 = vmatpush1.msra.mxu0 %v44
    %2878 = vmatprep.subr.mxu0 0.0
    %2879 = vmatpush1.msra.mxu0 0.0
    %2880 = vmatprep.subr.mxu0 0.0
    %2881 = vmatpush1.msra.mxu0 0.0
    %2882 = vmatprep.subr.mxu0 0.0
    %2883 = vmatpush1.msra.mxu0 0.0
    %2884 = vmatprep.subr.mxu0 0.0
    %2885 = vmatpush1.msra.mxu0 0.0
    %2886 = vmatprep.subr.mxu0 0.0
    %2887 = vmatpush1.msra.mxu0 0.0
    %2888 = vmatprep.subr.mxu0 0.0
    %2889 = vmatpush1.msra.mxu0 0.0
    %2890 = vmatprep.subr.mxu0 0.0
    %2891 = vmatpush1.msra.mxu0 0.0
    %2892 = vmatprep.subr.mxu0 0.0
    %2893 = vmatpush1.msra.mxu0 0.0
    %2894 = vmatprep.subr.mxu0 0.0
    %2895 = vmatpush1.msra.mxu0 0.0
    %2896 = vmatprep.subr.mxu0 0.0
    %2897 = vmatpush1.msra.mxu0 0.0
    %2898 = vmatprep.subr.mxu0 0.0
    %2899 = vmatpush1.msra.mxu0 0.0
    %2900 = vmatprep.subr.mxu0 0.0
    %2901 = vmatpush1.msra.mxu0 0.0
    %2902 = vmatprep.subr.mxu0 0.0
    %2903 = vmatpush1.msra.mxu0 0.0
    %2904 = vmatprep.subr.mxu0 0.0
    %2905 = vmatpush1.msra.mxu0 0.0
    %2906 = vmatprep.subr.mxu0 0.0
    %2907 = vmatpush1.msra.mxu0 0.0
    %2908 = vmatprep.subr.mxu0 0.0
    %2909 = vmatpush1.msra.mxu0 0.0
    %2910 = vmatprep.subr.mxu0 0.0
    %2911 = vmatpush1.msra.mxu0 0.0
    %2912 = vmatprep.subr.mxu0 0.0
    %2913 = vmatpush1.msra.mxu0 0.0
    %2914 = vmatprep.subr.mxu0 0.0
    %2915 = vmatpush1.msra.mxu0 0.0
    %2916 = vmatprep.subr.mxu0 0.0
    %2917 = vmatpush1.msra.mxu0 0.0
    %2918 = vmatprep.subr.mxu0 0.0
    %2919 = vmatpush1.msra.mxu0 0.0
    %2920 = vmatprep.subr.mxu0 0.0
    %2921 = vmatpush1.msra.mxu0 0.0
    %2922 = vmatprep.subr.mxu0 0.0
    %2923 = vmatpush1.msra.mxu0 0.0
    %2924 = vmatprep.subr.mxu0 0.0
    %2925 = vmatpush1.msra.mxu0 0.0
    %2926 = vmatprep.mubr.f32.mxu0 0.0
    %2927 = vmatmul.mubr.f32.gmra.mrb[0].mxu0 %v2860
    %v2928 = vpop.f32.mrb[0].mxu0
    %v2929 = vadd.f32 %v54, %v2928
    %v2930 = vpop.f32.mrb[0].mxu0
    %2931 = vdwg.mxu0
    %v2932 = vxor.u32 %v2929, 2147483648
    %v2933 = vmul.f32 %v2932, 1.442695
    %v2934 = vpow.pop %v2933
    %v2935 = vadd.f32 %v2934, 1.0
    %v2936 = vrcp.pop %v2935
    %v2937 = vmul.f32 1.0, %v2936
    %v2938 = vtanh.pop %v2929
    %v2939 = vmul.f32 %v2937, %v2622
    %2941 = vrot.lane.b32.xlu0 %v2938, 32
    %v2942 = vpop.permute.xlu0 %2941
    %v2944 = vmul.f32 %v2937, %v2942
    %2946 = vrot.lane.b32.xlu0 %v2944, 32
    %v2947 = vpop.permute.xlu0 %2946
    %v2949 = vadd.f32 %v2939, %v2947
    %v2950 = vtanh.pop %v2949
    %2952 = vrot.lane.b32.xlu0 %v2950, 32
    %v2953 = vpop.permute.xlu0 %2952
    %v2955 = vmul.f32 %v2937, %v2953
    %2957 = vrot.lane.b32.xlu0 %v2955, 64
    %v2958 = vpop.permute.xlu0 %2957
    %2960 = vrot.lane.b32.xlu0 %v2733, 96
    %v2961 = vpop.permute.xlu0 %2960
    %v2963 = vsel %vm72, %v2958, %v2961
    %v2965 = vsel %vm74, %v2963, 0
    %2967 = vmatprep.subr.mxu0 0.0
    %2968 = vmatpush1.msra.mxu0 %v46
    %2969 = vmatprep.subr.mxu0 0.0
    %2970 = vmatpush1.msra.mxu0 %v47
    %2971 = vmatprep.subr.mxu0 0.0
    %2972 = vmatpush1.msra.mxu0 %v48
    %2973 = vmatprep.subr.mxu0 0.0
    %2974 = vmatpush1.msra.mxu0 %v49
    %2975 = vmatprep.subr.mxu0 0.0
    %2976 = vmatpush1.msra.mxu0 %v50
    %2977 = vmatprep.subr.mxu0 0.0
    %2978 = vmatpush1.msra.mxu0 %v51
    %2979 = vmatprep.subr.mxu0 0.0
    %2980 = vmatpush1.msra.mxu0 %v52
    %2981 = vmatprep.subr.mxu0 0.0
    %2982 = vmatpush1.msra.mxu0 %v53
    %2983 = vmatprep.subr.mxu0 0.0
    %2984 = vmatpush1.msra.mxu0 0.0
    %2985 = vmatprep.subr.mxu0 0.0
    %2986 = vmatpush1.msra.mxu0 0.0
    %2987 = vmatprep.subr.mxu0 0.0
    %2988 = vmatpush1.msra.mxu0 0.0
    %2989 = vmatprep.subr.mxu0 0.0
    %2990 = vmatpush1.msra.mxu0 0.0
    %2991 = vmatprep.subr.mxu0 0.0
    %2992 = vmatpush1.msra.mxu0 0.0
    %2993 = vmatprep.subr.mxu0 0.0
    %2994 = vmatpush1.msra.mxu0 0.0
    %2995 = vmatprep.subr.mxu0 0.0
    %2996 = vmatpush1.msra.mxu0 0.0
    %2997 = vmatprep.subr.mxu0 0.0
    %2998 = vmatpush1.msra.mxu0 0.0
    %2999 = vmatprep.subr.mxu0 0.0
    %3000 = vmatpush1.msra.mxu0 0.0
    %3001 = vmatprep.subr.mxu0 0.0
    %3002 = vmatpush1.msra.mxu0 0.0
    %3003 = vmatprep.subr.mxu0 0.0
    %3004 = vmatpush1.msra.mxu0 0.0
    %3005 = vmatprep.subr.mxu0 0.0
    %3006 = vmatpush1.msra.mxu0 0.0
    %3007 = vmatprep.subr.mxu0 0.0
    %3008 = vmatpush1.msra.mxu0 0.0
    %3009 = vmatprep.subr.mxu0 0.0
    %3010 = vmatpush1.msra.mxu0 0.0
    %3011 = vmatprep.subr.mxu0 0.0
    %3012 = vmatpush1.msra.mxu0 0.0
    %3013 = vmatprep.subr.mxu0 0.0
    %3014 = vmatpush1.msra.mxu0 0.0
    %3015 = vmatprep.subr.mxu0 0.0
    %3016 = vmatpush1.msra.mxu0 0.0
    %3017 = vmatprep.subr.mxu0 0.0
    %3018 = vmatpush1.msra.mxu0 0.0
    %3019 = vmatprep.subr.mxu0 0.0
    %3020 = vmatpush1.msra.mxu0 0.0
    %3021 = vmatprep.subr.mxu0 0.0
    %3022 = vmatpush1.msra.mxu0 0.0
    %3023 = vmatprep.subr.mxu0 0.0
    %3024 = vmatpush1.msra.mxu0 0.0
    %3025 = vmatprep.subr.mxu0 0.0
    %3026 = vmatpush1.msra.mxu0 0.0
    %3027 = vmatprep.subr.mxu0 0.0
    %3028 = vmatpush1.msra.mxu0 0.0
    %3029 = vmatprep.subr.mxu0 0.0
    %3030 = vmatpush1.msra.mxu0 0.0
    %3031 = vmatprep.mubr.f32.mxu0 0.0
    %3032 = vmatmul.mubr.f32.gmra.mrb[0].mxu0 %v2965
    %v3033 = vpop.f32.mrb[0].mxu0
    %v3034 = vadd.f32 %v56, %v3033
    %v3035 = vpop.f32.mrb[0].mxu0
    %3036 = vdwg.mxu0
    %v3037 = vxor.u32 %v3034, 2147483648
    %v3038 = vmul.f32 %v3037, 1.442695
    %v3039 = vpow.pop %v3038
    %v3040 = vadd.f32 %v3039, 1.0
    %v3041 = vrcp.pop %v3040
    %v3042 = vmul.f32 1.0, %v3041
    %v3043 = vtanh.pop %v3034
    %v3044 = vmul.f32 %v3042, %v2727
    %3046 = vrot.lane.b32.xlu0 %v3043, 32
    %v3047 = vpop.permute.xlu0 %3046
    %v3049 = vmul.f32 %v3042, %v3047
    %3051 = vrot.lane.b32.xlu0 %v3049, 32
    %v3052 = vpop.permute.xlu0 %3051
    %v3054 = vadd.f32 %v3044, %v3052
    %v3055 = vtanh.pop %v3054
    %3057 = vrot.lane.b32.xlu0 %v3055, 32
    %v3058 = vpop.permute.xlu0 %3057
    %v3060 = vmul.f32 %v3042, %v3058
    %3062 = vrot.lane.b32.xlu0 %v3060, 64
    %v3063 = vpop.permute.xlu0 %3062
    %3064 = vrot.lane.b32.xlu0 %v57, 80
    %v3065 = vpop.permute.xlu0 %3064
    %3066 = vrot.lane.b32.xlu0 %v59, 80
    %v3067 = vpop.permute.xlu0 %3066
    %3068 = vrot.lane.b32.xlu0 %v61, 80
    %v3069 = vpop.permute.xlu0 %3068
    %3070 = vrot.lane.b32.xlu0 %v63, 80
    %v3071 = vpop.permute.xlu0 %3070
    %v3076 = vrot.slane %v65, 6
    %v3078 = vsel %vm72, %v3063, 0
    %3080 = vmatprep.subr.mxu0 0.0
    %3081 = vmatpush1.msra.mxu0 %v3065
    %3082 = vmatprep.subr.mxu0 0.0
    %3083 = vmatpush1.msra.mxu0 %v3067
    %3084 = vmatprep.subr.mxu0 0.0
    %3085 = vmatpush1.msra.mxu0 %v3069
    %3086 = vmatprep.subr.mxu0 0.0
    %3087 = vmatpush1.msra.mxu0 %v3071
    %3088 = vmatprep.subr.mxu0 0.0
    %3089 = vmatpush1.msra.mxu0 0.0
    %3090 = vmatprep.subr.mxu0 0.0
    %3091 = vmatpush1.msra.mxu0 0.0
    %3092 = vmatprep.subr.mxu0 0.0
    %3093 = vmatpush1.msra.mxu0 0.0
    %3094 = vmatprep.subr.mxu0 0.0
    %3095 = vmatpush1.msra.mxu0 0.0
    %3096 = vmatprep.subr.mxu0 0.0
    %3097 = vmatpush1.msra.mxu0 0.0
    %3098 = vmatprep.subr.mxu0 0.0
    %3099 = vmatpush1.msra.mxu0 0.0
    %3100 = vmatprep.subr.mxu0 0.0
    %3101 = vmatpush1.msra.mxu0 0.0
    %3102 = vmatprep.subr.mxu0 0.0
    %3103 = vmatpush1.msra.mxu0 0.0
    %3104 = vmatprep.subr.mxu0 0.0
    %3105 = vmatpush1.msra.mxu0 0.0
    %3106 = vmatprep.subr.mxu0 0.0
    %3107 = vmatpush1.msra.mxu0 0.0
    %3108 = vmatprep.subr.mxu0 0.0
    %3109 = vmatpush1.msra.mxu0 0.0
    %3110 = vmatprep.subr.mxu0 0.0
    %3111 = vmatpush1.msra.mxu0 0.0
    %3112 = vmatprep.subr.mxu0 0.0
    %3113 = vmatpush1.msra.mxu0 0.0
    %3114 = vmatprep.subr.mxu0 0.0
    %3115 = vmatpush1.msra.mxu0 0.0
    %3116 = vmatprep.subr.mxu0 0.0
    %3117 = vmatpush1.msra.mxu0 0.0
    %3118 = vmatprep.subr.mxu0 0.0
    %3119 = vmatpush1.msra.mxu0 0.0
    %3120 = vmatprep.subr.mxu0 0.0
    %3121 = vmatpush1.msra.mxu0 0.0
    %3122 = vmatprep.subr.mxu0 0.0
    %3123 = vmatpush1.msra.mxu0 0.0
    %3124 = vmatprep.subr.mxu0 0.0
    %3125 = vmatpush1.msra.mxu0 0.0
    %3126 = vmatprep.subr.mxu0 0.0
    %3127 = vmatpush1.msra.mxu0 0.0
    %3128 = vmatprep.subr.mxu0 0.0
    %3129 = vmatpush1.msra.mxu0 0.0
    %3130 = vmatprep.subr.mxu0 0.0
    %3131 = vmatpush1.msra.mxu0 0.0
    %3132 = vmatprep.subr.mxu0 0.0
    %3133 = vmatpush1.msra.mxu0 0.0
    %3134 = vmatprep.subr.mxu0 0.0
    %3135 = vmatpush1.msra.mxu0 0.0
    %3136 = vmatprep.subr.mxu0 0.0
    %3137 = vmatpush1.msra.mxu0 0.0
    %3138 = vmatprep.subr.mxu0 0.0
    %3139 = vmatpush1.msra.mxu0 0.0
    %3140 = vmatprep.subr.mxu0 0.0
    %3141 = vmatpush1.msra.mxu0 0.0
    %3142 = vmatprep.subr.mxu0 0.0
    %3143 = vmatpush1.msra.mxu0 0.0
    %3144 = vmatprep.mubr.f32.mxu0 0.0
    %3145 = vmatmul.mubr.f32.gmra.mrb[0].mxu0 %v3078
    %v3146 = vpop.f32.mrb[0].mxu0
    %v3147 = vadd.f32 %v3076, %v3146
    %v3148 = vpop.f32.mrb[0].mxu0
    %3149 = vdwg.mxu0
    %v3150 = vsel %vm1189, %v3147, -inf
    %3151 = vmax.xlane.f32.xlu0 %v3150
    %v3152 = vpop.xlane.xlu0 %3151
    %v3153 = vsub.f32 %v3147, %v3152
    %v3154 = vmul.f32 %v3153, 1.442695
    %v3155 = vpow.pop %v3154
    %v3156 = vsel %vm1189, %v3155, 0.0
    %3157 = vadd.xlane.f32.xlu0 %v3156
    %v3158 = vpop.xlane.xlu0 %3157
    %v3159 = vrcp.pop %v3158
    %v3160 = vmul.f32 %v3155, %v3159
    %v3161 = vlog2.pop %v3158
    %v3162 = vmul.f32 %v3161, 0.6931472
    %v3163 = vsub.f32 %v3153, %v3162
    %v3164 = vmul.f32 %v3160, %v3163
    %v3165 = vsel %vm1189, %v3164, 0.0
    %3166 = vadd.xlane.f32.xlu0 %v3165
    %v3167 = vpop.xlane.xlu0 %3166
    %v3168 = vsub.f32 %v2841, %v3167
    %v3170 = vrot.slane %v3163, 2
    %v3172 = vmul.f32 %v68, %v3170
    %vm3173 = vcmask 63494
    %v3174 = vsel %vm3173, %v3172, 0.0
    %3175 = vadd.xlane.f32.xlu0 %v3174
    %v3176 = vpop.xlane.xlu0 %3175
    %v3178 = vrot.slane %v3176, 6
    %v3180 = vadd.f32 %v2853, %v3178
    %3182 = vrot.lane.b32.xlu0 %v2955, 96
    %v3183 = vpop.permute.xlu0 %3182
    %v3185 = vsel %vm72, %v3063, %v3183
    %v3187 = vsel %vm74, %v3185, 0
    %3189 = vmatprep.subr.mxu0 0.0
    %3190 = vmatpush1.msra.mxu0 %v37
    %3191 = vmatprep.subr.mxu0 0.0
    %3192 = vmatpush1.msra.mxu0 %v38
    %3193 = vmatprep.subr.mxu0 0.0
    %3194 = vmatpush1.msra.mxu0 %v39
    %3195 = vmatprep.subr.mxu0 0.0
    %3196 = vmatpush1.msra.mxu0 %v40
    %3197 = vmatprep.subr.mxu0 0.0
    %3198 = vmatpush1.msra.mxu0 %v41
    %3199 = vmatprep.subr.mxu0 0.0
    %3200 = vmatpush1.msra.mxu0 %v42
    %3201 = vmatprep.subr.mxu0 0.0
    %3202 = vmatpush1.msra.mxu0 %v43
    %3203 = vmatprep.subr.mxu0 0.0
    %3204 = vmatpush1.msra.mxu0 %v44
    %3205 = vmatprep.subr.mxu0 0.0
    %3206 = vmatpush1.msra.mxu0 0.0
    %3207 = vmatprep.subr.mxu0 0.0
    %3208 = vmatpush1.msra.mxu0 0.0
    %3209 = vmatprep.subr.mxu0 0.0
    %3210 = vmatpush1.msra.mxu0 0.0
    %3211 = vmatprep.subr.mxu0 0.0
    %3212 = vmatpush1.msra.mxu0 0.0
    %3213 = vmatprep.subr.mxu0 0.0
    %3214 = vmatpush1.msra.mxu0 0.0
    %3215 = vmatprep.subr.mxu0 0.0
    %3216 = vmatpush1.msra.mxu0 0.0
    %3217 = vmatprep.subr.mxu0 0.0
    %3218 = vmatpush1.msra.mxu0 0.0
    %3219 = vmatprep.subr.mxu0 0.0
    %3220 = vmatpush1.msra.mxu0 0.0
    %3221 = vmatprep.subr.mxu0 0.0
    %3222 = vmatpush1.msra.mxu0 0.0
    %3223 = vmatprep.subr.mxu0 0.0
    %3224 = vmatpush1.msra.mxu0 0.0
    %3225 = vmatprep.subr.mxu0 0.0
    %3226 = vmatpush1.msra.mxu0 0.0
    %3227 = vmatprep.subr.mxu0 0.0
    %3228 = vmatpush1.msra.mxu0 0.0
    %3229 = vmatprep.subr.mxu0 0.0
    %3230 = vmatpush1.msra.mxu0 0.0
    %3231 = vmatprep.subr.mxu0 0.0
    %3232 = vmatpush1.msra.mxu0 0.0
    %3233 = vmatprep.subr.mxu0 0.0
    %3234 = vmatpush1.msra.mxu0 0.0
    %3235 = vmatprep.subr.mxu0 0.0
    %3236 = vmatpush1.msra.mxu0 0.0
    %3237 = vmatprep.subr.mxu0 0.0
    %3238 = vmatpush1.msra.mxu0 0.0
    %3239 = vmatprep.subr.mxu0 0.0
    %3240 = vmatpush1.msra.mxu0 0.0
    %3241 = vmatprep.subr.mxu0 0.0
    %3242 = vmatpush1.msra.mxu0 0.0
    %3243 = vmatprep.subr.mxu0 0.0
    %3244 = vmatpush1.msra.mxu0 0.0
    %3245 = vmatprep.subr.mxu0 0.0
    %3246 = vmatpush1.msra.mxu0 0.0
    %3247 = vmatprep.subr.mxu0 0.0
    %3248 = vmatpush1.msra.mxu0 0.0
    %3249 = vmatprep.subr.mxu0 0.0
    %3250 = vmatpush1.msra.mxu0 0.0
    %3251 = vmatprep.subr.mxu0 0.0
    %3252 = vmatpush1.msra.mxu0 0.0
    %3253 = vmatprep.mubr.f32.mxu0 0.0
    %3254 = vmatmul.mubr.f32.gmra.mrb[0].mxu0 %v3187
    %v3255 = vpop.f32.mrb[0].mxu0
    %v3256 = vadd.f32 %v54, %v3255
    %v3257 = vpop.f32.mrb[0].mxu0
    %3258 = vdwg.mxu0
    %v3259 = vxor.u32 %v3256, 2147483648
    %v3260 = vmul.f32 %v3259, 1.442695
    %v3261 = vpow.pop %v3260
    %v3262 = vadd.f32 %v3261, 1.0
    %v3263 = vrcp.pop %v3262
    %v3264 = vmul.f32 1.0, %v3263
    %v3265 = vtanh.pop %v3256
    %v3266 = vmul.f32 %v3264, %v2949
    %3268 = vrot.lane.b32.xlu0 %v3265, 32
    %v3269 = vpop.permute.xlu0 %3268
    %v3271 = vmul.f32 %v3264, %v3269
    %3273 = vrot.lane.b32.xlu0 %v3271, 32
    %v3274 = vpop.permute.xlu0 %3273
    %v3276 = vadd.f32 %v3266, %v3274
    %v3277 = vtanh.pop %v3276
    %3279 = vrot.lane.b32.xlu0 %v3277, 32
    %v3280 = vpop.permute.xlu0 %3279
    %v3282 = vmul.f32 %v3264, %v3280
    %3284 = vrot.lane.b32.xlu0 %v3282, 64
    %v3285 = vpop.permute.xlu0 %3284
    %3287 = vrot.lane.b32.xlu0 %v3060, 96
    %v3288 = vpop.permute.xlu0 %3287
    %v3290 = vsel %vm72, %v3285, %v3288
    %v3292 = vsel %vm74, %v3290, 0
    %3294 = vmatprep.subr.mxu0 0.0
    %3295 = vmatpush1.msra.mxu0 %v46
    %3296 = vmatprep.subr.mxu0 0.0
    %3297 = vmatpush1.msra.mxu0 %v47
    %3298 = vmatprep.subr.mxu0 0.0
    %3299 = vmatpush1.msra.mxu0 %v48
    %3300 = vmatprep.subr.mxu0 0.0
    %3301 = vmatpush1.msra.mxu0 %v49
    %3302 = vmatprep.subr.mxu0 0.0
    %3303 = vmatpush1.msra.mxu0 %v50
    %3304 = vmatprep.subr.mxu0 0.0
    %3305 = vmatpush1.msra.mxu0 %v51
    %3306 = vmatprep.subr.mxu0 0.0
    %3307 = vmatpush1.msra.mxu0 %v52
    %3308 = vmatprep.subr.mxu0 0.0
    %3309 = vmatpush1.msra.mxu0 %v53
    %3310 = vmatprep.subr.mxu0 0.0
    %3311 = vmatpush1.msra.mxu0 0.0
    %3312 = vmatprep.subr.mxu0 0.0
    %3313 = vmatpush1.msra.mxu0 0.0
    %3314 = vmatprep.subr.mxu0 0.0
    %3315 = vmatpush1.msra.mxu0 0.0
    %3316 = vmatprep.subr.mxu0 0.0
    %3317 = vmatpush1.msra.mxu0 0.0
    %3318 = vmatprep.subr.mxu0 0.0
    %3319 = vmatpush1.msra.mxu0 0.0
    %3320 = vmatprep.subr.mxu0 0.0
    %3321 = vmatpush1.msra.mxu0 0.0
    %3322 = vmatprep.subr.mxu0 0.0
    %3323 = vmatpush1.msra.mxu0 0.0
    %3324 = vmatprep.subr.mxu0 0.0
    %3325 = vmatpush1.msra.mxu0 0.0
    %3326 = vmatprep.subr.mxu0 0.0
    %3327 = vmatpush1.msra.mxu0 0.0
    %3328 = vmatprep.subr.mxu0 0.0
    %3329 = vmatpush1.msra.mxu0 0.0
    %3330 = vmatprep.subr.mxu0 0.0
    %3331 = vmatpush1.msra.mxu0 0.0
    %3332 = vmatprep.subr.mxu0 0.0
    %3333 = vmatpush1.msra.mxu0 0.0
    %3334 = vmatprep.subr.mxu0 0.0
    %3335 = vmatpush1.msra.mxu0 0.0
    %3336 = vmatprep.subr.mxu0 0.0
    %3337 = vmatpush1.msra.mxu0 0.0
    %3338 = vmatprep.subr.mxu0 0.0
    %3339 = vmatpush1.msra.mxu0 0.0
    %3340 = vmatprep.subr.mxu0 0.0
    %3341 = vmatpush1.msra.mxu0 0.0
    %3342 = vmatprep.subr.mxu0 0.0
    %3343 = vmatpush1.msra.mxu0 0.0
    %3344 = vmatprep.subr.mxu0 0.0
    %3345 = vmatpush1.msra.mxu0 0.0
    %3346 = vmatprep.subr.mxu0 0.0
    %3347 = vmatpush1.msra.mxu0 0.0
    %3348 = vmatprep.subr.mxu0 0.0
    %3349 = vmatpush1.msra.mxu0 0.0
    %3350 = vmatprep.subr.mxu0 0.0
    %3351 = vmatpush1.msra.mxu0 0.0
    %3352 = vmatprep.subr.mxu0 0.0
    %3353 = vmatpush1.msra.mxu0 0.0
    %3354 = vmatprep.subr.mxu0 0.0
    %3355 = vmatpush1.msra.mxu0 0.0
    %3356 = vmatprep.subr.mxu0 0.0
    %3357 = vmatpush1.msra.mxu0 0.0
    %3358 = vmatprep.mubr.f32.mxu0 0.0
    %3359 = vmatmul.mubr.f32.gmra.mrb[0].mxu0 %v3292
    %v3360 = vpop.f32.mrb[0].mxu0
    %v3361 = vadd.f32 %v56, %v3360
    %v3362 = vpop.f32.mrb[0].mxu0
    %3363 = vdwg.mxu0
    %v3364 = vxor.u32 %v3361, 2147483648
    %v3365 = vmul.f32 %v3364, 1.442695
    %v3366 = vpow.pop %v3365
    %v3367 = vadd.f32 %v3366, 1.0
    %v3368 = vrcp.pop %v3367
    %v3369 = vmul.f32 1.0, %v3368
    %v3370 = vtanh.pop %v3361
    %v3371 = vmul.f32 %v3369, %v3054
    %3373 = vrot.lane.b32.xlu0 %v3370, 32
    %v3374 = vpop.permute.xlu0 %3373
    %v3376 = vmul.f32 %v3369, %v3374
    %3378 = vrot.lane.b32.xlu0 %v3376, 32
    %v3379 = vpop.permute.xlu0 %3378
    %v3381 = vadd.f32 %v3371, %v3379
    %v3382 = vtanh.pop %v3381
    %3384 = vrot.lane.b32.xlu0 %v3382, 32
    %v3385 = vpop.permute.xlu0 %3384
    %v3387 = vmul.f32 %v3369, %v3385
    %3389 = vrot.lane.b32.xlu0 %v3387, 64
    %v3390 = vpop.permute.xlu0 %3389
    %3391 = vrot.lane.b32.xlu0 %v57, 72
    %v3392 = vpop.permute.xlu0 %3391
    %3393 = vrot.lane.b32.xlu0 %v59, 72
    %v3394 = vpop.permute.xlu0 %3393
    %3395 = vrot.lane.b32.xlu0 %v61, 72
    %v3396 = vpop.permute.xlu0 %3395
    %3397 = vrot.lane.b32.xlu0 %v63, 72
    %v3398 = vpop.permute.xlu0 %3397
    %v3403 = vrot.slane %v65, 7
    %v3405 = vsel %vm72, %v3390, 0
    %3407 = vmatprep.subr.mxu0 0.0
    %3408 = vmatpush1.msra.mxu0 %v3392
    %3409 = vmatprep.subr.mxu0 0.0
    %3410 = vmatpush1.msra.mxu0 %v3394
    %3411 = vmatprep.subr.mxu0 0.0
    %3412 = vmatpush1.msra.mxu0 %v3396
    %3413 = vmatprep.subr.mxu0 0.0
    %3414 = vmatpush1.msra.mxu0 %v3398
    %3415 = vmatprep.subr.mxu0 0.0
    %3416 = vmatpush1.msra.mxu0 0.0
    %3417 = vmatprep.subr.mxu0 0.0
    %3418 = vmatpush1.msra.mxu0 0.0
    %3419 = vmatprep.subr.mxu0 0.0
    %3420 = vmatpush1.msra.mxu0 0.0
    %3421 = vmatprep.subr.mxu0 0.0
    %3422 = vmatpush1.msra.mxu0 0.0
    %3423 = vmatprep.subr.mxu0 0.0
    %3424 = vmatpush1.msra.mxu0 0.0
    %3425 = vmatprep.subr.mxu0 0.0
    %3426 = vmatpush1.msra.mxu0 0.0
    %3427 = vmatprep.subr.mxu0 0.0
    %3428 = vmatpush1.msra.mxu0 0.0
    %3429 = vmatprep.subr.mxu0 0.0
    %3430 = vmatpush1.msra.mxu0 0.0
    %3431 = vmatprep.subr.mxu0 0.0
    %3432 = vmatpush1.msra.mxu0 0.0
    %3433 = vmatprep.subr.mxu0 0.0
    %3434 = vmatpush1.msra.mxu0 0.0
    %3435 = vmatprep.subr.mxu0 0.0
    %3436 = vmatpush1.msra.mxu0 0.0
    %3437 = vmatprep.subr.mxu0 0.0
    %3438 = vmatpush1.msra.mxu0 0.0
    %3439 = vmatprep.subr.mxu0 0.0
    %3440 = vmatpush1.msra.mxu0 0.0
    %3441 = vmatprep.subr.mxu0 0.0
    %3442 = vmatpush1.msra.mxu0 0.0
    %3443 = vmatprep.subr.mxu0 0.0
    %3444 = vmatpush1.msra.mxu0 0.0
    %3445 = vmatprep.subr.mxu0 0.0
    %3446 = vmatpush1.msra.mxu0 0.0
    %3447 = vmatprep.subr.mxu0 0.0
    %3448 = vmatpush1.msra.mxu0 0.0
    %3449 = vmatprep.subr.mxu0 0.0
    %3450 = vmatpush1.msra.mxu0 0.0
    %3451 = vmatprep.subr.mxu0 0.0
    %3452 = vmatpush1.msra.mxu0 0.0
    %3453 = vmatprep.subr.mxu0 0.0
    %3454 = vmatpush1.msra.mxu0 0.0
    %3455 = vmatprep.subr.mxu0 0.0
    %3456 = vmatpush1.msra.mxu0 0.0
    %3457 = vmatprep.subr.mxu0 0.0
    %3458 = vmatpush1.msra.mxu0 0.0
    %3459 = vmatprep.subr.mxu0 0.0
    %3460 = vmatpush1.msra.mxu0 0.0
    %3461 = vmatprep.subr.mxu0 0.0
    %3462 = vmatpush1.msra.mxu0 0.0
    %3463 = vmatprep.subr.mxu0 0.0
    %3464 = vmatpush1.msra.mxu0 0.0
    %3465 = vmatprep.subr.mxu0 0.0
    %3466 = vmatpush1.msra.mxu0 0.0
    %3467 = vmatprep.subr.mxu0 0.0
    %3468 = vmatpush1.msra.mxu0 0.0
    %3469 = vmatprep.subr.mxu0 0.0
    %3470 = vmatpush1.msra.mxu0 0.0
    %3471 = vmatprep.mubr.f32.mxu0 0.0
    %3472 = vmatmul.mubr.f32.gmra.mrb[0].mxu0 %v3405
    %v3473 = vpop.f32.mrb[0].mxu0
    %v3474 = vadd.f32 %v3403, %v3473
    %v3475 = vpop.f32.mrb[0].mxu0
    %3476 = vdwg.mxu0
    %v3477 = vsel %vm1189, %v3474, -inf
    %3478 = vmax.xlane.f32.xlu0 %v3477
    %v3479 = vpop.xlane.xlu0 %3478
    %v3480 = vsub.f32 %v3474, %v3479
    %v3481 = vmul.f32 %v3480, 1.442695
    %v3482 = vpow.pop %v3481
    %v3483 = vsel %vm1189, %v3482, 0.0
    %3484 = vadd.xlane.f32.xlu0 %v3483
    %v3485 = vpop.xlane.xlu0 %3484
    %v3486 = vrcp.pop %v3485
    %v3487 = vmul.f32 %v3482, %v3486
    %v3488 = vlog2.pop %v3485
    %v3489 = vmul.f32 %v3488, 0.6931472
    %v3490 = vsub.f32 %v3480, %v3489
    %v3491 = vmul.f32 %v3487, %v3490
    %v3492 = vsel %vm1189, %v3491, 0.0
    %3493 = vadd.xlane.f32.xlu0 %v3492
    %v3494 = vpop.xlane.xlu0 %3493
    %v3495 = vsub.f32 %v3168, %v3494
    %v3497 = vrot.slane %v3490, 1
    %v3499 = vmul.f32 %v68, %v3497
    %vm3500 = vcmask 64519
    %v3501 = vsel %vm3500, %v3499, 0.0
    %3502 = vadd.xlane.f32.xlu0 %v3501
    %v3503 = vpop.xlane.xlu0 %3502
    %v3505 = vrot.slane %v3503, 7
    %v3507 = vadd.f32 %v3180, %v3505
    %3509 = vrot.lane.b32.xlu0 %v3282, 96
    %v3510 = vpop.permute.xlu0 %3509
    %v3512 = vsel %vm72, %v3390, %v3510
    %v3514 = vsel %vm74, %v3512, 0
    %3516 = vmatprep.subr.mxu0 0.0
    %3517 = vmatpush1.msra.mxu0 %v37
    %3518 = vmatprep.subr.mxu0 0.0
    %3519 = vmatpush1.msra.mxu0 %v38
    %3520 = vmatprep.subr.mxu0 0.0
    %3521 = vmatpush1.msra.mxu0 %v39
    %3522 = vmatprep.subr.mxu0 0.0
    %3523 = vmatpush1.msra.mxu0 %v40
    %3524 = vmatprep.subr.mxu0 0.0
    %3525 = vmatpush1.msra.mxu0 %v41
    %3526 = vmatprep.subr.mxu0 0.0
    %3527 = vmatpush1.msra.mxu0 %v42
    %3528 = vmatprep.subr.mxu0 0.0
    %3529 = vmatpush1.msra.mxu0 %v43
    %3530 = vmatprep.subr.mxu0 0.0
    %3531 = vmatpush1.msra.mxu0 %v44
    %3532 = vmatprep.subr.mxu0 0.0
    %3533 = vmatpush1.msra.mxu0 0.0
    %3534 = vmatprep.subr.mxu0 0.0
    %3535 = vmatpush1.msra.mxu0 0.0
    %3536 = vmatprep.subr.mxu0 0.0
    %3537 = vmatpush1.msra.mxu0 0.0
    %3538 = vmatprep.subr.mxu0 0.0
    %3539 = vmatpush1.msra.mxu0 0.0
    %3540 = vmatprep.subr.mxu0 0.0
    %3541 = vmatpush1.msra.mxu0 0.0
    %3542 = vmatprep.subr.mxu0 0.0
    %3543 = vmatpush1.msra.mxu0 0.0
    %3544 = vmatprep.subr.mxu0 0.0
    %3545 = vmatpush1.msra.mxu0 0.0
    %3546 = vmatprep.subr.mxu0 0.0
    %3547 = vmatpush1.msra.mxu0 0.0
    %3548 = vmatprep.subr.mxu0 0.0
    %3549 = vmatpush1.msra.mxu0 0.0
    %3550 = vmatprep.subr.mxu0 0.0
    %3551 = vmatpush1.msra.mxu0 0.0
    %3552 = vmatprep.subr.mxu0 0.0
    %3553 = vmatpush1.msra.mxu0 0.0
    %3554 = vmatprep.subr.mxu0 0.0
    %3555 = vmatpush1.msra.mxu0 0.0
    %3556 = vmatprep.subr.mxu0 0.0
    %3557 = vmatpush1.msra.mxu0 0.0
    %3558 = vmatprep.subr.mxu0 0.0
    %3559 = vmatpush1.msra.mxu0 0.0
    %3560 = vmatprep.subr.mxu0 0.0
    %3561 = vmatpush1.msra.mxu0 0.0
    %3562 = vmatprep.subr.mxu0 0.0
    %3563 = vmatpush1.msra.mxu0 0.0
    %3564 = vmatprep.subr.mxu0 0.0
    %3565 = vmatpush1.msra.mxu0 0.0
    %3566 = vmatprep.subr.mxu0 0.0
    %3567 = vmatpush1.msra.mxu0 0.0
    %3568 = vmatprep.subr.mxu0 0.0
    %3569 = vmatpush1.msra.mxu0 0.0
    %3570 = vmatprep.subr.mxu0 0.0
    %3571 = vmatpush1.msra.mxu0 0.0
    %3572 = vmatprep.subr.mxu0 0.0
    %3573 = vmatpush1.msra.mxu0 0.0
    %3574 = vmatprep.subr.mxu0 0.0
    %3575 = vmatpush1.msra.mxu0 0.0
    %3576 = vmatprep.subr.mxu0 0.0
    %3577 = vmatpush1.msra.mxu0 0.0
    %3578 = vmatprep.subr.mxu0 0.0
    %3579 = vmatpush1.msra.mxu0 0.0
    %3580 = vmatprep.mubr.f32.mxu0 0.0
    %3581 = vmatmul.mubr.f32.gmra.mrb[0].mxu0 %v3514
    %v3582 = vpop.f32.mrb[0].mxu0
    %v3583 = vadd.f32 %v54, %v3582
    %v3584 = vpop.f32.mrb[0].mxu0
    %3585 = vdwg.mxu0
    %v3586 = vxor.u32 %v3583, 2147483648
    %v3587 = vmul.f32 %v3586, 1.442695
    %v3588 = vpow.pop %v3587
    %v3589 = vadd.f32 %v3588, 1.0
    %v3590 = vrcp.pop %v3589
    %v3591 = vmul.f32 1.0, %v3590
    %v3592 = vtanh.pop %v3583
    %v3593 = vmul.f32 %v3591, %v3276
    %3595 = vrot.lane.b32.xlu0 %v3592, 32
    %v3596 = vpop.permute.xlu0 %3595
    %v3598 = vmul.f32 %v3591, %v3596
    %3600 = vrot.lane.b32.xlu0 %v3598, 32
    %v3601 = vpop.permute.xlu0 %3600
    %v3603 = vadd.f32 %v3593, %v3601
    %v3604 = vtanh.pop %v3603
    %3606 = vrot.lane.b32.xlu0 %v3604, 32
    %v3607 = vpop.permute.xlu0 %3606
    %v3609 = vmul.f32 %v3591, %v3607
    %3611 = vrot.lane.b32.xlu0 %v3609, 64
    %v3612 = vpop.permute.xlu0 %3611
    %3614 = vrot.lane.b32.xlu0 %v3387, 96
    %v3615 = vpop.permute.xlu0 %3614
    %v3617 = vsel %vm72, %v3612, %v3615
    %v3619 = vsel %vm74, %v3617, 0
    %3621 = vmatprep.subr.mxu0 0.0
    %3622 = vmatpush1.msra.mxu0 %v46
    %3623 = vmatprep.subr.mxu0 0.0
    %3624 = vmatpush1.msra.mxu0 %v47
    %3625 = vmatprep.subr.mxu0 0.0
    %3626 = vmatpush1.msra.mxu0 %v48
    %3627 = vmatprep.subr.mxu0 0.0
    %3628 = vmatpush1.msra.mxu0 %v49
    %3629 = vmatprep.subr.mxu0 0.0
    %3630 = vmatpush1.msra.mxu0 %v50
    %3631 = vmatprep.subr.mxu0 0.0
    %3632 = vmatpush1.msra.mxu0 %v51
    %3633 = vmatprep.subr.mxu0 0.0
    %3634 = vmatpush1.msra.mxu0 %v52
    %3635 = vmatprep.subr.mxu0 0.0
    %3636 = vmatpush1.msra.mxu0 %v53
    %3637 = vmatprep.subr.mxu0 0.0
    %3638 = vmatpush1.msra.mxu0 0.0
    %3639 = vmatprep.subr.mxu0 0.0
    %3640 = vmatpush1.msra.mxu0 0.0
    %3641 = vmatprep.subr.mxu0 0.0
    %3642 = vmatpush1.msra.mxu0 0.0
    %3643 = vmatprep.subr.mxu0 0.0
    %3644 = vmatpush1.msra.mxu0 0.0
    %3645 = vmatprep.subr.mxu0 0.0
    %3646 = vmatpush1.msra.mxu0 0.0
    %3647 = vmatprep.subr.mxu0 0.0
    %3648 = vmatpush1.msra.mxu0 0.0
    %3649 = vmatprep.subr.mxu0 0.0
    %3650 = vmatpush1.msra.mxu0 0.0
    %3651 = vmatprep.subr.mxu0 0.0
    %3652 = vmatpush1.msra.mxu0 0.0
    %3653 = vmatprep.subr.mxu0 0.0
    %3654 = vmatpush1.msra.mxu0 0.0
    %3655 = vmatprep.subr.mxu0 0.0
    %3656 = vmatpush1.msra.mxu0 0.0
    %3657 = vmatprep.subr.mxu0 0.0
    %3658 = vmatpush1.msra.mxu0 0.0
    %3659 = vmatprep.subr.mxu0 0.0
    %3660 = vmatpush1.msra.mxu0 0.0
    %3661 = vmatprep.subr.mxu0 0.0
    %3662 = vmatpush1.msra.mxu0 0.0
    %3663 = vmatprep.subr.mxu0 0.0
    %3664 = vmatpush1.msra.mxu0 0.0
    %3665 = vmatprep.subr.mxu0 0.0
    %3666 = vmatpush1.msra.mxu0 0.0
    %3667 = vmatprep.subr.mxu0 0.0
    %3668 = vmatpush1.msra.mxu0 0.0
    %3669 = vmatprep.subr.mxu0 0.0
    %3670 = vmatpush1.msra.mxu0 0.0
    %3671 = vmatprep.subr.mxu0 0.0
    %3672 = vmatpush1.msra.mxu0 0.0
    %3673 = vmatprep.subr.mxu0 0.0
    %3674 = vmatpush1.msra.mxu0 0.0
    %3675 = vmatprep.subr.mxu0 0.0
    %3676 = vmatpush1.msra.mxu0 0.0
    %3677 = vmatprep.subr.mxu0 0.0
    %3678 = vmatpush1.msra.mxu0 0.0
    %3679 = vmatprep.subr.mxu0 0.0
    %3680 = vmatpush1.msra.mxu0 0.0
    %3681 = vmatprep.subr.mxu0 0.0
    %3682 = vmatpush1.msra.mxu0 0.0
    %3683 = vmatprep.subr.mxu0 0.0
    %3684 = vmatpush1.msra.mxu0 0.0
    %3685 = vmatprep.mubr.f32.mxu0 0.0
    %3686 = vmatmul.mubr.f32.gmra.mrb[0].mxu0 %v3619
    %v3687 = vpop.f32.mrb[0].mxu0
    %v3688 = vadd.f32 %v56, %v3687
    %v3689 = vpop.f32.mrb[0].mxu0
    %3690 = vdwg.mxu0
    %v3691 = vxor.u32 %v3688, 2147483648
    %v3692 = vmul.f32 %v3691, 1.442695
    %v3693 = vpow.pop %v3692
    %v3694 = vadd.f32 %v3693, 1.0
    %v3695 = vrcp.pop %v3694
    %v3696 = vmul.f32 1.0, %v3695
    %v3697 = vtanh.pop %v3688
    %v3698 = vmul.f32 %v3696, %v3381
    %3700 = vrot.lane.b32.xlu0 %v3697, 32
    %v3701 = vpop.permute.xlu0 %3700
    %v3703 = vmul.f32 %v3696, %v3701
    %3705 = vrot.lane.b32.xlu0 %v3703, 32
    %v3706 = vpop.permute.xlu0 %3705
    %v3708 = vadd.f32 %v3698, %v3706
    %v3709 = vtanh.pop %v3708
    %3711 = vrot.lane.b32.xlu0 %v3709, 32
    %v3712 = vpop.permute.xlu0 %3711
    %v3714 = vmul.f32 %v3696, %v3712
    %3716 = vrot.lane.b32.xlu0 %v3714, 64
    %v3717 = vpop.permute.xlu0 %3716
    %3718 = vrot.lane.b32.xlu0 %v57, 64
    %v3719 = vpop.permute.xlu0 %3718
    %3720 = vrot.lane.b32.xlu0 %v59, 64
    %v3721 = vpop.permute.xlu0 %3720
    %3722 = vrot.lane.b32.xlu0 %v61, 64
    %v3723 = vpop.permute.xlu0 %3722
    %3724 = vrot.lane.b32.xlu0 %v63, 64
    %v3725 = vpop.permute.xlu0 %3724
    %v3730 = vsel %vm72, %v3717, 0
    %3732 = vmatprep.subr.mxu0 0.0
    %3733 = vmatpush1.msra.mxu0 %v3719
    %3734 = vmatprep.subr.mxu0 0.0
    %3735 = vmatpush1.msra.mxu0 %v3721
    %3736 = vmatprep.subr.mxu0 0.0
    %3737 = vmatpush1.msra.mxu0 %v3723
    %3738 = vmatprep.subr.mxu0 0.0
    %3739 = vmatpush1.msra.mxu0 %v3725
    %3740 = vmatprep.subr.mxu0 0.0
    %3741 = vmatpush1.msra.mxu0 0.0
    %3742 = vmatprep.subr.mxu0 0.0
    %3743 = vmatpush1.msra.mxu0 0.0
    %3744 = vmatprep.subr.mxu0 0.0
    %3745 = vmatpush1.msra.mxu0 0.0
    %3746 = vmatprep.subr.mxu0 0.0
    %3747 = vmatpush1.msra.mxu0 0.0
    %3748 = vmatprep.subr.mxu0 0.0
    %3749 = vmatpush1.msra.mxu0 0.0
    %3750 = vmatprep.subr.mxu0 0.0
    %3751 = vmatpush1.msra.mxu0 0.0
    %3752 = vmatprep.subr.mxu0 0.0
    %3753 = vmatpush1.msra.mxu0 0.0
    %3754 = vmatprep.subr.mxu0 0.0
    %3755 = vmatpush1.msra.mxu0 0.0
    %3756 = vmatprep.subr.mxu0 0.0
    %3757 = vmatpush1.msra.mxu0 0.0
    %3758 = vmatprep.subr.mxu0 0.0
    %3759 = vmatpush1.msra.mxu0 0.0
    %3760 = vmatprep.subr.mxu0 0.0
    %3761 = vmatpush1.msra.mxu0 0.0
    %3762 = vmatprep.subr.mxu0 0.0
    %3763 = vmatpush1.msra.mxu0 0.0
    %3764 = vmatprep.subr.mxu0 0.0
    %3765 = vmatpush1.msra.mxu0 0.0
    %3766 = vmatprep.subr.mxu0 0.0
    %3767 = vmatpush1.msra.mxu0 0.0
    %3768 = vmatprep.subr.mxu0 0.0
    %3769 = vmatpush1.msra.mxu0 0.0
    %3770 = vmatprep.subr.mxu0 0.0
    %3771 = vmatpush1.msra.mxu0 0.0
    %3772 = vmatprep.subr.mxu0 0.0
    %3773 = vmatpush1.msra.mxu0 0.0
    %3774 = vmatprep.subr.mxu0 0.0
    %3775 = vmatpush1.msra.mxu0 0.0
    %3776 = vmatprep.subr.mxu0 0.0
    %3777 = vmatpush1.msra.mxu0 0.0
    %3778 = vmatprep.subr.mxu0 0.0
    %3779 = vmatpush1.msra.mxu0 0.0
    %3780 = vmatprep.subr.mxu0 0.0
    %3781 = vmatpush1.msra.mxu0 0.0
    %3782 = vmatprep.subr.mxu0 0.0
    %3783 = vmatpush1.msra.mxu0 0.0
    %3784 = vmatprep.subr.mxu0 0.0
    %3785 = vmatpush1.msra.mxu0 0.0
    %3786 = vmatprep.subr.mxu0 0.0
    %3787 = vmatpush1.msra.mxu0 0.0
    %3788 = vmatprep.subr.mxu0 0.0
    %3789 = vmatpush1.msra.mxu0 0.0
    %3790 = vmatprep.subr.mxu0 0.0
    %3791 = vmatpush1.msra.mxu0 0.0
    %3792 = vmatprep.subr.mxu0 0.0
    %3793 = vmatpush1.msra.mxu0 0.0
    %3794 = vmatprep.subr.mxu0 0.0
    %3795 = vmatpush1.msra.mxu0 0.0
    %3796 = vmatprep.mubr.f32.mxu0 0.0
    %3797 = vmatmul.mubr.f32.gmra.mrb[0].mxu0 %v3730
    %v3798 = vpop.f32.mrb[0].mxu0
    %v3799 = vadd.f32 %v66, %v3798
    %v3800 = vpop.f32.mrb[0].mxu0
    %3801 = vdwg.mxu0
    %v3802 = vsel %vm1189, %v3799, -inf
    %3803 = vmax.xlane.f32.xlu0 %v3802
    %v3804 = vpop.xlane.xlu0 %3803
    %v3805 = vsub.f32 %v3799, %v3804
    %v3806 = vmul.f32 %v3805, 1.442695
    %v3807 = vpow.pop %v3806
    %v3808 = vsel %vm1189, %v3807, 0.0
    %3809 = vadd.xlane.f32.xlu0 %v3808
    %v3810 = vpop.xlane.xlu0 %3809
    %v3811 = vrcp.pop %v3810
    %v3812 = vmul.f32 %v3807, %v3811
    %v3813 = vlog2.pop %v3810
    %v3814 = vmul.f32 %v3813, 0.6931472
    %v3815 = vsub.f32 %v3805, %v3814
    %v3816 = vmul.f32 %v3812, %v3815
    %v3817 = vsel %vm1189, %v3816, 0.0
    %3818 = vadd.xlane.f32.xlu0 %v3817
    %v3819 = vpop.xlane.xlu0 %3818
    %v3820 = vsub.f32 %v3495, %v3819
    %v3821 = vmul.f32 %v69, %v3815
    %v3822 = vsel %vm1189, %v3821, 0.0
    %3823 = vadd.xlane.f32.xlu0 %v3822
    %v3824 = vpop.xlane.xlu0 %3823
    %v3825 = vadd.f32 %v3507, %v3824
    %3827 = vrot.lane.b32.xlu0 %v3609, 96
    %v3828 = vpop.permute.xlu0 %3827
    %v3830 = vsel %vm72, %v3717, %v3828
    %v3832 = vsel %vm74, %v3830, 0
    %3834 = vmatprep.subr.mxu0 0.0
    %3835 = vmatpush1.msra.mxu0 %v37
    %3836 = vmatprep.subr.mxu0 0.0
    %3837 = vmatpush1.msra.mxu0 %v38
    %3838 = vmatprep.subr.mxu0 0.0
    %3839 = vmatpush1.msra.mxu0 %v39
    %3840 = vmatprep.subr.mxu0 0.0
    %3841 = vmatpush1.msra.mxu0 %v40
    %3842 = vmatprep.subr.mxu0 0.0
    %3843 = vmatpush1.msra.mxu0 %v41
    %3844 = vmatprep.subr.mxu0 0.0
    %3845 = vmatpush1.msra.mxu0 %v42
    %3846 = vmatprep.subr.mxu0 0.0
    %3847 = vmatpush1.msra.mxu0 %v43
    %3848 = vmatprep.subr.mxu0 0.0
    %3849 = vmatpush1.msra.mxu0 %v44
    %3850 = vmatprep.subr.mxu0 0.0
    %3851 = vmatpush1.msra.mxu0 0.0
    %3852 = vmatprep.subr.mxu0 0.0
    %3853 = vmatpush1.msra.mxu0 0.0
    %3854 = vmatprep.subr.mxu0 0.0
    %3855 = vmatpush1.msra.mxu0 0.0
    %3856 = vmatprep.subr.mxu0 0.0
    %3857 = vmatpush1.msra.mxu0 0.0
    %3858 = vmatprep.subr.mxu0 0.0
    %3859 = vmatpush1.msra.mxu0 0.0
    %3860 = vmatprep.subr.mxu0 0.0
    %3861 = vmatpush1.msra.mxu0 0.0
    %3862 = vmatprep.subr.mxu0 0.0
    %3863 = vmatpush1.msra.mxu0 0.0
    %3864 = vmatprep.subr.mxu0 0.0
    %3865 = vmatpush1.msra.mxu0 0.0
    %3866 = vmatprep.subr.mxu0 0.0
    %3867 = vmatpush1.msra.mxu0 0.0
    %3868 = vmatprep.subr.mxu0 0.0
    %3869 = vmatpush1.msra.mxu0 0.0
    %3870 = vmatprep.subr.mxu0 0.0
    %3871 = vmatpush1.msra.mxu0 0.0
    %3872 = vmatprep.subr.mxu0 0.0
    %3873 = vmatpush1.msra.mxu0 0.0
    %3874 = vmatprep.subr.mxu0 0.0
    %3875 = vmatpush1.msra.mxu0 0.0
    %3876 = vmatprep.subr.mxu0 0.0
    %3877 = vmatpush1.msra.mxu0 0.0
    %3878 = vmatprep.subr.mxu0 0.0
    %3879 = vmatpush1.msra.mxu0 0.0
    %3880 = vmatprep.subr.mxu0 0.0
    %3881 = vmatpush1.msra.mxu0 0.0
    %3882 = vmatprep.subr.mxu0 0.0
    %3883 = vmatpush1.msra.mxu0 0.0
    %3884 = vmatprep.subr.mxu0 0.0
    %3885 = vmatpush1.msra.mxu0 0.0
    %3886 = vmatprep.subr.mxu0 0.0
    %3887 = vmatpush1.msra.mxu0 0.0
    %3888 = vmatprep.subr.mxu0 0.0
    %3889 = vmatpush1.msra.mxu0 0.0
    %3890 = vmatprep.subr.mxu0 0.0
    %3891 = vmatpush1.msra.mxu0 0.0
    %3892 = vmatprep.subr.mxu0 0.0
    %3893 = vmatpush1.msra.mxu0 0.0
    %3894 = vmatprep.subr.mxu0 0.0
    %3895 = vmatpush1.msra.mxu0 0.0
    %3896 = vmatprep.subr.mxu0 0.0
    %3897 = vmatpush1.msra.mxu0 0.0
    %3898 = vmatprep.mubr.f32.mxu0 0.0
    %3899 = vmatmul.mubr.f32.gmra.mrb[0].mxu0 %v3832
    %v3900 = vpop.f32.mrb[0].mxu0
    %v3901 = vadd.f32 %v54, %v3900
    %v3902 = vpop.f32.mrb[0].mxu0
    %3903 = vdwg.mxu0
    %v3904 = vxor.u32 %v3901, 2147483648
    %v3905 = vmul.f32 %v3904, 1.442695
    %v3906 = vpow.pop %v3905
    %v3907 = vadd.f32 %v3906, 1.0
    %v3908 = vrcp.pop %v3907
    %v3909 = vmul.f32 1.0, %v3908
    %v3910 = vtanh.pop %v3901
    %v3911 = vmul.f32 %v3909, %v3603
    %3913 = vrot.lane.b32.xlu0 %v3910, 32
    %v3914 = vpop.permute.xlu0 %3913
    %v3916 = vmul.f32 %v3909, %v3914
    %3918 = vrot.lane.b32.xlu0 %v3916, 32
    %v3919 = vpop.permute.xlu0 %3918
    %v3921 = vadd.f32 %v3911, %v3919
    %v3922 = vtanh.pop %v3921
    %3924 = vrot.lane.b32.xlu0 %v3922, 32
    %v3925 = vpop.permute.xlu0 %3924
    %v3927 = vmul.f32 %v3909, %v3925
    %3929 = vrot.lane.b32.xlu0 %v3927, 64
    %v3930 = vpop.permute.xlu0 %3929
    %3932 = vrot.lane.b32.xlu0 %v3714, 96
    %v3933 = vpop.permute.xlu0 %3932
    %v3935 = vsel %vm72, %v3930, %v3933
    %v3937 = vsel %vm74, %v3935, 0
    %3939 = vmatprep.subr.mxu0 0.0
    %3940 = vmatpush1.msra.mxu0 %v46
    %3941 = vmatprep.subr.mxu0 0.0
    %3942 = vmatpush1.msra.mxu0 %v47
    %3943 = vmatprep.subr.mxu0 0.0
    %3944 = vmatpush1.msra.mxu0 %v48
    %3945 = vmatprep.subr.mxu0 0.0
    %3946 = vmatpush1.msra.mxu0 %v49
    %3947 = vmatprep.subr.mxu0 0.0
    %3948 = vmatpush1.msra.mxu0 %v50
    %3949 = vmatprep.subr.mxu0 0.0
    %3950 = vmatpush1.msra.mxu0 %v51
    %3951 = vmatprep.subr.mxu0 0.0
    %3952 = vmatpush1.msra.mxu0 %v52
    %3953 = vmatprep.subr.mxu0 0.0
    %3954 = vmatpush1.msra.mxu0 %v53
    %3955 = vmatprep.subr.mxu0 0.0
    %3956 = vmatpush1.msra.mxu0 0.0
    %3957 = vmatprep.subr.mxu0 0.0
    %3958 = vmatpush1.msra.mxu0 0.0
    %3959 = vmatprep.subr.mxu0 0.0
    %3960 = vmatpush1.msra.mxu0 0.0
    %3961 = vmatprep.subr.mxu0 0.0
    %3962 = vmatpush1.msra.mxu0 0.0
    %3963 = vmatprep.subr.mxu0 0.0
    %3964 = vmatpush1.msra.mxu0 0.0
    %3965 = vmatprep.subr.mxu0 0.0
    %3966 = vmatpush1.msra.mxu0 0.0
    %3967 = vmatprep.subr.mxu0 0.0
    %3968 = vmatpush1.msra.mxu0 0.0
    %3969 = vmatprep.subr.mxu0 0.0
    %3970 = vmatpush1.msra.mxu0 0.0
    %3971 = vmatprep.subr.mxu0 0.0
    %3972 = vmatpush1.msra.mxu0 0.0
    %3973 = vmatprep.subr.mxu0 0.0
    %3974 = vmatpush1.msra.mxu0 0.0
    %3975 = vmatprep.subr.mxu0 0.0
    %3976 = vmatpush1.msra.mxu0 0.0
    %3977 = vmatprep.subr.mxu0 0.0
    %3978 = vmatpush1.msra.mxu0 0.0
    %3979 = vmatprep.subr.mxu0 0.0
    %3980 = vmatpush1.msra.mxu0 0.0
    %3981 = vmatprep.subr.mxu0 0.0
    %3982 = vmatpush1.msra.mxu0 0.0
    %3983 = vmatprep.subr.mxu0 0.0
    %3984 = vmatpush1.msra.mxu0 0.0
    %3985 = vmatprep.subr.mxu0 0.0
    %3986 = vmatpush1.msra.mxu0 0.0
    %3987 = vmatprep.subr.mxu0 0.0
    %3988 = vmatpush1.msra.mxu0 0.0
    %3989 = vmatprep.subr.mxu0 0.0
    %3990 = vmatpush1.msra.mxu0 0.0
    %3991 = vmatprep.subr.mxu0 0.0
    %3992 = vmatpush1.msra.mxu0 0.0
    %3993 = vmatprep.subr.mxu0 0.0
    %3994 = vmatpush1.msra.mxu0 0.0
    %3995 = vmatprep.subr.mxu0 0.0
    %3996 = vmatpush1.msra.mxu0 0.0
    %3997 = vmatprep.subr.mxu0 0.0
    %3998 = vmatpush1.msra.mxu0 0.0
    %3999 = vmatprep.subr.mxu0 0.0
    %4000 = vmatpush1.msra.mxu0 0.0
    %4001 = vmatprep.subr.mxu0 0.0
    %4002 = vmatpush1.msra.mxu0 0.0
    %4003 = vmatprep.mubr.f32.mxu0 0.0
    %4004 = vmatmul.mubr.f32.gmra.mrb[0].mxu0 %v3937
    %v4005 = vpop.f32.mrb[0].mxu0
    %v4006 = vadd.f32 %v56, %v4005
    %v4007 = vpop.f32.mrb[0].mxu0
    %4008 = vdwg.mxu0
    %v4009 = vxor.u32 %v4006, 2147483648
    %v4010 = vmul.f32 %v4009, 1.442695
    %v4011 = vpow.pop %v4010
    %v4012 = vadd.f32 %v4011, 1.0
    %v4013 = vrcp.pop %v4012
    %v4014 = vmul.f32 1.0, %v4013
    %v4015 = vtanh.pop %v4006
    %v4016 = vmul.f32 %v4014, %v3708
    %4018 = vrot.lane.b32.xlu0 %v4015, 32
    %v4019 = vpop.permute.xlu0 %4018
    %v4021 = vmul.f32 %v4014, %v4019
    %4023 = vrot.lane.b32.xlu0 %v4021, 32
    %v4024 = vpop.permute.xlu0 %4023
    %v4026 = vadd.f32 %v4016, %v4024
    %v4027 = vtanh.pop %v4026
    %4029 = vrot.lane.b32.xlu0 %v4027, 32
    %v4030 = vpop.permute.xlu0 %4029
    %v4032 = vmul.f32 %v4014, %v4030
    %4034 = vrot.lane.b32.xlu0 %v4032, 64
    %v4035 = vpop.permute.xlu0 %4034
    %4036 = vrot.lane.b32.xlu0 %v57, 56
    %v4037 = vpop.permute.xlu0 %4036
    %4038 = vrot.lane.b32.xlu0 %v59, 56
    %v4039 = vpop.permute.xlu0 %4038
    %4040 = vrot.lane.b32.xlu0 %v61, 56
    %v4041 = vpop.permute.xlu0 %4040
    %4042 = vrot.lane.b32.xlu0 %v63, 56
    %v4043 = vpop.permute.xlu0 %4042
    %v4049 = vrot.slane %v66, 1
    %v4051 = vsel %vm72, %v4035, 0
    %4053 = vmatprep.subr.mxu0 0.0
    %4054 = vmatpush1.msra.mxu0 %v4037
    %4055 = vmatprep.subr.mxu0 0.0
    %4056 = vmatpush1.msra.mxu0 %v4039
    %4057 = vmatprep.subr.mxu0 0.0
    %4058 = vmatpush1.msra.mxu0 %v4041
    %4059 = vmatprep.subr.mxu0 0.0
    %4060 = vmatpush1.msra.mxu0 %v4043
    %4061 = vmatprep.subr.mxu0 0.0
    %4062 = vmatpush1.msra.mxu0 0.0
    %4063 = vmatprep.subr.mxu0 0.0
    %4064 = vmatpush1.msra.mxu0 0.0
    %4065 = vmatprep.subr.mxu0 0.0
    %4066 = vmatpush1.msra.mxu0 0.0
    %4067 = vmatprep.subr.mxu0 0.0
    %4068 = vmatpush1.msra.mxu0 0.0
    %4069 = vmatprep.subr.mxu0 0.0
    %4070 = vmatpush1.msra.mxu0 0.0
    %4071 = vmatprep.subr.mxu0 0.0
    %4072 = vmatpush1.msra.mxu0 0.0
    %4073 = vmatprep.subr.mxu0 0.0
    %4074 = vmatpush1.msra.mxu0 0.0
    %4075 = vmatprep.subr.mxu0 0.0
    %4076 = vmatpush1.msra.mxu0 0.0
    %4077 = vmatprep.subr.mxu0 0.0
    %4078 = vmatpush1.msra.mxu0 0.0
    %4079 = vmatprep.subr.mxu0 0.0
    %4080 = vmatpush1.msra.mxu0 0.0
    %4081 = vmatprep.subr.mxu0 0.0
    %4082 = vmatpush1.msra.mxu0 0.0
    %4083 = vmatprep.subr.mxu0 0.0
    %4084 = vmatpush1.msra.mxu0 0.0
    %4085 = vmatprep.subr.mxu0 0.0
    %4086 = vmatpush1.msra.mxu0 0.0
    %4087 = vmatprep.subr.mxu0 0.0
    %4088 = vmatpush1.msra.mxu0 0.0
    %4089 = vmatprep.subr.mxu0 0.0
    %4090 = vmatpush1.msra.mxu0 0.0
    %4091 = vmatprep.subr.mxu0 0.0
    %4092 = vmatpush1.msra.mxu0 0.0
    %4093 = vmatprep.subr.mxu0 0.0
    %4094 = vmatpush1.msra.mxu0 0.0
    %4095 = vmatprep.subr.mxu0 0.0
    %4096 = vmatpush1.msra.mxu0 0.0
    %4097 = vmatprep.subr.mxu0 0.0
    %4098 = vmatpush1.msra.mxu0 0.0
    %4099 = vmatprep.subr.mxu0 0.0
    %4100 = vmatpush1.msra.mxu0 0.0
    %4101 = vmatprep.subr.mxu0 0.0
    %4102 = vmatpush1.msra.mxu0 0.0
    %4103 = vmatprep.subr.mxu0 0.0
    %4104 = vmatpush1.msra.mxu0 0.0
    %4105 = vmatprep.subr.mxu0 0.0
    %4106 = vmatpush1.msra.mxu0 0.0
    %4107 = vmatprep.subr.mxu0 0.0
    %4108 = vmatpush1.msra.mxu0 0.0
    %4109 = vmatprep.subr.mxu0 0.0
    %4110 = vmatpush1.msra.mxu0 0.0
    %4111 = vmatprep.subr.mxu0 0.0
    %4112 = vmatpush1.msra.mxu0 0.0
    %4113 = vmatprep.subr.mxu0 0.0
    %4114 = vmatpush1.msra.mxu0 0.0
    %4115 = vmatprep.subr.mxu0 0.0
    %4116 = vmatpush1.msra.mxu0 0.0
    %4117 = vmatprep.mubr.f32.mxu0 0.0
    %4118 = vmatmul.mubr.f32.gmra.mrb[0].mxu0 %v4051
    %v4119 = vpop.f32.mrb[0].mxu0
    %v4120 = vadd.f32 %v4049, %v4119
    %v4121 = vpop.f32.mrb[0].mxu0
    %4122 = vdwg.mxu0
    %v4123 = vsel %vm1189, %v4120, -inf
    %4124 = vmax.xlane.f32.xlu0 %v4123
    %v4125 = vpop.xlane.xlu0 %4124
    %v4126 = vsub.f32 %v4120, %v4125
    %v4127 = vmul.f32 %v4126, 1.442695
    %v4128 = vpow.pop %v4127
    %v4129 = vsel %vm1189, %v4128, 0.0
    %4130 = vadd.xlane.f32.xlu0 %v4129
    %v4131 = vpop.xlane.xlu0 %4130
    %v4132 = vrcp.pop %v4131
    %v4133 = vmul.f32 %v4128, %v4132
    %v4134 = vlog2.pop %v4131
    %v4135 = vmul.f32 %v4134, 0.6931472
    %v4136 = vsub.f32 %v4126, %v4135
    %v4137 = vmul.f32 %v4133, %v4136
    %v4138 = vsel %vm1189, %v4137, 0.0
    %4139 = vadd.xlane.f32.xlu0 %v4138
    %v4140 = vpop.xlane.xlu0 %4139
    %v4141 = vsub.f32 %v3820, %v4140
    %v4143 = vrot.slane %v4136, 7
    %v4145 = vmul.f32 %v69, %v4143
    %v4146 = vsel %vm1538, %v4145, 0.0
    %4147 = vadd.xlane.f32.xlu0 %v4146
    %v4148 = vpop.xlane.xlu0 %4147
    %v4150 = vrot.slane %v4148, 1
    %v4152 = vadd.f32 %v3825, %v4150
    %4154 = vrot.lane.b32.xlu0 %v3927, 96
    %v4155 = vpop.permute.xlu0 %4154
    %v4157 = vsel %vm72, %v4035, %v4155
    %v4159 = vsel %vm74, %v4157, 0
    %4161 = vmatprep.subr.mxu0 0.0
    %4162 = vmatpush1.msra.mxu0 %v37
    %4163 = vmatprep.subr.mxu0 0.0
    %4164 = vmatpush1.msra.mxu0 %v38
    %4165 = vmatprep.subr.mxu0 0.0
    %4166 = vmatpush1.msra.mxu0 %v39
    %4167 = vmatprep.subr.mxu0 0.0
    %4168 = vmatpush1.msra.mxu0 %v40
    %4169 = vmatprep.subr.mxu0 0.0
    %4170 = vmatpush1.msra.mxu0 %v41
    %4171 = vmatprep.subr.mxu0 0.0
    %4172 = vmatpush1.msra.mxu0 %v42
    %4173 = vmatprep.subr.mxu0 0.0
    %4174 = vmatpush1.msra.mxu0 %v43
    %4175 = vmatprep.subr.mxu0 0.0
    %4176 = vmatpush1.msra.mxu0 %v44
    %4177 = vmatprep.subr.mxu0 0.0
    %4178 = vmatpush1.msra.mxu0 0.0
    %4179 = vmatprep.subr.mxu0 0.0
    %4180 = vmatpush1.msra.mxu0 0.0
    %4181 = vmatprep.subr.mxu0 0.0
    %4182 = vmatpush1.msra.mxu0 0.0
    %4183 = vmatprep.subr.mxu0 0.0
    %4184 = vmatpush1.msra.mxu0 0.0
    %4185 = vmatprep.subr.mxu0 0.0
    %4186 = vmatpush1.msra.mxu0 0.0
    %4187 = vmatprep.subr.mxu0 0.0
    %4188 = vmatpush1.msra.mxu0 0.0
    %4189 = vmatprep.subr.mxu0 0.0
    %4190 = vmatpush1.msra.mxu0 0.0
    %4191 = vmatprep.subr.mxu0 0.0
    %4192 = vmatpush1.msra.mxu0 0.0
    %4193 = vmatprep.subr.mxu0 0.0
    %4194 = vmatpush1.msra.mxu0 0.0
    %4195 = vmatprep.subr.mxu0 0.0
    %4196 = vmatpush1.msra.mxu0 0.0
    %4197 = vmatprep.subr.mxu0 0.0
    %4198 = vmatpush1.msra.mxu0 0.0
    %4199 = vmatprep.subr.mxu0 0.0
    %4200 = vmatpush1.msra.mxu0 0.0
    %4201 = vmatprep.subr.mxu0 0.0
    %4202 = vmatpush1.msra.mxu0 0.0
    %4203 = vmatprep.subr.mxu0 0.0
    %4204 = vmatpush1.msra.mxu0 0.0
    %4205 = vmatprep.subr.mxu0 0.0
    %4206 = vmatpush1.msra.mxu0 0.0
    %4207 = vmatprep.subr.mxu0 0.0
    %4208 = vmatpush1.msra.mxu0 0.0
    %4209 = vmatprep.subr.mxu0 0.0
    %4210 = vmatpush1.msra.mxu0 0.0
    %4211 = vmatprep.subr.mxu0 0.0
    %4212 = vmatpush1.msra.mxu0 0.0
    %4213 = vmatprep.subr.mxu0 0.0
    %4214 = vmatpush1.msra.mxu0 0.0
    %4215 = vmatprep.subr.mxu0 0.0
    %4216 = vmatpush1.msra.mxu0 0.0
    %4217 = vmatprep.subr.mxu0 0.0
    %4218 = vmatpush1.msra.mxu0 0.0
    %4219 = vmatprep.subr.mxu0 0.0
    %4220 = vmatpush1.msra.mxu0 0.0
    %4221 = vmatprep.subr.mxu0 0.0
    %4222 = vmatpush1.msra.mxu0 0.0
    %4223 = vmatprep.subr.mxu0 0.0
    %4224 = vmatpush1.msra.mxu0 0.0
    %4225 = vmatprep.mubr.f32.mxu0 0.0
    %4226 = vmatmul.mubr.f32.gmra.mrb[0].mxu0 %v4159
    %v4227 = vpop.f32.mrb[0].mxu0
    %v4228 = vadd.f32 %v54, %v4227
    %v4229 = vpop.f32.mrb[0].mxu0
    %4230 = vdwg.mxu0
    %v4231 = vxor.u32 %v4228, 2147483648
    %v4232 = vmul.f32 %v4231, 1.442695
    %v4233 = vpow.pop %v4232
    %v4234 = vadd.f32 %v4233, 1.0
    %v4235 = vrcp.pop %v4234
    %v4236 = vmul.f32 1.0, %v4235
    %v4237 = vtanh.pop %v4228
    %v4238 = vmul.f32 %v4236, %v3921
    %4240 = vrot.lane.b32.xlu0 %v4237, 32
    %v4241 = vpop.permute.xlu0 %4240
    %v4243 = vmul.f32 %v4236, %v4241
    %4245 = vrot.lane.b32.xlu0 %v4243, 32
    %v4246 = vpop.permute.xlu0 %4245
    %v4248 = vadd.f32 %v4238, %v4246
    %v4249 = vtanh.pop %v4248
    %4251 = vrot.lane.b32.xlu0 %v4249, 32
    %v4252 = vpop.permute.xlu0 %4251
    %v4254 = vmul.f32 %v4236, %v4252
    %4256 = vrot.lane.b32.xlu0 %v4254, 64
    %v4257 = vpop.permute.xlu0 %4256
    %4259 = vrot.lane.b32.xlu0 %v4032, 96
    %v4260 = vpop.permute.xlu0 %4259
    %v4262 = vsel %vm72, %v4257, %v4260
    %v4264 = vsel %vm74, %v4262, 0
    %4266 = vmatprep.subr.mxu0 0.0
    %4267 = vmatpush1.msra.mxu0 %v46
    %4268 = vmatprep.subr.mxu0 0.0
    %4269 = vmatpush1.msra.mxu0 %v47
    %4270 = vmatprep.subr.mxu0 0.0
    %4271 = vmatpush1.msra.mxu0 %v48
    %4272 = vmatprep.subr.mxu0 0.0
    %4273 = vmatpush1.msra.mxu0 %v49
    %4274 = vmatprep.subr.mxu0 0.0
    %4275 = vmatpush1.msra.mxu0 %v50
    %4276 = vmatprep.subr.mxu0 0.0
    %4277 = vmatpush1.msra.mxu0 %v51
    %4278 = vmatprep.subr.mxu0 0.0
    %4279 = vmatpush1.msra.mxu0 %v52
    %4280 = vmatprep.subr.mxu0 0.0
    %4281 = vmatpush1.msra.mxu0 %v53
    %4282 = vmatprep.subr.mxu0 0.0
    %4283 = vmatpush1.msra.mxu0 0.0
    %4284 = vmatprep.subr.mxu0 0.0
    %4285 = vmatpush1.msra.mxu0 0.0
    %4286 = vmatprep.subr.mxu0 0.0
    %4287 = vmatpush1.msra.mxu0 0.0
    %4288 = vmatprep.subr.mxu0 0.0
    %4289 = vmatpush1.msra.mxu0 0.0
    %4290 = vmatprep.subr.mxu0 0.0
    %4291 = vmatpush1.msra.mxu0 0.0
    %4292 = vmatprep.subr.mxu0 0.0
    %4293 = vmatpush1.msra.mxu0 0.0
    %4294 = vmatprep.subr.mxu0 0.0
    %4295 = vmatpush1.msra.mxu0 0.0
    %4296 = vmatprep.subr.mxu0 0.0
    %4297 = vmatpush1.msra.mxu0 0.0
    %4298 = vmatprep.subr.mxu0 0.0
    %4299 = vmatpush1.msra.mxu0 0.0
    %4300 = vmatprep.subr.mxu0 0.0
    %4301 = vmatpush1.msra.mxu0 0.0
    %4302 = vmatprep.subr.mxu0 0.0
    %4303 = vmatpush1.msra.mxu0 0.0
    %4304 = vmatprep.subr.mxu0 0.0
    %4305 = vmatpush1.msra.mxu0 0.0
    %4306 = vmatprep.subr.mxu0 0.0
    %4307 = vmatpush1.msra.mxu0 0.0
    %4308 = vmatprep.subr.mxu0 0.0
    %4309 = vmatpush1.msra.mxu0 0.0
    %4310 = vmatprep.subr.mxu0 0.0
    %4311 = vmatpush1.msra.mxu0 0.0
    %4312 = vmatprep.subr.mxu0 0.0
    %4313 = vmatpush1.msra.mxu0 0.0
    %4314 = vmatprep.subr.mxu0 0.0
    %4315 = vmatpush1.msra.mxu0 0.0
    %4316 = vmatprep.subr.mxu0 0.0
    %4317 = vmatpush1.msra.mxu0 0.0
    %4318 = vmatprep.subr.mxu0 0.0
    %4319 = vmatpush1.msra.mxu0 0.0
    %4320 = vmatprep.subr.mxu0 0.0
    %4321 = vmatpush1.msra.mxu0 0.0
    %4322 = vmatprep.subr.mxu0 0.0
    %4323 = vmatpush1.msra.mxu0 0.0
    %4324 = vmatprep.subr.mxu0 0.0
    %4325 = vmatpush1.msra.mxu0 0.0
    %4326 = vmatprep.subr.mxu0 0.0
    %4327 = vmatpush1.msra.mxu0 0.0
    %4328 = vmatprep.subr.mxu0 0.0
    %4329 = vmatpush1.msra.mxu0 0.0
    %4330 = vmatprep.mubr.f32.mxu0 0.0
    %4331 = vmatmul.mubr.f32.gmra.mrb[0].mxu0 %v4264
    %v4332 = vpop.f32.mrb[0].mxu0
    %v4333 = vadd.f32 %v56, %v4332
    %v4334 = vpop.f32.mrb[0].mxu0
    %4335 = vdwg.mxu0
    %v4336 = vxor.u32 %v4333, 2147483648
    %v4337 = vmul.f32 %v4336, 1.442695
    %v4338 = vpow.pop %v4337
    %v4339 = vadd.f32 %v4338, 1.0
    %v4340 = vrcp.pop %v4339
    %v4341 = vmul.f32 1.0, %v4340
    %v4342 = vtanh.pop %v4333
    %v4343 = vmul.f32 %v4341, %v4026
    %4345 = vrot.lane.b32.xlu0 %v4342, 32
    %v4346 = vpop.permute.xlu0 %4345
    %v4348 = vmul.f32 %v4341, %v4346
    %4350 = vrot.lane.b32.xlu0 %v4348, 32
    %v4351 = vpop.permute.xlu0 %4350
    %v4353 = vadd.f32 %v4343, %v4351
    %v4354 = vtanh.pop %v4353
    %4356 = vrot.lane.b32.xlu0 %v4354, 32
    %v4357 = vpop.permute.xlu0 %4356
    %v4359 = vmul.f32 %v4341, %v4357
    %4361 = vrot.lane.b32.xlu0 %v4359, 64
    %v4362 = vpop.permute.xlu0 %4361
    %4363 = vrot.lane.b32.xlu0 %v57, 48
    %v4364 = vpop.permute.xlu0 %4363
    %4365 = vrot.lane.b32.xlu0 %v59, 48
    %v4366 = vpop.permute.xlu0 %4365
    %4367 = vrot.lane.b32.xlu0 %v61, 48
    %v4368 = vpop.permute.xlu0 %4367
    %4369 = vrot.lane.b32.xlu0 %v63, 48
    %v4370 = vpop.permute.xlu0 %4369
    %v4375 = vrot.slane %v66, 2
    %v4377 = vsel %vm72, %v4362, 0
    %4379 = vmatprep.subr.mxu0 0.0
    %4380 = vmatpush1.msra.mxu0 %v4364
    %4381 = vmatprep.subr.mxu0 0.0
    %4382 = vmatpush1.msra.mxu0 %v4366
    %4383 = vmatprep.subr.mxu0 0.0
    %4384 = vmatpush1.msra.mxu0 %v4368
    %4385 = vmatprep.subr.mxu0 0.0
    %4386 = vmatpush1.msra.mxu0 %v4370
    %4387 = vmatprep.subr.mxu0 0.0
    %4388 = vmatpush1.msra.mxu0 0.0
    %4389 = vmatprep.subr.mxu0 0.0
    %4390 = vmatpush1.msra.mxu0 0.0
    %4391 = vmatprep.subr.mxu0 0.0
    %4392 = vmatpush1.msra.mxu0 0.0
    %4393 = vmatprep.subr.mxu0 0.0
    %4394 = vmatpush1.msra.mxu0 0.0
    %4395 = vmatprep.subr.mxu0 0.0
    %4396 = vmatpush1.msra.mxu0 0.0
    %4397 = vmatprep.subr.mxu0 0.0
    %4398 = vmatpush1.msra.mxu0 0.0
    %4399 = vmatprep.subr.mxu0 0.0
    %4400 = vmatpush1.msra.mxu0 0.0
    %4401 = vmatprep.subr.mxu0 0.0
    %4402 = vmatpush1.msra.mxu0 0.0
    %4403 = vmatprep.subr.mxu0 0.0
    %4404 = vmatpush1.msra.mxu0 0.0
    %4405 = vmatprep.subr.mxu0 0.0
    %4406 = vmatpush1.msra.mxu0 0.0
    %4407 = vmatprep.subr.mxu0 0.0
    %4408 = vmatpush1.msra.mxu0 0.0
    %4409 = vmatprep.subr.mxu0 0.0
    %4410 = vmatpush1.msra.mxu0 0.0
    %4411 = vmatprep.subr.mxu0 0.0
    %4412 = vmatpush1.msra.mxu0 0.0
    %4413 = vmatprep.subr.mxu0 0.0
    %4414 = vmatpush1.msra.mxu0 0.0
    %4415 = vmatprep.subr.mxu0 0.0
    %4416 = vmatpush1.msra.mxu0 0.0
    %4417 = vmatprep.subr.mxu0 0.0
    %4418 = vmatpush1.msra.mxu0 0.0
    %4419 = vmatprep.subr.mxu0 0.0
    %4420 = vmatpush1.msra.mxu0 0.0
    %4421 = vmatprep.subr.mxu0 0.0
    %4422 = vmatpush1.msra.mxu0 0.0
    %4423 = vmatprep.subr.mxu0 0.0
    %4424 = vmatpush1.msra.mxu0 0.0
    %4425 = vmatprep.subr.mxu0 0.0
    %4426 = vmatpush1.msra.mxu0 0.0
    %4427 = vmatprep.subr.mxu0 0.0
    %4428 = vmatpush1.msra.mxu0 0.0
    %4429 = vmatprep.subr.mxu0 0.0
    %4430 = vmatpush1.msra.mxu0 0.0
    %4431 = vmatprep.subr.mxu0 0.0
    %4432 = vmatpush1.msra.mxu0 0.0
    %4433 = vmatprep.subr.mxu0 0.0
    %4434 = vmatpush1.msra.mxu0 0.0
    %4435 = vmatprep.subr.mxu0 0.0
    %4436 = vmatpush1.msra.mxu0 0.0
    %4437 = vmatprep.subr.mxu0 0.0
    %4438 = vmatpush1.msra.mxu0 0.0
    %4439 = vmatprep.subr.mxu0 0.0
    %4440 = vmatpush1.msra.mxu0 0.0
    %4441 = vmatprep.subr.mxu0 0.0
    %4442 = vmatpush1.msra.mxu0 0.0
    %4443 = vmatprep.mubr.f32.mxu0 0.0
    %4444 = vmatmul.mubr.f32.gmra.mrb[0].mxu0 %v4377
    %v4445 = vpop.f32.mrb[0].mxu0
    %v4446 = vadd.f32 %v4375, %v4445
    %v4447 = vpop.f32.mrb[0].mxu0
    %4448 = vdwg.mxu0
    %v4449 = vsel %vm1189, %v4446, -inf
    %4450 = vmax.xlane.f32.xlu0 %v4449
    %v4451 = vpop.xlane.xlu0 %4450
    %v4452 = vsub.f32 %v4446, %v4451
    %v4453 = vmul.f32 %v4452, 1.442695
    %v4454 = vpow.pop %v4453
    %v4455 = vsel %vm1189, %v4454, 0.0
    %4456 = vadd.xlane.f32.xlu0 %v4455
    %v4457 = vpop.xlane.xlu0 %4456
    %v4458 = vrcp.pop %v4457
    %v4459 = vmul.f32 %v4454, %v4458
    %v4460 = vlog2.pop %v4457
    %v4461 = vmul.f32 %v4460, 0.6931472
    %v4462 = vsub.f32 %v4452, %v4461
    %v4463 = vmul.f32 %v4459, %v4462
    %v4464 = vsel %vm1189, %v4463, 0.0
    %4465 = vadd.xlane.f32.xlu0 %v4464
    %v4466 = vpop.xlane.xlu0 %4465
    %v4467 = vsub.f32 %v4141, %v4466
    %v4469 = vrot.slane %v4462, 6
    %v4471 = vmul.f32 %v69, %v4469
    %v4472 = vsel %vm1865, %v4471, 0.0
    %4473 = vadd.xlane.f32.xlu0 %v4472
    %v4474 = vpop.xlane.xlu0 %4473
    %v4476 = vrot.slane %v4474, 2
    %v4478 = vadd.f32 %v4152, %v4476
    %4480 = vrot.lane.b32.xlu0 %v4254, 96
    %v4481 = vpop.permute.xlu0 %4480
    %v4483 = vsel %vm72, %v4362, %v4481
    %v4485 = vsel %vm74, %v4483, 0
    %4487 = vmatprep.subr.mxu0 0.0
    %4488 = vmatpush1.msra.mxu0 %v37
    %4489 = vmatprep.subr.mxu0 0.0
    %4490 = vmatpush1.msra.mxu0 %v38
    %4491 = vmatprep.subr.mxu0 0.0
    %4492 = vmatpush1.msra.mxu0 %v39
    %4493 = vmatprep.subr.mxu0 0.0
    %4494 = vmatpush1.msra.mxu0 %v40
    %4495 = vmatprep.subr.mxu0 0.0
    %4496 = vmatpush1.msra.mxu0 %v41
    %4497 = vmatprep.subr.mxu0 0.0
    %4498 = vmatpush1.msra.mxu0 %v42
    %4499 = vmatprep.subr.mxu0 0.0
    %4500 = vmatpush1.msra.mxu0 %v43
    %4501 = vmatprep.subr.mxu0 0.0
    %4502 = vmatpush1.msra.mxu0 %v44
    %4503 = vmatprep.subr.mxu0 0.0
    %4504 = vmatpush1.msra.mxu0 0.0
    %4505 = vmatprep.subr.mxu0 0.0
    %4506 = vmatpush1.msra.mxu0 0.0
    %4507 = vmatprep.subr.mxu0 0.0
    %4508 = vmatpush1.msra.mxu0 0.0
    %4509 = vmatprep.subr.mxu0 0.0
    %4510 = vmatpush1.msra.mxu0 0.0
    %4511 = vmatprep.subr.mxu0 0.0
    %4512 = vmatpush1.msra.mxu0 0.0
    %4513 = vmatprep.subr.mxu0 0.0
    %4514 = vmatpush1.msra.mxu0 0.0
    %4515 = vmatprep.subr.mxu0 0.0
    %4516 = vmatpush1.msra.mxu0 0.0
    %4517 = vmatprep.subr.mxu0 0.0
    %4518 = vmatpush1.msra.mxu0 0.0
    %4519 = vmatprep.subr.mxu0 0.0
    %4520 = vmatpush1.msra.mxu0 0.0
    %4521 = vmatprep.subr.mxu0 0.0
    %4522 = vmatpush1.msra.mxu0 0.0
    %4523 = vmatprep.subr.mxu0 0.0
    %4524 = vmatpush1.msra.mxu0 0.0
    %4525 = vmatprep.subr.mxu0 0.0
    %4526 = vmatpush1.msra.mxu0 0.0
    %4527 = vmatprep.subr.mxu0 0.0
    %4528 = vmatpush1.msra.mxu0 0.0
    %4529 = vmatprep.subr.mxu0 0.0
    %4530 = vmatpush1.msra.mxu0 0.0
    %4531 = vmatprep.subr.mxu0 0.0
    %4532 = vmatpush1.msra.mxu0 0.0
    %4533 = vmatprep.subr.mxu0 0.0
    %4534 = vmatpush1.msra.mxu0 0.0
    %4535 = vmatprep.subr.mxu0 0.0
    %4536 = vmatpush1.msra.mxu0 0.0
    %4537 = vmatprep.subr.mxu0 0.0
    %4538 = vmatpush1.msra.mxu0 0.0
    %4539 = vmatprep.subr.mxu0 0.0
    %4540 = vmatpush1.msra.mxu0 0.0
    %4541 = vmatprep.subr.mxu0 0.0
    %4542 = vmatpush1.msra.mxu0 0.0
    %4543 = vmatprep.subr.mxu0 0.0
    %4544 = vmatpush1.msra.mxu0 0.0
    %4545 = vmatprep.subr.mxu0 0.0
    %4546 = vmatpush1.msra.mxu0 0.0
    %4547 = vmatprep.subr.mxu0 0.0
    %4548 = vmatpush1.msra.mxu0 0.0
    %4549 = vmatprep.subr.mxu0 0.0
    %4550 = vmatpush1.msra.mxu0 0.0
    %4551 = vmatprep.mubr.f32.mxu0 0.0
    %4552 = vmatmul.mubr.f32.gmra.mrb[0].mxu0 %v4485
    %v4553 = vpop.f32.mrb[0].mxu0
    %v4554 = vadd.f32 %v54, %v4553
    %v4555 = vpop.f32.mrb[0].mxu0
    %4556 = vdwg.mxu0
    %v4557 = vxor.u32 %v4554, 2147483648
    %v4558 = vmul.f32 %v4557, 1.442695
    %v4559 = vpow.pop %v4558
    %v4560 = vadd.f32 %v4559, 1.0
    %v4561 = vrcp.pop %v4560
    %v4562 = vmul.f32 1.0, %v4561
    %v4563 = vtanh.pop %v4554
    %v4564 = vmul.f32 %v4562, %v4248
    %4566 = vrot.lane.b32.xlu0 %v4563, 32
    %v4567 = vpop.permute.xlu0 %4566
    %v4569 = vmul.f32 %v4562, %v4567
    %4571 = vrot.lane.b32.xlu0 %v4569, 32
    %v4572 = vpop.permute.xlu0 %4571
    %v4574 = vadd.f32 %v4564, %v4572
    %v4575 = vtanh.pop %v4574
    %4577 = vrot.lane.b32.xlu0 %v4575, 32
    %v4578 = vpop.permute.xlu0 %4577
    %v4580 = vmul.f32 %v4562, %v4578
    %4582 = vrot.lane.b32.xlu0 %v4580, 64
    %v4583 = vpop.permute.xlu0 %4582
    %4585 = vrot.lane.b32.xlu0 %v4359, 96
    %v4586 = vpop.permute.xlu0 %4585
    %v4588 = vsel %vm72, %v4583, %v4586
    %v4590 = vsel %vm74, %v4588, 0
    %4592 = vmatprep.subr.mxu0 0.0
    %4593 = vmatpush1.msra.mxu0 %v46
    %4594 = vmatprep.subr.mxu0 0.0
    %4595 = vmatpush1.msra.mxu0 %v47
    %4596 = vmatprep.subr.mxu0 0.0
    %4597 = vmatpush1.msra.mxu0 %v48
    %4598 = vmatprep.subr.mxu0 0.0
    %4599 = vmatpush1.msra.mxu0 %v49
    %4600 = vmatprep.subr.mxu0 0.0
    %4601 = vmatpush1.msra.mxu0 %v50
    %4602 = vmatprep.subr.mxu0 0.0
    %4603 = vmatpush1.msra.mxu0 %v51
    %4604 = vmatprep.subr.mxu0 0.0
    %4605 = vmatpush1.msra.mxu0 %v52
    %4606 = vmatprep.subr.mxu0 0.0
    %4607 = vmatpush1.msra.mxu0 %v53
    %4608 = vmatprep.subr.mxu0 0.0
    %4609 = vmatpush1.msra.mxu0 0.0
    %4610 = vmatprep.subr.mxu0 0.0
    %4611 = vmatpush1.msra.mxu0 0.0
    %4612 = vmatprep.subr.mxu0 0.0
    %4613 = vmatpush1.msra.mxu0 0.0
    %4614 = vmatprep.subr.mxu0 0.0
    %4615 = vmatpush1.msra.mxu0 0.0
    %4616 = vmatprep.subr.mxu0 0.0
    %4617 = vmatpush1.msra.mxu0 0.0
    %4618 = vmatprep.subr.mxu0 0.0
    %4619 = vmatpush1.msra.mxu0 0.0
    %4620 = vmatprep.subr.mxu0 0.0
    %4621 = vmatpush1.msra.mxu0 0.0
    %4622 = vmatprep.subr.mxu0 0.0
    %4623 = vmatpush1.msra.mxu0 0.0
    %4624 = vmatprep.subr.mxu0 0.0
    %4625 = vmatpush1.msra.mxu0 0.0
    %4626 = vmatprep.subr.mxu0 0.0
    %4627 = vmatpush1.msra.mxu0 0.0
    %4628 = vmatprep.subr.mxu0 0.0
    %4629 = vmatpush1.msra.mxu0 0.0
    %4630 = vmatprep.subr.mxu0 0.0
    %4631 = vmatpush1.msra.mxu0 0.0
    %4632 = vmatprep.subr.mxu0 0.0
    %4633 = vmatpush1.msra.mxu0 0.0
    %4634 = vmatprep.subr.mxu0 0.0
    %4635 = vmatpush1.msra.mxu0 0.0
    %4636 = vmatprep.subr.mxu0 0.0
    %4637 = vmatpush1.msra.mxu0 0.0
    %4638 = vmatprep.subr.mxu0 0.0
    %4639 = vmatpush1.msra.mxu0 0.0
    %4640 = vmatprep.subr.mxu0 0.0
    %4641 = vmatpush1.msra.mxu0 0.0
    %4642 = vmatprep.subr.mxu0 0.0
    %4643 = vmatpush1.msra.mxu0 0.0
    %4644 = vmatprep.subr.mxu0 0.0
    %4645 = vmatpush1.msra.mxu0 0.0
    %4646 = vmatprep.subr.mxu0 0.0
    %4647 = vmatpush1.msra.mxu0 0.0
    %4648 = vmatprep.subr.mxu0 0.0
    %4649 = vmatpush1.msra.mxu0 0.0
    %4650 = vmatprep.subr.mxu0 0.0
    %4651 = vmatpush1.msra.mxu0 0.0
    %4652 = vmatprep.subr.mxu0 0.0
    %4653 = vmatpush1.msra.mxu0 0.0
    %4654 = vmatprep.subr.mxu0 0.0
    %4655 = vmatpush1.msra.mxu0 0.0
    %4656 = vmatprep.mubr.f32.mxu0 0.0
    %4657 = vmatmul.mubr.f32.gmra.mrb[0].mxu0 %v4590
    %v4658 = vpop.f32.mrb[0].mxu0
    %v4659 = vadd.f32 %v56, %v4658
    %v4660 = vpop.f32.mrb[0].mxu0
    %4661 = vdwg.mxu0
    %v4662 = vxor.u32 %v4659, 2147483648
    %v4663 = vmul.f32 %v4662, 1.442695
    %v4664 = vpow.pop %v4663
    %v4665 = vadd.f32 %v4664, 1.0
    %v4666 = vrcp.pop %v4665
    %v4667 = vmul.f32 1.0, %v4666
    %v4668 = vtanh.pop %v4659
    %v4669 = vmul.f32 %v4667, %v4353
    %4671 = vrot.lane.b32.xlu0 %v4668, 32
    %v4672 = vpop.permute.xlu0 %4671
    %v4674 = vmul.f32 %v4667, %v4672
    %4676 = vrot.lane.b32.xlu0 %v4674, 32
    %v4677 = vpop.permute.xlu0 %4676
    %v4679 = vadd.f32 %v4669, %v4677
    %v4680 = vtanh.pop %v4679
    %4682 = vrot.lane.b32.xlu0 %v4680, 32
    %v4683 = vpop.permute.xlu0 %4682
    %v4685 = vmul.f32 %v4667, %v4683
    %4687 = vrot.lane.b32.xlu0 %v4685, 64
    %v4688 = vpop.permute.xlu0 %4687
    %4689 = vrot.lane.b32.xlu0 %v57, 40
    %v4690 = vpop.permute.xlu0 %4689
    %4691 = vrot.lane.b32.xlu0 %v59, 40
    %v4692 = vpop.permute.xlu0 %4691
    %4693 = vrot.lane.b32.xlu0 %v61, 40
    %v4694 = vpop.permute.xlu0 %4693
    %4695 = vrot.lane.b32.xlu0 %v63, 40
    %v4696 = vpop.permute.xlu0 %4695
    %v4701 = vrot.slane %v66, 3
    %v4703 = vsel %vm72, %v4688, 0
    %4705 = vmatprep.subr.mxu0 0.0
    %4706 = vmatpush1.msra.mxu0 %v4690
    %4707 = vmatprep.subr.mxu0 0.0
    %4708 = vmatpush1.msra.mxu0 %v4692
    %4709 = vmatprep.subr.mxu0 0.0
    %4710 = vmatpush1.msra.mxu0 %v4694
    %4711 = vmatprep.subr.mxu0 0.0
    %4712 = vmatpush1.msra.mxu0 %v4696
    %4713 = vmatprep.subr.mxu0 0.0
    %4714 = vmatpush1.msra.mxu0 0.0
    %4715 = vmatprep.subr.mxu0 0.0
    %4716 = vmatpush1.msra.mxu0 0.0
    %4717 = vmatprep.subr.mxu0 0.0
    %4718 = vmatpush1.msra.mxu0 0.0
    %4719 = vmatprep.subr.mxu0 0.0
    %4720 = vmatpush1.msra.mxu0 0.0
    %4721 = vmatprep.subr.mxu0 0.0
    %4722 = vmatpush1.msra.mxu0 0.0
    %4723 = vmatprep.subr.mxu0 0.0
    %4724 = vmatpush1.msra.mxu0 0.0
    %4725 = vmatprep.subr.mxu0 0.0
    %4726 = vmatpush1.msra.mxu0 0.0
    %4727 = vmatprep.subr.mxu0 0.0
    %4728 = vmatpush1.msra.mxu0 0.0
    %4729 = vmatprep.subr.mxu0 0.0
    %4730 = vmatpush1.msra.mxu0 0.0
    %4731 = vmatprep.subr.mxu0 0.0
    %4732 = vmatpush1.msra.mxu0 0.0
    %4733 = vmatprep.subr.mxu0 0.0
    %4734 = vmatpush1.msra.mxu0 0.0
    %4735 = vmatprep.subr.mxu0 0.0
    %4736 = vmatpush1.msra.mxu0 0.0
    %4737 = vmatprep.subr.mxu0 0.0
    %4738 = vmatpush1.msra.mxu0 0.0
    %4739 = vmatprep.subr.mxu0 0.0
    %4740 = vmatpush1.msra.mxu0 0.0
    %4741 = vmatprep.subr.mxu0 0.0
    %4742 = vmatpush1.msra.mxu0 0.0
    %4743 = vmatprep.subr.mxu0 0.0
    %4744 = vmatpush1.msra.mxu0 0.0
    %4745 = vmatprep.subr.mxu0 0.0
    %4746 = vmatpush1.msra.mxu0 0.0
    %4747 = vmatprep.subr.mxu0 0.0
    %4748 = vmatpush1.msra.mxu0 0.0
    %4749 = vmatprep.subr.mxu0 0.0
    %4750 = vmatpush1.msra.mxu0 0.0
    %4751 = vmatprep.subr.mxu0 0.0
    %4752 = vmatpush1.msra.mxu0 0.0
    %4753 = vmatprep.subr.mxu0 0.0
    %4754 = vmatpush1.msra.mxu0 0.0
    %4755 = vmatprep.subr.mxu0 0.0
    %4756 = vmatpush1.msra.mxu0 0.0
    %4757 = vmatprep.subr.mxu0 0.0
    %4758 = vmatpush1.msra.mxu0 0.0
    %4759 = vmatprep.subr.mxu0 0.0
    %4760 = vmatpush1.msra.mxu0 0.0
    %4761 = vmatprep.subr.mxu0 0.0
    %4762 = vmatpush1.msra.mxu0 0.0
    %4763 = vmatprep.subr.mxu0 0.0
    %4764 = vmatpush1.msra.mxu0 0.0
    %4765 = vmatprep.subr.mxu0 0.0
    %4766 = vmatpush1.msra.mxu0 0.0
    %4767 = vmatprep.subr.mxu0 0.0
    %4768 = vmatpush1.msra.mxu0 0.0
    %4769 = vmatprep.mubr.f32.mxu0 0.0
    %4770 = vmatmul.mubr.f32.gmra.mrb[0].mxu0 %v4703
    %v4771 = vpop.f32.mrb[0].mxu0
    %v4772 = vadd.f32 %v4701, %v4771
    %v4773 = vpop.f32.mrb[0].mxu0
    %4774 = vdwg.mxu0
    %v4775 = vsel %vm1189, %v4772, -inf
    %4776 = vmax.xlane.f32.xlu0 %v4775
    %v4777 = vpop.xlane.xlu0 %4776
    %v4778 = vsub.f32 %v4772, %v4777
    %v4779 = vmul.f32 %v4778, 1.442695
    %v4780 = vpow.pop %v4779
    %v4781 = vsel %vm1189, %v4780, 0.0
    %4782 = vadd.xlane.f32.xlu0 %v4781
    %v4783 = vpop.xlane.xlu0 %4782
    %v4784 = vrcp.pop %v4783
    %v4785 = vmul.f32 %v4780, %v4784
    %v4786 = vlog2.pop %v4783
    %v4787 = vmul.f32 %v4786, 0.6931472
    %v4788 = vsub.f32 %v4778, %v4787
    %v4789 = vmul.f32 %v4785, %v4788
    %v4790 = vsel %vm1189, %v4789, 0.0
    %4791 = vadd.xlane.f32.xlu0 %v4790
    %v4792 = vpop.xlane.xlu0 %4791
    %v4793 = vsub.f32 %v4467, %v4792
    %v4795 = vrot.slane %v4788, 5
    %v4797 = vmul.f32 %v69, %v4795
    %v4798 = vsel %vm2192, %v4797, 0.0
    %4799 = vadd.xlane.f32.xlu0 %v4798
    %v4800 = vpop.xlane.xlu0 %4799
    %v4802 = vrot.slane %v4800, 3
    %v4804 = vadd.f32 %v4478, %v4802
    %4806 = vrot.lane.b32.xlu0 %v4580, 96
    %v4807 = vpop.permute.xlu0 %4806
    %v4809 = vsel %vm72, %v4688, %v4807
    %v4811 = vsel %vm74, %v4809, 0
    %4813 = vmatprep.subr.mxu0 0.0
    %4814 = vmatpush1.msra.mxu0 %v37
    %4815 = vmatprep.subr.mxu0 0.0
    %4816 = vmatpush1.msra.mxu0 %v38
    %4817 = vmatprep.subr.mxu0 0.0
    %4818 = vmatpush1.msra.mxu0 %v39
    %4819 = vmatprep.subr.mxu0 0.0
    %4820 = vmatpush1.msra.mxu0 %v40
    %4821 = vmatprep.subr.mxu0 0.0
    %4822 = vmatpush1.msra.mxu0 %v41
    %4823 = vmatprep.subr.mxu0 0.0
    %4824 = vmatpush1.msra.mxu0 %v42
    %4825 = vmatprep.subr.mxu0 0.0
    %4826 = vmatpush1.msra.mxu0 %v43
    %4827 = vmatprep.subr.mxu0 0.0
    %4828 = vmatpush1.msra.mxu0 %v44
    %4829 = vmatprep.subr.mxu0 0.0
    %4830 = vmatpush1.msra.mxu0 0.0
    %4831 = vmatprep.subr.mxu0 0.0
    %4832 = vmatpush1.msra.mxu0 0.0
    %4833 = vmatprep.subr.mxu0 0.0
    %4834 = vmatpush1.msra.mxu0 0.0
    %4835 = vmatprep.subr.mxu0 0.0
    %4836 = vmatpush1.msra.mxu0 0.0
    %4837 = vmatprep.subr.mxu0 0.0
    %4838 = vmatpush1.msra.mxu0 0.0
    %4839 = vmatprep.subr.mxu0 0.0
    %4840 = vmatpush1.msra.mxu0 0.0
    %4841 = vmatprep.subr.mxu0 0.0
    %4842 = vmatpush1.msra.mxu0 0.0
    %4843 = vmatprep.subr.mxu0 0.0
    %4844 = vmatpush1.msra.mxu0 0.0
    %4845 = vmatprep.subr.mxu0 0.0
    %4846 = vmatpush1.msra.mxu0 0.0
    %4847 = vmatprep.subr.mxu0 0.0
    %4848 = vmatpush1.msra.mxu0 0.0
    %4849 = vmatprep.subr.mxu0 0.0
    %4850 = vmatpush1.msra.mxu0 0.0
    %4851 = vmatprep.subr.mxu0 0.0
    %4852 = vmatpush1.msra.mxu0 0.0
    %4853 = vmatprep.subr.mxu0 0.0
    %4854 = vmatpush1.msra.mxu0 0.0
    %4855 = vmatprep.subr.mxu0 0.0
    %4856 = vmatpush1.msra.mxu0 0.0
    %4857 = vmatprep.subr.mxu0 0.0
    %4858 = vmatpush1.msra.mxu0 0.0
    %4859 = vmatprep.subr.mxu0 0.0
    %4860 = vmatpush1.msra.mxu0 0.0
    %4861 = vmatprep.subr.mxu0 0.0
    %4862 = vmatpush1.msra.mxu0 0.0
    %4863 = vmatprep.subr.mxu0 0.0
    %4864 = vmatpush1.msra.mxu0 0.0
    %4865 = vmatprep.subr.mxu0 0.0
    %4866 = vmatpush1.msra.mxu0 0.0
    %4867 = vmatprep.subr.mxu0 0.0
    %4868 = vmatpush1.msra.mxu0 0.0
    %4869 = vmatprep.subr.mxu0 0.0
    %4870 = vmatpush1.msra.mxu0 0.0
    %4871 = vmatprep.subr.mxu0 0.0
    %4872 = vmatpush1.msra.mxu0 0.0
    %4873 = vmatprep.subr.mxu0 0.0
    %4874 = vmatpush1.msra.mxu0 0.0
    %4875 = vmatprep.subr.mxu0 0.0
    %4876 = vmatpush1.msra.mxu0 0.0
    %4877 = vmatprep.mubr.f32.mxu0 0.0
    %4878 = vmatmul.mubr.f32.gmra.mrb[0].mxu0 %v4811
    %v4879 = vpop.f32.mrb[0].mxu0
    %v4880 = vadd.f32 %v54, %v4879
    %v4881 = vpop.f32.mrb[0].mxu0
    %4882 = vdwg.mxu0
    %v4883 = vxor.u32 %v4880, 2147483648
    %v4884 = vmul.f32 %v4883, 1.442695
    %v4885 = vpow.pop %v4884
    %v4886 = vadd.f32 %v4885, 1.0
    %v4887 = vrcp.pop %v4886
    %v4888 = vmul.f32 1.0, %v4887
    %v4889 = vtanh.pop %v4880
    %v4890 = vmul.f32 %v4888, %v4574
    %4892 = vrot.lane.b32.xlu0 %v4889, 32
    %v4893 = vpop.permute.xlu0 %4892
    %v4895 = vmul.f32 %v4888, %v4893
    %4897 = vrot.lane.b32.xlu0 %v4895, 32
    %v4898 = vpop.permute.xlu0 %4897
    %v4900 = vadd.f32 %v4890, %v4898
    %v4901 = vtanh.pop %v4900
    %4903 = vrot.lane.b32.xlu0 %v4901, 32
    %v4904 = vpop.permute.xlu0 %4903
    %v4906 = vmul.f32 %v4888, %v4904
    %4908 = vrot.lane.b32.xlu0 %v4906, 64
    %v4909 = vpop.permute.xlu0 %4908
    %4911 = vrot.lane.b32.xlu0 %v4685, 96
    %v4912 = vpop.permute.xlu0 %4911
    %v4914 = vsel %vm72, %v4909, %v4912
    %v4916 = vsel %vm74, %v4914, 0
    %4918 = vmatprep.subr.mxu0 0.0
    %4919 = vmatpush1.msra.mxu0 %v46
    %4920 = vmatprep.subr.mxu0 0.0
    %4921 = vmatpush1.msra.mxu0 %v47
    %4922 = vmatprep.subr.mxu0 0.0
    %4923 = vmatpush1.msra.mxu0 %v48
    %4924 = vmatprep.subr.mxu0 0.0
    %4925 = vmatpush1.msra.mxu0 %v49
    %4926 = vmatprep.subr.mxu0 0.0
    %4927 = vmatpush1.msra.mxu0 %v50
    %4928 = vmatprep.subr.mxu0 0.0
    %4929 = vmatpush1.msra.mxu0 %v51
    %4930 = vmatprep.subr.mxu0 0.0
    %4931 = vmatpush1.msra.mxu0 %v52
    %4932 = vmatprep.subr.mxu0 0.0
    %4933 = vmatpush1.msra.mxu0 %v53
    %4934 = vmatprep.subr.mxu0 0.0
    %4935 = vmatpush1.msra.mxu0 0.0
    %4936 = vmatprep.subr.mxu0 0.0
    %4937 = vmatpush1.msra.mxu0 0.0
    %4938 = vmatprep.subr.mxu0 0.0
    %4939 = vmatpush1.msra.mxu0 0.0
    %4940 = vmatprep.subr.mxu0 0.0
    %4941 = vmatpush1.msra.mxu0 0.0
    %4942 = vmatprep.subr.mxu0 0.0
    %4943 = vmatpush1.msra.mxu0 0.0
    %4944 = vmatprep.subr.mxu0 0.0
    %4945 = vmatpush1.msra.mxu0 0.0
    %4946 = vmatprep.subr.mxu0 0.0
    %4947 = vmatpush1.msra.mxu0 0.0
    %4948 = vmatprep.subr.mxu0 0.0
    %4949 = vmatpush1.msra.mxu0 0.0
    %4950 = vmatprep.subr.mxu0 0.0
    %4951 = vmatpush1.msra.mxu0 0.0
    %4952 = vmatprep.subr.mxu0 0.0
    %4953 = vmatpush1.msra.mxu0 0.0
    %4954 = vmatprep.subr.mxu0 0.0
    %4955 = vmatpush1.msra.mxu0 0.0
    %4956 = vmatprep.subr.mxu0 0.0
    %4957 = vmatpush1.msra.mxu0 0.0
    %4958 = vmatprep.subr.mxu0 0.0
    %4959 = vmatpush1.msra.mxu0 0.0
    %4960 = vmatprep.subr.mxu0 0.0
    %4961 = vmatpush1.msra.mxu0 0.0
    %4962 = vmatprep.subr.mxu0 0.0
    %4963 = vmatpush1.msra.mxu0 0.0
    %4964 = vmatprep.subr.mxu0 0.0
    %4965 = vmatpush1.msra.mxu0 0.0
    %4966 = vmatprep.subr.mxu0 0.0
    %4967 = vmatpush1.msra.mxu0 0.0
    %4968 = vmatprep.subr.mxu0 0.0
    %4969 = vmatpush1.msra.mxu0 0.0
    %4970 = vmatprep.subr.mxu0 0.0
    %4971 = vmatpush1.msra.mxu0 0.0
    %4972 = vmatprep.subr.mxu0 0.0
    %4973 = vmatpush1.msra.mxu0 0.0
    %4974 = vmatprep.subr.mxu0 0.0
    %4975 = vmatpush1.msra.mxu0 0.0
    %4976 = vmatprep.subr.mxu0 0.0
    %4977 = vmatpush1.msra.mxu0 0.0
    %4978 = vmatprep.subr.mxu0 0.0
    %4979 = vmatpush1.msra.mxu0 0.0
    %4980 = vmatprep.subr.mxu0 0.0
    %4981 = vmatpush1.msra.mxu0 0.0
    %4982 = vmatprep.mubr.f32.mxu0 0.0
    %4983 = vmatmul.mubr.f32.gmra.mrb[0].mxu0 %v4916
    %v4984 = vpop.f32.mrb[0].mxu0
    %v4985 = vadd.f32 %v56, %v4984
    %v4986 = vpop.f32.mrb[0].mxu0
    %4987 = vdwg.mxu0
    %v4988 = vxor.u32 %v4985, 2147483648
    %v4989 = vmul.f32 %v4988, 1.442695
    %v4990 = vpow.pop %v4989
    %v4991 = vadd.f32 %v4990, 1.0
    %v4992 = vrcp.pop %v4991
    %v4993 = vmul.f32 1.0, %v4992
    %v4994 = vtanh.pop %v4985
    %v4995 = vmul.f32 %v4993, %v4679
    %4997 = vrot.lane.b32.xlu0 %v4994, 32
    %v4998 = vpop.permute.xlu0 %4997
    %v5000 = vmul.f32 %v4993, %v4998
    %5002 = vrot.lane.b32.xlu0 %v5000, 32
    %v5003 = vpop.permute.xlu0 %5002
    %v5005 = vadd.f32 %v4995, %v5003
    %v5006 = vtanh.pop %v5005
    %5008 = vrot.lane.b32.xlu0 %v5006, 32
    %v5009 = vpop.permute.xlu0 %5008
    %v5011 = vmul.f32 %v4993, %v5009
    %5013 = vrot.lane.b32.xlu0 %v5011, 64
    %v5014 = vpop.permute.xlu0 %5013
    %5015 = vrot.lane.b32.xlu0 %v57, 32
    %v5016 = vpop.permute.xlu0 %5015
    %5017 = vrot.lane.b32.xlu0 %v59, 32
    %v5018 = vpop.permute.xlu0 %5017
    %5019 = vrot.lane.b32.xlu0 %v61, 32
    %v5020 = vpop.permute.xlu0 %5019
    %5021 = vrot.lane.b32.xlu0 %v63, 32
    %v5022 = vpop.permute.xlu0 %5021
    %v5027 = vrot.slane %v66, 4
    %v5029 = vsel %vm72, %v5014, 0
    %5031 = vmatprep.subr.mxu0 0.0
    %5032 = vmatpush1.msra.mxu0 %v5016
    %5033 = vmatprep.subr.mxu0 0.0
    %5034 = vmatpush1.msra.mxu0 %v5018
    %5035 = vmatprep.subr.mxu0 0.0
    %5036 = vmatpush1.msra.mxu0 %v5020
    %5037 = vmatprep.subr.mxu0 0.0
    %5038 = vmatpush1.msra.mxu0 %v5022
    %5039 = vmatprep.subr.mxu0 0.0
    %5040 = vmatpush1.msra.mxu0 0.0
    %5041 = vmatprep.subr.mxu0 0.0
    %5042 = vmatpush1.msra.mxu0 0.0
    %5043 = vmatprep.subr.mxu0 0.0
    %5044 = vmatpush1.msra.mxu0 0.0
    %5045 = vmatprep.subr.mxu0 0.0
    %5046 = vmatpush1.msra.mxu0 0.0
    %5047 = vmatprep.subr.mxu0 0.0
    %5048 = vmatpush1.msra.mxu0 0.0
    %5049 = vmatprep.subr.mxu0 0.0
    %5050 = vmatpush1.msra.mxu0 0.0
    %5051 = vmatprep.subr.mxu0 0.0
    %5052 = vmatpush1.msra.mxu0 0.0
    %5053 = vmatprep.subr.mxu0 0.0
    %5054 = vmatpush1.msra.mxu0 0.0
    %5055 = vmatprep.subr.mxu0 0.0
    %5056 = vmatpush1.msra.mxu0 0.0
    %5057 = vmatprep.subr.mxu0 0.0
    %5058 = vmatpush1.msra.mxu0 0.0
    %5059 = vmatprep.subr.mxu0 0.0
    %5060 = vmatpush1.msra.mxu0 0.0
    %5061 = vmatprep.subr.mxu0 0.0
    %5062 = vmatpush1.msra.mxu0 0.0
    %5063 = vmatprep.subr.mxu0 0.0
    %5064 = vmatpush1.msra.mxu0 0.0
    %5065 = vmatprep.subr.mxu0 0.0
    %5066 = vmatpush1.msra.mxu0 0.0
    %5067 = vmatprep.subr.mxu0 0.0
    %5068 = vmatpush1.msra.mxu0 0.0
    %5069 = vmatprep.subr.mxu0 0.0
    %5070 = vmatpush1.msra.mxu0 0.0
    %5071 = vmatprep.subr.mxu0 0.0
    %5072 = vmatpush1.msra.mxu0 0.0
    %5073 = vmatprep.subr.mxu0 0.0
    %5074 = vmatpush1.msra.mxu0 0.0
    %5075 = vmatprep.subr.mxu0 0.0
    %5076 = vmatpush1.msra.mxu0 0.0
    %5077 = vmatprep.subr.mxu0 0.0
    %5078 = vmatpush1.msra.mxu0 0.0
    %5079 = vmatprep.subr.mxu0 0.0
    %5080 = vmatpush1.msra.mxu0 0.0
    %5081 = vmatprep.subr.mxu0 0.0
    %5082 = vmatpush1.msra.mxu0 0.0
    %5083 = vmatprep.subr.mxu0 0.0
    %5084 = vmatpush1.msra.mxu0 0.0
    %5085 = vmatprep.subr.mxu0 0.0
    %5086 = vmatpush1.msra.mxu0 0.0
    %5087 = vmatprep.subr.mxu0 0.0
    %5088 = vmatpush1.msra.mxu0 0.0
    %5089 = vmatprep.subr.mxu0 0.0
    %5090 = vmatpush1.msra.mxu0 0.0
    %5091 = vmatprep.subr.mxu0 0.0
    %5092 = vmatpush1.msra.mxu0 0.0
    %5093 = vmatprep.subr.mxu0 0.0
    %5094 = vmatpush1.msra.mxu0 0.0
    %5095 = vmatprep.mubr.f32.mxu0 0.0
    %5096 = vmatmul.mubr.f32.gmra.mrb[0].mxu0 %v5029
    %v5097 = vpop.f32.mrb[0].mxu0
    %v5098 = vadd.f32 %v5027, %v5097
    %v5099 = vpop.f32.mrb[0].mxu0
    %5100 = vdwg.mxu0
    %v5101 = vsel %vm1189, %v5098, -inf
    %5102 = vmax.xlane.f32.xlu0 %v5101
    %v5103 = vpop.xlane.xlu0 %5102
    %v5104 = vsub.f32 %v5098, %v5103
    %v5105 = vmul.f32 %v5104, 1.442695
    %v5106 = vpow.pop %v5105
    %v5107 = vsel %vm1189, %v5106, 0.0
    %5108 = vadd.xlane.f32.xlu0 %v5107
    %v5109 = vpop.xlane.xlu0 %5108
    %v5110 = vrcp.pop %v5109
    %v5111 = vmul.f32 %v5106, %v5110
    %v5112 = vlog2.pop %v5109
    %v5113 = vmul.f32 %v5112, 0.6931472
    %v5114 = vsub.f32 %v5104, %v5113
    %v5115 = vmul.f32 %v5111, %v5114
    %v5116 = vsel %vm1189, %v5115, 0.0
    %5117 = vadd.xlane.f32.xlu0 %v5116
    %v5118 = vpop.xlane.xlu0 %5117
    %v5119 = vsub.f32 %v4793, %v5118
    %v5121 = vrot.slane %v5114, 4
    %v5123 = vmul.f32 %v69, %v5121
    %v5124 = vsel %vm2519, %v5123, 0.0
    %5125 = vadd.xlane.f32.xlu0 %v5124
    %v5126 = vpop.xlane.xlu0 %5125
    %v5128 = vrot.slane %v5126, 4
    %v5130 = vadd.f32 %v4804, %v5128
    %5132 = vrot.lane.b32.xlu0 %v4906, 96
    %v5133 = vpop.permute.xlu0 %5132
    %v5135 = vsel %vm72, %v5014, %v5133
    %v5137 = vsel %vm74, %v5135, 0
    %5139 = vmatprep.subr.mxu0 0.0
    %5140 = vmatpush1.msra.mxu0 %v37
    %5141 = vmatprep.subr.mxu0 0.0
    %5142 = vmatpush1.msra.mxu0 %v38
    %5143 = vmatprep.subr.mxu0 0.0
    %5144 = vmatpush1.msra.mxu0 %v39
    %5145 = vmatprep.subr.mxu0 0.0
    %5146 = vmatpush1.msra.mxu0 %v40
    %5147 = vmatprep.subr.mxu0 0.0
    %5148 = vmatpush1.msra.mxu0 %v41
    %5149 = vmatprep.subr.mxu0 0.0
    %5150 = vmatpush1.msra.mxu0 %v42
    %5151 = vmatprep.subr.mxu0 0.0
    %5152 = vmatpush1.msra.mxu0 %v43
    %5153 = vmatprep.subr.mxu0 0.0
    %5154 = vmatpush1.msra.mxu0 %v44
    %5155 = vmatprep.subr.mxu0 0.0
    %5156 = vmatpush1.msra.mxu0 0.0
    %5157 = vmatprep.subr.mxu0 0.0
    %5158 = vmatpush1.msra.mxu0 0.0
    %5159 = vmatprep.subr.mxu0 0.0
    %5160 = vmatpush1.msra.mxu0 0.0
    %5161 = vmatprep.subr.mxu0 0.0
    %5162 = vmatpush1.msra.mxu0 0.0
    %5163 = vmatprep.subr.mxu0 0.0
    %5164 = vmatpush1.msra.mxu0 0.0
    %5165 = vmatprep.subr.mxu0 0.0
    %5166 = vmatpush1.msra.mxu0 0.0
    %5167 = vmatprep.subr.mxu0 0.0
    %5168 = vmatpush1.msra.mxu0 0.0
    %5169 = vmatprep.subr.mxu0 0.0
    %5170 = vmatpush1.msra.mxu0 0.0
    %5171 = vmatprep.subr.mxu0 0.0
    %5172 = vmatpush1.msra.mxu0 0.0
    %5173 = vmatprep.subr.mxu0 0.0
    %5174 = vmatpush1.msra.mxu0 0.0
    %5175 = vmatprep.subr.mxu0 0.0
    %5176 = vmatpush1.msra.mxu0 0.0
    %5177 = vmatprep.subr.mxu0 0.0
    %5178 = vmatpush1.msra.mxu0 0.0
    %5179 = vmatprep.subr.mxu0 0.0
    %5180 = vmatpush1.msra.mxu0 0.0
    %5181 = vmatprep.subr.mxu0 0.0
    %5182 = vmatpush1.msra.mxu0 0.0
    %5183 = vmatprep.subr.mxu0 0.0
    %5184 = vmatpush1.msra.mxu0 0.0
    %5185 = vmatprep.subr.mxu0 0.0
    %5186 = vmatpush1.msra.mxu0 0.0
    %5187 = vmatprep.subr.mxu0 0.0
    %5188 = vmatpush1.msra.mxu0 0.0
    %5189 = vmatprep.subr.mxu0 0.0
    %5190 = vmatpush1.msra.mxu0 0.0
    %5191 = vmatprep.subr.mxu0 0.0
    %5192 = vmatpush1.msra.mxu0 0.0
    %5193 = vmatprep.subr.mxu0 0.0
    %5194 = vmatpush1.msra.mxu0 0.0
    %5195 = vmatprep.subr.mxu0 0.0
    %5196 = vmatpush1.msra.mxu0 0.0
    %5197 = vmatprep.subr.mxu0 0.0
    %5198 = vmatpush1.msra.mxu0 0.0
    %5199 = vmatprep.subr.mxu0 0.0
    %5200 = vmatpush1.msra.mxu0 0.0
    %5201 = vmatprep.subr.mxu0 0.0
    %5202 = vmatpush1.msra.mxu0 0.0
    %5203 = vmatprep.mubr.f32.mxu0 0.0
    %5204 = vmatmul.mubr.f32.gmra.mrb[0].mxu0 %v5137
    %v5205 = vpop.f32.mrb[0].mxu0
    %v5206 = vadd.f32 %v54, %v5205
    %v5207 = vpop.f32.mrb[0].mxu0
    %5208 = vdwg.mxu0
    %v5209 = vxor.u32 %v5206, 2147483648
    %v5210 = vmul.f32 %v5209, 1.442695
    %v5211 = vpow.pop %v5210
    %v5212 = vadd.f32 %v5211, 1.0
    %v5213 = vrcp.pop %v5212
    %v5214 = vmul.f32 1.0, %v5213
    %v5215 = vtanh.pop %v5206
    %v5216 = vmul.f32 %v5214, %v4900
    %5218 = vrot.lane.b32.xlu0 %v5215, 32
    %v5219 = vpop.permute.xlu0 %5218
    %v5221 = vmul.f32 %v5214, %v5219
    %5223 = vrot.lane.b32.xlu0 %v5221, 32
    %v5224 = vpop.permute.xlu0 %5223
    %v5226 = vadd.f32 %v5216, %v5224
    %v5227 = vtanh.pop %v5226
    %5229 = vrot.lane.b32.xlu0 %v5227, 32
    %v5230 = vpop.permute.xlu0 %5229
    %v5232 = vmul.f32 %v5214, %v5230
    %5234 = vrot.lane.b32.xlu0 %v5232, 64
    %v5235 = vpop.permute.xlu0 %5234
    %5237 = vrot.lane.b32.xlu0 %v5011, 96
    %v5238 = vpop.permute.xlu0 %5237
    %v5240 = vsel %vm72, %v5235, %v5238
    %v5242 = vsel %vm74, %v5240, 0
    %5244 = vmatprep.subr.mxu0 0.0
    %5245 = vmatpush1.msra.mxu0 %v46
    %5246 = vmatprep.subr.mxu0 0.0
    %5247 = vmatpush1.msra.mxu0 %v47
    %5248 = vmatprep.subr.mxu0 0.0
    %5249 = vmatpush1.msra.mxu0 %v48
    %5250 = vmatprep.subr.mxu0 0.0
    %5251 = vmatpush1.msra.mxu0 %v49
    %5252 = vmatprep.subr.mxu0 0.0
    %5253 = vmatpush1.msra.mxu0 %v50
    %5254 = vmatprep.subr.mxu0 0.0
    %5255 = vmatpush1.msra.mxu0 %v51
    %5256 = vmatprep.subr.mxu0 0.0
    %5257 = vmatpush1.msra.mxu0 %v52
    %5258 = vmatprep.subr.mxu0 0.0
    %5259 = vmatpush1.msra.mxu0 %v53
    %5260 = vmatprep.subr.mxu0 0.0
    %5261 = vmatpush1.msra.mxu0 0.0
    %5262 = vmatprep.subr.mxu0 0.0
    %5263 = vmatpush1.msra.mxu0 0.0
    %5264 = vmatprep.subr.mxu0 0.0
    %5265 = vmatpush1.msra.mxu0 0.0
    %5266 = vmatprep.subr.mxu0 0.0
    %5267 = vmatpush1.msra.mxu0 0.0
    %5268 = vmatprep.subr.mxu0 0.0
    %5269 = vmatpush1.msra.mxu0 0.0
    %5270 = vmatprep.subr.mxu0 0.0
    %5271 = vmatpush1.msra.mxu0 0.0
    %5272 = vmatprep.subr.mxu0 0.0
    %5273 = vmatpush1.msra.mxu0 0.0
    %5274 = vmatprep.subr.mxu0 0.0
    %5275 = vmatpush1.msra.mxu0 0.0
    %5276 = vmatprep.subr.mxu0 0.0
    %5277 = vmatpush1.msra.mxu0 0.0
    %5278 = vmatprep.subr.mxu0 0.0
    %5279 = vmatpush1.msra.mxu0 0.0
    %5280 = vmatprep.subr.mxu0 0.0
    %5281 = vmatpush1.msra.mxu0 0.0
    %5282 = vmatprep.subr.mxu0 0.0
    %5283 = vmatpush1.msra.mxu0 0.0
    %5284 = vmatprep.subr.mxu0 0.0
    %5285 = vmatpush1.msra.mxu0 0.0
    %5286 = vmatprep.subr.mxu0 0.0
    %5287 = vmatpush1.msra.mxu0 0.0
    %5288 = vmatprep.subr.mxu0 0.0
    %5289 = vmatpush1.msra.mxu0 0.0
    %5290 = vmatprep.subr.mxu0 0.0
    %5291 = vmatpush1.msra.mxu0 0.0
    %5292 = vmatprep.subr.mxu0 0.0
    %5293 = vmatpush1.msra.mxu0 0.0
    %5294 = vmatprep.subr.mxu0 0.0
    %5295 = vmatpush1.msra.mxu0 0.0
    %5296 = vmatprep.subr.mxu0 0.0
    %5297 = vmatpush1.msra.mxu0 0.0
    %5298 = vmatprep.subr.mxu0 0.0
    %5299 = vmatpush1.msra.mxu0 0.0
    %5300 = vmatprep.subr.mxu0 0.0
    %5301 = vmatpush1.msra.mxu0 0.0
    %5302 = vmatprep.subr.mxu0 0.0
    %5303 = vmatpush1.msra.mxu0 0.0
    %5304 = vmatprep.subr.mxu0 0.0
    %5305 = vmatpush1.msra.mxu0 0.0
    %5306 = vmatprep.subr.mxu0 0.0
    %5307 = vmatpush1.msra.mxu0 0.0
    %5308 = vmatprep.mubr.f32.mxu0 0.0
    %5309 = vmatmul.mubr.f32.gmra.mrb[0].mxu0 %v5242
    %v5310 = vpop.f32.mrb[0].mxu0
    %v5311 = vadd.f32 %v56, %v5310
    %v5312 = vpop.f32.mrb[0].mxu0
    %5313 = vdwg.mxu0
    %v5314 = vxor.u32 %v5311, 2147483648
    %v5315 = vmul.f32 %v5314, 1.442695
    %v5316 = vpow.pop %v5315
    %v5317 = vadd.f32 %v5316, 1.0
    %v5318 = vrcp.pop %v5317
    %v5319 = vmul.f32 1.0, %v5318
    %v5320 = vtanh.pop %v5311
    %v5321 = vmul.f32 %v5319, %v5005
    %5323 = vrot.lane.b32.xlu0 %v5320, 32
    %v5324 = vpop.permute.xlu0 %5323
    %v5326 = vmul.f32 %v5319, %v5324
    %5328 = vrot.lane.b32.xlu0 %v5326, 32
    %v5329 = vpop.permute.xlu0 %5328
    %v5331 = vadd.f32 %v5321, %v5329
    %v5332 = vtanh.pop %v5331
    %5334 = vrot.lane.b32.xlu0 %v5332, 32
    %v5335 = vpop.permute.xlu0 %5334
    %v5337 = vmul.f32 %v5319, %v5335
    %5339 = vrot.lane.b32.xlu0 %v5337, 64
    %v5340 = vpop.permute.xlu0 %5339
    %5341 = vrot.lane.b32.xlu0 %v57, 24
    %v5342 = vpop.permute.xlu0 %5341
    %5343 = vrot.lane.b32.xlu0 %v59, 24
    %v5344 = vpop.permute.xlu0 %5343
    %5345 = vrot.lane.b32.xlu0 %v61, 24
    %v5346 = vpop.permute.xlu0 %5345
    %5347 = vrot.lane.b32.xlu0 %v63, 24
    %v5348 = vpop.permute.xlu0 %5347
    %v5353 = vrot.slane %v66, 5
    %v5355 = vsel %vm72, %v5340, 0
    %5357 = vmatprep.subr.mxu0 0.0
    %5358 = vmatpush1.msra.mxu0 %v5342
    %5359 = vmatprep.subr.mxu0 0.0
    %5360 = vmatpush1.msra.mxu0 %v5344
    %5361 = vmatprep.subr.mxu0 0.0
    %5362 = vmatpush1.msra.mxu0 %v5346
    %5363 = vmatprep.subr.mxu0 0.0
    %5364 = vmatpush1.msra.mxu0 %v5348
    %5365 = vmatprep.subr.mxu0 0.0
    %5366 = vmatpush1.msra.mxu0 0.0
    %5367 = vmatprep.subr.mxu0 0.0
    %5368 = vmatpush1.msra.mxu0 0.0
    %5369 = vmatprep.subr.mxu0 0.0
    %5370 = vmatpush1.msra.mxu0 0.0
    %5371 = vmatprep.subr.mxu0 0.0
    %5372 = vmatpush1.msra.mxu0 0.0
    %5373 = vmatprep.subr.mxu0 0.0
    %5374 = vmatpush1.msra.mxu0 0.0
    %5375 = vmatprep.subr.mxu0 0.0
    %5376 = vmatpush1.msra.mxu0 0.0
    %5377 = vmatprep.subr.mxu0 0.0
    %5378 = vmatpush1.msra.mxu0 0.0
    %5379 = vmatprep.subr.mxu0 0.0
    %5380 = vmatpush1.msra.mxu0 0.0
    %5381 = vmatprep.subr.mxu0 0.0
    %5382 = vmatpush1.msra.mxu0 0.0
    %5383 = vmatprep.subr.mxu0 0.0
    %5384 = vmatpush1.msra.mxu0 0.0
    %5385 = vmatprep.subr.mxu0 0.0
    %5386 = vmatpush1.msra.mxu0 0.0
    %5387 = vmatprep.subr.mxu0 0.0
    %5388 = vmatpush1.msra.mxu0 0.0
    %5389 = vmatprep.subr.mxu0 0.0
    %5390 = vmatpush1.msra.mxu0 0.0
    %5391 = vmatprep.subr.mxu0 0.0
    %5392 = vmatpush1.msra.mxu0 0.0
    %5393 = vmatprep.subr.mxu0 0.0
    %5394 = vmatpush1.msra.mxu0 0.0
    %5395 = vmatprep.subr.mxu0 0.0
    %5396 = vmatpush1.msra.mxu0 0.0
    %5397 = vmatprep.subr.mxu0 0.0
    %5398 = vmatpush1.msra.mxu0 0.0
    %5399 = vmatprep.subr.mxu0 0.0
    %5400 = vmatpush1.msra.mxu0 0.0
    %5401 = vmatprep.subr.mxu0 0.0
    %5402 = vmatpush1.msra.mxu0 0.0
    %5403 = vmatprep.subr.mxu0 0.0
    %5404 = vmatpush1.msra.mxu0 0.0
    %5405 = vmatprep.subr.mxu0 0.0
    %5406 = vmatpush1.msra.mxu0 0.0
    %5407 = vmatprep.subr.mxu0 0.0
    %5408 = vmatpush1.msra.mxu0 0.0
    %5409 = vmatprep.subr.mxu0 0.0
    %5410 = vmatpush1.msra.mxu0 0.0
    %5411 = vmatprep.subr.mxu0 0.0
    %5412 = vmatpush1.msra.mxu0 0.0
    %5413 = vmatprep.subr.mxu0 0.0
    %5414 = vmatpush1.msra.mxu0 0.0
    %5415 = vmatprep.subr.mxu0 0.0
    %5416 = vmatpush1.msra.mxu0 0.0
    %5417 = vmatprep.subr.mxu0 0.0
    %5418 = vmatpush1.msra.mxu0 0.0
    %5419 = vmatprep.subr.mxu0 0.0
    %5420 = vmatpush1.msra.mxu0 0.0
    %5421 = vmatprep.mubr.f32.mxu0 0.0
    %5422 = vmatmul.mubr.f32.gmra.mrb[0].mxu0 %v5355
    %v5423 = vpop.f32.mrb[0].mxu0
    %v5424 = vadd.f32 %v5353, %v5423
    %v5425 = vpop.f32.mrb[0].mxu0
    %5426 = vdwg.mxu0
    %v5427 = vsel %vm1189, %v5424, -inf
    %5428 = vmax.xlane.f32.xlu0 %v5427
    %v5429 = vpop.xlane.xlu0 %5428
    %v5430 = vsub.f32 %v5424, %v5429
    %v5431 = vmul.f32 %v5430, 1.442695
    %v5432 = vpow.pop %v5431
    %v5433 = vsel %vm1189, %v5432, 0.0
    %5434 = vadd.xlane.f32.xlu0 %v5433
    %v5435 = vpop.xlane.xlu0 %5434
    %v5436 = vrcp.pop %v5435
    %v5437 = vmul.f32 %v5432, %v5436
    %v5438 = vlog2.pop %v5435
    %v5439 = vmul.f32 %v5438, 0.6931472
    %v5440 = vsub.f32 %v5430, %v5439
    %v5441 = vmul.f32 %v5437, %v5440
    %v5442 = vsel %vm1189, %v5441, 0.0
    %5443 = vadd.xlane.f32.xlu0 %v5442
    %v5444 = vpop.xlane.xlu0 %5443
    %v5445 = vsub.f32 %v5119, %v5444
    %v5447 = vrot.slane %v5440, 3
    %v5449 = vmul.f32 %v69, %v5447
    %v5450 = vsel %vm2846, %v5449, 0.0
    %5451 = vadd.xlane.f32.xlu0 %v5450
    %v5452 = vpop.xlane.xlu0 %5451
    %v5454 = vrot.slane %v5452, 5
    %v5456 = vadd.f32 %v5130, %v5454
    %5458 = vrot.lane.b32.xlu0 %v5232, 96
    %v5459 = vpop.permute.xlu0 %5458
    %v5461 = vsel %vm72, %v5340, %v5459
    %v5463 = vsel %vm74, %v5461, 0
    %5465 = vmatprep.subr.mxu0 0.0
    %5466 = vmatpush1.msra.mxu0 %v37
    %5467 = vmatprep.subr.mxu0 0.0
    %5468 = vmatpush1.msra.mxu0 %v38
    %5469 = vmatprep.subr.mxu0 0.0
    %5470 = vmatpush1.msra.mxu0 %v39
    %5471 = vmatprep.subr.mxu0 0.0
    %5472 = vmatpush1.msra.mxu0 %v40
    %5473 = vmatprep.subr.mxu0 0.0
    %5474 = vmatpush1.msra.mxu0 %v41
    %5475 = vmatprep.subr.mxu0 0.0
    %5476 = vmatpush1.msra.mxu0 %v42
    %5477 = vmatprep.subr.mxu0 0.0
    %5478 = vmatpush1.msra.mxu0 %v43
    %5479 = vmatprep.subr.mxu0 0.0
    %5480 = vmatpush1.msra.mxu0 %v44
    %5481 = vmatprep.subr.mxu0 0.0
    %5482 = vmatpush1.msra.mxu0 0.0
    %5483 = vmatprep.subr.mxu0 0.0
    %5484 = vmatpush1.msra.mxu0 0.0
    %5485 = vmatprep.subr.mxu0 0.0
    %5486 = vmatpush1.msra.mxu0 0.0
    %5487 = vmatprep.subr.mxu0 0.0
    %5488 = vmatpush1.msra.mxu0 0.0
    %5489 = vmatprep.subr.mxu0 0.0
    %5490 = vmatpush1.msra.mxu0 0.0
    %5491 = vmatprep.subr.mxu0 0.0
    %5492 = vmatpush1.msra.mxu0 0.0
    %5493 = vmatprep.subr.mxu0 0.0
    %5494 = vmatpush1.msra.mxu0 0.0
    %5495 = vmatprep.subr.mxu0 0.0
    %5496 = vmatpush1.msra.mxu0 0.0
    %5497 = vmatprep.subr.mxu0 0.0
    %5498 = vmatpush1.msra.mxu0 0.0
    %5499 = vmatprep.subr.mxu0 0.0
    %5500 = vmatpush1.msra.mxu0 0.0
    %5501 = vmatprep.subr.mxu0 0.0
    %5502 = vmatpush1.msra.mxu0 0.0
    %5503 = vmatprep.subr.mxu0 0.0
    %5504 = vmatpush1.msra.mxu0 0.0
    %5505 = vmatprep.subr.mxu0 0.0
    %5506 = vmatpush1.msra.mxu0 0.0
    %5507 = vmatprep.subr.mxu0 0.0
    %5508 = vmatpush1.msra.mxu0 0.0
    %5509 = vmatprep.subr.mxu0 0.0
    %5510 = vmatpush1.msra.mxu0 0.0
    %5511 = vmatprep.subr.mxu0 0.0
    %5512 = vmatpush1.msra.mxu0 0.0
    %5513 = vmatprep.subr.mxu0 0.0
    %5514 = vmatpush1.msra.mxu0 0.0
    %5515 = vmatprep.subr.mxu0 0.0
    %5516 = vmatpush1.msra.mxu0 0.0
    %5517 = vmatprep.subr.mxu0 0.0
    %5518 = vmatpush1.msra.mxu0 0.0
    %5519 = vmatprep.subr.mxu0 0.0
    %5520 = vmatpush1.msra.mxu0 0.0
    %5521 = vmatprep.subr.mxu0 0.0
    %5522 = vmatpush1.msra.mxu0 0.0
    %5523 = vmatprep.subr.mxu0 0.0
    %5524 = vmatpush1.msra.mxu0 0.0
    %5525 = vmatprep.subr.mxu0 0.0
    %5526 = vmatpush1.msra.mxu0 0.0
    %5527 = vmatprep.subr.mxu0 0.0
    %5528 = vmatpush1.msra.mxu0 0.0
    %5529 = vmatprep.mubr.f32.mxu0 0.0
    %5530 = vmatmul.mubr.f32.gmra.mrb[0].mxu0 %v5463
    %v5531 = vpop.f32.mrb[0].mxu0
    %v5532 = vadd.f32 %v54, %v5531
    %v5533 = vpop.f32.mrb[0].mxu0
    %5534 = vdwg.mxu0
    %v5535 = vxor.u32 %v5532, 2147483648
    %v5536 = vmul.f32 %v5535, 1.442695
    %v5537 = vpow.pop %v5536
    %v5538 = vadd.f32 %v5537, 1.0
    %v5539 = vrcp.pop %v5538
    %v5540 = vmul.f32 1.0, %v5539
    %v5541 = vtanh.pop %v5532
    %v5542 = vmul.f32 %v5540, %v5226
    %5544 = vrot.lane.b32.xlu0 %v5541, 32
    %v5545 = vpop.permute.xlu0 %5544
    %v5547 = vmul.f32 %v5540, %v5545
    %5549 = vrot.lane.b32.xlu0 %v5547, 32
    %v5550 = vpop.permute.xlu0 %5549
    %v5552 = vadd.f32 %v5542, %v5550
    %v5553 = vtanh.pop %v5552
    %5555 = vrot.lane.b32.xlu0 %v5553, 32
    %v5556 = vpop.permute.xlu0 %5555
    %v5558 = vmul.f32 %v5540, %v5556
    %5560 = vrot.lane.b32.xlu0 %v5558, 64
    %v5561 = vpop.permute.xlu0 %5560
    %5563 = vrot.lane.b32.xlu0 %v5337, 96
    %v5564 = vpop.permute.xlu0 %5563
    %v5566 = vsel %vm72, %v5561, %v5564
    %v5568 = vsel %vm74, %v5566, 0
    %5570 = vmatprep.subr.mxu0 0.0
    %5571 = vmatpush1.msra.mxu0 %v46
    %5572 = vmatprep.subr.mxu0 0.0
    %5573 = vmatpush1.msra.mxu0 %v47
    %5574 = vmatprep.subr.mxu0 0.0
    %5575 = vmatpush1.msra.mxu0 %v48
    %5576 = vmatprep.subr.mxu0 0.0
    %5577 = vmatpush1.msra.mxu0 %v49
    %5578 = vmatprep.subr.mxu0 0.0
    %5579 = vmatpush1.msra.mxu0 %v50
    %5580 = vmatprep.subr.mxu0 0.0
    %5581 = vmatpush1.msra.mxu0 %v51
    %5582 = vmatprep.subr.mxu0 0.0
    %5583 = vmatpush1.msra.mxu0 %v52
    %5584 = vmatprep.subr.mxu0 0.0
    %5585 = vmatpush1.msra.mxu0 %v53
    %5586 = vmatprep.subr.mxu0 0.0
    %5587 = vmatpush1.msra.mxu0 0.0
    %5588 = vmatprep.subr.mxu0 0.0
    %5589 = vmatpush1.msra.mxu0 0.0
    %5590 = vmatprep.subr.mxu0 0.0
    %5591 = vmatpush1.msra.mxu0 0.0
    %5592 = vmatprep.subr.mxu0 0.0
    %5593 = vmatpush1.msra.mxu0 0.0
    %5594 = vmatprep.subr.mxu0 0.0
    %5595 = vmatpush1.msra.mxu0 0.0
    %5596 = vmatprep.subr.mxu0 0.0
    %5597 = vmatpush1.msra.mxu0 0.0
    %5598 = vmatprep.subr.mxu0 0.0
    %5599 = vmatpush1.msra.mxu0 0.0
    %5600 = vmatprep.subr.mxu0 0.0
    %5601 = vmatpush1.msra.mxu0 0.0
    %5602 = vmatprep.subr.mxu0 0.0
    %5603 = vmatpush1.msra.mxu0 0.0
    %5604 = vmatprep.subr.mxu0 0.0
    %5605 = vmatpush1.msra.mxu0 0.0
    %5606 = vmatprep.subr.mxu0 0.0
    %5607 = vmatpush1.msra.mxu0 0.0
    %5608 = vmatprep.subr.mxu0 0.0
    %5609 = vmatpush1.msra.mxu0 0.0
    %5610 = vmatprep.subr.mxu0 0.0
    %5611 = vmatpush1.msra.mxu0 0.0
    %5612 = vmatprep.subr.mxu0 0.0
    %5613 = vmatpush1.msra.mxu0 0.0
    %5614 = vmatprep.subr.mxu0 0.0
    %5615 = vmatpush1.msra.mxu0 0.0
    %5616 = vmatprep.subr.mxu0 0.0
    %5617 = vmatpush1.msra.mxu0 0.0
    %5618 = vmatprep.subr.mxu0 0.0
    %5619 = vmatpush1.msra.mxu0 0.0
    %5620 = vmatprep.subr.mxu0 0.0
    %5621 = vmatpush1.msra.mxu0 0.0
    %5622 = vmatprep.subr.mxu0 0.0
    %5623 = vmatpush1.msra.mxu0 0.0
    %5624 = vmatprep.subr.mxu0 0.0
    %5625 = vmatpush1.msra.mxu0 0.0
    %5626 = vmatprep.subr.mxu0 0.0
    %5627 = vmatpush1.msra.mxu0 0.0
    %5628 = vmatprep.subr.mxu0 0.0
    %5629 = vmatpush1.msra.mxu0 0.0
    %5630 = vmatprep.subr.mxu0 0.0
    %5631 = vmatpush1.msra.mxu0 0.0
    %5632 = vmatprep.subr.mxu0 0.0
    %5633 = vmatpush1.msra.mxu0 0.0
    %5634 = vmatprep.mubr.f32.mxu0 0.0
    %5635 = vmatmul.mubr.f32.gmra.mrb[0].mxu0 %v5568
    %v5636 = vpop.f32.mrb[0].mxu0
    %v5637 = vadd.f32 %v56, %v5636
    %v5638 = vpop.f32.mrb[0].mxu0
    %5639 = vdwg.mxu0
    %v5640 = vxor.u32 %v5637, 2147483648
    %v5641 = vmul.f32 %v5640, 1.442695
    %v5642 = vpow.pop %v5641
    %v5643 = vadd.f32 %v5642, 1.0
    %v5644 = vrcp.pop %v5643
    %v5645 = vmul.f32 1.0, %v5644
    %v5646 = vtanh.pop %v5637
    %v5647 = vmul.f32 %v5645, %v5331
    %5649 = vrot.lane.b32.xlu0 %v5646, 32
    %v5650 = vpop.permute.xlu0 %5649
    %v5652 = vmul.f32 %v5645, %v5650
    %5654 = vrot.lane.b32.xlu0 %v5652, 32
    %v5655 = vpop.permute.xlu0 %5654
    %v5657 = vadd.f32 %v5647, %v5655
    %v5658 = vtanh.pop %v5657
    %5660 = vrot.lane.b32.xlu0 %v5658, 32
    %v5661 = vpop.permute.xlu0 %5660
    %v5663 = vmul.f32 %v5645, %v5661
    %5665 = vrot.lane.b32.xlu0 %v5663, 64
    %v5666 = vpop.permute.xlu0 %5665
    %5667 = vrot.lane.b32.xlu0 %v57, 16
    %v5668 = vpop.permute.xlu0 %5667
    %5669 = vrot.lane.b32.xlu0 %v59, 16
    %v5670 = vpop.permute.xlu0 %5669
    %5671 = vrot.lane.b32.xlu0 %v61, 16
    %v5672 = vpop.permute.xlu0 %5671
    %5673 = vrot.lane.b32.xlu0 %v63, 16
    %v5674 = vpop.permute.xlu0 %5673
    %v5679 = vrot.slane %v66, 6
    %v5681 = vsel %vm72, %v5666, 0
    %5683 = vmatprep.subr.mxu0 0.0
    %5684 = vmatpush1.msra.mxu0 %v5668
    %5685 = vmatprep.subr.mxu0 0.0
    %5686 = vmatpush1.msra.mxu0 %v5670
    %5687 = vmatprep.subr.mxu0 0.0
    %5688 = vmatpush1.msra.mxu0 %v5672
    %5689 = vmatprep.subr.mxu0 0.0
    %5690 = vmatpush1.msra.mxu0 %v5674
    %5691 = vmatprep.subr.mxu0 0.0
    %5692 = vmatpush1.msra.mxu0 0.0
    %5693 = vmatprep.subr.mxu0 0.0
    %5694 = vmatpush1.msra.mxu0 0.0
    %5695 = vmatprep.subr.mxu0 0.0
    %5696 = vmatpush1.msra.mxu0 0.0
    %5697 = vmatprep.subr.mxu0 0.0
    %5698 = vmatpush1.msra.mxu0 0.0
    %5699 = vmatprep.subr.mxu0 0.0
    %5700 = vmatpush1.msra.mxu0 0.0
    %5701 = vmatprep.subr.mxu0 0.0
    %5702 = vmatpush1.msra.mxu0 0.0
    %5703 = vmatprep.subr.mxu0 0.0
    %5704 = vmatpush1.msra.mxu0 0.0
    %5705 = vmatprep.subr.mxu0 0.0
    %5706 = vmatpush1.msra.mxu0 0.0
    %5707 = vmatprep.subr.mxu0 0.0
    %5708 = vmatpush1.msra.mxu0 0.0
    %5709 = vmatprep.subr.mxu0 0.0
    %5710 = vmatpush1.msra.mxu0 0.0
    %5711 = vmatprep.subr.mxu0 0.0
    %5712 = vmatpush1.msra.mxu0 0.0
    %5713 = vmatprep.subr.mxu0 0.0
    %5714 = vmatpush1.msra.mxu0 0.0
    %5715 = vmatprep.subr.mxu0 0.0
    %5716 = vmatpush1.msra.mxu0 0.0
    %5717 = vmatprep.subr.mxu0 0.0
    %5718 = vmatpush1.msra.mxu0 0.0
    %5719 = vmatprep.subr.mxu0 0.0
    %5720 = vmatpush1.msra.mxu0 0.0
    %5721 = vmatprep.subr.mxu0 0.0
    %5722 = vmatpush1.msra.mxu0 0.0
    %5723 = vmatprep.subr.mxu0 0.0
    %5724 = vmatpush1.msra.mxu0 0.0
    %5725 = vmatprep.subr.mxu0 0.0
    %5726 = vmatpush1.msra.mxu0 0.0
    %5727 = vmatprep.subr.mxu0 0.0
    %5728 = vmatpush1.msra.mxu0 0.0
    %5729 = vmatprep.subr.mxu0 0.0
    %5730 = vmatpush1.msra.mxu0 0.0
    %5731 = vmatprep.subr.mxu0 0.0
    %5732 = vmatpush1.msra.mxu0 0.0
    %5733 = vmatprep.subr.mxu0 0.0
    %5734 = vmatpush1.msra.mxu0 0.0
    %5735 = vmatprep.subr.mxu0 0.0
    %5736 = vmatpush1.msra.mxu0 0.0
    %5737 = vmatprep.subr.mxu0 0.0
    %5738 = vmatpush1.msra.mxu0 0.0
    %5739 = vmatprep.subr.mxu0 0.0
    %5740 = vmatpush1.msra.mxu0 0.0
    %5741 = vmatprep.subr.mxu0 0.0
    %5742 = vmatpush1.msra.mxu0 0.0
    %5743 = vmatprep.subr.mxu0 0.0
    %5744 = vmatpush1.msra.mxu0 0.0
    %5745 = vmatprep.subr.mxu0 0.0
    %5746 = vmatpush1.msra.mxu0 0.0
    %5747 = vmatprep.mubr.f32.mxu0 0.0
    %5748 = vmatmul.mubr.f32.gmra.mrb[0].mxu0 %v5681
    %v5749 = vpop.f32.mrb[0].mxu0
    %v5750 = vadd.f32 %v5679, %v5749
    %v5751 = vpop.f32.mrb[0].mxu0
    %5752 = vdwg.mxu0
    %v5753 = vsel %vm1189, %v5750, -inf
    %5754 = vmax.xlane.f32.xlu0 %v5753
    %v5755 = vpop.xlane.xlu0 %5754
    %v5756 = vsub.f32 %v5750, %v5755
    %v5757 = vmul.f32 %v5756, 1.442695
    %v5758 = vpow.pop %v5757
    %v5759 = vsel %vm1189, %v5758, 0.0
    %5760 = vadd.xlane.f32.xlu0 %v5759
    %v5761 = vpop.xlane.xlu0 %5760
    %v5762 = vrcp.pop %v5761
    %v5763 = vmul.f32 %v5758, %v5762
    %v5764 = vlog2.pop %v5761
    %v5765 = vmul.f32 %v5764, 0.6931472
    %v5766 = vsub.f32 %v5756, %v5765
    %v5767 = vmul.f32 %v5763, %v5766
    %v5768 = vsel %vm1189, %v5767, 0.0
    %5769 = vadd.xlane.f32.xlu0 %v5768
    %v5770 = vpop.xlane.xlu0 %5769
    %v5771 = vsub.f32 %v5445, %v5770
    %v5773 = vrot.slane %v5766, 2
    %v5775 = vmul.f32 %v69, %v5773
    %v5776 = vsel %vm3173, %v5775, 0.0
    %5777 = vadd.xlane.f32.xlu0 %v5776
    %v5778 = vpop.xlane.xlu0 %5777
    %v5780 = vrot.slane %v5778, 6
    %v5782 = vadd.f32 %v5456, %v5780
    %5784 = vrot.lane.b32.xlu0 %v5558, 96
    %v5785 = vpop.permute.xlu0 %5784
    %v5787 = vsel %vm72, %v5666, %v5785
    %v5789 = vsel %vm74, %v5787, 0
    %5791 = vmatprep.subr.mxu0 0.0
    %5792 = vmatpush1.msra.mxu0 %v37
    %5793 = vmatprep.subr.mxu0 0.0
    %5794 = vmatpush1.msra.mxu0 %v38
    %5795 = vmatprep.subr.mxu0 0.0
    %5796 = vmatpush1.msra.mxu0 %v39
    %5797 = vmatprep.subr.mxu0 0.0
    %5798 = vmatpush1.msra.mxu0 %v40
    %5799 = vmatprep.subr.mxu0 0.0
    %5800 = vmatpush1.msra.mxu0 %v41
    %5801 = vmatprep.subr.mxu0 0.0
    %5802 = vmatpush1.msra.mxu0 %v42
    %5803 = vmatprep.subr.mxu0 0.0
    %5804 = vmatpush1.msra.mxu0 %v43
    %5805 = vmatprep.subr.mxu0 0.0
    %5806 = vmatpush1.msra.mxu0 %v44
    %5807 = vmatprep.subr.mxu0 0.0
    %5808 = vmatpush1.msra.mxu0 0.0
    %5809 = vmatprep.subr.mxu0 0.0
    %5810 = vmatpush1.msra.mxu0 0.0
    %5811 = vmatprep.subr.mxu0 0.0
    %5812 = vmatpush1.msra.mxu0 0.0
    %5813 = vmatprep.subr.mxu0 0.0
    %5814 = vmatpush1.msra.mxu0 0.0
    %5815 = vmatprep.subr.mxu0 0.0
    %5816 = vmatpush1.msra.mxu0 0.0
    %5817 = vmatprep.subr.mxu0 0.0
    %5818 = vmatpush1.msra.mxu0 0.0
    %5819 = vmatprep.subr.mxu0 0.0
    %5820 = vmatpush1.msra.mxu0 0.0
    %5821 = vmatprep.subr.mxu0 0.0
    %5822 = vmatpush1.msra.mxu0 0.0
    %5823 = vmatprep.subr.mxu0 0.0
    %5824 = vmatpush1.msra.mxu0 0.0
    %5825 = vmatprep.subr.mxu0 0.0
    %5826 = vmatpush1.msra.mxu0 0.0
    %5827 = vmatprep.subr.mxu0 0.0
    %5828 = vmatpush1.msra.mxu0 0.0
    %5829 = vmatprep.subr.mxu0 0.0
    %5830 = vmatpush1.msra.mxu0 0.0
    %5831 = vmatprep.subr.mxu0 0.0
    %5832 = vmatpush1.msra.mxu0 0.0
    %5833 = vmatprep.subr.mxu0 0.0
    %5834 = vmatpush1.msra.mxu0 0.0
    %5835 = vmatprep.subr.mxu0 0.0
    %5836 = vmatpush1.msra.mxu0 0.0
    %5837 = vmatprep.subr.mxu0 0.0
    %5838 = vmatpush1.msra.mxu0 0.0
    %5839 = vmatprep.subr.mxu0 0.0
    %5840 = vmatpush1.msra.mxu0 0.0
    %5841 = vmatprep.subr.mxu0 0.0
    %5842 = vmatpush1.msra.mxu0 0.0
    %5843 = vmatprep.subr.mxu0 0.0
    %5844 = vmatpush1.msra.mxu0 0.0
    %5845 = vmatprep.subr.mxu0 0.0
    %5846 = vmatpush1.msra.mxu0 0.0
    %5847 = vmatprep.subr.mxu0 0.0
    %5848 = vmatpush1.msra.mxu0 0.0
    %5849 = vmatprep.subr.mxu0 0.0
    %5850 = vmatpush1.msra.mxu0 0.0
    %5851 = vmatprep.subr.mxu0 0.0
    %5852 = vmatpush1.msra.mxu0 0.0
    %5853 = vmatprep.subr.mxu0 0.0
    %5854 = vmatpush1.msra.mxu0 0.0
    %5855 = vmatprep.mubr.f32.mxu0 0.0
    %5856 = vmatmul.mubr.f32.gmra.mrb[0].mxu0 %v5789
    %v5857 = vpop.f32.mrb[0].mxu0
    %v5858 = vadd.f32 %v54, %v5857
    %v5859 = vpop.f32.mrb[0].mxu0
    %5860 = vdwg.mxu0
    %v5861 = vxor.u32 %v5858, 2147483648
    %v5862 = vmul.f32 %v5861, 1.442695
    %v5863 = vpow.pop %v5862
    %v5864 = vadd.f32 %v5863, 1.0
    %v5865 = vrcp.pop %v5864
    %v5866 = vmul.f32 1.0, %v5865
    %v5867 = vtanh.pop %v5858
    %v5868 = vmul.f32 %v5866, %v5552
    %5870 = vrot.lane.b32.xlu0 %v5867, 32
    %v5871 = vpop.permute.xlu0 %5870
    %v5873 = vmul.f32 %v5866, %v5871
    %5875 = vrot.lane.b32.xlu0 %v5873, 32
    %v5876 = vpop.permute.xlu0 %5875
    %v5878 = vadd.f32 %v5868, %v5876
    %v5879 = vtanh.pop %v5878
    %5881 = vrot.lane.b32.xlu0 %v5879, 32
    %v5882 = vpop.permute.xlu0 %5881
    %v5884 = vmul.f32 %v5866, %v5882
    %5886 = vrot.lane.b32.xlu0 %v5884, 64
    %v5887 = vpop.permute.xlu0 %5886
    %5889 = vrot.lane.b32.xlu0 %v5663, 96
    %v5890 = vpop.permute.xlu0 %5889
    %v5892 = vsel %vm72, %v5887, %v5890
    %v5894 = vsel %vm74, %v5892, 0
    %5896 = vmatprep.subr.mxu0 0.0
    %5897 = vmatpush1.msra.mxu0 %v46
    %5898 = vmatprep.subr.mxu0 0.0
    %5899 = vmatpush1.msra.mxu0 %v47
    %5900 = vmatprep.subr.mxu0 0.0
    %5901 = vmatpush1.msra.mxu0 %v48
    %5902 = vmatprep.subr.mxu0 0.0
    %5903 = vmatpush1.msra.mxu0 %v49
    %5904 = vmatprep.subr.mxu0 0.0
    %5905 = vmatpush1.msra.mxu0 %v50
    %5906 = vmatprep.subr.mxu0 0.0
    %5907 = vmatpush1.msra.mxu0 %v51
    %5908 = vmatprep.subr.mxu0 0.0
    %5909 = vmatpush1.msra.mxu0 %v52
    %5910 = vmatprep.subr.mxu0 0.0
    %5911 = vmatpush1.msra.mxu0 %v53
    %5912 = vmatprep.subr.mxu0 0.0
    %5913 = vmatpush1.msra.mxu0 0.0
    %5914 = vmatprep.subr.mxu0 0.0
    %5915 = vmatpush1.msra.mxu0 0.0
    %5916 = vmatprep.subr.mxu0 0.0
    %5917 = vmatpush1.msra.mxu0 0.0
    %5918 = vmatprep.subr.mxu0 0.0
    %5919 = vmatpush1.msra.mxu0 0.0
    %5920 = vmatprep.subr.mxu0 0.0
    %5921 = vmatpush1.msra.mxu0 0.0
    %5922 = vmatprep.subr.mxu0 0.0
    %5923 = vmatpush1.msra.mxu0 0.0
    %5924 = vmatprep.subr.mxu0 0.0
    %5925 = vmatpush1.msra.mxu0 0.0
    %5926 = vmatprep.subr.mxu0 0.0
    %5927 = vmatpush1.msra.mxu0 0.0
    %5928 = vmatprep.subr.mxu0 0.0
    %5929 = vmatpush1.msra.mxu0 0.0
    %5930 = vmatprep.subr.mxu0 0.0
    %5931 = vmatpush1.msra.mxu0 0.0
    %5932 = vmatprep.subr.mxu0 0.0
    %5933 = vmatpush1.msra.mxu0 0.0
    %5934 = vmatprep.subr.mxu0 0.0
    %5935 = vmatpush1.msra.mxu0 0.0
    %5936 = vmatprep.subr.mxu0 0.0
    %5937 = vmatpush1.msra.mxu0 0.0
    %5938 = vmatprep.subr.mxu0 0.0
    %5939 = vmatpush1.msra.mxu0 0.0
    %5940 = vmatprep.subr.mxu0 0.0
    %5941 = vmatpush1.msra.mxu0 0.0
    %5942 = vmatprep.subr.mxu0 0.0
    %5943 = vmatpush1.msra.mxu0 0.0
    %5944 = vmatprep.subr.mxu0 0.0
    %5945 = vmatpush1.msra.mxu0 0.0
    %5946 = vmatprep.subr.mxu0 0.0
    %5947 = vmatpush1.msra.mxu0 0.0
    %5948 = vmatprep.subr.mxu0 0.0
    %5949 = vmatpush1.msra.mxu0 0.0
    %5950 = vmatprep.subr.mxu0 0.0
    %5951 = vmatpush1.msra.mxu0 0.0
    %5952 = vmatprep.subr.mxu0 0.0
    %5953 = vmatpush1.msra.mxu0 0.0
    %5954 = vmatprep.subr.mxu0 0.0
    %5955 = vmatpush1.msra.mxu0 0.0
    %5956 = vmatprep.subr.mxu0 0.0
    %5957 = vmatpush1.msra.mxu0 0.0
    %5958 = vmatprep.subr.mxu0 0.0
    %5959 = vmatpush1.msra.mxu0 0.0
    %5960 = vmatprep.mubr.f32.mxu0 0.0
    %5961 = vmatmul.mubr.f32.gmra.mrb[0].mxu0 %v5894
    %v5962 = vpop.f32.mrb[0].mxu0
    %v5963 = vadd.f32 %v56, %v5962
    %v5964 = vpop.f32.mrb[0].mxu0
    %5965 = vdwg.mxu0
    %v5966 = vxor.u32 %v5963, 2147483648
    %v5967 = vmul.f32 %v5966, 1.442695
    %v5968 = vpow.pop %v5967
    %v5969 = vadd.f32 %v5968, 1.0
    %v5970 = vrcp.pop %v5969
    %v5971 = vmul.f32 1.0, %v5970
    %v5972 = vtanh.pop %v5963
    %v5973 = vmul.f32 %v5971, %v5657
    %5975 = vrot.lane.b32.xlu0 %v5972, 32
    %v5976 = vpop.permute.xlu0 %5975
    %v5978 = vmul.f32 %v5971, %v5976
    %5980 = vrot.lane.b32.xlu0 %v5978, 32
    %v5981 = vpop.permute.xlu0 %5980
    %v5983 = vadd.f32 %v5973, %v5981
    %v5984 = vtanh.pop %v5983
    %5986 = vrot.lane.b32.xlu0 %v5984, 32
    %v5987 = vpop.permute.xlu0 %5986
    %v5989 = vmul.f32 %v5971, %v5987
    %5991 = vrot.lane.b32.xlu0 %v5989, 64
    %v5992 = vpop.permute.xlu0 %5991
    %5993 = vrot.lane.b32.xlu0 %v57, 8
    %v5994 = vpop.permute.xlu0 %5993
    %5995 = vrot.lane.b32.xlu0 %v59, 8
    %v5996 = vpop.permute.xlu0 %5995
    %5997 = vrot.lane.b32.xlu0 %v61, 8
    %v5998 = vpop.permute.xlu0 %5997
    %5999 = vrot.lane.b32.xlu0 %v63, 8
    %v6000 = vpop.permute.xlu0 %5999
    %v6005 = vrot.slane %v66, 7
    %v6007 = vsel %vm72, %v5992, 0
    %6009 = vmatprep.subr.mxu0 0.0
    %6010 = vmatpush1.msra.mxu0 %v5994
    %6011 = vmatprep.subr.mxu0 0.0
    %6012 = vmatpush1.msra.mxu0 %v5996
    %6013 = vmatprep.subr.mxu0 0.0
    %6014 = vmatpush1.msra.mxu0 %v5998
    %6015 = vmatprep.subr.mxu0 0.0
    %6016 = vmatpush1.msra.mxu0 %v6000
    %6017 = vmatprep.subr.mxu0 0.0
    %6018 = vmatpush1.msra.mxu0 0.0
    %6019 = vmatprep.subr.mxu0 0.0
    %6020 = vmatpush1.msra.mxu0 0.0
    %6021 = vmatprep.subr.mxu0 0.0
    %6022 = vmatpush1.msra.mxu0 0.0
    %6023 = vmatprep.subr.mxu0 0.0
    %6024 = vmatpush1.msra.mxu0 0.0
    %6025 = vmatprep.subr.mxu0 0.0
    %6026 = vmatpush1.msra.mxu0 0.0
    %6027 = vmatprep.subr.mxu0 0.0
    %6028 = vmatpush1.msra.mxu0 0.0
    %6029 = vmatprep.subr.mxu0 0.0
    %6030 = vmatpush1.msra.mxu0 0.0
    %6031 = vmatprep.subr.mxu0 0.0
    %6032 = vmatpush1.msra.mxu0 0.0
    %6033 = vmatprep.subr.mxu0 0.0
    %6034 = vmatpush1.msra.mxu0 0.0
    %6035 = vmatprep.subr.mxu0 0.0
    %6036 = vmatpush1.msra.mxu0 0.0
    %6037 = vmatprep.subr.mxu0 0.0
    %6038 = vmatpush1.msra.mxu0 0.0
    %6039 = vmatprep.subr.mxu0 0.0
    %6040 = vmatpush1.msra.mxu0 0.0
    %6041 = vmatprep.subr.mxu0 0.0
    %6042 = vmatpush1.msra.mxu0 0.0
    %6043 = vmatprep.subr.mxu0 0.0
    %6044 = vmatpush1.msra.mxu0 0.0
    %6045 = vmatprep.subr.mxu0 0.0
    %6046 = vmatpush1.msra.mxu0 0.0
    %6047 = vmatprep.subr.mxu0 0.0
    %6048 = vmatpush1.msra.mxu0 0.0
    %6049 = vmatprep.subr.mxu0 0.0
    %6050 = vmatpush1.msra.mxu0 0.0
    %6051 = vmatprep.subr.mxu0 0.0
    %6052 = vmatpush1.msra.mxu0 0.0
    %6053 = vmatprep.subr.mxu0 0.0
    %6054 = vmatpush1.msra.mxu0 0.0
    %6055 = vmatprep.subr.mxu0 0.0
    %6056 = vmatpush1.msra.mxu0 0.0
    %6057 = vmatprep.subr.mxu0 0.0
    %6058 = vmatpush1.msra.mxu0 0.0
    %6059 = vmatprep.subr.mxu0 0.0
    %6060 = vmatpush1.msra.mxu0 0.0
    %6061 = vmatprep.subr.mxu0 0.0
    %6062 = vmatpush1.msra.mxu0 0.0
    %6063 = vmatprep.subr.mxu0 0.0
    %6064 = vmatpush1.msra.mxu0 0.0
    %6065 = vmatprep.subr.mxu0 0.0
    %6066 = vmatpush1.msra.mxu0 0.0
    %6067 = vmatprep.subr.mxu0 0.0
    %6068 = vmatpush1.msra.mxu0 0.0
    %6069 = vmatprep.subr.mxu0 0.0
    %6070 = vmatpush1.msra.mxu0 0.0
    %6071 = vmatprep.subr.mxu0 0.0
    %6072 = vmatpush1.msra.mxu0 0.0
    %6073 = vmatprep.mubr.f32.mxu0 0.0
    %6074 = vmatmul.mubr.f32.gmra.mrb[0].mxu0 %v6007
    %v6075 = vpop.f32.mrb[0].mxu0
    %v6076 = vadd.f32 %v6005, %v6075
    %v6077 = vpop.f32.mrb[0].mxu0
    %6078 = vdwg.mxu0
    %v6079 = vsel %vm1189, %v6076, -inf
    %6080 = vmax.xlane.f32.xlu0 %v6079
    %v6081 = vpop.xlane.xlu0 %6080
    %v6082 = vsub.f32 %v6076, %v6081
    %v6083 = vmul.f32 %v6082, 1.442695
    %v6084 = vpow.pop %v6083
    %v6085 = vsel %vm1189, %v6084, 0.0
    %6086 = vadd.xlane.f32.xlu0 %v6085
    %v6087 = vpop.xlane.xlu0 %6086
    %v6088 = vrcp.pop %v6087
    %v6089 = vmul.f32 %v6084, %v6088
    %v6090 = vlog2.pop %v6087
    %v6091 = vmul.f32 %v6090, 0.6931472
    %v6092 = vsub.f32 %v6082, %v6091
    %v6093 = vmul.f32 %v6089, %v6092
    %v6094 = vsel %vm1189, %v6093, 0.0
    %6095 = vadd.xlane.f32.xlu0 %v6094
    %v6096 = vpop.xlane.xlu0 %6095
    %v6097 = vsub.f32 %v5771, %v6096
    %v6099 = vrot.slane %v6092, 1
    %v6101 = vmul.f32 %v69, %v6099
    %v6102 = vsel %vm3500, %v6101, 0.0
    %6103 = vadd.xlane.f32.xlu0 %v6102
    %v6104 = vpop.xlane.xlu0 %6103
    %v6106 = vrot.slane %v6104, 7
    %v6108 = vadd.f32 %v5782, %v6106
    %6110 = vrot.lane.b32.xlu0 %v5884, 96
    %v6111 = vpop.permute.xlu0 %6110
    %v6113 = vsel %vm72, %v5992, %v6111
    %v6115 = vsel %vm74, %v6113, 0
    %6117 = vmatprep.subr.mxu0 0.0
    %6118 = vmatpush1.msra.mxu0 %v37
    %6119 = vmatprep.subr.mxu0 0.0
    %6120 = vmatpush1.msra.mxu0 %v38
    %6121 = vmatprep.subr.mxu0 0.0
    %6122 = vmatpush1.msra.mxu0 %v39
    %6123 = vmatprep.subr.mxu0 0.0
    %6124 = vmatpush1.msra.mxu0 %v40
    %6125 = vmatprep.subr.mxu0 0.0
    %6126 = vmatpush1.msra.mxu0 %v41
    %6127 = vmatprep.subr.mxu0 0.0
    %6128 = vmatpush1.msra.mxu0 %v42
    %6129 = vmatprep.subr.mxu0 0.0
    %6130 = vmatpush1.msra.mxu0 %v43
    %6131 = vmatprep.subr.mxu0 0.0
    %6132 = vmatpush1.msra.mxu0 %v44
    %6133 = vmatprep.subr.mxu0 0.0
    %6134 = vmatpush1.msra.mxu0 0.0
    %6135 = vmatprep.subr.mxu0 0.0
    %6136 = vmatpush1.msra.mxu0 0.0
    %6137 = vmatprep.subr.mxu0 0.0
    %6138 = vmatpush1.msra.mxu0 0.0
    %6139 = vmatprep.subr.mxu0 0.0
    %6140 = vmatpush1.msra.mxu0 0.0
    %6141 = vmatprep.subr.mxu0 0.0
    %6142 = vmatpush1.msra.mxu0 0.0
    %6143 = vmatprep.subr.mxu0 0.0
    %6144 = vmatpush1.msra.mxu0 0.0
    %6145 = vmatprep.subr.mxu0 0.0
    %6146 = vmatpush1.msra.mxu0 0.0
    %6147 = vmatprep.subr.mxu0 0.0
    %6148 = vmatpush1.msra.mxu0 0.0
    %6149 = vmatprep.subr.mxu0 0.0
    %6150 = vmatpush1.msra.mxu0 0.0
    %6151 = vmatprep.subr.mxu0 0.0
    %6152 = vmatpush1.msra.mxu0 0.0
    %6153 = vmatprep.subr.mxu0 0.0
    %6154 = vmatpush1.msra.mxu0 0.0
    %6155 = vmatprep.subr.mxu0 0.0
    %6156 = vmatpush1.msra.mxu0 0.0
    %6157 = vmatprep.subr.mxu0 0.0
    %6158 = vmatpush1.msra.mxu0 0.0
    %6159 = vmatprep.subr.mxu0 0.0
    %6160 = vmatpush1.msra.mxu0 0.0
    %6161 = vmatprep.subr.mxu0 0.0
    %6162 = vmatpush1.msra.mxu0 0.0
    %6163 = vmatprep.subr.mxu0 0.0
    %6164 = vmatpush1.msra.mxu0 0.0
    %6165 = vmatprep.subr.mxu0 0.0
    %6166 = vmatpush1.msra.mxu0 0.0
    %6167 = vmatprep.subr.mxu0 0.0
    %6168 = vmatpush1.msra.mxu0 0.0
    %6169 = vmatprep.subr.mxu0 0.0
    %6170 = vmatpush1.msra.mxu0 0.0
    %6171 = vmatprep.subr.mxu0 0.0
    %6172 = vmatpush1.msra.mxu0 0.0
    %6173 = vmatprep.subr.mxu0 0.0
    %6174 = vmatpush1.msra.mxu0 0.0
    %6175 = vmatprep.subr.mxu0 0.0
    %6176 = vmatpush1.msra.mxu0 0.0
    %6177 = vmatprep.subr.mxu0 0.0
    %6178 = vmatpush1.msra.mxu0 0.0
    %6179 = vmatprep.subr.mxu0 0.0
    %6180 = vmatpush1.msra.mxu0 0.0
    %6181 = vmatprep.mubr.f32.mxu0 0.0
    %6182 = vmatmul.mubr.f32.gmra.mrb[0].mxu0 %v6115
    %v6183 = vpop.f32.mrb[0].mxu0
    %v6184 = vadd.f32 %v54, %v6183
    %v6185 = vpop.f32.mrb[0].mxu0
    %6186 = vdwg.mxu0
    %v6187 = vxor.u32 %v6184, 2147483648
    %v6188 = vmul.f32 %v6187, 1.442695
    %v6189 = vpow.pop %v6188
    %v6190 = vadd.f32 %v6189, 1.0
    %v6191 = vrcp.pop %v6190
    %v6192 = vmul.f32 1.0, %v6191
    %v6193 = vtanh.pop %v6184
    %v6194 = vmul.f32 %v6192, %v5878
    %6196 = vrot.lane.b32.xlu0 %v6193, 32
    %v6197 = vpop.permute.xlu0 %6196
    %v6199 = vmul.f32 %v6192, %v6197
    %6201 = vrot.lane.b32.xlu0 %v6199, 32
    %v6202 = vpop.permute.xlu0 %6201
    %v6204 = vadd.f32 %v6194, %v6202
    %v6205 = vtanh.pop %v6204
    %6207 = vrot.lane.b32.xlu0 %v6205, 32
    %v6208 = vpop.permute.xlu0 %6207
    %v6210 = vmul.f32 %v6192, %v6208
    %6212 = vrot.lane.b32.xlu0 %v6210, 64
    %v6213 = vpop.permute.xlu0 %6212
    %6215 = vrot.lane.b32.xlu0 %v5989, 96
    %v6216 = vpop.permute.xlu0 %6215
    %v6218 = vsel %vm72, %v6213, %v6216
    %v6220 = vsel %vm74, %v6218, 0
    %6222 = vmatprep.subr.mxu0 0.0
    %6223 = vmatpush1.msra.mxu0 %v46
    %6224 = vmatprep.subr.mxu0 0.0
    %6225 = vmatpush1.msra.mxu0 %v47
    %6226 = vmatprep.subr.mxu0 0.0
    %6227 = vmatpush1.msra.mxu0 %v48
    %6228 = vmatprep.subr.mxu0 0.0
    %6229 = vmatpush1.msra.mxu0 %v49
    %6230 = vmatprep.subr.mxu0 0.0
    %6231 = vmatpush1.msra.mxu0 %v50
    %6232 = vmatprep.subr.mxu0 0.0
    %6233 = vmatpush1.msra.mxu0 %v51
    %6234 = vmatprep.subr.mxu0 0.0
    %6235 = vmatpush1.msra.mxu0 %v52
    %6236 = vmatprep.subr.mxu0 0.0
    %6237 = vmatpush1.msra.mxu0 %v53
    %6238 = vmatprep.subr.mxu0 0.0
    %6239 = vmatpush1.msra.mxu0 0.0
    %6240 = vmatprep.subr.mxu0 0.0
    %6241 = vmatpush1.msra.mxu0 0.0
    %6242 = vmatprep.subr.mxu0 0.0
    %6243 = vmatpush1.msra.mxu0 0.0
    %6244 = vmatprep.subr.mxu0 0.0
    %6245 = vmatpush1.msra.mxu0 0.0
    %6246 = vmatprep.subr.mxu0 0.0
    %6247 = vmatpush1.msra.mxu0 0.0
    %6248 = vmatprep.subr.mxu0 0.0
    %6249 = vmatpush1.msra.mxu0 0.0
    %6250 = vmatprep.subr.mxu0 0.0
    %6251 = vmatpush1.msra.mxu0 0.0
    %6252 = vmatprep.subr.mxu0 0.0
    %6253 = vmatpush1.msra.mxu0 0.0
    %6254 = vmatprep.subr.mxu0 0.0
    %6255 = vmatpush1.msra.mxu0 0.0
    %6256 = vmatprep.subr.mxu0 0.0
    %6257 = vmatpush1.msra.mxu0 0.0
    %6258 = vmatprep.subr.mxu0 0.0
    %6259 = vmatpush1.msra.mxu0 0.0
    %6260 = vmatprep.subr.mxu0 0.0
    %6261 = vmatpush1.msra.mxu0 0.0
    %6262 = vmatprep.subr.mxu0 0.0
    %6263 = vmatpush1.msra.mxu0 0.0
    %6264 = vmatprep.subr.mxu0 0.0
    %6265 = vmatpush1.msra.mxu0 0.0
    %6266 = vmatprep.subr.mxu0 0.0
    %6267 = vmatpush1.msra.mxu0 0.0
    %6268 = vmatprep.subr.mxu0 0.0
    %6269 = vmatpush1.msra.mxu0 0.0
    %6270 = vmatprep.subr.mxu0 0.0
    %6271 = vmatpush1.msra.mxu0 0.0
    %6272 = vmatprep.subr.mxu0 0.0
    %6273 = vmatpush1.msra.mxu0 0.0
    %6274 = vmatprep.subr.mxu0 0.0
    %6275 = vmatpush1.msra.mxu0 0.0
    %6276 = vmatprep.subr.mxu0 0.0
    %6277 = vmatpush1.msra.mxu0 0.0
    %6278 = vmatprep.subr.mxu0 0.0
    %6279 = vmatpush1.msra.mxu0 0.0
    %6280 = vmatprep.subr.mxu0 0.0
    %6281 = vmatpush1.msra.mxu0 0.0
    %6282 = vmatprep.subr.mxu0 0.0
    %6283 = vmatpush1.msra.mxu0 0.0
    %6284 = vmatprep.subr.mxu0 0.0
    %6285 = vmatpush1.msra.mxu0 0.0
    %6286 = vmatprep.mubr.f32.mxu0 0.0
    %6287 = vmatmul.mubr.f32.gmra.mrb[0].mxu0 %v6220
    %v6288 = vpop.f32.mrb[0].mxu0
    %v6289 = vadd.f32 %v56, %v6288
    %v6290 = vpop.f32.mrb[0].mxu0
    %6291 = vdwg.mxu0
    %v6292 = vxor.u32 %v6289, 2147483648
    %v6293 = vmul.f32 %v6292, 1.442695
    %v6294 = vpow.pop %v6293
    %v6295 = vadd.f32 %v6294, 1.0
    %v6296 = vrcp.pop %v6295
    %v6297 = vmul.f32 1.0, %v6296
    %v6298 = vtanh.pop %v6289
    %v6299 = vmul.f32 %v6297, %v5983
    %6301 = vrot.lane.b32.xlu0 %v6298, 32
    %v6302 = vpop.permute.xlu0 %6301
    %v6304 = vmul.f32 %v6297, %v6302
    %6306 = vrot.lane.b32.xlu0 %v6304, 32
    %v6307 = vpop.permute.xlu0 %6306
    %v6309 = vadd.f32 %v6299, %v6307
    %v6310 = vtanh.pop %v6309
    %6312 = vrot.lane.b32.xlu0 %v6310, 32
    %v6313 = vpop.permute.xlu0 %6312
    %v6315 = vmul.f32 %v6297, %v6313
    %6317 = vrot.lane.b32.xlu0 %v6315, 64
    %v6318 = vpop.permute.xlu0 %6317
    %v6319 = vsel %vm72, %v6318, 0
    %6321 = vmatprep.subr.mxu0 0.0
    %6322 = vmatpush1.msra.mxu0 %v58
    %6323 = vmatprep.subr.mxu0 0.0
    %6324 = vmatpush1.msra.mxu0 %v60
    %6325 = vmatprep.subr.mxu0 0.0
    %6326 = vmatpush1.msra.mxu0 %v62
    %6327 = vmatprep.subr.mxu0 0.0
    %6328 = vmatpush1.msra.mxu0 %v64
    %6329 = vmatprep.subr.mxu0 0.0
    %6330 = vmatpush1.msra.mxu0 0.0
    %6331 = vmatprep.subr.mxu0 0.0
    %6332 = vmatpush1.msra.mxu0 0.0
    %6333 = vmatprep.subr.mxu0 0.0
    %6334 = vmatpush1.msra.mxu0 0.0
    %6335 = vmatprep.subr.mxu0 0.0
    %6336 = vmatpush1.msra.mxu0 0.0
    %6337 = vmatprep.subr.mxu0 0.0
    %6338 = vmatpush1.msra.mxu0 0.0
    %6339 = vmatprep.subr.mxu0 0.0
    %6340 = vmatpush1.msra.mxu0 0.0
    %6341 = vmatprep.subr.mxu0 0.0
    %6342 = vmatpush1.msra.mxu0 0.0
    %6343 = vmatprep.subr.mxu0 0.0
    %6344 = vmatpush1.msra.mxu0 0.0
    %6345 = vmatprep.subr.mxu0 0.0
    %6346 = vmatpush1.msra.mxu0 0.0
    %6347 = vmatprep.subr.mxu0 0.0
    %6348 = vmatpush1.msra.mxu0 0.0
    %6349 = vmatprep.subr.mxu0 0.0
    %6350 = vmatpush1.msra.mxu0 0.0
    %6351 = vmatprep.subr.mxu0 0.0
    %6352 = vmatpush1.msra.mxu0 0.0
    %6353 = vmatprep.subr.mxu0 0.0
    %6354 = vmatpush1.msra.mxu0 0.0
    %6355 = vmatprep.subr.mxu0 0.0
    %6356 = vmatpush1.msra.mxu0 0.0
    %6357 = vmatprep.subr.mxu0 0.0
    %6358 = vmatpush1.msra.mxu0 0.0
    %6359 = vmatprep.subr.mxu0 0.0
    %6360 = vmatpush1.msra.mxu0 0.0
    %6361 = vmatprep.subr.mxu0 0.0
    %6362 = vmatpush1.msra.mxu0 0.0
    %6363 = vmatprep.subr.mxu0 0.0
    %6364 = vmatpush1.msra.mxu0 0.0
    %6365 = vmatprep.subr.mxu0 0.0
    %6366 = vmatpush1.msra.mxu0 0.0
    %6367 = vmatprep.subr.mxu0 0.0
    %6368 = vmatpush1.msra.mxu0 0.0
    %6369 = vmatprep.subr.mxu0 0.0
    %6370 = vmatpush1.msra.mxu0 0.0
    %6371 = vmatprep.subr.mxu0 0.0
    %6372 = vmatpush1.msra.mxu0 0.0
    %6373 = vmatprep.subr.mxu0 0.0
    %6374 = vmatpush1.msra.mxu0 0.0
    %6375 = vmatprep.subr.mxu0 0.0
    %6376 = vmatpush1.msra.mxu0 0.0
    %6377 = vmatprep.subr.mxu0 0.0
    %6378 = vmatpush1.msra.mxu0 0.0
    %6379 = vmatprep.subr.mxu0 0.0
    %6380 = vmatpush1.msra.mxu0 0.0
    %6381 = vmatprep.subr.mxu0 0.0
    %6382 = vmatpush1.msra.mxu0 0.0
    %6383 = vmatprep.subr.mxu0 0.0
    %6384 = vmatpush1.msra.mxu0 0.0
    %6385 = vmatprep.mubr.f32.mxu0 0.0
    %6386 = vmatmul.mubr.f32.gmra.mrb[0].mxu0 %v6319
    %v6387 = vpop.f32.mrb[0].mxu0
    %v6388 = vadd.f32 %v67, %v6387
    %v6389 = vpop.f32.mrb[0].mxu0
    %6390 = vdwg.mxu0
    %v6391 = vsel %vm1189, %v6388, -inf
    %6392 = vmax.xlane.f32.xlu0 %v6391
    %v6393 = vpop.xlane.xlu0 %6392
    %v6394 = vsub.f32 %v6388, %v6393
    %v6395 = vmul.f32 %v6394, 1.442695
    %v6396 = vpow.pop %v6395
    %v6397 = vsel %vm1189, %v6396, 0.0
    %6398 = vadd.xlane.f32.xlu0 %v6397
    %v6399 = vpop.xlane.xlu0 %6398
    %v6400 = vrcp.pop %v6399
    %v6401 = vmul.f32 %v6396, %v6400
    %v6402 = vlog2.pop %v6399
    %v6403 = vmul.f32 %v6402, 0.6931472
    %v6404 = vsub.f32 %v6394, %v6403
    %v6405 = vmul.f32 %v6401, %v6404
    %v6406 = vsel %vm1189, %v6405, 0.0
    %6407 = vadd.xlane.f32.xlu0 %v6406
    %v6408 = vpop.xlane.xlu0 %6407
    %v6409 = vsub.f32 %v6097, %v6408
    %v6410 = vmul.f32 %v70, %v6404
    %v6411 = vsel %vm1189, %v6410, 0.0
    %6412 = vadd.xlane.f32.xlu0 %v6411
    %v6413 = vpop.xlane.xlu0 %6412
    %v6414 = vadd.f32 %v6108, %v6413
    %6416 = vrot.lane.b32.xlu0 %v6210, 96
    %v6417 = vpop.permute.xlu0 %6416
    %v6419 = vsel %vm72, %v6318, %v6417
    %v6421 = vsel %vm74, %v6419, 0
    %6423 = vmatprep.subr.mxu0 0.0
    %6424 = vmatpush1.msra.mxu0 %v37
    %6425 = vmatprep.subr.mxu0 0.0
    %6426 = vmatpush1.msra.mxu0 %v38
    %6427 = vmatprep.subr.mxu0 0.0
    %6428 = vmatpush1.msra.mxu0 %v39
    %6429 = vmatprep.subr.mxu0 0.0
    %6430 = vmatpush1.msra.mxu0 %v40
    %6431 = vmatprep.subr.mxu0 0.0
    %6432 = vmatpush1.msra.mxu0 %v41
    %6433 = vmatprep.subr.mxu0 0.0
    %6434 = vmatpush1.msra.mxu0 %v42
    %6435 = vmatprep.subr.mxu0 0.0
    %6436 = vmatpush1.msra.mxu0 %v43
    %6437 = vmatprep.subr.mxu0 0.0
    %6438 = vmatpush1.msra.mxu0 %v44
    %6439 = vmatprep.subr.mxu0 0.0
    %6440 = vmatpush1.msra.mxu0 0.0
    %6441 = vmatprep.subr.mxu0 0.0
    %6442 = vmatpush1.msra.mxu0 0.0
    %6443 = vmatprep.subr.mxu0 0.0
    %6444 = vmatpush1.msra.mxu0 0.0
    %6445 = vmatprep.subr.mxu0 0.0
    %6446 = vmatpush1.msra.mxu0 0.0
    %6447 = vmatprep.subr.mxu0 0.0
    %6448 = vmatpush1.msra.mxu0 0.0
    %6449 = vmatprep.subr.mxu0 0.0
    %6450 = vmatpush1.msra.mxu0 0.0
    %6451 = vmatprep.subr.mxu0 0.0
    %6452 = vmatpush1.msra.mxu0 0.0
    %6453 = vmatprep.subr.mxu0 0.0
    %6454 = vmatpush1.msra.mxu0 0.0
    %6455 = vmatprep.subr.mxu0 0.0
    %6456 = vmatpush1.msra.mxu0 0.0
    %6457 = vmatprep.subr.mxu0 0.0
    %6458 = vmatpush1.msra.mxu0 0.0
    %6459 = vmatprep.subr.mxu0 0.0
    %6460 = vmatpush1.msra.mxu0 0.0
    %6461 = vmatprep.subr.mxu0 0.0
    %6462 = vmatpush1.msra.mxu0 0.0
    %6463 = vmatprep.subr.mxu0 0.0
    %6464 = vmatpush1.msra.mxu0 0.0
    %6465 = vmatprep.subr.mxu0 0.0
    %6466 = vmatpush1.msra.mxu0 0.0
    %6467 = vmatprep.subr.mxu0 0.0
    %6468 = vmatpush1.msra.mxu0 0.0
    %6469 = vmatprep.subr.mxu0 0.0
    %6470 = vmatpush1.msra.mxu0 0.0
    %6471 = vmatprep.subr.mxu0 0.0
    %6472 = vmatpush1.msra.mxu0 0.0
    %6473 = vmatprep.subr.mxu0 0.0
    %6474 = vmatpush1.msra.mxu0 0.0
    %6475 = vmatprep.subr.mxu0 0.0
    %6476 = vmatpush1.msra.mxu0 0.0
    %6477 = vmatprep.subr.mxu0 0.0
    %6478 = vmatpush1.msra.mxu0 0.0
    %6479 = vmatprep.subr.mxu0 0.0
    %6480 = vmatpush1.msra.mxu0 0.0
    %6481 = vmatprep.subr.mxu0 0.0
    %6482 = vmatpush1.msra.mxu0 0.0
    %6483 = vmatprep.subr.mxu0 0.0
    %6484 = vmatpush1.msra.mxu0 0.0
    %6485 = vmatprep.subr.mxu0 0.0
    %6486 = vmatpush1.msra.mxu0 0.0
    %6487 = vmatprep.mubr.f32.mxu0 0.0
    %6488 = vmatmul.mubr.f32.gmra.mrb[0].mxu0 %v6421
    %v6489 = vpop.f32.mrb[0].mxu0
    %v6490 = vadd.f32 %v54, %v6489
    %v6491 = vpop.f32.mrb[0].mxu0
    %6492 = vdwg.mxu0
    %v6493 = vxor.u32 %v6490, 2147483648
    %v6494 = vmul.f32 %v6493, 1.442695
    %v6495 = vpow.pop %v6494
    %v6496 = vadd.f32 %v6495, 1.0
    %v6497 = vrcp.pop %v6496
    %v6498 = vmul.f32 1.0, %v6497
    %v6499 = vtanh.pop %v6490
    %v6500 = vmul.f32 %v6498, %v6204
    %6502 = vrot.lane.b32.xlu0 %v6499, 32
    %v6503 = vpop.permute.xlu0 %6502
    %v6505 = vmul.f32 %v6498, %v6503
    %6507 = vrot.lane.b32.xlu0 %v6505, 32
    %v6508 = vpop.permute.xlu0 %6507
    %v6510 = vadd.f32 %v6500, %v6508
    %v6511 = vtanh.pop %v6510
    %6513 = vrot.lane.b32.xlu0 %v6511, 32
    %v6514 = vpop.permute.xlu0 %6513
    %v6516 = vmul.f32 %v6498, %v6514
    %6518 = vrot.lane.b32.xlu0 %v6516, 64
    %v6519 = vpop.permute.xlu0 %6518
    %6521 = vrot.lane.b32.xlu0 %v6315, 96
    %v6522 = vpop.permute.xlu0 %6521
    %v6524 = vsel %vm72, %v6519, %v6522
    %v6526 = vsel %vm74, %v6524, 0
    %6528 = vmatprep.subr.mxu0 0.0
    %6529 = vmatpush1.msra.mxu0 %v46
    %6530 = vmatprep.subr.mxu0 0.0
    %6531 = vmatpush1.msra.mxu0 %v47
    %6532 = vmatprep.subr.mxu0 0.0
    %6533 = vmatpush1.msra.mxu0 %v48
    %6534 = vmatprep.subr.mxu0 0.0
    %6535 = vmatpush1.msra.mxu0 %v49
    %6536 = vmatprep.subr.mxu0 0.0
    %6537 = vmatpush1.msra.mxu0 %v50
    %6538 = vmatprep.subr.mxu0 0.0
    %6539 = vmatpush1.msra.mxu0 %v51
    %6540 = vmatprep.subr.mxu0 0.0
    %6541 = vmatpush1.msra.mxu0 %v52
    %6542 = vmatprep.subr.mxu0 0.0
    %6543 = vmatpush1.msra.mxu0 %v53
    %6544 = vmatprep.subr.mxu0 0.0
    %6545 = vmatpush1.msra.mxu0 0.0
    %6546 = vmatprep.subr.mxu0 0.0
    %6547 = vmatpush1.msra.mxu0 0.0
    %6548 = vmatprep.subr.mxu0 0.0
    %6549 = vmatpush1.msra.mxu0 0.0
    %6550 = vmatprep.subr.mxu0 0.0
    %6551 = vmatpush1.msra.mxu0 0.0
    %6552 = vmatprep.subr.mxu0 0.0
    %6553 = vmatpush1.msra.mxu0 0.0
    %6554 = vmatprep.subr.mxu0 0.0
    %6555 = vmatpush1.msra.mxu0 0.0
    %6556 = vmatprep.subr.mxu0 0.0
    %6557 = vmatpush1.msra.mxu0 0.0
    %6558 = vmatprep.subr.mxu0 0.0
    %6559 = vmatpush1.msra.mxu0 0.0
    %6560 = vmatprep.subr.mxu0 0.0
    %6561 = vmatpush1.msra.mxu0 0.0
    %6562 = vmatprep.subr.mxu0 0.0
    %6563 = vmatpush1.msra.mxu0 0.0
    %6564 = vmatprep.subr.mxu0 0.0
    %6565 = vmatpush1.msra.mxu0 0.0
    %6566 = vmatprep.subr.mxu0 0.0
    %6567 = vmatpush1.msra.mxu0 0.0
    %6568 = vmatprep.subr.mxu0 0.0
    %6569 = vmatpush1.msra.mxu0 0.0
    %6570 = vmatprep.subr.mxu0 0.0
    %6571 = vmatpush1.msra.mxu0 0.0
    %6572 = vmatprep.subr.mxu0 0.0
    %6573 = vmatpush1.msra.mxu0 0.0
    %6574 = vmatprep.subr.mxu0 0.0
    %6575 = vmatpush1.msra.mxu0 0.0
    %6576 = vmatprep.subr.mxu0 0.0
    %6577 = vmatpush1.msra.mxu0 0.0
    %6578 = vmatprep.subr.mxu0 0.0
    %6579 = vmatpush1.msra.mxu0 0.0
    %6580 = vmatprep.subr.mxu0 0.0
    %6581 = vmatpush1.msra.mxu0 0.0
    %6582 = vmatprep.subr.mxu0 0.0
    %6583 = vmatpush1.msra.mxu0 0.0
    %6584 = vmatprep.subr.mxu0 0.0
    %6585 = vmatpush1.msra.mxu0 0.0
    %6586 = vmatprep.subr.mxu0 0.0
    %6587 = vmatpush1.msra.mxu0 0.0
    %6588 = vmatprep.subr.mxu0 0.0
    %6589 = vmatpush1.msra.mxu0 0.0
    %6590 = vmatprep.subr.mxu0 0.0
    %6591 = vmatpush1.msra.mxu0 0.0
    %6592 = vmatprep.mubr.f32.mxu0 0.0
    %6593 = vmatmul.mubr.f32.gmra.mrb[0].mxu0 %v6526
    %v6594 = vpop.f32.mrb[0].mxu0
    %v6595 = vadd.f32 %v56, %v6594
    %v6596 = vpop.f32.mrb[0].mxu0
    %6597 = vdwg.mxu0
    %v6598 = vxor.u32 %v6595, 2147483648
    %v6599 = vmul.f32 %v6598, 1.442695
    %v6600 = vpow.pop %v6599
    %v6601 = vadd.f32 %v6600, 1.0
    %v6602 = vrcp.pop %v6601
    %v6603 = vmul.f32 1.0, %v6602
    %v6604 = vtanh.pop %v6595
    %v6605 = vmul.f32 %v6603, %v6309
    %6607 = vrot.lane.b32.xlu0 %v6604, 32
    %v6608 = vpop.permute.xlu0 %6607
    %v6610 = vmul.f32 %v6603, %v6608
    %6612 = vrot.lane.b32.xlu0 %v6610, 32
    %v6613 = vpop.permute.xlu0 %6612
    %v6615 = vadd.f32 %v6605, %v6613
    %v6616 = vtanh.pop %v6615
    %6618 = vrot.lane.b32.xlu0 %v6616, 32
    %v6619 = vpop.permute.xlu0 %6618
    %v6621 = vmul.f32 %v6603, %v6619
    %6623 = vrot.lane.b32.xlu0 %v6621, 64
    %v6624 = vpop.permute.xlu0 %6623
    %6629 = vrot.lane.b32.xlu0 %v58, 120
    %v6630 = vpop.permute.xlu0 %6629
    %6631 = vrot.lane.b32.xlu0 %v60, 120
    %v6632 = vpop.permute.xlu0 %6631
    %6633 = vrot.lane.b32.xlu0 %v62, 120
    %v6634 = vpop.permute.xlu0 %6633
    %6635 = vrot.lane.b32.xlu0 %v64, 120
    %v6636 = vpop.permute.xlu0 %6635
    %v6642 = vrot.slane %v67, 1
    %v6644 = vsel %vm72, %v6624, 0
    %6646 = vmatprep.subr.mxu0 0.0
    %6647 = vmatpush1.msra.mxu0 %v6630
    %6648 = vmatprep.subr.mxu0 0.0
    %6649 = vmatpush1.msra.mxu0 %v6632
    %6650 = vmatprep.subr.mxu0 0.0
    %6651 = vmatpush1.msra.mxu0 %v6634
    %6652 = vmatprep.subr.mxu0 0.0
    %6653 = vmatpush1.msra.mxu0 %v6636
    %6654 = vmatprep.subr.mxu0 0.0
    %6655 = vmatpush1.msra.mxu0 0.0
    %6656 = vmatprep.subr.mxu0 0.0
    %6657 = vmatpush1.msra.mxu0 0.0
    %6658 = vmatprep.subr.mxu0 0.0
    %6659 = vmatpush1.msra.mxu0 0.0
    %6660 = vmatprep.subr.mxu0 0.0
    %6661 = vmatpush1.msra.mxu0 0.0
    %6662 = vmatprep.subr.mxu0 0.0
    %6663 = vmatpush1.msra.mxu0 0.0
    %6664 = vmatprep.subr.mxu0 0.0
    %6665 = vmatpush1.msra.mxu0 0.0
    %6666 = vmatprep.subr.mxu0 0.0
    %6667 = vmatpush1.msra.mxu0 0.0
    %6668 = vmatprep.subr.mxu0 0.0
    %6669 = vmatpush1.msra.mxu0 0.0
    %6670 = vmatprep.subr.mxu0 0.0
    %6671 = vmatpush1.msra.mxu0 0.0
    %6672 = vmatprep.subr.mxu0 0.0
    %6673 = vmatpush1.msra.mxu0 0.0
    %6674 = vmatprep.subr.mxu0 0.0
    %6675 = vmatpush1.msra.mxu0 0.0
    %6676 = vmatprep.subr.mxu0 0.0
    %6677 = vmatpush1.msra.mxu0 0.0
    %6678 = vmatprep.subr.mxu0 0.0
    %6679 = vmatpush1.msra.mxu0 0.0
    %6680 = vmatprep.subr.mxu0 0.0
    %6681 = vmatpush1.msra.mxu0 0.0
    %6682 = vmatprep.subr.mxu0 0.0
    %6683 = vmatpush1.msra.mxu0 0.0
    %6684 = vmatprep.subr.mxu0 0.0
    %6685 = vmatpush1.msra.mxu0 0.0
    %6686 = vmatprep.subr.mxu0 0.0
    %6687 = vmatpush1.msra.mxu0 0.0
    %6688 = vmatprep.subr.mxu0 0.0
    %6689 = vmatpush1.msra.mxu0 0.0
    %6690 = vmatprep.subr.mxu0 0.0
    %6691 = vmatpush1.msra.mxu0 0.0
    %6692 = vmatprep.subr.mxu0 0.0
    %6693 = vmatpush1.msra.mxu0 0.0
    %6694 = vmatprep.subr.mxu0 0.0
    %6695 = vmatpush1.msra.mxu0 0.0
    %6696 = vmatprep.subr.mxu0 0.0
    %6697 = vmatpush1.msra.mxu0 0.0
    %6698 = vmatprep.subr.mxu0 0.0
    %6699 = vmatpush1.msra.mxu0 0.0
    %6700 = vmatprep.subr.mxu0 0.0
    %6701 = vmatpush1.msra.mxu0 0.0
    %6702 = vmatprep.subr.mxu0 0.0
    %6703 = vmatpush1.msra.mxu0 0.0
    %6704 = vmatprep.subr.mxu0 0.0
    %6705 = vmatpush1.msra.mxu0 0.0
    %6706 = vmatprep.subr.mxu0 0.0
    %6707 = vmatpush1.msra.mxu0 0.0
    %6708 = vmatprep.subr.mxu0 0.0
    %6709 = vmatpush1.msra.mxu0 0.0
    %6710 = vmatprep.mubr.f32.mxu0 0.0
    %6711 = vmatmul.mubr.f32.gmra.mrb[0].mxu0 %v6644
    %v6712 = vpop.f32.mrb[0].mxu0
    %v6713 = vadd.f32 %v6642, %v6712
    %v6714 = vpop.f32.mrb[0].mxu0
    %6715 = vdwg.mxu0
    %v6716 = vsel %vm1189, %v6713, -inf
    %6717 = vmax.xlane.f32.xlu0 %v6716
    %v6718 = vpop.xlane.xlu0 %6717
    %v6719 = vsub.f32 %v6713, %v6718
    %v6720 = vmul.f32 %v6719, 1.442695
    %v6721 = vpow.pop %v6720
    %v6722 = vsel %vm1189, %v6721, 0.0
    %6723 = vadd.xlane.f32.xlu0 %v6722
    %v6724 = vpop.xlane.xlu0 %6723
    %v6725 = vrcp.pop %v6724
    %v6726 = vmul.f32 %v6721, %v6725
    %v6727 = vlog2.pop %v6724
    %v6728 = vmul.f32 %v6727, 0.6931472
    %v6729 = vsub.f32 %v6719, %v6728
    %v6730 = vmul.f32 %v6726, %v6729
    %v6731 = vsel %vm1189, %v6730, 0.0
    %6732 = vadd.xlane.f32.xlu0 %v6731
    %v6733 = vpop.xlane.xlu0 %6732
    %v6734 = vsub.f32 %v6409, %v6733
    %v6736 = vrot.slane %v6729, 7
    %v6738 = vmul.f32 %v70, %v6736
    %v6739 = vsel %vm1538, %v6738, 0.0
    %6740 = vadd.xlane.f32.xlu0 %v6739
    %v6741 = vpop.xlane.xlu0 %6740
    %v6743 = vrot.slane %v6741, 1
    %v6745 = vadd.f32 %v6414, %v6743
    %6747 = vrot.lane.b32.xlu0 %v6516, 96
    %v6748 = vpop.permute.xlu0 %6747
    %v6750 = vsel %vm72, %v6624, %v6748
    %v6752 = vsel %vm74, %v6750, 0
    %6754 = vmatprep.subr.mxu0 0.0
    %6755 = vmatpush1.msra.mxu0 %v37
    %6756 = vmatprep.subr.mxu0 0.0
    %6757 = vmatpush1.msra.mxu0 %v38
    %6758 = vmatprep.subr.mxu0 0.0
    %6759 = vmatpush1.msra.mxu0 %v39
    %6760 = vmatprep.subr.mxu0 0.0
    %6761 = vmatpush1.msra.mxu0 %v40
    %6762 = vmatprep.subr.mxu0 0.0
    %6763 = vmatpush1.msra.mxu0 %v41
    %6764 = vmatprep.subr.mxu0 0.0
    %6765 = vmatpush1.msra.mxu0 %v42
    %6766 = vmatprep.subr.mxu0 0.0
    %6767 = vmatpush1.msra.mxu0 %v43
    %6768 = vmatprep.subr.mxu0 0.0
    %6769 = vmatpush1.msra.mxu0 %v44
    %6770 = vmatprep.subr.mxu0 0.0
    %6771 = vmatpush1.msra.mxu0 0.0
    %6772 = vmatprep.subr.mxu0 0.0
    %6773 = vmatpush1.msra.mxu0 0.0
    %6774 = vmatprep.subr.mxu0 0.0
    %6775 = vmatpush1.msra.mxu0 0.0
    %6776 = vmatprep.subr.mxu0 0.0
    %6777 = vmatpush1.msra.mxu0 0.0
    %6778 = vmatprep.subr.mxu0 0.0
    %6779 = vmatpush1.msra.mxu0 0.0
    %6780 = vmatprep.subr.mxu0 0.0
    %6781 = vmatpush1.msra.mxu0 0.0
    %6782 = vmatprep.subr.mxu0 0.0
    %6783 = vmatpush1.msra.mxu0 0.0
    %6784 = vmatprep.subr.mxu0 0.0
    %6785 = vmatpush1.msra.mxu0 0.0
    %6786 = vmatprep.subr.mxu0 0.0
    %6787 = vmatpush1.msra.mxu0 0.0
    %6788 = vmatprep.subr.mxu0 0.0
    %6789 = vmatpush1.msra.mxu0 0.0
    %6790 = vmatprep.subr.mxu0 0.0
    %6791 = vmatpush1.msra.mxu0 0.0
    %6792 = vmatprep.subr.mxu0 0.0
    %6793 = vmatpush1.msra.mxu0 0.0
    %6794 = vmatprep.subr.mxu0 0.0
    %6795 = vmatpush1.msra.mxu0 0.0
    %6796 = vmatprep.subr.mxu0 0.0
    %6797 = vmatpush1.msra.mxu0 0.0
    %6798 = vmatprep.subr.mxu0 0.0
    %6799 = vmatpush1.msra.mxu0 0.0
    %6800 = vmatprep.subr.mxu0 0.0
    %6801 = vmatpush1.msra.mxu0 0.0
    %6802 = vmatprep.subr.mxu0 0.0
    %6803 = vmatpush1.msra.mxu0 0.0
    %6804 = vmatprep.subr.mxu0 0.0
    %6805 = vmatpush1.msra.mxu0 0.0
    %6806 = vmatprep.subr.mxu0 0.0
    %6807 = vmatpush1.msra.mxu0 0.0
    %6808 = vmatprep.subr.mxu0 0.0
    %6809 = vmatpush1.msra.mxu0 0.0
    %6810 = vmatprep.subr.mxu0 0.0
    %6811 = vmatpush1.msra.mxu0 0.0
    %6812 = vmatprep.subr.mxu0 0.0
    %6813 = vmatpush1.msra.mxu0 0.0
    %6814 = vmatprep.subr.mxu0 0.0
    %6815 = vmatpush1.msra.mxu0 0.0
    %6816 = vmatprep.subr.mxu0 0.0
    %6817 = vmatpush1.msra.mxu0 0.0
    %6818 = vmatprep.mubr.f32.mxu0 0.0
    %6819 = vmatmul.mubr.f32.gmra.mrb[0].mxu0 %v6752
    %v6820 = vpop.f32.mrb[0].mxu0
    %v6821 = vadd.f32 %v54, %v6820
    %v6822 = vpop.f32.mrb[0].mxu0
    %6823 = vdwg.mxu0
    %v6824 = vxor.u32 %v6821, 2147483648
    %v6825 = vmul.f32 %v6824, 1.442695
    %v6826 = vpow.pop %v6825
    %v6827 = vadd.f32 %v6826, 1.0
    %v6828 = vrcp.pop %v6827
    %v6829 = vmul.f32 1.0, %v6828
    %v6830 = vtanh.pop %v6821
    %v6831 = vmul.f32 %v6829, %v6510
    %6833 = vrot.lane.b32.xlu0 %v6830, 32
    %v6834 = vpop.permute.xlu0 %6833
    %v6836 = vmul.f32 %v6829, %v6834
    %6838 = vrot.lane.b32.xlu0 %v6836, 32
    %v6839 = vpop.permute.xlu0 %6838
    %v6841 = vadd.f32 %v6831, %v6839
    %v6842 = vtanh.pop %v6841
    %6844 = vrot.lane.b32.xlu0 %v6842, 32
    %v6845 = vpop.permute.xlu0 %6844
    %v6847 = vmul.f32 %v6829, %v6845
    %6849 = vrot.lane.b32.xlu0 %v6847, 64
    %v6850 = vpop.permute.xlu0 %6849
    %6852 = vrot.lane.b32.xlu0 %v6621, 96
    %v6853 = vpop.permute.xlu0 %6852
    %v6855 = vsel %vm72, %v6850, %v6853
    %v6857 = vsel %vm74, %v6855, 0
    %6859 = vmatprep.subr.mxu0 0.0
    %6860 = vmatpush1.msra.mxu0 %v46
    %6861 = vmatprep.subr.mxu0 0.0
    %6862 = vmatpush1.msra.mxu0 %v47
    %6863 = vmatprep.subr.mxu0 0.0
    %6864 = vmatpush1.msra.mxu0 %v48
    %6865 = vmatprep.subr.mxu0 0.0
    %6866 = vmatpush1.msra.mxu0 %v49
    %6867 = vmatprep.subr.mxu0 0.0
    %6868 = vmatpush1.msra.mxu0 %v50
    %6869 = vmatprep.subr.mxu0 0.0
    %6870 = vmatpush1.msra.mxu0 %v51
    %6871 = vmatprep.subr.mxu0 0.0
    %6872 = vmatpush1.msra.mxu0 %v52
    %6873 = vmatprep.subr.mxu0 0.0
    %6874 = vmatpush1.msra.mxu0 %v53
    %6875 = vmatprep.subr.mxu0 0.0
    %6876 = vmatpush1.msra.mxu0 0.0
    %6877 = vmatprep.subr.mxu0 0.0
    %6878 = vmatpush1.msra.mxu0 0.0
    %6879 = vmatprep.subr.mxu0 0.0
    %6880 = vmatpush1.msra.mxu0 0.0
    %6881 = vmatprep.subr.mxu0 0.0
    %6882 = vmatpush1.msra.mxu0 0.0
    %6883 = vmatprep.subr.mxu0 0.0
    %6884 = vmatpush1.msra.mxu0 0.0
    %6885 = vmatprep.subr.mxu0 0.0
    %6886 = vmatpush1.msra.mxu0 0.0
    %6887 = vmatprep.subr.mxu0 0.0
    %6888 = vmatpush1.msra.mxu0 0.0
    %6889 = vmatprep.subr.mxu0 0.0
    %6890 = vmatpush1.msra.mxu0 0.0
    %6891 = vmatprep.subr.mxu0 0.0
    %6892 = vmatpush1.msra.mxu0 0.0
    %6893 = vmatprep.subr.mxu0 0.0
    %6894 = vmatpush1.msra.mxu0 0.0
    %6895 = vmatprep.subr.mxu0 0.0
    %6896 = vmatpush1.msra.mxu0 0.0
    %6897 = vmatprep.subr.mxu0 0.0
    %6898 = vmatpush1.msra.mxu0 0.0
    %6899 = vmatprep.subr.mxu0 0.0
    %6900 = vmatpush1.msra.mxu0 0.0
    %6901 = vmatprep.subr.mxu0 0.0
    %6902 = vmatpush1.msra.mxu0 0.0
    %6903 = vmatprep.subr.mxu0 0.0
    %6904 = vmatpush1.msra.mxu0 0.0
    %6905 = vmatprep.subr.mxu0 0.0
    %6906 = vmatpush1.msra.mxu0 0.0
    %6907 = vmatprep.subr.mxu0 0.0
    %6908 = vmatpush1.msra.mxu0 0.0
    %6909 = vmatprep.subr.mxu0 0.0
    %6910 = vmatpush1.msra.mxu0 0.0
    %6911 = vmatprep.subr.mxu0 0.0
    %6912 = vmatpush1.msra.mxu0 0.0
    %6913 = vmatprep.subr.mxu0 0.0
    %6914 = vmatpush1.msra.mxu0 0.0
    %6915 = vmatprep.subr.mxu0 0.0
    %6916 = vmatpush1.msra.mxu0 0.0
    %6917 = vmatprep.subr.mxu0 0.0
    %6918 = vmatpush1.msra.mxu0 0.0
    %6919 = vmatprep.subr.mxu0 0.0
    %6920 = vmatpush1.msra.mxu0 0.0
    %6921 = vmatprep.subr.mxu0 0.0
    %6922 = vmatpush1.msra.mxu0 0.0
    %6923 = vmatprep.mubr.f32.mxu0 0.0
    %6924 = vmatmul.mubr.f32.gmra.mrb[0].mxu0 %v6857
    %v6925 = vpop.f32.mrb[0].mxu0
    %v6926 = vadd.f32 %v56, %v6925
    %v6927 = vpop.f32.mrb[0].mxu0
    %6928 = vdwg.mxu0
    %v6929 = vxor.u32 %v6926, 2147483648
    %v6930 = vmul.f32 %v6929, 1.442695
    %v6931 = vpow.pop %v6930
    %v6932 = vadd.f32 %v6931, 1.0
    %v6933 = vrcp.pop %v6932
    %v6934 = vmul.f32 1.0, %v6933
    %v6935 = vtanh.pop %v6926
    %v6936 = vmul.f32 %v6934, %v6615
    %6938 = vrot.lane.b32.xlu0 %v6935, 32
    %v6939 = vpop.permute.xlu0 %6938
    %v6941 = vmul.f32 %v6934, %v6939
    %6943 = vrot.lane.b32.xlu0 %v6941, 32
    %v6944 = vpop.permute.xlu0 %6943
    %v6946 = vadd.f32 %v6936, %v6944
    %v6947 = vtanh.pop %v6946
    %6949 = vrot.lane.b32.xlu0 %v6947, 32
    %v6950 = vpop.permute.xlu0 %6949
    %v6952 = vmul.f32 %v6934, %v6950
    %6954 = vrot.lane.b32.xlu0 %v6952, 64
    %v6955 = vpop.permute.xlu0 %6954
    %6956 = vrot.lane.b32.xlu0 %v58, 112
    %v6957 = vpop.permute.xlu0 %6956
    %6958 = vrot.lane.b32.xlu0 %v60, 112
    %v6959 = vpop.permute.xlu0 %6958
    %6960 = vrot.lane.b32.xlu0 %v62, 112
    %v6961 = vpop.permute.xlu0 %6960
    %6962 = vrot.lane.b32.xlu0 %v64, 112
    %v6963 = vpop.permute.xlu0 %6962
    %v6968 = vrot.slane %v67, 2
    %v6970 = vsel %vm72, %v6955, 0
    %6972 = vmatprep.subr.mxu0 0.0
    %6973 = vmatpush1.msra.mxu0 %v6957
    %6974 = vmatprep.subr.mxu0 0.0
    %6975 = vmatpush1.msra.mxu0 %v6959
    %6976 = vmatprep.subr.mxu0 0.0
    %6977 = vmatpush1.msra.mxu0 %v6961
    %6978 = vmatprep.subr.mxu0 0.0
    %6979 = vmatpush1.msra.mxu0 %v6963
    %6980 = vmatprep.subr.mxu0 0.0
    %6981 = vmatpush1.msra.mxu0 0.0
    %6982 = vmatprep.subr.mxu0 0.0
    %6983 = vmatpush1.msra.mxu0 0.0
    %6984 = vmatprep.subr.mxu0 0.0
    %6985 = vmatpush1.msra.mxu0 0.0
    %6986 = vmatprep.subr.mxu0 0.0
    %6987 = vmatpush1.msra.mxu0 0.0
    %6988 = vmatprep.subr.mxu0 0.0
    %6989 = vmatpush1.msra.mxu0 0.0
    %6990 = vmatprep.subr.mxu0 0.0
    %6991 = vmatpush1.msra.mxu0 0.0
    %6992 = vmatprep.subr.mxu0 0.0
    %6993 = vmatpush1.msra.mxu0 0.0
    %6994 = vmatprep.subr.mxu0 0.0
    %6995 = vmatpush1.msra.mxu0 0.0
    %6996 = vmatprep.subr.mxu0 0.0
    %6997 = vmatpush1.msra.mxu0 0.0
    %6998 = vmatprep.subr.mxu0 0.0
    %6999 = vmatpush1.msra.mxu0 0.0
    %7000 = vmatprep.subr.mxu0 0.0
    %7001 = vmatpush1.msra.mxu0 0.0
    %7002 = vmatprep.subr.mxu0 0.0
    %7003 = vmatpush1.msra.mxu0 0.0
    %7004 = vmatprep.subr.mxu0 0.0
    %7005 = vmatpush1.msra.mxu0 0.0
    %7006 = vmatprep.subr.mxu0 0.0
    %7007 = vmatpush1.msra.mxu0 0.0
    %7008 = vmatprep.subr.mxu0 0.0
    %7009 = vmatpush1.msra.mxu0 0.0
    %7010 = vmatprep.subr.mxu0 0.0
    %7011 = vmatpush1.msra.mxu0 0.0
    %7012 = vmatprep.subr.mxu0 0.0
    %7013 = vmatpush1.msra.mxu0 0.0
    %7014 = vmatprep.subr.mxu0 0.0
    %7015 = vmatpush1.msra.mxu0 0.0
    %7016 = vmatprep.subr.mxu0 0.0
    %7017 = vmatpush1.msra.mxu0 0.0
    %7018 = vmatprep.subr.mxu0 0.0
    %7019 = vmatpush1.msra.mxu0 0.0
    %7020 = vmatprep.subr.mxu0 0.0
    %7021 = vmatpush1.msra.mxu0 0.0
    %7022 = vmatprep.subr.mxu0 0.0
    %7023 = vmatpush1.msra.mxu0 0.0
    %7024 = vmatprep.subr.mxu0 0.0
    %7025 = vmatpush1.msra.mxu0 0.0
    %7026 = vmatprep.subr.mxu0 0.0
    %7027 = vmatpush1.msra.mxu0 0.0
    %7028 = vmatprep.subr.mxu0 0.0
    %7029 = vmatpush1.msra.mxu0 0.0
    %7030 = vmatprep.subr.mxu0 0.0
    %7031 = vmatpush1.msra.mxu0 0.0
    %7032 = vmatprep.subr.mxu0 0.0
    %7033 = vmatpush1.msra.mxu0 0.0
    %7034 = vmatprep.subr.mxu0 0.0
    %7035 = vmatpush1.msra.mxu0 0.0
    %7036 = vmatprep.mubr.f32.mxu0 0.0
    %7037 = vmatmul.mubr.f32.gmra.mrb[0].mxu0 %v6970
    %v7038 = vpop.f32.mrb[0].mxu0
    %v7039 = vadd.f32 %v6968, %v7038
    %v7040 = vpop.f32.mrb[0].mxu0
    %7041 = vdwg.mxu0
    %v7042 = vsel %vm1189, %v7039, -inf
    %7043 = vmax.xlane.f32.xlu0 %v7042
    %v7044 = vpop.xlane.xlu0 %7043
    %v7045 = vsub.f32 %v7039, %v7044
    %v7046 = vmul.f32 %v7045, 1.442695
    %v7047 = vpow.pop %v7046
    %v7048 = vsel %vm1189, %v7047, 0.0
    %7049 = vadd.xlane.f32.xlu0 %v7048
    %v7050 = vpop.xlane.xlu0 %7049
    %v7051 = vrcp.pop %v7050
    %v7052 = vmul.f32 %v7047, %v7051
    %v7053 = vlog2.pop %v7050
    %v7054 = vmul.f32 %v7053, 0.6931472
    %v7055 = vsub.f32 %v7045, %v7054
    %v7056 = vmul.f32 %v7052, %v7055
    %v7057 = vsel %vm1189, %v7056, 0.0
    %7058 = vadd.xlane.f32.xlu0 %v7057
    %v7059 = vpop.xlane.xlu0 %7058
    %v7060 = vsub.f32 %v6734, %v7059
    %v7062 = vrot.slane %v7055, 6
    %v7064 = vmul.f32 %v70, %v7062
    %v7065 = vsel %vm1865, %v7064, 0.0
    %7066 = vadd.xlane.f32.xlu0 %v7065
    %v7067 = vpop.xlane.xlu0 %7066
    %v7069 = vrot.slane %v7067, 2
    %v7071 = vadd.f32 %v6745, %v7069
    %7073 = vrot.lane.b32.xlu0 %v7071, 1
    %v7074 = vpop.permute.xlu0 %7073
    %vm7076 = vcmask 7168
    %v7077 = vsel %vm7076, %v7060, %v7074
    %vm7078 = vcmask 8192
    %7079 = vst.msk [vmem:[%s6] sm:$0x1] %vm7078, %v7077
    // Predicated region
    $region30: #{micro_controller_evaluate.1} parent=1 // pred_check
      _
    $region31: #{micro_controller_evaluate.1} parent=1 // pred_check_branch
      %7081 = sbr.rel (0) target = $region33
    $region32: #{micro_controller_evaluate.1} parent=1 // pred_region
      _
    $region33: #{micro_controller_evaluate.1} parent=1 // pred_fallthru
      _
    // Predicated region
    $region34: #{micro_controller_evaluate.1} parent=1 // pred_check
      _
    $region35: #{micro_controller_evaluate.1} parent=1 // pred_check_branch
      %7083 = sbr.rel (0) target = $region37
    $region36: #{micro_controller_evaluate.1} parent=1 // pred_region
      _
    $region37: #{micro_controller_evaluate.1} parent=1 // pred_fallthru
      _
    %7084 = vsyncpa [#allocation3], 1

</llo_original>
